<compile_context>
chip_gen: v7x
topology: tpu7x:2x2x1
jax: 0.10.0
libtpu: 0.0.40
codegen_flags: <defaults>
</compile_context>

<pallas_src>
import math

import jax
import jax.numpy as jnp
from jax.experimental import pallas as pl
from jax.experimental.pallas import tpu as pltpu

_INV_SQRT2 = 1.0 / math.sqrt(2.0)
_LN_EPS = 1e-5  # torch.nn.LayerNorm default


def _layernorm_2d(v, gamma, beta):
    # v: (M, d), gamma/beta: (1, d)
    mu = jnp.mean(v, axis=-1, keepdims=True)
    vc = v - mu
    var = jnp.mean(vc * vc, axis=-1, keepdims=True)
    return vc * jax.lax.rsqrt(var + _LN_EPS) * gamma + beta


def _block_kernel(x_ref, wq_ref, wk_ref, wv_ref, wproj_ref, bproj_ref,
                  w1_ref, b1_ref, w2_ref, b2_ref,
                  ln1g_ref, ln1b_ref, ln2g_ref, ln2b_ref, o_ref):
    # x_ref:     (tb, N, d)
    # wq/wk/wv:  (heads, d, dh)     wproj: (heads, dh, d)   bproj: (1, d)
    # w1: (d, 4d)  b1: (1, 4d)      w2: (4d, d)  b2: (1, d)
    # ln*g/ln*b: (1, d)             o_ref: (tb, N, d)
    tb, n, d = x_ref.shape
    heads = wq_ref.shape[0]
    dh = wq_ref.shape[-1]
    m = tb * n
    scale = 1.0 / math.sqrt(dh)

    x = x_ref[...].astype(jnp.float32).reshape(m, d)

    # ---------------- attention branch: x = x + proj(attn(norm1(x))) --------
    n1 = _layernorm_2d(x, ln1g_ref[...], ln1b_ref[...])

    attn_acc = jnp.zeros((m, d), dtype=jnp.float32)
    for hh in range(heads):  # static unrolled loop (heads is small)
        q_h = jnp.dot(n1, wq_ref[hh], preferred_element_type=jnp.float32)
        k_h = jnp.dot(n1, wk_ref[hh], preferred_element_type=jnp.float32)
        v_h = jnp.dot(n1, wv_ref[hh], preferred_element_type=jnp.float32)

        qb = q_h.reshape(tb, n, dh)
        kb = k_h.reshape(tb, n, dh)
        vb = v_h.reshape(tb, n, dh)

        s = jnp.einsum('bqh,bkh->bqk', qb, kb,
                       preferred_element_type=jnp.float32) * scale
        s = s - jnp.max(s, axis=-1, keepdims=True)
        p = jnp.exp(s)
        p = p / jnp.sum(p, axis=-1, keepdims=True)

        o_h = jnp.einsum('bqk,bkh->bqh', p, vb,
                         preferred_element_type=jnp.float32)
        # accumulate this head's contribution to the output projection
        attn_acc = attn_acc + jnp.dot(o_h.reshape(m, dh), wproj_ref[hh],
                                      preferred_element_type=jnp.float32)

    x = x + attn_acc + bproj_ref[...]

    # ---------------- MLP branch: x = x + W2 @ gelu(W1 @ norm2(x) + b1) + b2 -
    n2 = _layernorm_2d(x, ln2g_ref[...], ln2b_ref[...])
    h1 = jnp.dot(n2, w1_ref[...], preferred_element_type=jnp.float32) + b1_ref[...]
    # exact GELU (torch.nn.GELU default): 0.5 * h * (1 + erf(h / sqrt(2)))
    h1 = 0.5 * h1 * (1.0 + jax.lax.erf(h1 * _INV_SQRT2))
    mlp = jnp.dot(h1, w2_ref[...], preferred_element_type=jnp.float32) + b2_ref[...]

    y = x + mlp
    o_ref[...] = y.reshape(tb, n, d).astype(o_ref.dtype)


def block_forward(x, wqkv, wproj, bproj, w1, b1, w2, b2,
                  ln1_g, ln1_b, ln2_g, ln2_b, *, heads=8, tb=1):
    """Fused transformer Block forward.

    x: (B, N, d) float32.  Weights are stored (in, out), i.e. the kernel
    computes x @ W (== PyTorch's x @ W.T).  Returns (B, N, d).
    """
    B, N, d = x.shape
    assert d % heads == 0, "model dim must be divisible by the head count"
    dh = d // heads
    hid = w1.shape[1]

    # ---- wrapper-side layout plumbing (done once, cheap) --------------------
    # per-head weight views so the kernel never slices the lane axis
    wq = wqkv[:, 0 * d:1 * d].reshape(d, heads, dh).transpose(1, 0, 2)  # (h, d, dh)
    wk = wqkv[:, 1 * d:2 * d].reshape(d, heads, dh).transpose(1, 0, 2)
    wv = wqkv[:, 2 * d:3 * d].reshape(d, heads, dh).transpose(1, 0, 2)
    wproj_h = wproj.reshape(heads, dh, d)                               # (h, dh, d)

    bproj2 = bproj.reshape(1, d)
    b1_2 = b1.reshape(1, hid)
    b2_2 = b2.reshape(1, d)
    g1_2, bt1_2 = ln1_g.reshape(1, d), ln1_b.reshape(1, d)
    g2_2, bt2_2 = ln2_g.reshape(1, d), ln2_b.reshape(1, d)

    # ---- pad batch to a multiple of the batch tile (no divisibility assert) -
    nb = pl.cdiv(B, tb)
    Bp = nb * tb
    if Bp != B:
        x = jnp.pad(x, ((0, Bp - B), (0, 0), (0, 0)))

    const2 = lambda i: (0, 0)
    const3 = lambda i: (0, 0, 0)

    out = pl.pallas_call(
        _block_kernel,
        out_shape=jax.ShapeDtypeStruct((Bp, N, d), x.dtype),
        grid_spec=pltpu.PrefetchScalarGridSpec(
            num_scalar_prefetch=0,
            grid=(nb,),
            in_specs=[
                pl.BlockSpec((tb, N, d), lambda i: (i, 0, 0)),   # x (tiled over batch)
                pl.BlockSpec((heads, d, dh), const3),            # Wq  (resident)
                pl.BlockSpec((heads, d, dh), const3),            # Wk
                pl.BlockSpec((heads, d, dh), const3),            # Wv
                pl.BlockSpec((heads, dh, d), const3),            # Wproj (per head)
                pl.BlockSpec((1, d), const2),                    # bproj
                pl.BlockSpec((d, hid), const2),                  # W1
                pl.BlockSpec((1, hid), const2),                  # b1
                pl.BlockSpec((hid, d), const2),                  # W2
                pl.BlockSpec((1, d), const2),                    # b2
                pl.BlockSpec((1, d), const2),                    # ln1 gamma
                pl.BlockSpec((1, d), const2),                    # ln1 beta
                pl.BlockSpec((1, d), const2),                    # ln2 gamma
                pl.BlockSpec((1, d), const2),                    # ln2 beta
            ],
            out_specs=pl.BlockSpec((tb, N, d), lambda i: (i, 0, 0)),
        ),
        compiler_params=pltpu.CompilerParams(
            # batch tiles are independent -> shardable across v7x's 2 TCs
            dimension_semantics=("parallel",),
        ),
    )(x, wq, wk, wv, wproj_h, bproj2, w1, b1_2, w2, b2_2,
      g1_2, bt1_2, g2_2, bt2_2)

    return out[:B]


def _reference_block(x, wqkv, wproj, bproj, w1, b1, w2, b2,
                     ln1_g, ln1_b, ln2_g, ln2_b, heads):
    """Pure-JAX mirror of the PyTorch Block.forward."""
    def ln(v, g, b):
        mu = v.mean(-1, keepdims=True)
        var = ((v - mu) ** 2).mean(-1, keepdims=True)
        return (v - mu) * jax.lax.rsqrt(var + _LN_EPS) * g + b

    B, N, d = x.shape
    dh = d // heads

    n1 = ln(x, ln1_g, ln1_b)
    qkv = n1 @ wqkv
    q, k, v = jnp.split(qkv, 3, axis=-1)

    def split_heads(t):
        return t.reshape(B, N, heads, dh).transpose(0, 2, 1, 3)

    q, k, v = split_heads(q), split_heads(k), split_heads(v)
    w = (q @ jnp.swapaxes(k, -1, -2)) / math.sqrt(dh)
    w = jax.nn.softmax(w, axis=-1)
    o = (w @ v).transpose(0, 2, 1, 3).reshape(B, N, d)
    x = x + o @ wproj + bproj

    n2 = ln(x, ln2_g, ln2_b)
    h = n2 @ w1 + b1
    h = 0.5 * h * (1.0 + jax.lax.erf(h * _INV_SQRT2))
    x = x + h @ w2 + b2
    return x


if __name__ == "__main__":
    # Small synthetic shapes consistent with Block: batch=2, seq=16, d=128, heads=8.
    B, N, D, HEADS = 2, 16, 128, 8
    HID = 4 * D

    key = jax.random.PRNGKey(0)
    ks = jax.random.split(key, 13)

    x = jax.random.normal(ks[0], (B, N, D), dtype=jnp.float32)
    # Weights stored as (in, out) so the kernel does x @ W (== PyTorch x @ W.T).
    wqkv = jax.random.normal(ks[1], (D, 3 * D), dtype=jnp.float32) / math.sqrt(D)
    wproj = jax.random.normal(ks[2], (D, D), dtype=jnp.float32) / math.sqrt(D)
    bproj = jax.random.normal(ks[3], (D,), dtype=jnp.float32) * 0.02
    w1 = jax.random.normal(ks[4], (D, HID), dtype=jnp.float32) / math.sqrt(D)
    b1 = jax.random.normal(ks[5], (HID,), dtype=jnp.float32) * 0.02
    w2 = jax.random.normal(ks[6], (HID, D), dtype=jnp.float32) / math.sqrt(HID)
    b2 = jax.random.normal(ks[7], (D,), dtype=jnp.float32) * 0.02
    ln1_g = 1.0 + 0.1 * jax.random.normal(ks[8], (D,), dtype=jnp.float32)
    ln1_b = 0.05 * jax.random.normal(ks[9], (D,), dtype=jnp.float32)
    ln2_g = 1.0 + 0.1 * jax.random.normal(ks[10], (D,), dtype=jnp.float32)
    ln2_b = 0.05 * jax.random.normal(ks[11], (D,), dtype=jnp.float32)

    out = block_forward(x, wqkv, wproj, bproj, w1, b1, w2, b2,
                        ln1_g, ln1_b, ln2_g, ln2_b, heads=HEADS, tb=1)
    out = jax.block_until_ready(out)

    ref = _reference_block(x, wqkv, wproj, bproj, w1, b1, w2, b2,
                           ln1_g, ln1_b, ln2_g, ln2_b, heads=HEADS)

    assert out.shape == (B, N, D), out.shape
    assert jnp.allclose(out, ref, atol=2e-4, rtol=2e-4), (
        "mismatch vs reference: max abs err = "
        f"{float(jnp.max(jnp.abs(out - ref)))}")
    print("KERNEL_OK")
</pallas_src>

<mosaic_0001>
module attributes {stable_mosaic.version = 11 : i64} {
  func.func @_block_kernel(%arg0: i32, %arg1: memref<1x16x128xf32, #tpu.memory_space<vmem>>, %arg2: memref<8x128x16xf32, #tpu.memory_space<vmem>>, %arg3: memref<8x128x16xf32, #tpu.memory_space<vmem>>, %arg4: memref<8x128x16xf32, #tpu.memory_space<vmem>>, %arg5: memref<8x16x128xf32, #tpu.memory_space<vmem>>, %arg6: memref<1x128xf32, #tpu.memory_space<vmem>>, %arg7: memref<128x512xf32, #tpu.memory_space<vmem>>, %arg8: memref<1x512xf32, #tpu.memory_space<vmem>>, %arg9: memref<512x128xf32, #tpu.memory_space<vmem>>, %arg10: memref<1x128xf32, #tpu.memory_space<vmem>>, %arg11: memref<1x128xf32, #tpu.memory_space<vmem>>, %arg12: memref<1x128xf32, #tpu.memory_space<vmem>>, %arg13: memref<1x128xf32, #tpu.memory_space<vmem>>, %arg14: memref<1x128xf32, #tpu.memory_space<vmem>>, %arg15: memref<1x16x128xf32, #tpu.memory_space<vmem>>) attributes {dimension_semantics = [#tpu.dimension_semantics<parallel>], iteration_bounds = array<i64: 2>, scalar_prefetch = 0 : i64, scratch_operands = 0 : i64, tpu.core_type = #tpu.core_type<tc>, window_params = [{transform_indices = @transform_0, window_bounds = array<i64: 1, 16, 128>}, {pipeline_mode = #tpu.pipeline_mode<synchronous>, transform_indices = @transform_1, window_bounds = array<i64: 8, 128, 16>}, {pipeline_mode = #tpu.pipeline_mode<synchronous>, transform_indices = @transform_2, window_bounds = array<i64: 8, 128, 16>}, {pipeline_mode = #tpu.pipeline_mode<synchronous>, transform_indices = @transform_3, window_bounds = array<i64: 8, 128, 16>}, {pipeline_mode = #tpu.pipeline_mode<synchronous>, transform_indices = @transform_4, window_bounds = array<i64: 8, 16, 128>}, {pipeline_mode = #tpu.pipeline_mode<synchronous>, transform_indices = @transform_5, window_bounds = array<i64: 1, 128>}, {pipeline_mode = #tpu.pipeline_mode<synchronous>, transform_indices = @transform_6, window_bounds = array<i64: 128, 512>}, {pipeline_mode = #tpu.pipeline_mode<synchronous>, transform_indices = @transform_7, window_bounds = array<i64: 1, 512>}, {pipeline_mode = #tpu.pipeline_mode<synchronous>, transform_indices = @transform_8, window_bounds = array<i64: 512, 128>}, {pipeline_mode = #tpu.pipeline_mode<synchronous>, transform_indices = @transform_9, window_bounds = array<i64: 1, 128>}, {pipeline_mode = #tpu.pipeline_mode<synchronous>, transform_indices = @transform_10, window_bounds = array<i64: 1, 128>}, {pipeline_mode = #tpu.pipeline_mode<synchronous>, transform_indices = @transform_11, window_bounds = array<i64: 1, 128>}, {pipeline_mode = #tpu.pipeline_mode<synchronous>, transform_indices = @transform_12, window_bounds = array<i64: 1, 128>}, {pipeline_mode = #tpu.pipeline_mode<synchronous>, transform_indices = @transform_13, window_bounds = array<i64: 1, 128>}, {transform_indices = @transform_14, window_bounds = array<i64: 1, 16, 128>}]} {
    %c0 = arith.constant 0 : index
    %c0_0 = arith.constant 0 : index
    %c0_1 = arith.constant 0 : index
    %0 = vector.load %arg1[%c0, %c0_0, %c0_1] : memref<1x16x128xf32, #tpu.memory_space<vmem>>, vector<1x16x128xf32>
    %1 = vector.shape_cast %0 : vector<1x16x128xf32> to vector<16x128xf32>
    %c0_2 = arith.constant 0 : index
    %c0_3 = arith.constant 0 : index
    %2 = vector.load %arg11[%c0_2, %c0_3] : memref<1x128xf32, #tpu.memory_space<vmem>>, vector<1x128xf32>
    %c0_4 = arith.constant 0 : index
    %c0_5 = arith.constant 0 : index
    %3 = vector.load %arg12[%c0_4, %c0_5] : memref<1x128xf32, #tpu.memory_space<vmem>>, vector<1x128xf32>
    %cst = arith.constant dense<0.000000e+00> : vector<16xf32>
    %4 = vector.multi_reduction <add>, %1, %cst [1] : vector<16x128xf32> to vector<16xf32>
    %5 = vector.shape_cast %4 : vector<16xf32> to vector<16x1xf32>
    %cst_6 = arith.constant 1.280000e+02 : f32
    %6 = vector.broadcast %cst_6 : f32 to vector<16x1xf32>
    %7 = arith.divf %5, %6 : vector<16x1xf32>
    %8 = vector.broadcast %7 : vector<16x1xf32> to vector<16x128xf32>
    %9 = arith.subf %1, %8 : vector<16x128xf32>
    %10 = arith.mulf %9, %9 : vector<16x128xf32>
    %cst_7 = arith.constant dense<0.000000e+00> : vector<16xf32>
    %11 = vector.multi_reduction <add>, %10, %cst_7 [1] : vector<16x128xf32> to vector<16xf32>
    %12 = vector.shape_cast %11 : vector<16xf32> to vector<16x1xf32>
    %cst_8 = arith.constant 1.280000e+02 : f32
    %13 = vector.broadcast %cst_8 : f32 to vector<16x1xf32>
    %14 = arith.divf %12, %13 : vector<16x1xf32>
    %cst_9 = arith.constant 9.99999974E-6 : f32
    %15 = vector.broadcast %cst_9 : f32 to vector<16x1xf32>
    %16 = arith.addf %14, %15 : vector<16x1xf32>
    %17 = math.rsqrt %16 : vector<16x1xf32>
    %18 = vector.broadcast %17 : vector<16x1xf32> to vector<16x128xf32>
    %19 = arith.mulf %9, %18 : vector<16x128xf32>
    %20 = vector.broadcast %2 : vector<1x128xf32> to vector<16x128xf32>
    %21 = arith.mulf %19, %20 : vector<16x128xf32>
    %22 = vector.broadcast %3 : vector<1x128xf32> to vector<16x128xf32>
    %23 = arith.addf %21, %22 : vector<16x128xf32>
    %cst_10 = arith.constant 0.000000e+00 : f32
    %24 = vector.broadcast %cst_10 : f32 to vector<16x128xf32>
    %c0_11 = arith.constant 0 : index
    %c0_12 = arith.constant 0 : index
    %c0_13 = arith.constant 0 : index
    %25 = vector.load %arg2[%c0_11, %c0_12, %c0_13] : memref<8x128x16xf32, #tpu.memory_space<vmem>>, vector<1x128x16xf32>
    %26 = vector.shape_cast %25 : vector<1x128x16xf32> to vector<128x16xf32>
    %cst_14 = arith.constant dense<0.000000e+00> : vector<16x16xf32>
    %27 = tpu.matmul %23, %26, %cst_14 {dimension_numbers = #tpu.dot_dimension_numbers<[1], [0], [0], [1], [0, 0, 1, 1], [], []>} : vector<16x128xf32>, vector<128x16xf32>, vector<16x16xf32> -> vector<16x16xf32>
    %c0_15 = arith.constant 0 : index
    %c0_16 = arith.constant 0 : index
    %c0_17 = arith.constant 0 : index
    %28 = vector.load %arg3[%c0_15, %c0_16, %c0_17] : memref<8x128x16xf32, #tpu.memory_space<vmem>>, vector<1x128x16xf32>
    %29 = vector.shape_cast %28 : vector<1x128x16xf32> to vector<128x16xf32>
    %cst_18 = arith.constant dense<0.000000e+00> : vector<16x16xf32>
    %30 = tpu.matmul %23, %29, %cst_18 {dimension_numbers = #tpu.dot_dimension_numbers<[1], [0], [0], [1], [0, 0, 1, 1], [], []>} : vector<16x128xf32>, vector<128x16xf32>, vector<16x16xf32> -> vector<16x16xf32>
    %c0_19 = arith.constant 0 : index
    %c0_20 = arith.constant 0 : index
    %c0_21 = arith.constant 0 : index
    %31 = vector.load %arg4[%c0_19, %c0_20, %c0_21] : memref<8x128x16xf32, #tpu.memory_space<vmem>>, vector<1x128x16xf32>
    %32 = vector.shape_cast %31 : vector<1x128x16xf32> to vector<128x16xf32>
    %cst_22 = arith.constant dense<0.000000e+00> : vector<16x16xf32>
    %33 = tpu.matmul %23, %32, %cst_22 {dimension_numbers = #tpu.dot_dimension_numbers<[1], [0], [0], [1], [0, 0, 1, 1], [], []>} : vector<16x128xf32>, vector<128x16xf32>, vector<16x16xf32> -> vector<16x16xf32>
    %34 = vector.shape_cast %27 : vector<16x16xf32> to vector<1x16x16xf32>
    %35 = vector.shape_cast %30 : vector<16x16xf32> to vector<1x16x16xf32>
    %36 = vector.shape_cast %33 : vector<16x16xf32> to vector<1x16x16xf32>
    "tpu.trace_start"() <{level = 10 : i32, message = "bqh,bkh->bqk"}> : () -> ()
    %cst_23 = arith.constant dense<0.000000e+00> : vector<1x16x16xf32>
    %37 = tpu.matmul %34, %35, %cst_23 {dimension_numbers = #tpu.dot_dimension_numbers<[2], [2], [1], [1], [0, 0, 0, 1, 1, 1], [0], [0]>} : vector<1x16x16xf32>, vector<1x16x16xf32>, vector<1x16x16xf32> -> vector<1x16x16xf32>
    "tpu.trace_stop"() : () -> ()
    %cst_24 = arith.constant 2.500000e-01 : f32
    %38 = vector.broadcast %cst_24 : f32 to vector<1x16x16xf32>
    %39 = arith.mulf %37, %38 : vector<1x16x16xf32>
    %cst_25 = arith.constant dense<0xFF800000> : vector<1x16xf32>
    %40 = vector.multi_reduction <maximumf>, %39, %cst_25 [2] : vector<1x16x16xf32> to vector<1x16xf32>
    %41 = vector.shape_cast %40 : vector<1x16xf32> to vector<1x16x1xf32>
    %42 = vector.broadcast %41 : vector<1x16x1xf32> to vector<1x16x16xf32>
    %43 = arith.subf %39, %42 : vector<1x16x16xf32>
    %44 = math.exp %43 : vector<1x16x16xf32>
    %cst_26 = arith.constant dense<0.000000e+00> : vector<1x16xf32>
    %45 = vector.multi_reduction <add>, %44, %cst_26 [2] : vector<1x16x16xf32> to vector<1x16xf32>
    %46 = vector.shape_cast %45 : vector<1x16xf32> to vector<1x16x1xf32>
    %47 = vector.broadcast %46 : vector<1x16x1xf32> to vector<1x16x16xf32>
    %48 = arith.divf %44, %47 : vector<1x16x16xf32>
    "tpu.trace_start"() <{level = 10 : i32, message = "bqk,bkh->bqh"}> : () -> ()
    %cst_27 = arith.constant dense<0.000000e+00> : vector<1x16x16xf32>
    %49 = tpu.matmul %48, %36, %cst_27 {dimension_numbers = #tpu.dot_dimension_numbers<[2], [1], [1], [2], [0, 0, 0, 1, 1, 2], [0], [0]>} : vector<1x16x16xf32>, vector<1x16x16xf32>, vector<1x16x16xf32> -> vector<1x16x16xf32>
    "tpu.trace_stop"() : () -> ()
    %50 = vector.shape_cast %49 : vector<1x16x16xf32> to vector<16x16xf32>
    %c0_28 = arith.constant 0 : index
    %c0_29 = arith.constant 0 : index
    %c0_30 = arith.constant 0 : index
    %51 = vector.load %arg5[%c0_28, %c0_29, %c0_30] : memref<8x16x128xf32, #tpu.memory_space<vmem>>, vector<1x16x128xf32>
    %52 = vector.shape_cast %51 : vector<1x16x128xf32> to vector<16x128xf32>
    %cst_31 = arith.constant dense<0.000000e+00> : vector<16x128xf32>
    %53 = tpu.matmul %50, %52, %cst_31 {dimension_numbers = #tpu.dot_dimension_numbers<[1], [0], [0], [1], [0, 0, 1, 1], [], []>} : vector<16x16xf32>, vector<16x128xf32>, vector<16x128xf32> -> vector<16x128xf32>
    %54 = arith.addf %24, %53 : vector<16x128xf32>
    %c1 = arith.constant 1 : index
    %c0_32 = arith.constant 0 : index
    %c0_33 = arith.constant 0 : index
    %55 = vector.load %arg2[%c1, %c0_32, %c0_33] : memref<8x128x16xf32, #tpu.memory_space<vmem>>, vector<1x128x16xf32>
    %56 = vector.shape_cast %55 : vector<1x128x16xf32> to vector<128x16xf32>
    %cst_34 = arith.constant dense<0.000000e+00> : vector<16x16xf32>
    %57 = tpu.matmul %23, %56, %cst_34 {dimension_numbers = #tpu.dot_dimension_numbers<[1], [0], [0], [1], [0, 0, 1, 1], [], []>} : vector<16x128xf32>, vector<128x16xf32>, vector<16x16xf32> -> vector<16x16xf32>
    %c1_35 = arith.constant 1 : index
    %c0_36 = arith.constant 0 : index
    %c0_37 = arith.constant 0 : index
    %58 = vector.load %arg3[%c1_35, %c0_36, %c0_37] : memref<8x128x16xf32, #tpu.memory_space<vmem>>, vector<1x128x16xf32>
    %59 = vector.shape_cast %58 : vector<1x128x16xf32> to vector<128x16xf32>
    %cst_38 = arith.constant dense<0.000000e+00> : vector<16x16xf32>
    %60 = tpu.matmul %23, %59, %cst_38 {dimension_numbers = #tpu.dot_dimension_numbers<[1], [0], [0], [1], [0, 0, 1, 1], [], []>} : vector<16x128xf32>, vector<128x16xf32>, vector<16x16xf32> -> vector<16x16xf32>
    %c1_39 = arith.constant 1 : index
    %c0_40 = arith.constant 0 : index
    %c0_41 = arith.constant 0 : index
    %61 = vector.load %arg4[%c1_39, %c0_40, %c0_41] : memref<8x128x16xf32, #tpu.memory_space<vmem>>, vector<1x128x16xf32>
    %62 = vector.shape_cast %61 : vector<1x128x16xf32> to vector<128x16xf32>
    %cst_42 = arith.constant dense<0.000000e+00> : vector<16x16xf32>
    %63 = tpu.matmul %23, %62, %cst_42 {dimension_numbers = #tpu.dot_dimension_numbers<[1], [0], [0], [1], [0, 0, 1, 1], [], []>} : vector<16x128xf32>, vector<128x16xf32>, vector<16x16xf32> -> vector<16x16xf32>
    %64 = vector.shape_cast %57 : vector<16x16xf32> to vector<1x16x16xf32>
    %65 = vector.shape_cast %60 : vector<16x16xf32> to vector<1x16x16xf32>
    %66 = vector.shape_cast %63 : vector<16x16xf32> to vector<1x16x16xf32>
    "tpu.trace_start"() <{level = 10 : i32, message = "bqh,bkh->bqk"}> : () -> ()
    %cst_43 = arith.constant dense<0.000000e+00> : vector<1x16x16xf32>
    %67 = tpu.matmul %64, %65, %cst_43 {dimension_numbers = #tpu.dot_dimension_numbers<[2], [2], [1], [1], [0, 0, 0, 1, 1, 1], [0], [0]>} : vector<1x16x16xf32>, vector<1x16x16xf32>, vector<1x16x16xf32> -> vector<1x16x16xf32>
    "tpu.trace_stop"() : () -> ()
    %cst_44 = arith.constant 2.500000e-01 : f32
    %68 = vector.broadcast %cst_44 : f32 to vector<1x16x16xf32>
    %69 = arith.mulf %67, %68 : vector<1x16x16xf32>
    %cst_45 = arith.constant dense<0xFF800000> : vector<1x16xf32>
    %70 = vector.multi_reduction <maximumf>, %69, %cst_45 [2] : vector<1x16x16xf32> to vector<1x16xf32>
    %71 = vector.shape_cast %70 : vector<1x16xf32> to vector<1x16x1xf32>
    %72 = vector.broadcast %71 : vector<1x16x1xf32> to vector<1x16x16xf32>
    %73 = arith.subf %69, %72 : vector<1x16x16xf32>
    %74 = math.exp %73 : vector<1x16x16xf32>
    %cst_46 = arith.constant dense<0.000000e+00> : vector<1x16xf32>
    %75 = vector.multi_reduction <add>, %74, %cst_46 [2] : vector<1x16x16xf32> to vector<1x16xf32>
    %76 = vector.shape_cast %75 : vector<1x16xf32> to vector<1x16x1xf32>
    %77 = vector.broadcast %76 : vector<1x16x1xf32> to vector<1x16x16xf32>
    %78 = arith.divf %74, %77 : vector<1x16x16xf32>
    "tpu.trace_start"() <{level = 10 : i32, message = "bqk,bkh->bqh"}> : () -> ()
    %cst_47 = arith.constant dense<0.000000e+00> : vector<1x16x16xf32>
    %79 = tpu.matmul %78, %66, %cst_47 {dimension_numbers = #tpu.dot_dimension_numbers<[2], [1], [1], [2], [0, 0, 0, 1, 1, 2], [0], [0]>} : vector<1x16x16xf32>, vector<1x16x16xf32>, vector<1x16x16xf32> -> vector<1x16x16xf32>
    "tpu.trace_stop"() : () -> ()
    %80 = vector.shape_cast %79 : vector<1x16x16xf32> to vector<16x16xf32>
    %c1_48 = arith.constant 1 : index
    %c0_49 = arith.constant 0 : index
    %c0_50 = arith.constant 0 : index
    %81 = vector.load %arg5[%c1_48, %c0_49, %c0_50] : memref<8x16x128xf32, #tpu.memory_space<vmem>>, vector<1x16x128xf32>
    %82 = vector.shape_cast %81 : vector<1x16x128xf32> to vector<16x128xf32>
    %cst_51 = arith.constant dense<0.000000e+00> : vector<16x128xf32>
    %83 = tpu.matmul %80, %82, %cst_51 {dimension_numbers = #tpu.dot_dimension_numbers<[1], [0], [0], [1], [0, 0, 1, 1], [], []>} : vector<16x16xf32>, vector<16x128xf32>, vector<16x128xf32> -> vector<16x128xf32>
    %84 = arith.addf %54, %83 : vector<16x128xf32>
    %c2 = arith.constant 2 : index
    %c0_52 = arith.constant 0 : index
    %c0_53 = arith.constant 0 : index
    %85 = vector.load %arg2[%c2, %c0_52, %c0_53] : memref<8x128x16xf32, #tpu.memory_space<vmem>>, vector<1x128x16xf32>
    %86 = vector.shape_cast %85 : vector<1x128x16xf32> to vector<128x16xf32>
    %cst_54 = arith.constant dense<0.000000e+00> : vector<16x16xf32>
    %87 = tpu.matmul %23, %86, %cst_54 {dimension_numbers = #tpu.dot_dimension_numbers<[1], [0], [0], [1], [0, 0, 1, 1], [], []>} : vector<16x128xf32>, vector<128x16xf32>, vector<16x16xf32> -> vector<16x16xf32>
    %c2_55 = arith.constant 2 : index
    %c0_56 = arith.constant 0 : index
    %c0_57 = arith.constant 0 : index
    %88 = vector.load %arg3[%c2_55, %c0_56, %c0_57] : memref<8x128x16xf32, #tpu.memory_space<vmem>>, vector<1x128x16xf32>
    %89 = vector.shape_cast %88 : vector<1x128x16xf32> to vector<128x16xf32>
    %cst_58 = arith.constant dense<0.000000e+00> : vector<16x16xf32>
    %90 = tpu.matmul %23, %89, %cst_58 {dimension_numbers = #tpu.dot_dimension_numbers<[1], [0], [0], [1], [0, 0, 1, 1], [], []>} : vector<16x128xf32>, vector<128x16xf32>, vector<16x16xf32> -> vector<16x16xf32>
    %c2_59 = arith.constant 2 : index
    %c0_60 = arith.constant 0 : index
    %c0_61 = arith.constant 0 : index
    %91 = vector.load %arg4[%c2_59, %c0_60, %c0_61] : memref<8x128x16xf32, #tpu.memory_space<vmem>>, vector<1x128x16xf32>
    %92 = vector.shape_cast %91 : vector<1x128x16xf32> to vector<128x16xf32>
    %cst_62 = arith.constant dense<0.000000e+00> : vector<16x16xf32>
    %93 = tpu.matmul %23, %92, %cst_62 {dimension_numbers = #tpu.dot_dimension_numbers<[1], [0], [0], [1], [0, 0, 1, 1], [], []>} : vector<16x128xf32>, vector<128x16xf32>, vector<16x16xf32> -> vector<16x16xf32>
    %94 = vector.shape_cast %87 : vector<16x16xf32> to vector<1x16x16xf32>
    %95 = vector.shape_cast %90 : vector<16x16xf32> to vector<1x16x16xf32>
    %96 = vector.shape_cast %93 : vector<16x16xf32> to vector<1x16x16xf32>
    "tpu.trace_start"() <{level = 10 : i32, message = "bqh,bkh->bqk"}> : () -> ()
    %cst_63 = arith.constant dense<0.000000e+00> : vector<1x16x16xf32>
    %97 = tpu.matmul %94, %95, %cst_63 {dimension_numbers = #tpu.dot_dimension_numbers<[2], [2], [1], [1], [0, 0, 0, 1, 1, 1], [0], [0]>} : vector<1x16x16xf32>, vector<1x16x16xf32>, vector<1x16x16xf32> -> vector<1x16x16xf32>
    "tpu.trace_stop"() : () -> ()
    %cst_64 = arith.constant 2.500000e-01 : f32
    %98 = vector.broadcast %cst_64 : f32 to vector<1x16x16xf32>
    %99 = arith.mulf %97, %98 : vector<1x16x16xf32>
    %cst_65 = arith.constant dense<0xFF800000> : vector<1x16xf32>
    %100 = vector.multi_reduction <maximumf>, %99, %cst_65 [2] : vector<1x16x16xf32> to vector<1x16xf32>
    %101 = vector.shape_cast %100 : vector<1x16xf32> to vector<1x16x1xf32>
    %102 = vector.broadcast %101 : vector<1x16x1xf32> to vector<1x16x16xf32>
    %103 = arith.subf %99, %102 : vector<1x16x16xf32>
    %104 = math.exp %103 : vector<1x16x16xf32>
    %cst_66 = arith.constant dense<0.000000e+00> : vector<1x16xf32>
    %105 = vector.multi_reduction <add>, %104, %cst_66 [2] : vector<1x16x16xf32> to vector<1x16xf32>
    %106 = vector.shape_cast %105 : vector<1x16xf32> to vector<1x16x1xf32>
    %107 = vector.broadcast %106 : vector<1x16x1xf32> to vector<1x16x16xf32>
    %108 = arith.divf %104, %107 : vector<1x16x16xf32>
    "tpu.trace_start"() <{level = 10 : i32, message = "bqk,bkh->bqh"}> : () -> ()
    %cst_67 = arith.constant dense<0.000000e+00> : vector<1x16x16xf32>
    %109 = tpu.matmul %108, %96, %cst_67 {dimension_numbers = #tpu.dot_dimension_numbers<[2], [1], [1], [2], [0, 0, 0, 1, 1, 2], [0], [0]>} : vector<1x16x16xf32>, vector<1x16x16xf32>, vector<1x16x16xf32> -> vector<1x16x16xf32>
    "tpu.trace_stop"() : () -> ()
    %110 = vector.shape_cast %109 : vector<1x16x16xf32> to vector<16x16xf32>
    %c2_68 = arith.constant 2 : index
    %c0_69 = arith.constant 0 : index
    %c0_70 = arith.constant 0 : index
    %111 = vector.load %arg5[%c2_68, %c0_69, %c0_70] : memref<8x16x128xf32, #tpu.memory_space<vmem>>, vector<1x16x128xf32>
    %112 = vector.shape_cast %111 : vector<1x16x128xf32> to vector<16x128xf32>
    %cst_71 = arith.constant dense<0.000000e+00> : vector<16x128xf32>
    %113 = tpu.matmul %110, %112, %cst_71 {dimension_numbers = #tpu.dot_dimension_numbers<[1], [0], [0], [1], [0, 0, 1, 1], [], []>} : vector<16x16xf32>, vector<16x128xf32>, vector<16x128xf32> -> vector<16x128xf32>
    %114 = arith.addf %84, %113 : vector<16x128xf32>
    %c3 = arith.constant 3 : index
    %c0_72 = arith.constant 0 : index
    %c0_73 = arith.constant 0 : index
    %115 = vector.load %arg2[%c3, %c0_72, %c0_73] : memref<8x128x16xf32, #tpu.memory_space<vmem>>, vector<1x128x16xf32>
    %116 = vector.shape_cast %115 : vector<1x128x16xf32> to vector<128x16xf32>
    %cst_74 = arith.constant dense<0.000000e+00> : vector<16x16xf32>
    %117 = tpu.matmul %23, %116, %cst_74 {dimension_numbers = #tpu.dot_dimension_numbers<[1], [0], [0], [1], [0, 0, 1, 1], [], []>} : vector<16x128xf32>, vector<128x16xf32>, vector<16x16xf32> -> vector<16x16xf32>
    %c3_75 = arith.constant 3 : index
    %c0_76 = arith.constant 0 : index
    %c0_77 = arith.constant 0 : index
    %118 = vector.load %arg3[%c3_75, %c0_76, %c0_77] : memref<8x128x16xf32, #tpu.memory_space<vmem>>, vector<1x128x16xf32>
    %119 = vector.shape_cast %118 : vector<1x128x16xf32> to vector<128x16xf32>
    %cst_78 = arith.constant dense<0.000000e+00> : vector<16x16xf32>
    %120 = tpu.matmul %23, %119, %cst_78 {dimension_numbers = #tpu.dot_dimension_numbers<[1], [0], [0], [1], [0, 0, 1, 1], [], []>} : vector<16x128xf32>, vector<128x16xf32>, vector<16x16xf32> -> vector<16x16xf32>
    %c3_79 = arith.constant 3 : index
    %c0_80 = arith.constant 0 : index
    %c0_81 = arith.constant 0 : index
    %121 = vector.load %arg4[%c3_79, %c0_80, %c0_81] : memref<8x128x16xf32, #tpu.memory_space<vmem>>, vector<1x128x16xf32>
    %122 = vector.shape_cast %121 : vector<1x128x16xf32> to vector<128x16xf32>
    %cst_82 = arith.constant dense<0.000000e+00> : vector<16x16xf32>
    %123 = tpu.matmul %23, %122, %cst_82 {dimension_numbers = #tpu.dot_dimension_numbers<[1], [0], [0], [1], [0, 0, 1, 1], [], []>} : vector<16x128xf32>, vector<128x16xf32>, vector<16x16xf32> -> vector<16x16xf32>
    %124 = vector.shape_cast %117 : vector<16x16xf32> to vector<1x16x16xf32>
    %125 = vector.shape_cast %120 : vector<16x16xf32> to vector<1x16x16xf32>
    %126 = vector.shape_cast %123 : vector<16x16xf32> to vector<1x16x16xf32>
    "tpu.trace_start"() <{level = 10 : i32, message = "bqh,bkh->bqk"}> : () -> ()
    %cst_83 = arith.constant dense<0.000000e+00> : vector<1x16x16xf32>
    %127 = tpu.matmul %124, %125, %cst_83 {dimension_numbers = #tpu.dot_dimension_numbers<[2], [2], [1], [1], [0, 0, 0, 1, 1, 1], [0], [0]>} : vector<1x16x16xf32>, vector<1x16x16xf32>, vector<1x16x16xf32> -> vector<1x16x16xf32>
    "tpu.trace_stop"() : () -> ()
    %cst_84 = arith.constant 2.500000e-01 : f32
    %128 = vector.broadcast %cst_84 : f32 to vector<1x16x16xf32>
    %129 = arith.mulf %127, %128 : vector<1x16x16xf32>
    %cst_85 = arith.constant dense<0xFF800000> : vector<1x16xf32>
    %130 = vector.multi_reduction <maximumf>, %129, %cst_85 [2] : vector<1x16x16xf32> to vector<1x16xf32>
    %131 = vector.shape_cast %130 : vector<1x16xf32> to vector<1x16x1xf32>
    %132 = vector.broadcast %131 : vector<1x16x1xf32> to vector<1x16x16xf32>
    %133 = arith.subf %129, %132 : vector<1x16x16xf32>
    %134 = math.exp %133 : vector<1x16x16xf32>
    %cst_86 = arith.constant dense<0.000000e+00> : vector<1x16xf32>
    %135 = vector.multi_reduction <add>, %134, %cst_86 [2] : vector<1x16x16xf32> to vector<1x16xf32>
    %136 = vector.shape_cast %135 : vector<1x16xf32> to vector<1x16x1xf32>
    %137 = vector.broadcast %136 : vector<1x16x1xf32> to vector<1x16x16xf32>
    %138 = arith.divf %134, %137 : vector<1x16x16xf32>
    "tpu.trace_start"() <{level = 10 : i32, message = "bqk,bkh->bqh"}> : () -> ()
    %cst_87 = arith.constant dense<0.000000e+00> : vector<1x16x16xf32>
    %139 = tpu.matmul %138, %126, %cst_87 {dimension_numbers = #tpu.dot_dimension_numbers<[2], [1], [1], [2], [0, 0, 0, 1, 1, 2], [0], [0]>} : vector<1x16x16xf32>, vector<1x16x16xf32>, vector<1x16x16xf32> -> vector<1x16x16xf32>
    "tpu.trace_stop"() : () -> ()
    %140 = vector.shape_cast %139 : vector<1x16x16xf32> to vector<16x16xf32>
    %c3_88 = arith.constant 3 : index
    %c0_89 = arith.constant 0 : index
    %c0_90 = arith.constant 0 : index
    %141 = vector.load %arg5[%c3_88, %c0_89, %c0_90] : memref<8x16x128xf32, #tpu.memory_space<vmem>>, vector<1x16x128xf32>
    %142 = vector.shape_cast %141 : vector<1x16x128xf32> to vector<16x128xf32>
    %cst_91 = arith.constant dense<0.000000e+00> : vector<16x128xf32>
    %143 = tpu.matmul %140, %142, %cst_91 {dimension_numbers = #tpu.dot_dimension_numbers<[1], [0], [0], [1], [0, 0, 1, 1], [], []>} : vector<16x16xf32>, vector<16x128xf32>, vector<16x128xf32> -> vector<16x128xf32>
    %144 = arith.addf %114, %143 : vector<16x128xf32>
    %c4 = arith.constant 4 : index
    %c0_92 = arith.constant 0 : index
    %c0_93 = arith.constant 0 : index
    %145 = vector.load %arg2[%c4, %c0_92, %c0_93] : memref<8x128x16xf32, #tpu.memory_space<vmem>>, vector<1x128x16xf32>
    %146 = vector.shape_cast %145 : vector<1x128x16xf32> to vector<128x16xf32>
    %cst_94 = arith.constant dense<0.000000e+00> : vector<16x16xf32>
    %147 = tpu.matmul %23, %146, %cst_94 {dimension_numbers = #tpu.dot_dimension_numbers<[1], [0], [0], [1], [0, 0, 1, 1], [], []>} : vector<16x128xf32>, vector<128x16xf32>, vector<16x16xf32> -> vector<16x16xf32>
    %c4_95 = arith.constant 4 : index
    %c0_96 = arith.constant 0 : index
    %c0_97 = arith.constant 0 : index
    %148 = vector.load %arg3[%c4_95, %c0_96, %c0_97] : memref<8x128x16xf32, #tpu.memory_space<vmem>>, vector<1x128x16xf32>
    %149 = vector.shape_cast %148 : vector<1x128x16xf32> to vector<128x16xf32>
    %cst_98 = arith.constant dense<0.000000e+00> : vector<16x16xf32>
    %150 = tpu.matmul %23, %149, %cst_98 {dimension_numbers = #tpu.dot_dimension_numbers<[1], [0], [0], [1], [0, 0, 1, 1], [], []>} : vector<16x128xf32>, vector<128x16xf32>, vector<16x16xf32> -> vector<16x16xf32>
    %c4_99 = arith.constant 4 : index
    %c0_100 = arith.constant 0 : index
    %c0_101 = arith.constant 0 : index
    %151 = vector.load %arg4[%c4_99, %c0_100, %c0_101] : memref<8x128x16xf32, #tpu.memory_space<vmem>>, vector<1x128x16xf32>
    %152 = vector.shape_cast %151 : vector<1x128x16xf32> to vector<128x16xf32>
    %cst_102 = arith.constant dense<0.000000e+00> : vector<16x16xf32>
    %153 = tpu.matmul %23, %152, %cst_102 {dimension_numbers = #tpu.dot_dimension_numbers<[1], [0], [0], [1], [0, 0, 1, 1], [], []>} : vector<16x128xf32>, vector<128x16xf32>, vector<16x16xf32> -> vector<16x16xf32>
    %154 = vector.shape_cast %147 : vector<16x16xf32> to vector<1x16x16xf32>
    %155 = vector.shape_cast %150 : vector<16x16xf32> to vector<1x16x16xf32>
    %156 = vector.shape_cast %153 : vector<16x16xf32> to vector<1x16x16xf32>
    "tpu.trace_start"() <{level = 10 : i32, message = "bqh,bkh->bqk"}> : () -> ()
    %cst_103 = arith.constant dense<0.000000e+00> : vector<1x16x16xf32>
    %157 = tpu.matmul %154, %155, %cst_103 {dimension_numbers = #tpu.dot_dimension_numbers<[2], [2], [1], [1], [0, 0, 0, 1, 1, 1], [0], [0]>} : vector<1x16x16xf32>, vector<1x16x16xf32>, vector<1x16x16xf32> -> vector<1x16x16xf32>
    "tpu.trace_stop"() : () -> ()
    %cst_104 = arith.constant 2.500000e-01 : f32
    %158 = vector.broadcast %cst_104 : f32 to vector<1x16x16xf32>
    %159 = arith.mulf %157, %158 : vector<1x16x16xf32>
    %cst_105 = arith.constant dense<0xFF800000> : vector<1x16xf32>
    %160 = vector.multi_reduction <maximumf>, %159, %cst_105 [2] : vector<1x16x16xf32> to vector<1x16xf32>
    %161 = vector.shape_cast %160 : vector<1x16xf32> to vector<1x16x1xf32>
    %162 = vector.broadcast %161 : vector<1x16x1xf32> to vector<1x16x16xf32>
    %163 = arith.subf %159, %162 : vector<1x16x16xf32>
    %164 = math.exp %163 : vector<1x16x16xf32>
    %cst_106 = arith.constant dense<0.000000e+00> : vector<1x16xf32>
    %165 = vector.multi_reduction <add>, %164, %cst_106 [2] : vector<1x16x16xf32> to vector<1x16xf32>
    %166 = vector.shape_cast %165 : vector<1x16xf32> to vector<1x16x1xf32>
    %167 = vector.broadcast %166 : vector<1x16x1xf32> to vector<1x16x16xf32>
    %168 = arith.divf %164, %167 : vector<1x16x16xf32>
    "tpu.trace_start"() <{level = 10 : i32, message = "bqk,bkh->bqh"}> : () -> ()
    %cst_107 = arith.constant dense<0.000000e+00> : vector<1x16x16xf32>
    %169 = tpu.matmul %168, %156, %cst_107 {dimension_numbers = #tpu.dot_dimension_numbers<[2], [1], [1], [2], [0, 0, 0, 1, 1, 2], [0], [0]>} : vector<1x16x16xf32>, vector<1x16x16xf32>, vector<1x16x16xf32> -> vector<1x16x16xf32>
    "tpu.trace_stop"() : () -> ()
    %170 = vector.shape_cast %169 : vector<1x16x16xf32> to vector<16x16xf32>
    %c4_108 = arith.constant 4 : index
    %c0_109 = arith.constant 0 : index
    %c0_110 = arith.constant 0 : index
    %171 = vector.load %arg5[%c4_108, %c0_109, %c0_110] : memref<8x16x128xf32, #tpu.memory_space<vmem>>, vector<1x16x128xf32>
    %172 = vector.shape_cast %171 : vector<1x16x128xf32> to vector<16x128xf32>
    %cst_111 = arith.constant dense<0.000000e+00> : vector<16x128xf32>
    %173 = tpu.matmul %170, %172, %cst_111 {dimension_numbers = #tpu.dot_dimension_numbers<[1], [0], [0], [1], [0, 0, 1, 1], [], []>} : vector<16x16xf32>, vector<16x128xf32>, vector<16x128xf32> -> vector<16x128xf32>
    %174 = arith.addf %144, %173 : vector<16x128xf32>
    %c5 = arith.constant 5 : index
    %c0_112 = arith.constant 0 : index
    %c0_113 = arith.constant 0 : index
    %175 = vector.load %arg2[%c5, %c0_112, %c0_113] : memref<8x128x16xf32, #tpu.memory_space<vmem>>, vector<1x128x16xf32>
    %176 = vector.shape_cast %175 : vector<1x128x16xf32> to vector<128x16xf32>
    %cst_114 = arith.constant dense<0.000000e+00> : vector<16x16xf32>
    %177 = tpu.matmul %23, %176, %cst_114 {dimension_numbers = #tpu.dot_dimension_numbers<[1], [0], [0], [1], [0, 0, 1, 1], [], []>} : vector<16x128xf32>, vector<128x16xf32>, vector<16x16xf32> -> vector<16x16xf32>
    %c5_115 = arith.constant 5 : index
    %c0_116 = arith.constant 0 : index
    %c0_117 = arith.constant 0 : index
    %178 = vector.load %arg3[%c5_115, %c0_116, %c0_117] : memref<8x128x16xf32, #tpu.memory_space<vmem>>, vector<1x128x16xf32>
    %179 = vector.shape_cast %178 : vector<1x128x16xf32> to vector<128x16xf32>
    %cst_118 = arith.constant dense<0.000000e+00> : vector<16x16xf32>
    %180 = tpu.matmul %23, %179, %cst_118 {dimension_numbers = #tpu.dot_dimension_numbers<[1], [0], [0], [1], [0, 0, 1, 1], [], []>} : vector<16x128xf32>, vector<128x16xf32>, vector<16x16xf32> -> vector<16x16xf32>
    %c5_119 = arith.constant 5 : index
    %c0_120 = arith.constant 0 : index
    %c0_121 = arith.constant 0 : index
    %181 = vector.load %arg4[%c5_119, %c0_120, %c0_121] : memref<8x128x16xf32, #tpu.memory_space<vmem>>, vector<1x128x16xf32>
    %182 = vector.shape_cast %181 : vector<1x128x16xf32> to vector<128x16xf32>
    %cst_122 = arith.constant dense<0.000000e+00> : vector<16x16xf32>
    %183 = tpu.matmul %23, %182, %cst_122 {dimension_numbers = #tpu.dot_dimension_numbers<[1], [0], [0], [1], [0, 0, 1, 1], [], []>} : vector<16x128xf32>, vector<128x16xf32>, vector<16x16xf32> -> vector<16x16xf32>
    %184 = vector.shape_cast %177 : vector<16x16xf32> to vector<1x16x16xf32>
    %185 = vector.shape_cast %180 : vector<16x16xf32> to vector<1x16x16xf32>
    %186 = vector.shape_cast %183 : vector<16x16xf32> to vector<1x16x16xf32>
    "tpu.trace_start"() <{level = 10 : i32, message = "bqh,bkh->bqk"}> : () -> ()
    %cst_123 = arith.constant dense<0.000000e+00> : vector<1x16x16xf32>
    %187 = tpu.matmul %184, %185, %cst_123 {dimension_numbers = #tpu.dot_dimension_numbers<[2], [2], [1], [1], [0, 0, 0, 1, 1, 1], [0], [0]>} : vector<1x16x16xf32>, vector<1x16x16xf32>, vector<1x16x16xf32> -> vector<1x16x16xf32>
    "tpu.trace_stop"() : () -> ()
    %cst_124 = arith.constant 2.500000e-01 : f32
    %188 = vector.broadcast %cst_124 : f32 to vector<1x16x16xf32>
    %189 = arith.mulf %187, %188 : vector<1x16x16xf32>
    %cst_125 = arith.constant dense<0xFF800000> : vector<1x16xf32>
    %190 = vector.multi_reduction <maximumf>, %189, %cst_125 [2] : vector<1x16x16xf32> to vector<1x16xf32>
    %191 = vector.shape_cast %190 : vector<1x16xf32> to vector<1x16x1xf32>
    %192 = vector.broadcast %191 : vector<1x16x1xf32> to vector<1x16x16xf32>
    %193 = arith.subf %189, %192 : vector<1x16x16xf32>
    %194 = math.exp %193 : vector<1x16x16xf32>
    %cst_126 = arith.constant dense<0.000000e+00> : vector<1x16xf32>
    %195 = vector.multi_reduction <add>, %194, %cst_126 [2] : vector<1x16x16xf32> to vector<1x16xf32>
    %196 = vector.shape_cast %195 : vector<1x16xf32> to vector<1x16x1xf32>
    %197 = vector.broadcast %196 : vector<1x16x1xf32> to vector<1x16x16xf32>
    %198 = arith.divf %194, %197 : vector<1x16x16xf32>
    "tpu.trace_start"() <{level = 10 : i32, message = "bqk,bkh->bqh"}> : () -> ()
    %cst_127 = arith.constant dense<0.000000e+00> : vector<1x16x16xf32>
    %199 = tpu.matmul %198, %186, %cst_127 {dimension_numbers = #tpu.dot_dimension_numbers<[2], [1], [1], [2], [0, 0, 0, 1, 1, 2], [0], [0]>} : vector<1x16x16xf32>, vector<1x16x16xf32>, vector<1x16x16xf32> -> vector<1x16x16xf32>
    "tpu.trace_stop"() : () -> ()
    %200 = vector.shape_cast %199 : vector<1x16x16xf32> to vector<16x16xf32>
    %c5_128 = arith.constant 5 : index
    %c0_129 = arith.constant 0 : index
    %c0_130 = arith.constant 0 : index
    %201 = vector.load %arg5[%c5_128, %c0_129, %c0_130] : memref<8x16x128xf32, #tpu.memory_space<vmem>>, vector<1x16x128xf32>
    %202 = vector.shape_cast %201 : vector<1x16x128xf32> to vector<16x128xf32>
    %cst_131 = arith.constant dense<0.000000e+00> : vector<16x128xf32>
    %203 = tpu.matmul %200, %202, %cst_131 {dimension_numbers = #tpu.dot_dimension_numbers<[1], [0], [0], [1], [0, 0, 1, 1], [], []>} : vector<16x16xf32>, vector<16x128xf32>, vector<16x128xf32> -> vector<16x128xf32>
    %204 = arith.addf %174, %203 : vector<16x128xf32>
    %c6 = arith.constant 6 : index
    %c0_132 = arith.constant 0 : index
    %c0_133 = arith.constant 0 : index
    %205 = vector.load %arg2[%c6, %c0_132, %c0_133] : memref<8x128x16xf32, #tpu.memory_space<vmem>>, vector<1x128x16xf32>
    %206 = vector.shape_cast %205 : vector<1x128x16xf32> to vector<128x16xf32>
    %cst_134 = arith.constant dense<0.000000e+00> : vector<16x16xf32>
    %207 = tpu.matmul %23, %206, %cst_134 {dimension_numbers = #tpu.dot_dimension_numbers<[1], [0], [0], [1], [0, 0, 1, 1], [], []>} : vector<16x128xf32>, vector<128x16xf32>, vector<16x16xf32> -> vector<16x16xf32>
    %c6_135 = arith.constant 6 : index
    %c0_136 = arith.constant 0 : index
    %c0_137 = arith.constant 0 : index
    %208 = vector.load %arg3[%c6_135, %c0_136, %c0_137] : memref<8x128x16xf32, #tpu.memory_space<vmem>>, vector<1x128x16xf32>
    %209 = vector.shape_cast %208 : vector<1x128x16xf32> to vector<128x16xf32>
    %cst_138 = arith.constant dense<0.000000e+00> : vector<16x16xf32>
    %210 = tpu.matmul %23, %209, %cst_138 {dimension_numbers = #tpu.dot_dimension_numbers<[1], [0], [0], [1], [0, 0, 1, 1], [], []>} : vector<16x128xf32>, vector<128x16xf32>, vector<16x16xf32> -> vector<16x16xf32>
    %c6_139 = arith.constant 6 : index
    %c0_140 = arith.constant 0 : index
    %c0_141 = arith.constant 0 : index
    %211 = vector.load %arg4[%c6_139, %c0_140, %c0_141] : memref<8x128x16xf32, #tpu.memory_space<vmem>>, vector<1x128x16xf32>
    %212 = vector.shape_cast %211 : vector<1x128x16xf32> to vector<128x16xf32>
    %cst_142 = arith.constant dense<0.000000e+00> : vector<16x16xf32>
    %213 = tpu.matmul %23, %212, %cst_142 {dimension_numbers = #tpu.dot_dimension_numbers<[1], [0], [0], [1], [0, 0, 1, 1], [], []>} : vector<16x128xf32>, vector<128x16xf32>, vector<16x16xf32> -> vector<16x16xf32>
    %214 = vector.shape_cast %207 : vector<16x16xf32> to vector<1x16x16xf32>
    %215 = vector.shape_cast %210 : vector<16x16xf32> to vector<1x16x16xf32>
    %216 = vector.shape_cast %213 : vector<16x16xf32> to vector<1x16x16xf32>
    "tpu.trace_start"() <{level = 10 : i32, message = "bqh,bkh->bqk"}> : () -> ()
    %cst_143 = arith.constant dense<0.000000e+00> : vector<1x16x16xf32>
    %217 = tpu.matmul %214, %215, %cst_143 {dimension_numbers = #tpu.dot_dimension_numbers<[2], [2], [1], [1], [0, 0, 0, 1, 1, 1], [0], [0]>} : vector<1x16x16xf32>, vector<1x16x16xf32>, vector<1x16x16xf32> -> vector<1x16x16xf32>
    "tpu.trace_stop"() : () -> ()
    %cst_144 = arith.constant 2.500000e-01 : f32
    %218 = vector.broadcast %cst_144 : f32 to vector<1x16x16xf32>
    %219 = arith.mulf %217, %218 : vector<1x16x16xf32>
    %cst_145 = arith.constant dense<0xFF800000> : vector<1x16xf32>
    %220 = vector.multi_reduction <maximumf>, %219, %cst_145 [2] : vector<1x16x16xf32> to vector<1x16xf32>
    %221 = vector.shape_cast %220 : vector<1x16xf32> to vector<1x16x1xf32>
    %222 = vector.broadcast %221 : vector<1x16x1xf32> to vector<1x16x16xf32>
    %223 = arith.subf %219, %222 : vector<1x16x16xf32>
    %224 = math.exp %223 : vector<1x16x16xf32>
    %cst_146 = arith.constant dense<0.000000e+00> : vector<1x16xf32>
    %225 = vector.multi_reduction <add>, %224, %cst_146 [2] : vector<1x16x16xf32> to vector<1x16xf32>
    %226 = vector.shape_cast %225 : vector<1x16xf32> to vector<1x16x1xf32>
    %227 = vector.broadcast %226 : vector<1x16x1xf32> to vector<1x16x16xf32>
    %228 = arith.divf %224, %227 : vector<1x16x16xf32>
    "tpu.trace_start"() <{level = 10 : i32, message = "bqk,bkh->bqh"}> : () -> ()
    %cst_147 = arith.constant dense<0.000000e+00> : vector<1x16x16xf32>
    %229 = tpu.matmul %228, %216, %cst_147 {dimension_numbers = #tpu.dot_dimension_numbers<[2], [1], [1], [2], [0, 0, 0, 1, 1, 2], [0], [0]>} : vector<1x16x16xf32>, vector<1x16x16xf32>, vector<1x16x16xf32> -> vector<1x16x16xf32>
    "tpu.trace_stop"() : () -> ()
    %230 = vector.shape_cast %229 : vector<1x16x16xf32> to vector<16x16xf32>
    %c6_148 = arith.constant 6 : index
    %c0_149 = arith.constant 0 : index
    %c0_150 = arith.constant 0 : index
    %231 = vector.load %arg5[%c6_148, %c0_149, %c0_150] : memref<8x16x128xf32, #tpu.memory_space<vmem>>, vector<1x16x128xf32>
    %232 = vector.shape_cast %231 : vector<1x16x128xf32> to vector<16x128xf32>
    %cst_151 = arith.constant dense<0.000000e+00> : vector<16x128xf32>
    %233 = tpu.matmul %230, %232, %cst_151 {dimension_numbers = #tpu.dot_dimension_numbers<[1], [0], [0], [1], [0, 0, 1, 1], [], []>} : vector<16x16xf32>, vector<16x128xf32>, vector<16x128xf32> -> vector<16x128xf32>
    %234 = arith.addf %204, %233 : vector<16x128xf32>
    %c7 = arith.constant 7 : index
    %c0_152 = arith.constant 0 : index
    %c0_153 = arith.constant 0 : index
    %235 = vector.load %arg2[%c7, %c0_152, %c0_153] : memref<8x128x16xf32, #tpu.memory_space<vmem>>, vector<1x128x16xf32>
    %236 = vector.shape_cast %235 : vector<1x128x16xf32> to vector<128x16xf32>
    %cst_154 = arith.constant dense<0.000000e+00> : vector<16x16xf32>
    %237 = tpu.matmul %23, %236, %cst_154 {dimension_numbers = #tpu.dot_dimension_numbers<[1], [0], [0], [1], [0, 0, 1, 1], [], []>} : vector<16x128xf32>, vector<128x16xf32>, vector<16x16xf32> -> vector<16x16xf32>
    %c7_155 = arith.constant 7 : index
    %c0_156 = arith.constant 0 : index
    %c0_157 = arith.constant 0 : index
    %238 = vector.load %arg3[%c7_155, %c0_156, %c0_157] : memref<8x128x16xf32, #tpu.memory_space<vmem>>, vector<1x128x16xf32>
    %239 = vector.shape_cast %238 : vector<1x128x16xf32> to vector<128x16xf32>
    %cst_158 = arith.constant dense<0.000000e+00> : vector<16x16xf32>
    %240 = tpu.matmul %23, %239, %cst_158 {dimension_numbers = #tpu.dot_dimension_numbers<[1], [0], [0], [1], [0, 0, 1, 1], [], []>} : vector<16x128xf32>, vector<128x16xf32>, vector<16x16xf32> -> vector<16x16xf32>
    %c7_159 = arith.constant 7 : index
    %c0_160 = arith.constant 0 : index
    %c0_161 = arith.constant 0 : index
    %241 = vector.load %arg4[%c7_159, %c0_160, %c0_161] : memref<8x128x16xf32, #tpu.memory_space<vmem>>, vector<1x128x16xf32>
    %242 = vector.shape_cast %241 : vector<1x128x16xf32> to vector<128x16xf32>
    %cst_162 = arith.constant dense<0.000000e+00> : vector<16x16xf32>
    %243 = tpu.matmul %23, %242, %cst_162 {dimension_numbers = #tpu.dot_dimension_numbers<[1], [0], [0], [1], [0, 0, 1, 1], [], []>} : vector<16x128xf32>, vector<128x16xf32>, vector<16x16xf32> -> vector<16x16xf32>
    %244 = vector.shape_cast %237 : vector<16x16xf32> to vector<1x16x16xf32>
    %245 = vector.shape_cast %240 : vector<16x16xf32> to vector<1x16x16xf32>
    %246 = vector.shape_cast %243 : vector<16x16xf32> to vector<1x16x16xf32>
    "tpu.trace_start"() <{level = 10 : i32, message = "bqh,bkh->bqk"}> : () -> ()
    %cst_163 = arith.constant dense<0.000000e+00> : vector<1x16x16xf32>
    %247 = tpu.matmul %244, %245, %cst_163 {dimension_numbers = #tpu.dot_dimension_numbers<[2], [2], [1], [1], [0, 0, 0, 1, 1, 1], [0], [0]>} : vector<1x16x16xf32>, vector<1x16x16xf32>, vector<1x16x16xf32> -> vector<1x16x16xf32>
    "tpu.trace_stop"() : () -> ()
    %cst_164 = arith.constant 2.500000e-01 : f32
    %248 = vector.broadcast %cst_164 : f32 to vector<1x16x16xf32>
    %249 = arith.mulf %247, %248 : vector<1x16x16xf32>
    %cst_165 = arith.constant dense<0xFF800000> : vector<1x16xf32>
    %250 = vector.multi_reduction <maximumf>, %249, %cst_165 [2] : vector<1x16x16xf32> to vector<1x16xf32>
    %251 = vector.shape_cast %250 : vector<1x16xf32> to vector<1x16x1xf32>
    %252 = vector.broadcast %251 : vector<1x16x1xf32> to vector<1x16x16xf32>
    %253 = arith.subf %249, %252 : vector<1x16x16xf32>
    %254 = math.exp %253 : vector<1x16x16xf32>
    %cst_166 = arith.constant dense<0.000000e+00> : vector<1x16xf32>
    %255 = vector.multi_reduction <add>, %254, %cst_166 [2] : vector<1x16x16xf32> to vector<1x16xf32>
    %256 = vector.shape_cast %255 : vector<1x16xf32> to vector<1x16x1xf32>
    %257 = vector.broadcast %256 : vector<1x16x1xf32> to vector<1x16x16xf32>
    %258 = arith.divf %254, %257 : vector<1x16x16xf32>
    "tpu.trace_start"() <{level = 10 : i32, message = "bqk,bkh->bqh"}> : () -> ()
    %cst_167 = arith.constant dense<0.000000e+00> : vector<1x16x16xf32>
    %259 = tpu.matmul %258, %246, %cst_167 {dimension_numbers = #tpu.dot_dimension_numbers<[2], [1], [1], [2], [0, 0, 0, 1, 1, 2], [0], [0]>} : vector<1x16x16xf32>, vector<1x16x16xf32>, vector<1x16x16xf32> -> vector<1x16x16xf32>
    "tpu.trace_stop"() : () -> ()
    %260 = vector.shape_cast %259 : vector<1x16x16xf32> to vector<16x16xf32>
    %c7_168 = arith.constant 7 : index
    %c0_169 = arith.constant 0 : index
    %c0_170 = arith.constant 0 : index
    %261 = vector.load %arg5[%c7_168, %c0_169, %c0_170] : memref<8x16x128xf32, #tpu.memory_space<vmem>>, vector<1x16x128xf32>
    %262 = vector.shape_cast %261 : vector<1x16x128xf32> to vector<16x128xf32>
    %cst_171 = arith.constant dense<0.000000e+00> : vector<16x128xf32>
    %263 = tpu.matmul %260, %262, %cst_171 {dimension_numbers = #tpu.dot_dimension_numbers<[1], [0], [0], [1], [0, 0, 1, 1], [], []>} : vector<16x16xf32>, vector<16x128xf32>, vector<16x128xf32> -> vector<16x128xf32>
    %264 = arith.addf %234, %263 : vector<16x128xf32>
    %265 = arith.addf %1, %264 : vector<16x128xf32>
    %c0_172 = arith.constant 0 : index
    %c0_173 = arith.constant 0 : index
    %266 = vector.load %arg6[%c0_172, %c0_173] : memref<1x128xf32, #tpu.memory_space<vmem>>, vector<1x128xf32>
    %267 = vector.broadcast %266 : vector<1x128xf32> to vector<16x128xf32>
    %268 = arith.addf %265, %267 : vector<16x128xf32>
    %c0_174 = arith.constant 0 : index
    %c0_175 = arith.constant 0 : index
    %269 = vector.load %arg13[%c0_174, %c0_175] : memref<1x128xf32, #tpu.memory_space<vmem>>, vector<1x128xf32>
    %c0_176 = arith.constant 0 : index
    %c0_177 = arith.constant 0 : index
    %270 = vector.load %arg14[%c0_176, %c0_177] : memref<1x128xf32, #tpu.memory_space<vmem>>, vector<1x128xf32>
    %cst_178 = arith.constant dense<0.000000e+00> : vector<16xf32>
    %271 = vector.multi_reduction <add>, %268, %cst_178 [1] : vector<16x128xf32> to vector<16xf32>
    %272 = vector.shape_cast %271 : vector<16xf32> to vector<16x1xf32>
    %cst_179 = arith.constant 1.280000e+02 : f32
    %273 = vector.broadcast %cst_179 : f32 to vector<16x1xf32>
    %274 = arith.divf %272, %273 : vector<16x1xf32>
    %275 = vector.broadcast %274 : vector<16x1xf32> to vector<16x128xf32>
    %276 = arith.subf %268, %275 : vector<16x128xf32>
    %277 = arith.mulf %276, %276 : vector<16x128xf32>
    %cst_180 = arith.constant dense<0.000000e+00> : vector<16xf32>
    %278 = vector.multi_reduction <add>, %277, %cst_180 [1] : vector<16x128xf32> to vector<16xf32>
    %279 = vector.shape_cast %278 : vector<16xf32> to vector<16x1xf32>
    %cst_181 = arith.constant 1.280000e+02 : f32
    %280 = vector.broadcast %cst_181 : f32 to vector<16x1xf32>
    %281 = arith.divf %279, %280 : vector<16x1xf32>
    %cst_182 = arith.constant 9.99999974E-6 : f32
    %282 = vector.broadcast %cst_182 : f32 to vector<16x1xf32>
    %283 = arith.addf %281, %282 : vector<16x1xf32>
    %284 = math.rsqrt %283 : vector<16x1xf32>
    %285 = vector.broadcast %284 : vector<16x1xf32> to vector<16x128xf32>
    %286 = arith.mulf %276, %285 : vector<16x128xf32>
    %287 = vector.broadcast %269 : vector<1x128xf32> to vector<16x128xf32>
    %288 = arith.mulf %286, %287 : vector<16x128xf32>
    %289 = vector.broadcast %270 : vector<1x128xf32> to vector<16x128xf32>
    %290 = arith.addf %288, %289 : vector<16x128xf32>
    %c0_183 = arith.constant 0 : index
    %c0_184 = arith.constant 0 : index
    %291 = vector.load %arg7[%c0_183, %c0_184] : memref<128x512xf32, #tpu.memory_space<vmem>>, vector<128x512xf32>
    %cst_185 = arith.constant dense<0.000000e+00> : vector<16x512xf32>
    %292 = tpu.matmul %290, %291, %cst_185 {dimension_numbers = #tpu.dot_dimension_numbers<[1], [0], [0], [1], [0, 0, 1, 1], [], []>} : vector<16x128xf32>, vector<128x512xf32>, vector<16x512xf32> -> vector<16x512xf32>
    %c0_186 = arith.constant 0 : index
    %c0_187 = arith.constant 0 : index
    %293 = vector.load %arg8[%c0_186, %c0_187] : memref<1x512xf32, #tpu.memory_space<vmem>>, vector<1x512xf32>
    %294 = vector.broadcast %293 : vector<1x512xf32> to vector<16x512xf32>
    %295 = arith.addf %292, %294 : vector<16x512xf32>
    %cst_188 = arith.constant 5.000000e-01 : f32
    %296 = vector.broadcast %cst_188 : f32 to vector<16x512xf32>
    %297 = arith.mulf %296, %295 : vector<16x512xf32>
    %cst_189 = arith.constant 0.707106769 : f32
    %298 = vector.broadcast %cst_189 : f32 to vector<16x512xf32>
    %299 = arith.mulf %295, %298 : vector<16x512xf32>
    %300 = math.erf %299 : vector<16x512xf32>
    %cst_190 = arith.constant 1.000000e+00 : f32
    %301 = vector.broadcast %cst_190 : f32 to vector<16x512xf32>
    %302 = arith.addf %301, %300 : vector<16x512xf32>
    %303 = arith.mulf %297, %302 : vector<16x512xf32>
    %c0_191 = arith.constant 0 : index
    %c0_192 = arith.constant 0 : index
    %304 = vector.load %arg9[%c0_191, %c0_192] : memref<512x128xf32, #tpu.memory_space<vmem>>, vector<512x128xf32>
    %cst_193 = arith.constant dense<0.000000e+00> : vector<16x128xf32>
    %305 = tpu.matmul %303, %304, %cst_193 {dimension_numbers = #tpu.dot_dimension_numbers<[1], [0], [0], [1], [0, 0, 1, 1], [], []>} : vector<16x512xf32>, vector<512x128xf32>, vector<16x128xf32> -> vector<16x128xf32>
    %c0_194 = arith.constant 0 : index
    %c0_195 = arith.constant 0 : index
    %306 = vector.load %arg10[%c0_194, %c0_195] : memref<1x128xf32, #tpu.memory_space<vmem>>, vector<1x128xf32>
    %307 = vector.broadcast %306 : vector<1x128xf32> to vector<16x128xf32>
    %308 = arith.addf %305, %307 : vector<16x128xf32>
    %309 = arith.addf %268, %308 : vector<16x128xf32>
    %310 = vector.shape_cast %309 : vector<16x128xf32> to vector<1x16x128xf32>
    %c0_196 = arith.constant 0 : index
    %c0_197 = arith.constant 0 : index
    %c0_198 = arith.constant 0 : index
    %311 = vector.load %arg15[%c0_196, %c0_197, %c0_198] : memref<1x16x128xf32, #tpu.memory_space<vmem>>, vector<1x16x128xf32>
    tpu.vector_store %arg15[%c0_196, %c0_197, %c0_198], %310 {strides = array<i32>} : memref<1x16x128xf32, #tpu.memory_space<vmem>>, vector<1x16x128xf32>,
    return
  }
  func.func @transform_0(%arg0: i32) -> (i32, i32, i32) {
    %c0_i32 = arith.constant 0 : i32
    %c0_i32_0 = arith.constant 0 : i32
    %c0_i32_1 = arith.constant 0 : i32
    return %arg0, %c0_i32, %c0_i32_0 : i32, i32, i32
  }
  func.func @transform_1(%arg0: i32) -> (i32, i32, i32) {
    %c0_i32 = arith.constant 0 : i32
    %c0_i32_0 = arith.constant 0 : i32
    %c0_i32_1 = arith.constant 0 : i32
    %c0_i32_2 = arith.constant 0 : i32
    return %c0_i32, %c0_i32_0, %c0_i32_1 : i32, i32, i32
  }
  func.func @transform_2(%arg0: i32) -> (i32, i32, i32) {
    %c0_i32 = arith.constant 0 : i32
    %c0_i32_0 = arith.constant 0 : i32
    %c0_i32_1 = arith.constant 0 : i32
    %c0_i32_2 = arith.constant 0 : i32
    return %c0_i32, %c0_i32_0, %c0_i32_1 : i32, i32, i32
  }
  func.func @transform_3(%arg0: i32) -> (i32, i32, i32) {
    %c0_i32 = arith.constant 0 : i32
    %c0_i32_0 = arith.constant 0 : i32
    %c0_i32_1 = arith.constant 0 : i32
    %c0_i32_2 = arith.constant 0 : i32
    return %c0_i32, %c0_i32_0, %c0_i32_1 : i32, i32, i32
  }
  func.func @transform_4(%arg0: i32) -> (i32, i32, i32) {
    %c0_i32 = arith.constant 0 : i32
    %c0_i32_0 = arith.constant 0 : i32
    %c0_i32_1 = arith.constant 0 : i32
    %c0_i32_2 = arith.constant 0 : i32
    return %c0_i32, %c0_i32_0, %c0_i32_1 : i32, i32, i32
  }
  func.func @transform_5(%arg0: i32) -> (i32, i32) {
    %c0_i32 = arith.constant 0 : i32
    %c0_i32_0 = arith.constant 0 : i32
    %c0_i32_1 = arith.constant 0 : i32
    return %c0_i32, %c0_i32_0 : i32, i32
  }
  func.func @transform_6(%arg0: i32) -> (i32, i32) {
    %c0_i32 = arith.constant 0 : i32
    %c0_i32_0 = arith.constant 0 : i32
    %c0_i32_1 = arith.constant 0 : i32
    return %c0_i32, %c0_i32_0 : i32, i32
  }
  func.func @transform_7(%arg0: i32) -> (i32, i32) {
    %c0_i32 = arith.constant 0 : i32
    %c0_i32_0 = arith.constant 0 : i32
    %c0_i32_1 = arith.constant 0 : i32
    return %c0_i32, %c0_i32_0 : i32, i32
  }
  func.func @transform_8(%arg0: i32) -> (i32, i32) {
    %c0_i32 = arith.constant 0 : i32
    %c0_i32_0 = arith.constant 0 : i32
    %c0_i32_1 = arith.constant 0 : i32
    return %c0_i32, %c0_i32_0 : i32, i32
  }
  func.func @transform_9(%arg0: i32) -> (i32, i32) {
    %c0_i32 = arith.constant 0 : i32
    %c0_i32_0 = arith.constant 0 : i32
    %c0_i32_1 = arith.constant 0 : i32
    return %c0_i32, %c0_i32_0 : i32, i32
  }
  func.func @transform_10(%arg0: i32) -> (i32, i32) {
    %c0_i32 = arith.constant 0 : i32
    %c0_i32_0 = arith.constant 0 : i32
    %c0_i32_1 = arith.constant 0 : i32
    return %c0_i32, %c0_i32_0 : i32, i32
  }
  func.func @transform_11(%arg0: i32) -> (i32, i32) {
    %c0_i32 = arith.constant 0 : i32
    %c0_i32_0 = arith.constant 0 : i32
    %c0_i32_1 = arith.constant 0 : i32
    return %c0_i32, %c0_i32_0 : i32, i32
  }
  func.func @transform_12(%arg0: i32) -> (i32, i32) {
    %c0_i32 = arith.constant 0 : i32
    %c0_i32_0 = arith.constant 0 : i32
    %c0_i32_1 = arith.constant 0 : i32
    return %c0_i32, %c0_i32_0 : i32, i32
  }
  func.func @transform_13(%arg0: i32) -> (i32, i32) {
    %c0_i32 = arith.constant 0 : i32
    %c0_i32_0 = arith.constant 0 : i32
    %c0_i32_1 = arith.constant 0 : i32
    return %c0_i32, %c0_i32_0 : i32, i32
  }
  func.func @transform_14(%arg0: i32) -> (i32, i32, i32) {
    %c0_i32 = arith.constant 0 : i32
    %c0_i32_0 = arith.constant 0 : i32
    %c0_i32_1 = arith.constant 0 : i32
    return %arg0, %c0_i32, %c0_i32_0 : i32, i32, i32
  }
}

</mosaic_0001>

<llo_original>
// kernel: tpu_custom_call.1
$region0: #{tpu_custom_call.1}
  #allocation0 [shape = 'u32[]', space=smem, size = 0x4, offset = 0x4, fixed_abs, tag = 'smem constant byte address 0x4 - core index']
  #allocation1 [shape = 'u32[144,128]{1,0:T(1,128)}', space=vmem, size = 0x12000, scoped, tag = 'internal scratch']
  %s0 = inlined_call_operand.vmem [shape: f32[2,16,128], index: 0, kind: input, shape index: {}]
  %s1 = inlined_call_operand.vmem [shape: f32[8,128,16], index: 1, kind: input, shape index: {}]
  %s2 = inlined_call_operand.vmem [shape: f32[8,128,16], index: 2, kind: input, shape index: {}]
  %s3 = inlined_call_operand.vmem [shape: f32[8,128,16], index: 3, kind: input, shape index: {}]
  %s4 = inlined_call_operand.vmem [shape: f32[8,16,128], index: 4, kind: input, shape index: {}]
  %s5 = inlined_call_operand.vmem [shape: f32[1,128], index: 5, kind: input, shape index: {}]
  %s6 = inlined_call_operand.vmem [shape: f32[128,512], index: 6, kind: input, shape index: {}]
  %s7 = inlined_call_operand.vmem [shape: f32[1,512], index: 7, kind: input, shape index: {}]
  %s8 = inlined_call_operand.vmem [shape: f32[512,128], index: 8, kind: input, shape index: {}]
  %s9 = inlined_call_operand.vmem [shape: f32[1,128], index: 9, kind: input, shape index: {}]
  %s10 = inlined_call_operand.vmem [shape: f32[1,128], index: 10, kind: input, shape index: {}]
  %s11 = inlined_call_operand.vmem [shape: f32[1,128], index: 11, kind: input, shape index: {}]
  %s12 = inlined_call_operand.vmem [shape: f32[1,128], index: 12, kind: input, shape index: {}]
  %s13 = inlined_call_operand.vmem [shape: f32[1,128], index: 13, kind: input, shape index: {}]
  %s14 = inlined_call_operand.hbm [shape: f32[2,16,128], index: 14, kind: output, shape index: {}]
  %s15 = sld [smem:[#allocation0]]
  $region89: #{tpu_custom_call.1} parent=0
    _
  %s17 = ssub.s32 1, %s15
  %s18 = scalar_select 0, %s17, %s15
  $region1: #{tpu_custom_call.1} parent=0
    #allocation2 [shape = 'u8[16384]{0}', space=vmem, size = 0x4000, scoped, tag = 'output window, operand 0']
    #allocation3 [shape = 's32[2]{0}', space=sflag, size = 0x8, scoped, tag = 'scoped memory for tpu_custom_call.1']
    %19 = vsyncpa [#allocation3], 0
    %s20 = scalar_lea.sflag [#allocation3], 1
    %21 = vsyncpa %s20, 0
    loop: start=0, step=1, limit=4
    $region2: #{tpu_custom_call.1} parent=1 // loop_pre_header
      _
    $region3: #{tpu_custom_call.1} parent=1 // loop_header
      %s23 = sphi 0, %s27
      %p24 = scmp.ge.s32.totalorder %s23, 4
      %s33 = sphi 0, %s35
      %s36 = sphi 0, %s33
      %s37 = sphi 0, %s36
      %s53 = sphi 0, %s37
      %s57 = sphi 0, %s57
      %s59 = sphi 0, %s57
      %s60 = sphi 0, %s59
      %s74 = sphi 0, %s60
      %s78 = sphi 0, %s78
      %s80 = sphi 0, %s78
      %s81 = sphi 0, %s80
      %s95 = sphi 0, %s81
      %s99 = sphi 0, %s99
      %s101 = sphi 0, %s99
      %s102 = sphi 0, %s101
      %s116 = sphi 0, %s102
      %s120 = sphi 0, %s120
      %s122 = sphi 0, %s120
      %s123 = sphi 0, %s122
      %s137 = sphi 0, %s123
      %s141 = sphi 0, %s141
      %s143 = sphi 0, %s141
      %s144 = sphi 0, %s143
      %s158 = sphi 0, %s144
      %s162 = sphi 0, %s162
      %s164 = sphi 0, %s162
      %s165 = sphi 0, %s164
      %s179 = sphi 0, %s165
      %s183 = sphi 0, %s183
      %s185 = sphi 0, %s183
      %s186 = sphi 0, %s185
      %s200 = sphi 0, %s186
      %s204 = sphi 0, %s204
      %s206 = sphi 0, %s204
      %s207 = sphi 0, %s206
      %s221 = sphi 0, %s207
      %s225 = sphi 0, %s225
      %s227 = sphi 0, %s225
      %s228 = sphi 0, %s227
      %s242 = sphi 0, %s228
      %s246 = sphi 0, %s246
      %s248 = sphi 0, %s246
      %s249 = sphi 0, %s248
      %s263 = sphi 0, %s249
      %s267 = sphi 0, %s267
      %s269 = sphi 0, %s267
      %s270 = sphi 0, %s269
      %s284 = sphi 0, %s270
      %s288 = sphi 0, %s288
      %s290 = sphi 0, %s288
      %s291 = sphi 0, %s290
      %s305 = sphi 0, %s291
      %s309 = sphi 0, %s309
      %s311 = sphi 0, %s309
      %s312 = sphi 0, %s311
      %s326 = sphi 0, %s312
      %s332 = sphi 0, %s334
      %s335 = sphi 0, %s332
      %s336 = sphi 0, %s335
      %s352 = sphi 0, %s336
    $region4: #{tpu_custom_call.1} parent=1 // loop_header_branch
      %26 = sbr.rel (%p24) target = $region8
    $region5: #{tpu_custom_call.1} parent=1 // loop_body
      %s28 = ssub.s32 %s23, 1
      %s29 = ssub.s32 %s23, 2
      %s30 = sadd.s32 %s23, 1
      %s31 = ssub.s32 %s23, %s30
      %p32 = scmp.eq.s32.totalorder %s31, 0
      %s34 = sadd.s32 %s33, 1
      %s35 = scalar_select %p32, %s33, %s34
      %p38 = pneg %p32
      %p39 = scmp.eq.s32.totalorder %s23, 1
      %p40 = por %p38, %p39
      %p41 = scmp.ne.s32.totalorder %s33, %s36
      %p42 = scmp.eq.s32.totalorder %s23, 0
      %p43 = por %p41, %p42
      %p44 = scmp.ne.s32.totalorder %s33, %s36
      %p45 = scmp.eq.s32.totalorder %s28, 1
      %p46 = por %p44, %p45
      %p47 = scmp.ne.s32.totalorder %s36, %s37
      %p48 = scmp.eq.s32.totalorder %s28, 0
      %p49 = por %p47, %p48
      %p50 = scmp.ne.s32.totalorder %s36, %s37
      %p51 = scmp.eq.s32.totalorder %s29, 1
      %p52 = por %p50, %p51
      %p54 = scmp.ne.s32.totalorder %s37, %s53
      %p55 = scmp.eq.s32.totalorder %s29, 0
      %p56 = por %p54, %p55
      %s58 = sadd.s32 %s57, 1
      %p61 = scmp.eq.s32.totalorder %s23, 1
      %p62 = scmp.ne.s32.totalorder %s57, %s59
      %p63 = scmp.eq.s32.totalorder %s23, 0
      %p64 = por %p62, %p63
      %p65 = scmp.ne.s32.totalorder %s57, %s59
      %p66 = scmp.eq.s32.totalorder %s28, 1
      %p67 = por %p65, %p66
      %p68 = scmp.ne.s32.totalorder %s59, %s60
      %p69 = scmp.eq.s32.totalorder %s28, 0
      %p70 = por %p68, %p69
      %p71 = scmp.ne.s32.totalorder %s59, %s60
      %p72 = scmp.eq.s32.totalorder %s29, 1
      %p73 = por %p71, %p72
      %p75 = scmp.ne.s32.totalorder %s60, %s74
      %p76 = scmp.eq.s32.totalorder %s29, 0
      %p77 = por %p75, %p76
      %s79 = sadd.s32 %s78, 1
      %p82 = scmp.eq.s32.totalorder %s23, 1
      %p83 = scmp.ne.s32.totalorder %s78, %s80
      %p84 = scmp.eq.s32.totalorder %s23, 0
      %p85 = por %p83, %p84
      %p86 = scmp.ne.s32.totalorder %s78, %s80
      %p87 = scmp.eq.s32.totalorder %s28, 1
      %p88 = por %p86, %p87
      %p89 = scmp.ne.s32.totalorder %s80, %s81
      %p90 = scmp.eq.s32.totalorder %s28, 0
      %p91 = por %p89, %p90
      %p92 = scmp.ne.s32.totalorder %s80, %s81
      %p93 = scmp.eq.s32.totalorder %s29, 1
      %p94 = por %p92, %p93
      %p96 = scmp.ne.s32.totalorder %s81, %s95
      %p97 = scmp.eq.s32.totalorder %s29, 0
      %p98 = por %p96, %p97
      %s100 = sadd.s32 %s99, 1
      %p103 = scmp.eq.s32.totalorder %s23, 1
      %p104 = scmp.ne.s32.totalorder %s99, %s101
      %p105 = scmp.eq.s32.totalorder %s23, 0
      %p106 = por %p104, %p105
      %p107 = scmp.ne.s32.totalorder %s99, %s101
      %p108 = scmp.eq.s32.totalorder %s28, 1
      %p109 = por %p107, %p108
      %p110 = scmp.ne.s32.totalorder %s101, %s102
      %p111 = scmp.eq.s32.totalorder %s28, 0
      %p112 = por %p110, %p111
      %p113 = scmp.ne.s32.totalorder %s101, %s102
      %p114 = scmp.eq.s32.totalorder %s29, 1
      %p115 = por %p113, %p114
      %p117 = scmp.ne.s32.totalorder %s102, %s116
      %p118 = scmp.eq.s32.totalorder %s29, 0
      %p119 = por %p117, %p118
      %s121 = sadd.s32 %s120, 1
      %p124 = scmp.eq.s32.totalorder %s23, 1
      %p125 = scmp.ne.s32.totalorder %s120, %s122
      %p126 = scmp.eq.s32.totalorder %s23, 0
      %p127 = por %p125, %p126
      %p128 = scmp.ne.s32.totalorder %s120, %s122
      %p129 = scmp.eq.s32.totalorder %s28, 1
      %p130 = por %p128, %p129
      %p131 = scmp.ne.s32.totalorder %s122, %s123
      %p132 = scmp.eq.s32.totalorder %s28, 0
      %p133 = por %p131, %p132
      %p134 = scmp.ne.s32.totalorder %s122, %s123
      %p135 = scmp.eq.s32.totalorder %s29, 1
      %p136 = por %p134, %p135
      %p138 = scmp.ne.s32.totalorder %s123, %s137
      %p139 = scmp.eq.s32.totalorder %s29, 0
      %p140 = por %p138, %p139
      %s142 = sadd.s32 %s141, 1
      %p145 = scmp.eq.s32.totalorder %s23, 1
      %p146 = scmp.ne.s32.totalorder %s141, %s143
      %p147 = scmp.eq.s32.totalorder %s23, 0
      %p148 = por %p146, %p147
      %p149 = scmp.ne.s32.totalorder %s141, %s143
      %p150 = scmp.eq.s32.totalorder %s28, 1
      %p151 = por %p149, %p150
      %p152 = scmp.ne.s32.totalorder %s143, %s144
      %p153 = scmp.eq.s32.totalorder %s28, 0
      %p154 = por %p152, %p153
      %p155 = scmp.ne.s32.totalorder %s143, %s144
      %p156 = scmp.eq.s32.totalorder %s29, 1
      %p157 = por %p155, %p156
      %p159 = scmp.ne.s32.totalorder %s144, %s158
      %p160 = scmp.eq.s32.totalorder %s29, 0
      %p161 = por %p159, %p160
      %s163 = sadd.s32 %s162, 1
      %p166 = scmp.eq.s32.totalorder %s23, 1
      %p167 = scmp.ne.s32.totalorder %s162, %s164
      %p168 = scmp.eq.s32.totalorder %s23, 0
      %p169 = por %p167, %p168
      %p170 = scmp.ne.s32.totalorder %s162, %s164
      %p171 = scmp.eq.s32.totalorder %s28, 1
      %p172 = por %p170, %p171
      %p173 = scmp.ne.s32.totalorder %s164, %s165
      %p174 = scmp.eq.s32.totalorder %s28, 0
      %p175 = por %p173, %p174
      %p176 = scmp.ne.s32.totalorder %s164, %s165
      %p177 = scmp.eq.s32.totalorder %s29, 1
      %p178 = por %p176, %p177
      %p180 = scmp.ne.s32.totalorder %s165, %s179
      %p181 = scmp.eq.s32.totalorder %s29, 0
      %p182 = por %p180, %p181
      %s184 = sadd.s32 %s183, 1
      %p187 = scmp.eq.s32.totalorder %s23, 1
      %p188 = scmp.ne.s32.totalorder %s183, %s185
      %p189 = scmp.eq.s32.totalorder %s23, 0
      %p190 = por %p188, %p189
      %p191 = scmp.ne.s32.totalorder %s183, %s185
      %p192 = scmp.eq.s32.totalorder %s28, 1
      %p193 = por %p191, %p192
      %p194 = scmp.ne.s32.totalorder %s185, %s186
      %p195 = scmp.eq.s32.totalorder %s28, 0
      %p196 = por %p194, %p195
      %p197 = scmp.ne.s32.totalorder %s185, %s186
      %p198 = scmp.eq.s32.totalorder %s29, 1
      %p199 = por %p197, %p198
      %p201 = scmp.ne.s32.totalorder %s186, %s200
      %p202 = scmp.eq.s32.totalorder %s29, 0
      %p203 = por %p201, %p202
      %s205 = sadd.s32 %s204, 1
      %p208 = scmp.eq.s32.totalorder %s23, 1
      %p209 = scmp.ne.s32.totalorder %s204, %s206
      %p210 = scmp.eq.s32.totalorder %s23, 0
      %p211 = por %p209, %p210
      %p212 = scmp.ne.s32.totalorder %s204, %s206
      %p213 = scmp.eq.s32.totalorder %s28, 1
      %p214 = por %p212, %p213
      %p215 = scmp.ne.s32.totalorder %s206, %s207
      %p216 = scmp.eq.s32.totalorder %s28, 0
      %p217 = por %p215, %p216
      %p218 = scmp.ne.s32.totalorder %s206, %s207
      %p219 = scmp.eq.s32.totalorder %s29, 1
      %p220 = por %p218, %p219
      %p222 = scmp.ne.s32.totalorder %s207, %s221
      %p223 = scmp.eq.s32.totalorder %s29, 0
      %p224 = por %p222, %p223
      %s226 = sadd.s32 %s225, 1
      %p229 = scmp.eq.s32.totalorder %s23, 1
      %p230 = scmp.ne.s32.totalorder %s225, %s227
      %p231 = scmp.eq.s32.totalorder %s23, 0
      %p232 = por %p230, %p231
      %p233 = scmp.ne.s32.totalorder %s225, %s227
      %p234 = scmp.eq.s32.totalorder %s28, 1
      %p235 = por %p233, %p234
      %p236 = scmp.ne.s32.totalorder %s227, %s228
      %p237 = scmp.eq.s32.totalorder %s28, 0
      %p238 = por %p236, %p237
      %p239 = scmp.ne.s32.totalorder %s227, %s228
      %p240 = scmp.eq.s32.totalorder %s29, 1
      %p241 = por %p239, %p240
      %p243 = scmp.ne.s32.totalorder %s228, %s242
      %p244 = scmp.eq.s32.totalorder %s29, 0
      %p245 = por %p243, %p244
      %s247 = sadd.s32 %s246, 1
      %p250 = scmp.eq.s32.totalorder %s23, 1
      %p251 = scmp.ne.s32.totalorder %s246, %s248
      %p252 = scmp.eq.s32.totalorder %s23, 0
      %p253 = por %p251, %p252
      %p254 = scmp.ne.s32.totalorder %s246, %s248
      %p255 = scmp.eq.s32.totalorder %s28, 1
      %p256 = por %p254, %p255
      %p257 = scmp.ne.s32.totalorder %s248, %s249
      %p258 = scmp.eq.s32.totalorder %s28, 0
      %p259 = por %p257, %p258
      %p260 = scmp.ne.s32.totalorder %s248, %s249
      %p261 = scmp.eq.s32.totalorder %s29, 1
      %p262 = por %p260, %p261
      %p264 = scmp.ne.s32.totalorder %s249, %s263
      %p265 = scmp.eq.s32.totalorder %s29, 0
      %p266 = por %p264, %p265
      %s268 = sadd.s32 %s267, 1
      %p271 = scmp.eq.s32.totalorder %s23, 1
      %p272 = scmp.ne.s32.totalorder %s267, %s269
      %p273 = scmp.eq.s32.totalorder %s23, 0
      %p274 = por %p272, %p273
      %p275 = scmp.ne.s32.totalorder %s267, %s269
      %p276 = scmp.eq.s32.totalorder %s28, 1
      %p277 = por %p275, %p276
      %p278 = scmp.ne.s32.totalorder %s269, %s270
      %p279 = scmp.eq.s32.totalorder %s28, 0
      %p280 = por %p278, %p279
      %p281 = scmp.ne.s32.totalorder %s269, %s270
      %p282 = scmp.eq.s32.totalorder %s29, 1
      %p283 = por %p281, %p282
      %p285 = scmp.ne.s32.totalorder %s270, %s284
      %p286 = scmp.eq.s32.totalorder %s29, 0
      %p287 = por %p285, %p286
      %s289 = sadd.s32 %s288, 1
      %p292 = scmp.eq.s32.totalorder %s23, 1
      %p293 = scmp.ne.s32.totalorder %s288, %s290
      %p294 = scmp.eq.s32.totalorder %s23, 0
      %p295 = por %p293, %p294
      %p296 = scmp.ne.s32.totalorder %s288, %s290
      %p297 = scmp.eq.s32.totalorder %s28, 1
      %p298 = por %p296, %p297
      %p299 = scmp.ne.s32.totalorder %s290, %s291
      %p300 = scmp.eq.s32.totalorder %s28, 0
      %p301 = por %p299, %p300
      %p302 = scmp.ne.s32.totalorder %s290, %s291
      %p303 = scmp.eq.s32.totalorder %s29, 1
      %p304 = por %p302, %p303
      %p306 = scmp.ne.s32.totalorder %s291, %s305
      %p307 = scmp.eq.s32.totalorder %s29, 0
      %p308 = por %p306, %p307
      %s310 = sadd.s32 %s309, 1
      %p313 = scmp.eq.s32.totalorder %s23, 1
      %p314 = scmp.ne.s32.totalorder %s309, %s311
      %p315 = scmp.eq.s32.totalorder %s23, 0
      %p316 = por %p314, %p315
      %p317 = scmp.ne.s32.totalorder %s309, %s311
      %p318 = scmp.eq.s32.totalorder %s28, 1
      %p319 = por %p317, %p318
      %p320 = scmp.ne.s32.totalorder %s311, %s312
      %p321 = scmp.eq.s32.totalorder %s28, 0
      %p322 = por %p320, %p321
      %p323 = scmp.ne.s32.totalorder %s311, %s312
      %p324 = scmp.eq.s32.totalorder %s29, 1
      %p325 = por %p323, %p324
      %p327 = scmp.ne.s32.totalorder %s312, %s326
      %p328 = scmp.eq.s32.totalorder %s29, 0
      %p329 = por %p327, %p328
      %s330 = ssub.s32 %s23, %s30
      %p331 = scmp.eq.s32.totalorder %s330, 0
      %s333 = sadd.s32 %s332, 1
      %s334 = scalar_select %p331, %s332, %s333
      %p337 = pneg %p331
      %p338 = scmp.eq.s32.totalorder %s23, 1
      %p339 = por %p337, %p338
      %p340 = scmp.ne.s32.totalorder %s332, %s335
      %p341 = scmp.eq.s32.totalorder %s23, 0
      %p342 = por %p340, %p341
      %p343 = scmp.ne.s32.totalorder %s332, %s335
      %p344 = scmp.eq.s32.totalorder %s28, 1
      %p345 = por %p343, %p344
      %p346 = scmp.ne.s32.totalorder %s335, %s336
      %p347 = scmp.eq.s32.totalorder %s28, 0
      %p348 = por %p346, %p347
      %p349 = scmp.ne.s32.totalorder %s335, %s336
      %p350 = scmp.eq.s32.totalorder %s29, 1
      %p351 = por %p349, %p350
      %p353 = scmp.ne.s32.totalorder %s336, %s352
      %p354 = scmp.eq.s32.totalorder %s29, 0
      %p355 = por %p353, %p354
      %p356 = scmp.le.s32.totalorder 1, %s23
      %p357 = scmp.lt.s32.totalorder %s23, 3
      %p358 = pnand %p356, %p357
      %p359 = pneg %p358
      // Predicated region
      $region9: #{tpu_custom_call.1} parent=5 // pred_check
        _
      $region10: #{tpu_custom_call.1} parent=5 // pred_check_branch
        %361 = sbr.rel (%p358) target = $region12
      $region11: #{tpu_custom_call.1} parent=5 // pred_region
        %s362 = ssub.s32 %s23, 1
        // Predicated region
        $region13: #{tpu_custom_call.1} parent=11 // pred_check
          %p363 = pneg %p70
        $region14: #{tpu_custom_call.1} parent=11 // pred_check_branch
          %365 = sbr.rel (%p363) target = $region16
        $region15: #{tpu_custom_call.1} parent=11 // pred_region
          _
        $region16: #{tpu_custom_call.1} parent=11 // pred_fallthru
          _
        // Predicated region
        $region17: #{tpu_custom_call.1} parent=11 // pred_check
          %p366 = pneg %p91
        $region18: #{tpu_custom_call.1} parent=11 // pred_check_branch
          %368 = sbr.rel (%p366) target = $region20
        $region19: #{tpu_custom_call.1} parent=11 // pred_region
          _
        $region20: #{tpu_custom_call.1} parent=11 // pred_fallthru
          _
        // Predicated region
        $region21: #{tpu_custom_call.1} parent=11 // pred_check
          %p369 = pneg %p112
        $region22: #{tpu_custom_call.1} parent=11 // pred_check_branch
          %371 = sbr.rel (%p369) target = $region24
        $region23: #{tpu_custom_call.1} parent=11 // pred_region
          _
        $region24: #{tpu_custom_call.1} parent=11 // pred_fallthru
          _
        // Predicated region
        $region25: #{tpu_custom_call.1} parent=11 // pred_check
          %p372 = pneg %p133
        $region26: #{tpu_custom_call.1} parent=11 // pred_check_branch
          %374 = sbr.rel (%p372) target = $region28
        $region27: #{tpu_custom_call.1} parent=11 // pred_region
          _
        $region28: #{tpu_custom_call.1} parent=11 // pred_fallthru
          _
        // Predicated region
        $region29: #{tpu_custom_call.1} parent=11 // pred_check
          %p375 = pneg %p154
        $region30: #{tpu_custom_call.1} parent=11 // pred_check_branch
          %377 = sbr.rel (%p375) target = $region32
        $region31: #{tpu_custom_call.1} parent=11 // pred_region
          _
        $region32: #{tpu_custom_call.1} parent=11 // pred_fallthru
          _
        // Predicated region
        $region33: #{tpu_custom_call.1} parent=11 // pred_check
          %p378 = pneg %p175
        $region34: #{tpu_custom_call.1} parent=11 // pred_check_branch
          %380 = sbr.rel (%p378) target = $region36
        $region35: #{tpu_custom_call.1} parent=11 // pred_region
          _
        $region36: #{tpu_custom_call.1} parent=11 // pred_fallthru
          _
        // Predicated region
        $region37: #{tpu_custom_call.1} parent=11 // pred_check
          %p381 = pneg %p196
        $region38: #{tpu_custom_call.1} parent=11 // pred_check_branch
          %383 = sbr.rel (%p381) target = $region40
        $region39: #{tpu_custom_call.1} parent=11 // pred_region
          _
        $region40: #{tpu_custom_call.1} parent=11 // pred_fallthru
          _
        // Predicated region
        $region41: #{tpu_custom_call.1} parent=11 // pred_check
          %p384 = pneg %p217
        $region42: #{tpu_custom_call.1} parent=11 // pred_check_branch
          %386 = sbr.rel (%p384) target = $region44
        $region43: #{tpu_custom_call.1} parent=11 // pred_region
          _
        $region44: #{tpu_custom_call.1} parent=11 // pred_fallthru
          _
        // Predicated region
        $region45: #{tpu_custom_call.1} parent=11 // pred_check
          %p387 = pneg %p238
        $region46: #{tpu_custom_call.1} parent=11 // pred_check_branch
          %389 = sbr.rel (%p387) target = $region48
        $region47: #{tpu_custom_call.1} parent=11 // pred_region
          _
        $region48: #{tpu_custom_call.1} parent=11 // pred_fallthru
          _
        // Predicated region
        $region49: #{tpu_custom_call.1} parent=11 // pred_check
          %p390 = pneg %p259
        $region50: #{tpu_custom_call.1} parent=11 // pred_check_branch
          %392 = sbr.rel (%p390) target = $region52
        $region51: #{tpu_custom_call.1} parent=11 // pred_region
          _
        $region52: #{tpu_custom_call.1} parent=11 // pred_fallthru
          _
        // Predicated region
        $region53: #{tpu_custom_call.1} parent=11 // pred_check
          %p393 = pneg %p280
        $region54: #{tpu_custom_call.1} parent=11 // pred_check_branch
          %395 = sbr.rel (%p393) target = $region56
        $region55: #{tpu_custom_call.1} parent=11 // pred_region
          _
        $region56: #{tpu_custom_call.1} parent=11 // pred_fallthru
          _
        // Predicated region
        $region57: #{tpu_custom_call.1} parent=11 // pred_check
          %p396 = pneg %p301
        $region58: #{tpu_custom_call.1} parent=11 // pred_check_branch
          %398 = sbr.rel (%p396) target = $region60
        $region59: #{tpu_custom_call.1} parent=11 // pred_region
          _
        $region60: #{tpu_custom_call.1} parent=11 // pred_fallthru
          _
        // Predicated region
        $region61: #{tpu_custom_call.1} parent=11 // pred_check
          %p399 = pneg %p322
        $region62: #{tpu_custom_call.1} parent=11 // pred_check_branch
          %401 = sbr.rel (%p399) target = $region64
        $region63: #{tpu_custom_call.1} parent=11 // pred_region
          _
        $region64: #{tpu_custom_call.1} parent=11 // pred_fallthru
          _
      $region12: #{tpu_custom_call.1} parent=5 // pred_fallthru
        _
      %p402 = scmp.lt.s32.totalorder %s23, 2
      // Predicated region
      $region65: #{tpu_custom_call.1} parent=5 // pred_check
        %p403 = pneg %p402
      $region66: #{tpu_custom_call.1} parent=5 // pred_check_branch
        %405 = sbr.rel (%p403) target = $region68
      $region67: #{tpu_custom_call.1} parent=5 // pred_region
        // Predicated region
        $region69: #{tpu_custom_call.1} parent=67 // pred_check
          %p406 = pneg %p43
        $region70: #{tpu_custom_call.1} parent=67 // pred_check_branch
          %408 = sbr.rel (%p406) target = $region72
        $region71: #{tpu_custom_call.1} parent=67 // pred_region
          %p409 = scmp.lt.s32.totalorder %s23, 1
          %s410 = scalar_select %p409, %s23, 1
          %s411 = smul.addr %s410, 2
          %s412 = smul.addr %s411, 8
          %s413 = scalar_lea.vmem %s0, %s412
        $region72: #{tpu_custom_call.1} parent=67 // pred_fallthru
          _
      $region68: #{tpu_custom_call.1} parent=5 // pred_fallthru
        _
      %p414 = scmp.le.s32.totalorder 1, %s23
      %p415 = scmp.lt.s32.totalorder %s23, 3
      %p416 = pnand %p414, %p415
      %p417 = pneg %p416
      // Predicated region
      $region73: #{tpu_custom_call.1} parent=5 // pred_check
        _
      $region74: #{tpu_custom_call.1} parent=5 // pred_check_branch
        %419 = sbr.rel (%p416) target = $region76
      $region75: #{tpu_custom_call.1} parent=5 // pred_region
        %s420 = ssub.s32 %s23, 1
        %p421 = scmp.lt.s32.totalorder %s28, 1
        %s422 = scalar_select %p421, %s28, 1
        %s423 = smul.addr %s422, 2
        %s424 = smul.addr %s423, 8
        %s425 = scalar_lea.vmem %s0, %s424
        %p426 = pneg %p49
        %p427 = pneg %p46
        %p428 = pneg %p70
        %p429 = pneg %p67
        %p430 = pneg %p91
        %p431 = pneg %p88
        %p432 = pneg %p112
        %p433 = pneg %p109
        %p434 = pneg %p133
        %p435 = pneg %p130
        %p436 = pneg %p154
        %p437 = pneg %p151
        %p438 = pneg %p175
        %p439 = pneg %p172
        %p440 = pneg %p196
        %p441 = pneg %p193
        %p442 = pneg %p217
        %p443 = pneg %p214
        %p444 = pneg %p238
        %p445 = pneg %p235
        %p446 = pneg %p259
        %p447 = pneg %p256
        %p448 = pneg %p280
        %p449 = pneg %p277
        %p450 = pneg %p301
        %p451 = pneg %p298
        %p452 = pneg %p322
        %p453 = pneg %p319
        %p454 = pneg %p348
        %p455 = pneg %p345
        %s456 = sand.u32 %s335, 1
        %s457 = scalar_lea.sflag [#allocation3], %s456
        %s458 = sand.u32 %s335, 1
        %s459 = smul.addr %s458, 16
        %s460 = scalar_lea.vmem [#allocation2], %s459
        %p461 = scmp.lt.s32.totalorder %s28, 1
        %s462 = scalar_select %p461, %s28, 1
        %s463 = smul.addr %s462, 2
        %s464 = smul.addr %s463, 8
        %s465 = scalar_lea.vmem %s0, %s464
        %v466 = vld [vmem:[%s465] sm:$0xff]
        %v467 = vld [vmem:[%s465 + $0x8] sm:$0xff]
        %v468 = vld [vmem:[%s10] sm:$0x1]
        %v469 = vld [vmem:[%s11] sm:$0x1]
        %470 = vadd.xlane.f32.xlu0 %v466
        %v471 = vpop.xlane.xlu0 %470
        %472 = vadd.xlane.f32.xlu0 %v467
        %v473 = vpop.xlane.xlu0 %472
        %v474 = vrcp.pop 128.0
        %v475 = vmul.f32 %v471, %v474
        %v476 = vmul.f32 %v473, %v474
        %v477 = vsub.f32 %v466, %v475
        %v478 = vsub.f32 %v467, %v476
        %v479 = vmul.f32 %v477, %v477
        %v480 = vmul.f32 %v478, %v478
        %481 = vadd.xlane.f32.xlu0 %v479
        %v482 = vpop.xlane.xlu0 %481
        %483 = vadd.xlane.f32.xlu0 %v480
        %v484 = vpop.xlane.xlu0 %483
        %v485 = vmul.f32 %v482, %v474
        %v486 = vmul.f32 %v484, %v474
        %v487 = vadd.f32 %v485, 1e-05
        %v488 = vadd.f32 %v486, 1e-05
        %v489 = vrsqrt.pop %v487
        %v490 = vrsqrt.pop %v488
        %v491 = vmul.f32 %v477, %v489
        %v492 = vmul.f32 %v478, %v490
        %v494 = vlaneseq
        %v495 = vshrl.u32 %v494, 7
        %v496 = vsub.s32 0, %v495
        %v497 = vrot.slane %v468, %v496
        %v499 = vmul.f32 %v491, %v497
        %v500 = vmul.f32 %v492, %v497
        %v502 = vlaneseq
        %v503 = vshrl.u32 %v502, 7
        %v504 = vsub.s32 0, %v503
        %v505 = vrot.slane %v469, %v504
        %v507 = vadd.f32 %v499, %v505
        %v508 = vadd.f32 %v500, %v505
        %v509 = vld [vmem:[%s1] sm:$0xff]
        %v510 = vld [vmem:[%s1 + $0x8] sm:$0xff]
        %v511 = vld [vmem:[%s1 + $0x10] sm:$0xff]
        %v512 = vld [vmem:[%s1 + $0x18] sm:$0xff]
        %v513 = vld [vmem:[%s1 + $0x20] sm:$0xff]
        %v514 = vld [vmem:[%s1 + $0x28] sm:$0xff]
        %v515 = vld [vmem:[%s1 + $0x30] sm:$0xff]
        %v516 = vld [vmem:[%s1 + $0x38] sm:$0xff]
        %v517 = vld [vmem:[%s1 + $0x40] sm:$0xff]
        %v518 = vld [vmem:[%s1 + $0x48] sm:$0xff]
        %v519 = vld [vmem:[%s1 + $0x50] sm:$0xff]
        %v520 = vld [vmem:[%s1 + $0x58] sm:$0xff]
        %v521 = vld [vmem:[%s1 + $0x60] sm:$0xff]
        %v522 = vld [vmem:[%s1 + $0x68] sm:$0xff]
        %v523 = vld [vmem:[%s1 + $0x70] sm:$0xff]
        %v524 = vld [vmem:[%s1 + $0x78] sm:$0xff]
        %525 = vmatprep.subr.mxu0 0.0
        %526 = vmatpush1.msra.mxu0 %v509
        %527 = vmatprep.subr.mxu0 0.0
        %528 = vmatpush1.msra.mxu0 %v510
        %529 = vmatprep.subr.mxu0 0.0
        %530 = vmatpush1.msra.mxu0 %v511
        %531 = vmatprep.subr.mxu0 0.0
        %532 = vmatpush1.msra.mxu0 %v512
        %533 = vmatprep.subr.mxu0 0.0
        %534 = vmatpush1.msra.mxu0 %v513
        %535 = vmatprep.subr.mxu0 0.0
        %536 = vmatpush1.msra.mxu0 %v514
        %537 = vmatprep.subr.mxu0 0.0
        %538 = vmatpush1.msra.mxu0 %v515
        %539 = vmatprep.subr.mxu0 0.0
        %540 = vmatpush1.msra.mxu0 %v516
        %541 = vmatprep.subr.mxu0 0.0
        %542 = vmatpush1.msra.mxu0 %v517
        %543 = vmatprep.subr.mxu0 0.0
        %544 = vmatpush1.msra.mxu0 %v518
        %545 = vmatprep.subr.mxu0 0.0
        %546 = vmatpush1.msra.mxu0 %v519
        %547 = vmatprep.subr.mxu0 0.0
        %548 = vmatpush1.msra.mxu0 %v520
        %549 = vmatprep.subr.mxu0 0.0
        %550 = vmatpush1.msra.mxu0 %v521
        %551 = vmatprep.subr.mxu0 0.0
        %552 = vmatpush1.msra.mxu0 %v522
        %553 = vmatprep.subr.mxu0 0.0
        %554 = vmatpush1.msra.mxu0 %v523
        %555 = vmatprep.subr.mxu0 0.0
        %556 = vmatpush1.msra.mxu0 %v524
        %557 = vmatprep.subr.mxu0 0.0
        %558 = vmatpush1.msra.mxu0 0.0
        %559 = vmatprep.subr.mxu0 0.0
        %560 = vmatpush1.msra.mxu0 0.0
        %561 = vmatprep.subr.mxu0 0.0
        %562 = vmatpush1.msra.mxu0 0.0
        %563 = vmatprep.subr.mxu0 0.0
        %564 = vmatpush1.msra.mxu0 0.0
        %565 = vmatprep.subr.mxu0 0.0
        %566 = vmatpush1.msra.mxu0 0.0
        %567 = vmatprep.subr.mxu0 0.0
        %568 = vmatpush1.msra.mxu0 0.0
        %569 = vmatprep.subr.mxu0 0.0
        %570 = vmatpush1.msra.mxu0 0.0
        %571 = vmatprep.subr.mxu0 0.0
        %572 = vmatpush1.msra.mxu0 0.0
        %573 = vmatprep.subr.mxu0 0.0
        %574 = vmatpush1.msra.mxu0 0.0
        %575 = vmatprep.subr.mxu0 0.0
        %576 = vmatpush1.msra.mxu0 0.0
        %577 = vmatprep.subr.mxu0 0.0
        %578 = vmatpush1.msra.mxu0 0.0
        %579 = vmatprep.subr.mxu0 0.0
        %580 = vmatpush1.msra.mxu0 0.0
        %581 = vmatprep.subr.mxu0 0.0
        %582 = vmatpush1.msra.mxu0 0.0
        %583 = vmatprep.subr.mxu0 0.0
        %584 = vmatpush1.msra.mxu0 0.0
        %585 = vmatprep.subr.mxu0 0.0
        %586 = vmatpush1.msra.mxu0 0.0
        %587 = vmatprep.subr.mxu0 0.0
        %588 = vmatpush1.msra.mxu0 0.0
        %589 = vmatprep.mubr.f32.mxu0 0.0
        %590 = vmatmul.mubr.f32.gmra.mrb[0].mxu0 %v507
        %v591 = vpop.f32.mrb[0].mxu0
        %v592 = vadd.f32 0.0, %v591
        %v593 = vpop.f32.mrb[0].mxu0
        %594 = vmatprep.mubr.f32.mxu0 0.0
        %595 = vmatmul.mubr.f32.gmra.mrb[0].mxu0 %v508
        %v596 = vpop.f32.mrb[0].mxu0
        %v597 = vadd.f32 0.0, %v596
        %v598 = vpop.f32.mrb[0].mxu0
        %599 = vdwg.mxu0
        %v600 = vld [vmem:[%s2] sm:$0xff]
        %v601 = vld [vmem:[%s2 + $0x8] sm:$0xff]
        %v602 = vld [vmem:[%s2 + $0x10] sm:$0xff]
        %v603 = vld [vmem:[%s2 + $0x18] sm:$0xff]
        %v604 = vld [vmem:[%s2 + $0x20] sm:$0xff]
        %v605 = vld [vmem:[%s2 + $0x28] sm:$0xff]
        %v606 = vld [vmem:[%s2 + $0x30] sm:$0xff]
        %v607 = vld [vmem:[%s2 + $0x38] sm:$0xff]
        %v608 = vld [vmem:[%s2 + $0x40] sm:$0xff]
        %v609 = vld [vmem:[%s2 + $0x48] sm:$0xff]
        %v610 = vld [vmem:[%s2 + $0x50] sm:$0xff]
        %v611 = vld [vmem:[%s2 + $0x58] sm:$0xff]
        %v612 = vld [vmem:[%s2 + $0x60] sm:$0xff]
        %v613 = vld [vmem:[%s2 + $0x68] sm:$0xff]
        %v614 = vld [vmem:[%s2 + $0x70] sm:$0xff]
        %v615 = vld [vmem:[%s2 + $0x78] sm:$0xff]
        %616 = vmatprep.subr.mxu0 0.0
        %617 = vmatpush1.msra.mxu0 %v600
        %618 = vmatprep.subr.mxu0 0.0
        %619 = vmatpush1.msra.mxu0 %v601
        %620 = vmatprep.subr.mxu0 0.0
        %621 = vmatpush1.msra.mxu0 %v602
        %622 = vmatprep.subr.mxu0 0.0
        %623 = vmatpush1.msra.mxu0 %v603
        %624 = vmatprep.subr.mxu0 0.0
        %625 = vmatpush1.msra.mxu0 %v604
        %626 = vmatprep.subr.mxu0 0.0
        %627 = vmatpush1.msra.mxu0 %v605
        %628 = vmatprep.subr.mxu0 0.0
        %629 = vmatpush1.msra.mxu0 %v606
        %630 = vmatprep.subr.mxu0 0.0
        %631 = vmatpush1.msra.mxu0 %v607
        %632 = vmatprep.subr.mxu0 0.0
        %633 = vmatpush1.msra.mxu0 %v608
        %634 = vmatprep.subr.mxu0 0.0
        %635 = vmatpush1.msra.mxu0 %v609
        %636 = vmatprep.subr.mxu0 0.0
        %637 = vmatpush1.msra.mxu0 %v610
        %638 = vmatprep.subr.mxu0 0.0
        %639 = vmatpush1.msra.mxu0 %v611
        %640 = vmatprep.subr.mxu0 0.0
        %641 = vmatpush1.msra.mxu0 %v612
        %642 = vmatprep.subr.mxu0 0.0
        %643 = vmatpush1.msra.mxu0 %v613
        %644 = vmatprep.subr.mxu0 0.0
        %645 = vmatpush1.msra.mxu0 %v614
        %646 = vmatprep.subr.mxu0 0.0
        %647 = vmatpush1.msra.mxu0 %v615
        %648 = vmatprep.subr.mxu0 0.0
        %649 = vmatpush1.msra.mxu0 0.0
        %650 = vmatprep.subr.mxu0 0.0
        %651 = vmatpush1.msra.mxu0 0.0
        %652 = vmatprep.subr.mxu0 0.0
        %653 = vmatpush1.msra.mxu0 0.0
        %654 = vmatprep.subr.mxu0 0.0
        %655 = vmatpush1.msra.mxu0 0.0
        %656 = vmatprep.subr.mxu0 0.0
        %657 = vmatpush1.msra.mxu0 0.0
        %658 = vmatprep.subr.mxu0 0.0
        %659 = vmatpush1.msra.mxu0 0.0
        %660 = vmatprep.subr.mxu0 0.0
        %661 = vmatpush1.msra.mxu0 0.0
        %662 = vmatprep.subr.mxu0 0.0
        %663 = vmatpush1.msra.mxu0 0.0
        %664 = vmatprep.subr.mxu0 0.0
        %665 = vmatpush1.msra.mxu0 0.0
        %666 = vmatprep.subr.mxu0 0.0
        %667 = vmatpush1.msra.mxu0 0.0
        %668 = vmatprep.subr.mxu0 0.0
        %669 = vmatpush1.msra.mxu0 0.0
        %670 = vmatprep.subr.mxu0 0.0
        %671 = vmatpush1.msra.mxu0 0.0
        %672 = vmatprep.subr.mxu0 0.0
        %673 = vmatpush1.msra.mxu0 0.0
        %674 = vmatprep.subr.mxu0 0.0
        %675 = vmatpush1.msra.mxu0 0.0
        %676 = vmatprep.subr.mxu0 0.0
        %677 = vmatpush1.msra.mxu0 0.0
        %678 = vmatprep.subr.mxu0 0.0
        %679 = vmatpush1.msra.mxu0 0.0
        %680 = vmatprep.mubr.f32.mxu0 0.0
        %681 = vmatmul.mubr.f32.gmra.mrb[0].mxu0 %v507
        %v682 = vpop.f32.mrb[0].mxu0
        %v683 = vadd.f32 0.0, %v682
        %v684 = vpop.f32.mrb[0].mxu0
        %685 = vmatprep.mubr.f32.mxu0 0.0
        %686 = vmatmul.mubr.f32.gmra.mrb[0].mxu0 %v508
        %v687 = vpop.f32.mrb[0].mxu0
        %v688 = vadd.f32 0.0, %v687
        %v689 = vpop.f32.mrb[0].mxu0
        %690 = vdwg.mxu0
        %v691 = vld [vmem:[%s3] sm:$0xff]
        %v692 = vld [vmem:[%s3 + $0x8] sm:$0xff]
        %v693 = vld [vmem:[%s3 + $0x10] sm:$0xff]
        %v694 = vld [vmem:[%s3 + $0x18] sm:$0xff]
        %v695 = vld [vmem:[%s3 + $0x20] sm:$0xff]
        %v696 = vld [vmem:[%s3 + $0x28] sm:$0xff]
        %v697 = vld [vmem:[%s3 + $0x30] sm:$0xff]
        %v698 = vld [vmem:[%s3 + $0x38] sm:$0xff]
        %v699 = vld [vmem:[%s3 + $0x40] sm:$0xff]
        %v700 = vld [vmem:[%s3 + $0x48] sm:$0xff]
        %v701 = vld [vmem:[%s3 + $0x50] sm:$0xff]
        %v702 = vld [vmem:[%s3 + $0x58] sm:$0xff]
        %v703 = vld [vmem:[%s3 + $0x60] sm:$0xff]
        %v704 = vld [vmem:[%s3 + $0x68] sm:$0xff]
        %v705 = vld [vmem:[%s3 + $0x70] sm:$0xff]
        %v706 = vld [vmem:[%s3 + $0x78] sm:$0xff]
        %707 = vmatprep.subr.mxu0 0.0
        %708 = vmatpush1.msra.mxu0 %v691
        %709 = vmatprep.subr.mxu0 0.0
        %710 = vmatpush1.msra.mxu0 %v692
        %711 = vmatprep.subr.mxu0 0.0
        %712 = vmatpush1.msra.mxu0 %v693
        %713 = vmatprep.subr.mxu0 0.0
        %714 = vmatpush1.msra.mxu0 %v694
        %715 = vmatprep.subr.mxu0 0.0
        %716 = vmatpush1.msra.mxu0 %v695
        %717 = vmatprep.subr.mxu0 0.0
        %718 = vmatpush1.msra.mxu0 %v696
        %719 = vmatprep.subr.mxu0 0.0
        %720 = vmatpush1.msra.mxu0 %v697
        %721 = vmatprep.subr.mxu0 0.0
        %722 = vmatpush1.msra.mxu0 %v698
        %723 = vmatprep.subr.mxu0 0.0
        %724 = vmatpush1.msra.mxu0 %v699
        %725 = vmatprep.subr.mxu0 0.0
        %726 = vmatpush1.msra.mxu0 %v700
        %727 = vmatprep.subr.mxu0 0.0
        %728 = vmatpush1.msra.mxu0 %v701
        %729 = vmatprep.subr.mxu0 0.0
        %730 = vmatpush1.msra.mxu0 %v702
        %731 = vmatprep.subr.mxu0 0.0
        %732 = vmatpush1.msra.mxu0 %v703
        %733 = vmatprep.subr.mxu0 0.0
        %734 = vmatpush1.msra.mxu0 %v704
        %735 = vmatprep.subr.mxu0 0.0
        %736 = vmatpush1.msra.mxu0 %v705
        %737 = vmatprep.subr.mxu0 0.0
        %738 = vmatpush1.msra.mxu0 %v706
        %739 = vmatprep.subr.mxu0 0.0
        %740 = vmatpush1.msra.mxu0 0.0
        %741 = vmatprep.subr.mxu0 0.0
        %742 = vmatpush1.msra.mxu0 0.0
        %743 = vmatprep.subr.mxu0 0.0
        %744 = vmatpush1.msra.mxu0 0.0
        %745 = vmatprep.subr.mxu0 0.0
        %746 = vmatpush1.msra.mxu0 0.0
        %747 = vmatprep.subr.mxu0 0.0
        %748 = vmatpush1.msra.mxu0 0.0
        %749 = vmatprep.subr.mxu0 0.0
        %750 = vmatpush1.msra.mxu0 0.0
        %751 = vmatprep.subr.mxu0 0.0
        %752 = vmatpush1.msra.mxu0 0.0
        %753 = vmatprep.subr.mxu0 0.0
        %754 = vmatpush1.msra.mxu0 0.0
        %755 = vmatprep.subr.mxu0 0.0
        %756 = vmatpush1.msra.mxu0 0.0
        %757 = vmatprep.subr.mxu0 0.0
        %758 = vmatpush1.msra.mxu0 0.0
        %759 = vmatprep.subr.mxu0 0.0
        %760 = vmatpush1.msra.mxu0 0.0
        %761 = vmatprep.subr.mxu0 0.0
        %762 = vmatpush1.msra.mxu0 0.0
        %763 = vmatprep.subr.mxu0 0.0
        %764 = vmatpush1.msra.mxu0 0.0
        %765 = vmatprep.subr.mxu0 0.0
        %766 = vmatpush1.msra.mxu0 0.0
        %767 = vmatprep.subr.mxu0 0.0
        %768 = vmatpush1.msra.mxu0 0.0
        %769 = vmatprep.subr.mxu0 0.0
        %770 = vmatpush1.msra.mxu0 0.0
        %771 = vmatprep.mubr.f32.mxu0 0.0
        %772 = vmatmul.mubr.f32.gmra.mrb[0].mxu0 %v507
        %v773 = vpop.f32.mrb[0].mxu0
        %v774 = vadd.f32 0.0, %v773
        %v775 = vpop.f32.mrb[0].mxu0
        %776 = vmatprep.mubr.f32.mxu0 0.0
        %777 = vmatmul.mubr.f32.gmra.mrb[0].mxu0 %v508
        %v778 = vpop.f32.mrb[0].mxu0
        %v779 = vadd.f32 0.0, %v778
        %v780 = vpop.f32.mrb[0].mxu0
        %781 = vdwg.mxu0
        %vm782 = vcmask 130048
        %v784 = vsel %vm782, %v592, 0
        %v787 = vsel %vm782, %v597, 0
        %v790 = vsel %vm782, %v683, 0
        %v793 = vsel %vm782, %v688, 0
        %795 = vmatprep.subr.mxu0 0.0
        %796 = vmatpush1.xpose.msra.mxu0 %v790
        %797 = vmatprep.subr.mxu0 0.0
        %798 = vmatpush1.xpose.msra.mxu0 %v793
        %799 = vmatprep.subr.mxu0 0.0
        %800 = vmatpush1.xpose.msra.mxu0 0.0
        %801 = vmatprep.subr.mxu0 0.0
        %802 = vmatpush1.xpose.msra.mxu0 0.0
        %803 = vmatprep.subr.mxu0 0.0
        %804 = vmatpush1.xpose.msra.mxu0 0.0
        %805 = vmatprep.subr.mxu0 0.0
        %806 = vmatpush1.xpose.msra.mxu0 0.0
        %807 = vmatprep.subr.mxu0 0.0
        %808 = vmatpush1.xpose.msra.mxu0 0.0
        %809 = vmatprep.subr.mxu0 0.0
        %810 = vmatpush1.xpose.msra.mxu0 0.0
        %811 = vmatprep.subr.mxu0 0.0
        %812 = vmatpush1.xpose.msra.mxu0 0.0
        %813 = vmatprep.subr.mxu0 0.0
        %814 = vmatpush1.xpose.msra.mxu0 0.0
        %815 = vmatprep.subr.mxu0 0.0
        %816 = vmatpush1.xpose.msra.mxu0 0.0
        %817 = vmatprep.subr.mxu0 0.0
        %818 = vmatpush1.xpose.msra.mxu0 0.0
        %819 = vmatprep.subr.mxu0 0.0
        %820 = vmatpush1.xpose.msra.mxu0 0.0
        %821 = vmatprep.subr.mxu0 0.0
        %822 = vmatpush1.xpose.msra.mxu0 0.0
        %823 = vmatprep.subr.mxu0 0.0
        %824 = vmatpush1.xpose.msra.mxu0 0.0
        %825 = vmatprep.subr.mxu0 0.0
        %826 = vmatpush1.xpose.msra.mxu0 0.0
        %827 = vmatprep.subr.mxu0 0.0
        %828 = vmatpush1.xpose.msra.mxu0 0.0
        %829 = vmatprep.subr.mxu0 0.0
        %830 = vmatpush1.xpose.msra.mxu0 0.0
        %831 = vmatprep.subr.mxu0 0.0
        %832 = vmatpush1.xpose.msra.mxu0 0.0
        %833 = vmatprep.subr.mxu0 0.0
        %834 = vmatpush1.xpose.msra.mxu0 0.0
        %835 = vmatprep.subr.mxu0 0.0
        %836 = vmatpush1.xpose.msra.mxu0 0.0
        %837 = vmatprep.subr.mxu0 0.0
        %838 = vmatpush1.xpose.msra.mxu0 0.0
        %839 = vmatprep.subr.mxu0 0.0
        %840 = vmatpush1.xpose.msra.mxu0 0.0
        %841 = vmatprep.subr.mxu0 0.0
        %842 = vmatpush1.xpose.msra.mxu0 0.0
        %843 = vmatprep.subr.mxu0 0.0
        %844 = vmatpush1.xpose.msra.mxu0 0.0
        %845 = vmatprep.subr.mxu0 0.0
        %846 = vmatpush1.xpose.msra.mxu0 0.0
        %847 = vmatprep.subr.mxu0 0.0
        %848 = vmatpush1.xpose.msra.mxu0 0.0
        %849 = vmatprep.subr.mxu0 0.0
        %850 = vmatpush1.xpose.msra.mxu0 0.0
        %851 = vmatprep.subr.mxu0 0.0
        %852 = vmatpush1.xpose.msra.mxu0 0.0
        %853 = vmatprep.subr.mxu0 0.0
        %854 = vmatpush1.xpose.msra.mxu0 0.0
        %855 = vmatprep.subr.mxu0 0.0
        %856 = vmatpush1.xpose.msra.mxu0 0.0
        %857 = vmatprep.subr.mxu0 0.0
        %858 = vmatpush1.xpose.msra.mxu0 0.0
        %859 = vmatprep.mubr.f32.mxu0 0.0
        %860 = vmatmul.mubr.f32.gmra.mrb[0].mxu0 %v784
        %v861 = vpop.f32.mrb[0].mxu0
        %v862 = vadd.f32 0.0, %v861
        %v863 = vpop.f32.mrb[0].mxu0
        %864 = vmatprep.mubr.f32.mxu0 0.0
        %865 = vmatmul.mubr.f32.gmra.mrb[0].mxu0 %v787
        %v866 = vpop.f32.mrb[0].mxu0
        %v867 = vadd.f32 0.0, %v866
        %v868 = vpop.f32.mrb[0].mxu0
        %869 = vdwg.mxu0
        %v870 = vmul.f32 %v862, 0.25
        %v871 = vmul.f32 %v867, 0.25
        %v872 = vsel %vm782, %v870, -inf
        %873 = vmax.xlane.f32.xlu0 %v872
        %v874 = vpop.xlane.xlu0 %873
        %v875 = vsel %vm782, %v871, -inf
        %876 = vmax.xlane.f32.xlu0 %v875
        %v877 = vpop.xlane.xlu0 %876
        %v878 = vsub.f32 %v870, %v874
        %v879 = vsub.f32 %v871, %v877
        %v880 = vmul.f32 %v878, 1.442695
        %v881 = vpow.pop %v880
        %v882 = vmul.f32 %v879, 1.442695
        %v883 = vpow.pop %v882
        %v884 = vsel %vm782, %v881, 0.0
        %885 = vadd.xlane.f32.xlu0 %v884
        %v886 = vpop.xlane.xlu0 %885
        %v887 = vsel %vm782, %v883, 0.0
        %888 = vadd.xlane.f32.xlu0 %v887
        %v889 = vpop.xlane.xlu0 %888
        %v890 = vrcp.pop %v886
        %v891 = vmul.f32 %v881, %v890
        %v892 = vrcp.pop %v889
        %v893 = vmul.f32 %v883, %v892
        %v895 = vsel %vm782, %v891, 0
        %v898 = vsel %vm782, %v893, 0
        %900 = vmatprep.subr.mxu0 0.0
        %901 = vmatpush1.msra.mxu0 %v774
        %902 = vmatprep.subr.mxu0 0.0
        %903 = vmatpush1.msra.mxu0 %v779
        %904 = vmatprep.subr.mxu0 0.0
        %905 = vmatpush1.msra.mxu0 0.0
        %906 = vmatprep.subr.mxu0 0.0
        %907 = vmatpush1.msra.mxu0 0.0
        %908 = vmatprep.subr.mxu0 0.0
        %909 = vmatpush1.msra.mxu0 0.0
        %910 = vmatprep.subr.mxu0 0.0
        %911 = vmatpush1.msra.mxu0 0.0
        %912 = vmatprep.subr.mxu0 0.0
        %913 = vmatpush1.msra.mxu0 0.0
        %914 = vmatprep.subr.mxu0 0.0
        %915 = vmatpush1.msra.mxu0 0.0
        %916 = vmatprep.subr.mxu0 0.0
        %917 = vmatpush1.msra.mxu0 0.0
        %918 = vmatprep.subr.mxu0 0.0
        %919 = vmatpush1.msra.mxu0 0.0
        %920 = vmatprep.subr.mxu0 0.0
        %921 = vmatpush1.msra.mxu0 0.0
        %922 = vmatprep.subr.mxu0 0.0
        %923 = vmatpush1.msra.mxu0 0.0
        %924 = vmatprep.subr.mxu0 0.0
        %925 = vmatpush1.msra.mxu0 0.0
        %926 = vmatprep.subr.mxu0 0.0
        %927 = vmatpush1.msra.mxu0 0.0
        %928 = vmatprep.subr.mxu0 0.0
        %929 = vmatpush1.msra.mxu0 0.0
        %930 = vmatprep.subr.mxu0 0.0
        %931 = vmatpush1.msra.mxu0 0.0
        %932 = vmatprep.subr.mxu0 0.0
        %933 = vmatpush1.msra.mxu0 0.0
        %934 = vmatprep.subr.mxu0 0.0
        %935 = vmatpush1.msra.mxu0 0.0
        %936 = vmatprep.subr.mxu0 0.0
        %937 = vmatpush1.msra.mxu0 0.0
        %938 = vmatprep.subr.mxu0 0.0
        %939 = vmatpush1.msra.mxu0 0.0
        %940 = vmatprep.subr.mxu0 0.0
        %941 = vmatpush1.msra.mxu0 0.0
        %942 = vmatprep.subr.mxu0 0.0
        %943 = vmatpush1.msra.mxu0 0.0
        %944 = vmatprep.subr.mxu0 0.0
        %945 = vmatpush1.msra.mxu0 0.0
        %946 = vmatprep.subr.mxu0 0.0
        %947 = vmatpush1.msra.mxu0 0.0
        %948 = vmatprep.subr.mxu0 0.0
        %949 = vmatpush1.msra.mxu0 0.0
        %950 = vmatprep.subr.mxu0 0.0
        %951 = vmatpush1.msra.mxu0 0.0
        %952 = vmatprep.subr.mxu0 0.0
        %953 = vmatpush1.msra.mxu0 0.0
        %954 = vmatprep.subr.mxu0 0.0
        %955 = vmatpush1.msra.mxu0 0.0
        %956 = vmatprep.subr.mxu0 0.0
        %957 = vmatpush1.msra.mxu0 0.0
        %958 = vmatprep.subr.mxu0 0.0
        %959 = vmatpush1.msra.mxu0 0.0
        %960 = vmatprep.subr.mxu0 0.0
        %961 = vmatpush1.msra.mxu0 0.0
        %962 = vmatprep.subr.mxu0 0.0
        %963 = vmatpush1.msra.mxu0 0.0
        %964 = vmatprep.mubr.f32.mxu0 0.0
        %965 = vmatmul.mubr.f32.gmra.mrb[0].mxu0 %v895
        %v966 = vpop.f32.mrb[0].mxu0
        %v967 = vadd.f32 0.0, %v966
        %v968 = vpop.f32.mrb[0].mxu0
        %969 = vmatprep.mubr.f32.mxu0 0.0
        %970 = vmatmul.mubr.f32.gmra.mrb[0].mxu0 %v898
        %v971 = vpop.f32.mrb[0].mxu0
        %v972 = vadd.f32 0.0, %v971
        %v973 = vpop.f32.mrb[0].mxu0
        %974 = vdwg.mxu0
        %v975 = vld [vmem:[%s4] sm:$0xff]
        %v976 = vld [vmem:[%s4 + $0x8] sm:$0xff]
        %s977 = scalar_lea.vmem %s1, 128
        %v978 = vld [vmem:[%s977] sm:$0xff]
        %v979 = vld [vmem:[%s977 + $0x8] sm:$0xff]
        %v980 = vld [vmem:[%s977 + $0x10] sm:$0xff]
        %v981 = vld [vmem:[%s977 + $0x18] sm:$0xff]
        %v982 = vld [vmem:[%s977 + $0x20] sm:$0xff]
        %v983 = vld [vmem:[%s977 + $0x28] sm:$0xff]
        %v984 = vld [vmem:[%s977 + $0x30] sm:$0xff]
        %v985 = vld [vmem:[%s977 + $0x38] sm:$0xff]
        %v986 = vld [vmem:[%s977 + $0x40] sm:$0xff]
        %v987 = vld [vmem:[%s977 + $0x48] sm:$0xff]
        %v988 = vld [vmem:[%s977 + $0x50] sm:$0xff]
        %v989 = vld [vmem:[%s977 + $0x58] sm:$0xff]
        %v990 = vld [vmem:[%s977 + $0x60] sm:$0xff]
        %v991 = vld [vmem:[%s977 + $0x68] sm:$0xff]
        %v992 = vld [vmem:[%s977 + $0x70] sm:$0xff]
        %v993 = vld [vmem:[%s977 + $0x78] sm:$0xff]
        %994 = vmatprep.subr.mxu0 0.0
        %995 = vmatpush1.msra.mxu0 %v978
        %996 = vmatprep.subr.mxu0 0.0
        %997 = vmatpush1.msra.mxu0 %v979
        %998 = vmatprep.subr.mxu0 0.0
        %999 = vmatpush1.msra.mxu0 %v980
        %1000 = vmatprep.subr.mxu0 0.0
        %1001 = vmatpush1.msra.mxu0 %v981
        %1002 = vmatprep.subr.mxu0 0.0
        %1003 = vmatpush1.msra.mxu0 %v982
        %1004 = vmatprep.subr.mxu0 0.0
        %1005 = vmatpush1.msra.mxu0 %v983
        %1006 = vmatprep.subr.mxu0 0.0
        %1007 = vmatpush1.msra.mxu0 %v984
        %1008 = vmatprep.subr.mxu0 0.0
        %1009 = vmatpush1.msra.mxu0 %v985
        %1010 = vmatprep.subr.mxu0 0.0
        %1011 = vmatpush1.msra.mxu0 %v986
        %1012 = vmatprep.subr.mxu0 0.0
        %1013 = vmatpush1.msra.mxu0 %v987
        %1014 = vmatprep.subr.mxu0 0.0
        %1015 = vmatpush1.msra.mxu0 %v988
        %1016 = vmatprep.subr.mxu0 0.0
        %1017 = vmatpush1.msra.mxu0 %v989
        %1018 = vmatprep.subr.mxu0 0.0
        %1019 = vmatpush1.msra.mxu0 %v990
        %1020 = vmatprep.subr.mxu0 0.0
        %1021 = vmatpush1.msra.mxu0 %v991
        %1022 = vmatprep.subr.mxu0 0.0
        %1023 = vmatpush1.msra.mxu0 %v992
        %1024 = vmatprep.subr.mxu0 0.0
        %1025 = vmatpush1.msra.mxu0 %v993
        %1026 = vmatprep.subr.mxu0 0.0
        %1027 = vmatpush1.msra.mxu0 0.0
        %1028 = vmatprep.subr.mxu0 0.0
        %1029 = vmatpush1.msra.mxu0 0.0
        %1030 = vmatprep.subr.mxu0 0.0
        %1031 = vmatpush1.msra.mxu0 0.0
        %1032 = vmatprep.subr.mxu0 0.0
        %1033 = vmatpush1.msra.mxu0 0.0
        %1034 = vmatprep.subr.mxu0 0.0
        %1035 = vmatpush1.msra.mxu0 0.0
        %1036 = vmatprep.subr.mxu0 0.0
        %1037 = vmatpush1.msra.mxu0 0.0
        %1038 = vmatprep.subr.mxu0 0.0
        %1039 = vmatpush1.msra.mxu0 0.0
        %1040 = vmatprep.subr.mxu0 0.0
        %1041 = vmatpush1.msra.mxu0 0.0
        %1042 = vmatprep.subr.mxu0 0.0
        %1043 = vmatpush1.msra.mxu0 0.0
        %1044 = vmatprep.subr.mxu0 0.0
        %1045 = vmatpush1.msra.mxu0 0.0
        %1046 = vmatprep.subr.mxu0 0.0
        %1047 = vmatpush1.msra.mxu0 0.0
        %1048 = vmatprep.subr.mxu0 0.0
        %1049 = vmatpush1.msra.mxu0 0.0
        %1050 = vmatprep.subr.mxu0 0.0
        %1051 = vmatpush1.msra.mxu0 0.0
        %1052 = vmatprep.subr.mxu0 0.0
        %1053 = vmatpush1.msra.mxu0 0.0
        %1054 = vmatprep.subr.mxu0 0.0
        %1055 = vmatpush1.msra.mxu0 0.0
        %1056 = vmatprep.subr.mxu0 0.0
        %1057 = vmatpush1.msra.mxu0 0.0
        %1058 = vmatprep.mubr.f32.mxu0 0.0
        %1059 = vmatmul.mubr.f32.gmra.mrb[0].mxu0 %v507
        %v1060 = vpop.f32.mrb[0].mxu0
        %v1061 = vadd.f32 0.0, %v1060
        %v1062 = vpop.f32.mrb[0].mxu0
        %1063 = vmatprep.mubr.f32.mxu0 0.0
        %1064 = vmatmul.mubr.f32.gmra.mrb[0].mxu0 %v508
        %v1065 = vpop.f32.mrb[0].mxu0
        %v1066 = vadd.f32 0.0, %v1065
        %v1067 = vpop.f32.mrb[0].mxu0
        %1068 = vdwg.mxu0
        %s1069 = scalar_lea.vmem %s2, 128
        %v1070 = vld [vmem:[%s1069] sm:$0xff]
        %v1071 = vld [vmem:[%s1069 + $0x8] sm:$0xff]
        %v1072 = vld [vmem:[%s1069 + $0x10] sm:$0xff]
        %v1073 = vld [vmem:[%s1069 + $0x18] sm:$0xff]
        %v1074 = vld [vmem:[%s1069 + $0x20] sm:$0xff]
        %v1075 = vld [vmem:[%s1069 + $0x28] sm:$0xff]
        %v1076 = vld [vmem:[%s1069 + $0x30] sm:$0xff]
        %v1077 = vld [vmem:[%s1069 + $0x38] sm:$0xff]
        %v1078 = vld [vmem:[%s1069 + $0x40] sm:$0xff]
        %v1079 = vld [vmem:[%s1069 + $0x48] sm:$0xff]
        %v1080 = vld [vmem:[%s1069 + $0x50] sm:$0xff]
        %v1081 = vld [vmem:[%s1069 + $0x58] sm:$0xff]
        %v1082 = vld [vmem:[%s1069 + $0x60] sm:$0xff]
        %v1083 = vld [vmem:[%s1069 + $0x68] sm:$0xff]
        %v1084 = vld [vmem:[%s1069 + $0x70] sm:$0xff]
        %v1085 = vld [vmem:[%s1069 + $0x78] sm:$0xff]
        %1086 = vmatprep.subr.mxu0 0.0
        %1087 = vmatpush1.msra.mxu0 %v1070
        %1088 = vmatprep.subr.mxu0 0.0
        %1089 = vmatpush1.msra.mxu0 %v1071
        %1090 = vmatprep.subr.mxu0 0.0
        %1091 = vmatpush1.msra.mxu0 %v1072
        %1092 = vmatprep.subr.mxu0 0.0
        %1093 = vmatpush1.msra.mxu0 %v1073
        %1094 = vmatprep.subr.mxu0 0.0
        %1095 = vmatpush1.msra.mxu0 %v1074
        %1096 = vmatprep.subr.mxu0 0.0
        %1097 = vmatpush1.msra.mxu0 %v1075
        %1098 = vmatprep.subr.mxu0 0.0
        %1099 = vmatpush1.msra.mxu0 %v1076
        %1100 = vmatprep.subr.mxu0 0.0
        %1101 = vmatpush1.msra.mxu0 %v1077
        %1102 = vmatprep.subr.mxu0 0.0
        %1103 = vmatpush1.msra.mxu0 %v1078
        %1104 = vmatprep.subr.mxu0 0.0
        %1105 = vmatpush1.msra.mxu0 %v1079
        %1106 = vmatprep.subr.mxu0 0.0
        %1107 = vmatpush1.msra.mxu0 %v1080
        %1108 = vmatprep.subr.mxu0 0.0
        %1109 = vmatpush1.msra.mxu0 %v1081
        %1110 = vmatprep.subr.mxu0 0.0
        %1111 = vmatpush1.msra.mxu0 %v1082
        %1112 = vmatprep.subr.mxu0 0.0
        %1113 = vmatpush1.msra.mxu0 %v1083
        %1114 = vmatprep.subr.mxu0 0.0
        %1115 = vmatpush1.msra.mxu0 %v1084
        %1116 = vmatprep.subr.mxu0 0.0
        %1117 = vmatpush1.msra.mxu0 %v1085
        %1118 = vmatprep.subr.mxu0 0.0
        %1119 = vmatpush1.msra.mxu0 0.0
        %1120 = vmatprep.subr.mxu0 0.0
        %1121 = vmatpush1.msra.mxu0 0.0
        %1122 = vmatprep.subr.mxu0 0.0
        %1123 = vmatpush1.msra.mxu0 0.0
        %1124 = vmatprep.subr.mxu0 0.0
        %1125 = vmatpush1.msra.mxu0 0.0
        %1126 = vmatprep.subr.mxu0 0.0
        %1127 = vmatpush1.msra.mxu0 0.0
        %1128 = vmatprep.subr.mxu0 0.0
        %1129 = vmatpush1.msra.mxu0 0.0
        %1130 = vmatprep.subr.mxu0 0.0
        %1131 = vmatpush1.msra.mxu0 0.0
        %1132 = vmatprep.subr.mxu0 0.0
        %1133 = vmatpush1.msra.mxu0 0.0
        %1134 = vmatprep.subr.mxu0 0.0
        %1135 = vmatpush1.msra.mxu0 0.0
        %1136 = vmatprep.subr.mxu0 0.0
        %1137 = vmatpush1.msra.mxu0 0.0
        %1138 = vmatprep.subr.mxu0 0.0
        %1139 = vmatpush1.msra.mxu0 0.0
        %1140 = vmatprep.subr.mxu0 0.0
        %1141 = vmatpush1.msra.mxu0 0.0
        %1142 = vmatprep.subr.mxu0 0.0
        %1143 = vmatpush1.msra.mxu0 0.0
        %1144 = vmatprep.subr.mxu0 0.0
        %1145 = vmatpush1.msra.mxu0 0.0
        %1146 = vmatprep.subr.mxu0 0.0
        %1147 = vmatpush1.msra.mxu0 0.0
        %1148 = vmatprep.subr.mxu0 0.0
        %1149 = vmatpush1.msra.mxu0 0.0
        %1150 = vmatprep.mubr.f32.mxu0 0.0
        %1151 = vmatmul.mubr.f32.gmra.mrb[0].mxu0 %v507
        %v1152 = vpop.f32.mrb[0].mxu0
        %v1153 = vadd.f32 0.0, %v1152
        %v1154 = vpop.f32.mrb[0].mxu0
        %1155 = vmatprep.mubr.f32.mxu0 0.0
        %1156 = vmatmul.mubr.f32.gmra.mrb[0].mxu0 %v508
        %v1157 = vpop.f32.mrb[0].mxu0
        %v1158 = vadd.f32 0.0, %v1157
        %v1159 = vpop.f32.mrb[0].mxu0
        %1160 = vdwg.mxu0
        %s1161 = scalar_lea.vmem %s3, 128
        %v1162 = vld [vmem:[%s1161] sm:$0xff]
        %v1163 = vld [vmem:[%s1161 + $0x8] sm:$0xff]
        %v1164 = vld [vmem:[%s1161 + $0x10] sm:$0xff]
        %v1165 = vld [vmem:[%s1161 + $0x18] sm:$0xff]
        %v1166 = vld [vmem:[%s1161 + $0x20] sm:$0xff]
        %v1167 = vld [vmem:[%s1161 + $0x28] sm:$0xff]
        %v1168 = vld [vmem:[%s1161 + $0x30] sm:$0xff]
        %v1169 = vld [vmem:[%s1161 + $0x38] sm:$0xff]
        %v1170 = vld [vmem:[%s1161 + $0x40] sm:$0xff]
        %v1171 = vld [vmem:[%s1161 + $0x48] sm:$0xff]
        %v1172 = vld [vmem:[%s1161 + $0x50] sm:$0xff]
        %v1173 = vld [vmem:[%s1161 + $0x58] sm:$0xff]
        %v1174 = vld [vmem:[%s1161 + $0x60] sm:$0xff]
        %v1175 = vld [vmem:[%s1161 + $0x68] sm:$0xff]
        %v1176 = vld [vmem:[%s1161 + $0x70] sm:$0xff]
        %v1177 = vld [vmem:[%s1161 + $0x78] sm:$0xff]
        %1178 = vmatprep.subr.mxu0 0.0
        %1179 = vmatpush1.msra.mxu0 %v1162
        %1180 = vmatprep.subr.mxu0 0.0
        %1181 = vmatpush1.msra.mxu0 %v1163
        %1182 = vmatprep.subr.mxu0 0.0
        %1183 = vmatpush1.msra.mxu0 %v1164
        %1184 = vmatprep.subr.mxu0 0.0
        %1185 = vmatpush1.msra.mxu0 %v1165
        %1186 = vmatprep.subr.mxu0 0.0
        %1187 = vmatpush1.msra.mxu0 %v1166
        %1188 = vmatprep.subr.mxu0 0.0
        %1189 = vmatpush1.msra.mxu0 %v1167
        %1190 = vmatprep.subr.mxu0 0.0
        %1191 = vmatpush1.msra.mxu0 %v1168
        %1192 = vmatprep.subr.mxu0 0.0
        %1193 = vmatpush1.msra.mxu0 %v1169
        %1194 = vmatprep.subr.mxu0 0.0
        %1195 = vmatpush1.msra.mxu0 %v1170
        %1196 = vmatprep.subr.mxu0 0.0
        %1197 = vmatpush1.msra.mxu0 %v1171
        %1198 = vmatprep.subr.mxu0 0.0
        %1199 = vmatpush1.msra.mxu0 %v1172
        %1200 = vmatprep.subr.mxu0 0.0
        %1201 = vmatpush1.msra.mxu0 %v1173
        %1202 = vmatprep.subr.mxu0 0.0
        %1203 = vmatpush1.msra.mxu0 %v1174
        %1204 = vmatprep.subr.mxu0 0.0
        %1205 = vmatpush1.msra.mxu0 %v1175
        %1206 = vmatprep.subr.mxu0 0.0
        %1207 = vmatpush1.msra.mxu0 %v1176
        %1208 = vmatprep.subr.mxu0 0.0
        %1209 = vmatpush1.msra.mxu0 %v1177
        %1210 = vmatprep.subr.mxu0 0.0
        %1211 = vmatpush1.msra.mxu0 0.0
        %1212 = vmatprep.subr.mxu0 0.0
        %1213 = vmatpush1.msra.mxu0 0.0
        %1214 = vmatprep.subr.mxu0 0.0
        %1215 = vmatpush1.msra.mxu0 0.0
        %1216 = vmatprep.subr.mxu0 0.0
        %1217 = vmatpush1.msra.mxu0 0.0
        %1218 = vmatprep.subr.mxu0 0.0
        %1219 = vmatpush1.msra.mxu0 0.0
        %1220 = vmatprep.subr.mxu0 0.0
        %1221 = vmatpush1.msra.mxu0 0.0
        %1222 = vmatprep.subr.mxu0 0.0
        %1223 = vmatpush1.msra.mxu0 0.0
        %1224 = vmatprep.subr.mxu0 0.0
        %1225 = vmatpush1.msra.mxu0 0.0
        %1226 = vmatprep.subr.mxu0 0.0
        %1227 = vmatpush1.msra.mxu0 0.0
        %1228 = vmatprep.subr.mxu0 0.0
        %1229 = vmatpush1.msra.mxu0 0.0
        %1230 = vmatprep.subr.mxu0 0.0
        %1231 = vmatpush1.msra.mxu0 0.0
        %1232 = vmatprep.subr.mxu0 0.0
        %1233 = vmatpush1.msra.mxu0 0.0
        %1234 = vmatprep.subr.mxu0 0.0
        %1235 = vmatpush1.msra.mxu0 0.0
        %1236 = vmatprep.subr.mxu0 0.0
        %1237 = vmatpush1.msra.mxu0 0.0
        %1238 = vmatprep.subr.mxu0 0.0
        %1239 = vmatpush1.msra.mxu0 0.0
        %1240 = vmatprep.subr.mxu0 0.0
        %1241 = vmatpush1.msra.mxu0 0.0
        %1242 = vmatprep.mubr.f32.mxu0 0.0
        %1243 = vmatmul.mubr.f32.gmra.mrb[0].mxu0 %v507
        %v1244 = vpop.f32.mrb[0].mxu0
        %v1245 = vadd.f32 0.0, %v1244
        %v1246 = vpop.f32.mrb[0].mxu0
        %1247 = vmatprep.mubr.f32.mxu0 0.0
        %1248 = vmatmul.mubr.f32.gmra.mrb[0].mxu0 %v508
        %v1249 = vpop.f32.mrb[0].mxu0
        %v1250 = vadd.f32 0.0, %v1249
        %v1251 = vpop.f32.mrb[0].mxu0
        %1252 = vdwg.mxu0
        %v1254 = vsel %vm782, %v1061, 0
        %v1257 = vsel %vm782, %v1066, 0
        %v1260 = vsel %vm782, %v1153, 0
        %v1263 = vsel %vm782, %v1158, 0
        %1265 = vmatprep.subr.mxu0 0.0
        %1266 = vmatpush1.xpose.msra.mxu0 %v1260
        %1267 = vmatprep.subr.mxu0 0.0
        %1268 = vmatpush1.xpose.msra.mxu0 %v1263
        %1269 = vmatprep.subr.mxu0 0.0
        %1270 = vmatpush1.xpose.msra.mxu0 0.0
        %1271 = vmatprep.subr.mxu0 0.0
        %1272 = vmatpush1.xpose.msra.mxu0 0.0
        %1273 = vmatprep.subr.mxu0 0.0
        %1274 = vmatpush1.xpose.msra.mxu0 0.0
        %1275 = vmatprep.subr.mxu0 0.0
        %1276 = vmatpush1.xpose.msra.mxu0 0.0
        %1277 = vmatprep.subr.mxu0 0.0
        %1278 = vmatpush1.xpose.msra.mxu0 0.0
        %1279 = vmatprep.subr.mxu0 0.0
        %1280 = vmatpush1.xpose.msra.mxu0 0.0
        %1281 = vmatprep.subr.mxu0 0.0
        %1282 = vmatpush1.xpose.msra.mxu0 0.0
        %1283 = vmatprep.subr.mxu0 0.0
        %1284 = vmatpush1.xpose.msra.mxu0 0.0
        %1285 = vmatprep.subr.mxu0 0.0
        %1286 = vmatpush1.xpose.msra.mxu0 0.0
        %1287 = vmatprep.subr.mxu0 0.0
        %1288 = vmatpush1.xpose.msra.mxu0 0.0
        %1289 = vmatprep.subr.mxu0 0.0
        %1290 = vmatpush1.xpose.msra.mxu0 0.0
        %1291 = vmatprep.subr.mxu0 0.0
        %1292 = vmatpush1.xpose.msra.mxu0 0.0
        %1293 = vmatprep.subr.mxu0 0.0
        %1294 = vmatpush1.xpose.msra.mxu0 0.0
        %1295 = vmatprep.subr.mxu0 0.0
        %1296 = vmatpush1.xpose.msra.mxu0 0.0
        %1297 = vmatprep.subr.mxu0 0.0
        %1298 = vmatpush1.xpose.msra.mxu0 0.0
        %1299 = vmatprep.subr.mxu0 0.0
        %1300 = vmatpush1.xpose.msra.mxu0 0.0
        %1301 = vmatprep.subr.mxu0 0.0
        %1302 = vmatpush1.xpose.msra.mxu0 0.0
        %1303 = vmatprep.subr.mxu0 0.0
        %1304 = vmatpush1.xpose.msra.mxu0 0.0
        %1305 = vmatprep.subr.mxu0 0.0
        %1306 = vmatpush1.xpose.msra.mxu0 0.0
        %1307 = vmatprep.subr.mxu0 0.0
        %1308 = vmatpush1.xpose.msra.mxu0 0.0
        %1309 = vmatprep.subr.mxu0 0.0
        %1310 = vmatpush1.xpose.msra.mxu0 0.0
        %1311 = vmatprep.subr.mxu0 0.0
        %1312 = vmatpush1.xpose.msra.mxu0 0.0
        %1313 = vmatprep.subr.mxu0 0.0
        %1314 = vmatpush1.xpose.msra.mxu0 0.0
        %1315 = vmatprep.subr.mxu0 0.0
        %1316 = vmatpush1.xpose.msra.mxu0 0.0
        %1317 = vmatprep.subr.mxu0 0.0
        %1318 = vmatpush1.xpose.msra.mxu0 0.0
        %1319 = vmatprep.subr.mxu0 0.0
        %1320 = vmatpush1.xpose.msra.mxu0 0.0
        %1321 = vmatprep.subr.mxu0 0.0
        %1322 = vmatpush1.xpose.msra.mxu0 0.0
        %1323 = vmatprep.subr.mxu0 0.0
        %1324 = vmatpush1.xpose.msra.mxu0 0.0
        %1325 = vmatprep.subr.mxu0 0.0
        %1326 = vmatpush1.xpose.msra.mxu0 0.0
        %1327 = vmatprep.subr.mxu0 0.0
        %1328 = vmatpush1.xpose.msra.mxu0 0.0
        %1329 = vmatprep.mubr.f32.mxu0 0.0
        %1330 = vmatmul.mubr.f32.gmra.mrb[0].mxu0 %v1254
        %v1331 = vpop.f32.mrb[0].mxu0
        %v1332 = vadd.f32 0.0, %v1331
        %v1333 = vpop.f32.mrb[0].mxu0
        %1334 = vmatprep.mubr.f32.mxu0 0.0
        %1335 = vmatmul.mubr.f32.gmra.mrb[0].mxu0 %v1257
        %v1336 = vpop.f32.mrb[0].mxu0
        %v1337 = vadd.f32 0.0, %v1336
        %v1338 = vpop.f32.mrb[0].mxu0
        %1339 = vdwg.mxu0
        %v1340 = vmul.f32 %v1332, 0.25
        %v1341 = vmul.f32 %v1337, 0.25
        %v1342 = vsel %vm782, %v1340, -inf
        %1343 = vmax.xlane.f32.xlu0 %v1342
        %v1344 = vpop.xlane.xlu0 %1343
        %v1345 = vsel %vm782, %v1341, -inf
        %1346 = vmax.xlane.f32.xlu0 %v1345
        %v1347 = vpop.xlane.xlu0 %1346
        %v1348 = vsub.f32 %v1340, %v1344
        %v1349 = vsub.f32 %v1341, %v1347
        %v1350 = vmul.f32 %v1348, 1.442695
        %v1351 = vpow.pop %v1350
        %v1352 = vmul.f32 %v1349, 1.442695
        %v1353 = vpow.pop %v1352
        %v1354 = vsel %vm782, %v1351, 0.0
        %1355 = vadd.xlane.f32.xlu0 %v1354
        %v1356 = vpop.xlane.xlu0 %1355
        %v1357 = vsel %vm782, %v1353, 0.0
        %1358 = vadd.xlane.f32.xlu0 %v1357
        %v1359 = vpop.xlane.xlu0 %1358
        %v1360 = vrcp.pop %v1356
        %v1361 = vmul.f32 %v1351, %v1360
        %v1362 = vrcp.pop %v1359
        %v1363 = vmul.f32 %v1353, %v1362
        %v1365 = vsel %vm782, %v1361, 0
        %v1368 = vsel %vm782, %v1363, 0
        %1370 = vmatprep.subr.mxu0 0.0
        %1371 = vmatpush1.msra.mxu0 %v1245
        %1372 = vmatprep.subr.mxu0 0.0
        %1373 = vmatpush1.msra.mxu0 %v1250
        %1374 = vmatprep.subr.mxu0 0.0
        %1375 = vmatpush1.msra.mxu0 0.0
        %1376 = vmatprep.subr.mxu0 0.0
        %1377 = vmatpush1.msra.mxu0 0.0
        %1378 = vmatprep.subr.mxu0 0.0
        %1379 = vmatpush1.msra.mxu0 0.0
        %1380 = vmatprep.subr.mxu0 0.0
        %1381 = vmatpush1.msra.mxu0 0.0
        %1382 = vmatprep.subr.mxu0 0.0
        %1383 = vmatpush1.msra.mxu0 0.0
        %1384 = vmatprep.subr.mxu0 0.0
        %1385 = vmatpush1.msra.mxu0 0.0
        %1386 = vmatprep.subr.mxu0 0.0
        %1387 = vmatpush1.msra.mxu0 0.0
        %1388 = vmatprep.subr.mxu0 0.0
        %1389 = vmatpush1.msra.mxu0 0.0
        %1390 = vmatprep.subr.mxu0 0.0
        %1391 = vmatpush1.msra.mxu0 0.0
        %1392 = vmatprep.subr.mxu0 0.0
        %1393 = vmatpush1.msra.mxu0 0.0
        %1394 = vmatprep.subr.mxu0 0.0
        %1395 = vmatpush1.msra.mxu0 0.0
        %1396 = vmatprep.subr.mxu0 0.0
        %1397 = vmatpush1.msra.mxu0 0.0
        %1398 = vmatprep.subr.mxu0 0.0
        %1399 = vmatpush1.msra.mxu0 0.0
        %1400 = vmatprep.subr.mxu0 0.0
        %1401 = vmatpush1.msra.mxu0 0.0
        %1402 = vmatprep.subr.mxu0 0.0
        %1403 = vmatpush1.msra.mxu0 0.0
        %1404 = vmatprep.subr.mxu0 0.0
        %1405 = vmatpush1.msra.mxu0 0.0
        %1406 = vmatprep.subr.mxu0 0.0
        %1407 = vmatpush1.msra.mxu0 0.0
        %1408 = vmatprep.subr.mxu0 0.0
        %1409 = vmatpush1.msra.mxu0 0.0
        %1410 = vmatprep.subr.mxu0 0.0
        %1411 = vmatpush1.msra.mxu0 0.0
        %1412 = vmatprep.subr.mxu0 0.0
        %1413 = vmatpush1.msra.mxu0 0.0
        %1414 = vmatprep.subr.mxu0 0.0
        %1415 = vmatpush1.msra.mxu0 0.0
        %1416 = vmatprep.subr.mxu0 0.0
        %1417 = vmatpush1.msra.mxu0 0.0
        %1418 = vmatprep.subr.mxu0 0.0
        %1419 = vmatpush1.msra.mxu0 0.0
        %1420 = vmatprep.subr.mxu0 0.0
        %1421 = vmatpush1.msra.mxu0 0.0
        %1422 = vmatprep.subr.mxu0 0.0
        %1423 = vmatpush1.msra.mxu0 0.0
        %1424 = vmatprep.subr.mxu0 0.0
        %1425 = vmatpush1.msra.mxu0 0.0
        %1426 = vmatprep.subr.mxu0 0.0
        %1427 = vmatpush1.msra.mxu0 0.0
        %1428 = vmatprep.subr.mxu0 0.0
        %1429 = vmatpush1.msra.mxu0 0.0
        %1430 = vmatprep.subr.mxu0 0.0
        %1431 = vmatpush1.msra.mxu0 0.0
        %1432 = vmatprep.subr.mxu0 0.0
        %1433 = vmatpush1.msra.mxu0 0.0
        %1434 = vmatprep.mubr.f32.mxu0 0.0
        %1435 = vmatmul.mubr.f32.gmra.mrb[0].mxu0 %v1365
        %v1436 = vpop.f32.mrb[0].mxu0
        %v1437 = vadd.f32 0.0, %v1436
        %v1438 = vpop.f32.mrb[0].mxu0
        %1439 = vmatprep.mubr.f32.mxu0 0.0
        %1440 = vmatmul.mubr.f32.gmra.mrb[0].mxu0 %v1368
        %v1441 = vpop.f32.mrb[0].mxu0
        %v1442 = vadd.f32 0.0, %v1441
        %v1443 = vpop.f32.mrb[0].mxu0
        %1444 = vdwg.mxu0
        %s1445 = scalar_lea.vmem %s4, 16
        %v1446 = vld [vmem:[%s1445] sm:$0xff]
        %v1447 = vld [vmem:[%s1445 + $0x8] sm:$0xff]
        %v1449 = vsel %vm782, %v1437, 0
        %v1452 = vsel %vm782, %v1442, 0
        %1454 = vmatprep.subr.mxu0 0.0
        %1455 = vmatpush1.msra.mxu0 %v1446
        %1456 = vmatprep.subr.mxu0 0.0
        %1457 = vmatpush1.msra.mxu0 %v1447
        %1458 = vmatprep.subr.mxu0 0.0
        %1459 = vmatpush1.msra.mxu0 0.0
        %1460 = vmatprep.subr.mxu0 0.0
        %1461 = vmatpush1.msra.mxu0 0.0
        %1462 = vmatprep.subr.mxu0 0.0
        %1463 = vmatpush1.msra.mxu0 0.0
        %1464 = vmatprep.subr.mxu0 0.0
        %1465 = vmatpush1.msra.mxu0 0.0
        %1466 = vmatprep.subr.mxu0 0.0
        %1467 = vmatpush1.msra.mxu0 0.0
        %1468 = vmatprep.subr.mxu0 0.0
        %1469 = vmatpush1.msra.mxu0 0.0
        %1470 = vmatprep.subr.mxu0 0.0
        %1471 = vmatpush1.msra.mxu0 0.0
        %1472 = vmatprep.subr.mxu0 0.0
        %1473 = vmatpush1.msra.mxu0 0.0
        %1474 = vmatprep.subr.mxu0 0.0
        %1475 = vmatpush1.msra.mxu0 0.0
        %1476 = vmatprep.subr.mxu0 0.0
        %1477 = vmatpush1.msra.mxu0 0.0
        %1478 = vmatprep.subr.mxu0 0.0
        %1479 = vmatpush1.msra.mxu0 0.0
        %1480 = vmatprep.subr.mxu0 0.0
        %1481 = vmatpush1.msra.mxu0 0.0
        %1482 = vmatprep.subr.mxu0 0.0
        %1483 = vmatpush1.msra.mxu0 0.0
        %1484 = vmatprep.subr.mxu0 0.0
        %1485 = vmatpush1.msra.mxu0 0.0
        %1486 = vmatprep.subr.mxu0 0.0
        %1487 = vmatpush1.msra.mxu0 0.0
        %1488 = vmatprep.subr.mxu0 0.0
        %1489 = vmatpush1.msra.mxu0 0.0
        %1490 = vmatprep.subr.mxu0 0.0
        %1491 = vmatpush1.msra.mxu0 0.0
        %1492 = vmatprep.subr.mxu0 0.0
        %1493 = vmatpush1.msra.mxu0 0.0
        %1494 = vmatprep.subr.mxu0 0.0
        %1495 = vmatpush1.msra.mxu0 0.0
        %1496 = vmatprep.subr.mxu0 0.0
        %1497 = vmatpush1.msra.mxu0 0.0
        %1498 = vmatprep.subr.mxu0 0.0
        %1499 = vmatpush1.msra.mxu0 0.0
        %1500 = vmatprep.subr.mxu0 0.0
        %1501 = vmatpush1.msra.mxu0 0.0
        %1502 = vmatprep.subr.mxu0 0.0
        %1503 = vmatpush1.msra.mxu0 0.0
        %1504 = vmatprep.subr.mxu0 0.0
        %1505 = vmatpush1.msra.mxu0 0.0
        %1506 = vmatprep.subr.mxu0 0.0
        %1507 = vmatpush1.msra.mxu0 0.0
        %1508 = vmatprep.subr.mxu0 0.0
        %1509 = vmatpush1.msra.mxu0 0.0
        %1510 = vmatprep.subr.mxu0 0.0
        %1511 = vmatpush1.msra.mxu0 0.0
        %1512 = vmatprep.subr.mxu0 0.0
        %1513 = vmatpush1.msra.mxu0 0.0
        %1514 = vmatprep.subr.mxu0 0.0
        %1515 = vmatpush1.msra.mxu0 0.0
        %1516 = vmatprep.subr.mxu0 0.0
        %1517 = vmatpush1.msra.mxu0 0.0
        %1518 = vmatprep.mubr.f32.mxu0 0.0
        %1519 = vmatmul.mubr.f32.gmra.mrb[0].mxu0 %v1449
        %v1520 = vpop.f32.mrb[0].mxu0
        %v1521 = vadd.f32 0.0, %v1520
        %v1522 = vpop.f32.mrb[0].mxu0
        %1523 = vmatprep.mubr.f32.mxu0 0.0
        %1524 = vmatmul.mubr.f32.gmra.mrb[0].mxu0 %v1452
        %v1525 = vpop.f32.mrb[0].mxu0
        %v1526 = vadd.f32 0.0, %v1525
        %v1527 = vpop.f32.mrb[0].mxu0
        %1528 = vdwg.mxu0
        %v1530 = vsel %vm782, %v967, 0
        %v1533 = vsel %vm782, %v972, 0
        %1535 = vmatprep.subr.mxu0 0.0
        %1536 = vmatpush1.msra.mxu0 %v975
        %1537 = vmatprep.subr.mxu0 0.0
        %1538 = vmatpush1.msra.mxu0 %v976
        %1539 = vmatprep.subr.mxu0 0.0
        %1540 = vmatpush1.msra.mxu0 0.0
        %1541 = vmatprep.subr.mxu0 0.0
        %1542 = vmatpush1.msra.mxu0 0.0
        %1543 = vmatprep.subr.mxu0 0.0
        %1544 = vmatpush1.msra.mxu0 0.0
        %1545 = vmatprep.subr.mxu0 0.0
        %1546 = vmatpush1.msra.mxu0 0.0
        %1547 = vmatprep.subr.mxu0 0.0
        %1548 = vmatpush1.msra.mxu0 0.0
        %1549 = vmatprep.subr.mxu0 0.0
        %1550 = vmatpush1.msra.mxu0 0.0
        %1551 = vmatprep.subr.mxu0 0.0
        %1552 = vmatpush1.msra.mxu0 0.0
        %1553 = vmatprep.subr.mxu0 0.0
        %1554 = vmatpush1.msra.mxu0 0.0
        %1555 = vmatprep.subr.mxu0 0.0
        %1556 = vmatpush1.msra.mxu0 0.0
        %1557 = vmatprep.subr.mxu0 0.0
        %1558 = vmatpush1.msra.mxu0 0.0
        %1559 = vmatprep.subr.mxu0 0.0
        %1560 = vmatpush1.msra.mxu0 0.0
        %1561 = vmatprep.subr.mxu0 0.0
        %1562 = vmatpush1.msra.mxu0 0.0
        %1563 = vmatprep.subr.mxu0 0.0
        %1564 = vmatpush1.msra.mxu0 0.0
        %1565 = vmatprep.subr.mxu0 0.0
        %1566 = vmatpush1.msra.mxu0 0.0
        %1567 = vmatprep.subr.mxu0 0.0
        %1568 = vmatpush1.msra.mxu0 0.0
        %1569 = vmatprep.subr.mxu0 0.0
        %1570 = vmatpush1.msra.mxu0 0.0
        %1571 = vmatprep.subr.mxu0 0.0
        %1572 = vmatpush1.msra.mxu0 0.0
        %1573 = vmatprep.subr.mxu0 0.0
        %1574 = vmatpush1.msra.mxu0 0.0
        %1575 = vmatprep.subr.mxu0 0.0
        %1576 = vmatpush1.msra.mxu0 0.0
        %1577 = vmatprep.subr.mxu0 0.0
        %1578 = vmatpush1.msra.mxu0 0.0
        %1579 = vmatprep.subr.mxu0 0.0
        %1580 = vmatpush1.msra.mxu0 0.0
        %1581 = vmatprep.subr.mxu0 0.0
        %1582 = vmatpush1.msra.mxu0 0.0
        %1583 = vmatprep.subr.mxu0 0.0
        %1584 = vmatpush1.msra.mxu0 0.0
        %1585 = vmatprep.subr.mxu0 0.0
        %1586 = vmatpush1.msra.mxu0 0.0
        %1587 = vmatprep.subr.mxu0 0.0
        %1588 = vmatpush1.msra.mxu0 0.0
        %1589 = vmatprep.subr.mxu0 0.0
        %1590 = vmatpush1.msra.mxu0 0.0
        %1591 = vmatprep.subr.mxu0 0.0
        %1592 = vmatpush1.msra.mxu0 0.0
        %1593 = vmatprep.subr.mxu0 0.0
        %1594 = vmatpush1.msra.mxu0 0.0
        %1595 = vmatprep.subr.mxu0 0.0
        %1596 = vmatpush1.msra.mxu0 0.0
        %1597 = vmatprep.subr.mxu0 0.0
        %1598 = vmatpush1.msra.mxu0 0.0
        %1599 = vmatprep.mubr.f32.mxu0 0.0
        %1600 = vmatmul.mubr.f32.gmra.mrb[0].mxu0 %v1530
        %v1601 = vpop.f32.mrb[0].mxu0
        %v1602 = vadd.f32 %v1521, %v1601
        %v1603 = vpop.f32.mrb[0].mxu0
        %1604 = vmatprep.mubr.f32.mxu0 0.0
        %1605 = vmatmul.mubr.f32.gmra.mrb[0].mxu0 %v1533
        %v1606 = vpop.f32.mrb[0].mxu0
        %v1607 = vadd.f32 %v1526, %v1606
        %v1608 = vpop.f32.mrb[0].mxu0
        %1609 = vdwg.mxu0
        %s1610 = scalar_lea.vmem %s1, 256
        %v1611 = vld [vmem:[%s1610] sm:$0xff]
        %v1612 = vld [vmem:[%s1610 + $0x8] sm:$0xff]
        %v1613 = vld [vmem:[%s1610 + $0x10] sm:$0xff]
        %v1614 = vld [vmem:[%s1610 + $0x18] sm:$0xff]
        %v1615 = vld [vmem:[%s1610 + $0x20] sm:$0xff]
        %v1616 = vld [vmem:[%s1610 + $0x28] sm:$0xff]
        %v1617 = vld [vmem:[%s1610 + $0x30] sm:$0xff]
        %v1618 = vld [vmem:[%s1610 + $0x38] sm:$0xff]
        %v1619 = vld [vmem:[%s1610 + $0x40] sm:$0xff]
        %v1620 = vld [vmem:[%s1610 + $0x48] sm:$0xff]
        %v1621 = vld [vmem:[%s1610 + $0x50] sm:$0xff]
        %v1622 = vld [vmem:[%s1610 + $0x58] sm:$0xff]
        %v1623 = vld [vmem:[%s1610 + $0x60] sm:$0xff]
        %v1624 = vld [vmem:[%s1610 + $0x68] sm:$0xff]
        %v1625 = vld [vmem:[%s1610 + $0x70] sm:$0xff]
        %v1626 = vld [vmem:[%s1610 + $0x78] sm:$0xff]
        %1627 = vmatprep.subr.mxu0 0.0
        %1628 = vmatpush1.msra.mxu0 %v1611
        %1629 = vmatprep.subr.mxu0 0.0
        %1630 = vmatpush1.msra.mxu0 %v1612
        %1631 = vmatprep.subr.mxu0 0.0
        %1632 = vmatpush1.msra.mxu0 %v1613
        %1633 = vmatprep.subr.mxu0 0.0
        %1634 = vmatpush1.msra.mxu0 %v1614
        %1635 = vmatprep.subr.mxu0 0.0
        %1636 = vmatpush1.msra.mxu0 %v1615
        %1637 = vmatprep.subr.mxu0 0.0
        %1638 = vmatpush1.msra.mxu0 %v1616
        %1639 = vmatprep.subr.mxu0 0.0
        %1640 = vmatpush1.msra.mxu0 %v1617
        %1641 = vmatprep.subr.mxu0 0.0
        %1642 = vmatpush1.msra.mxu0 %v1618
        %1643 = vmatprep.subr.mxu0 0.0
        %1644 = vmatpush1.msra.mxu0 %v1619
        %1645 = vmatprep.subr.mxu0 0.0
        %1646 = vmatpush1.msra.mxu0 %v1620
        %1647 = vmatprep.subr.mxu0 0.0
        %1648 = vmatpush1.msra.mxu0 %v1621
        %1649 = vmatprep.subr.mxu0 0.0
        %1650 = vmatpush1.msra.mxu0 %v1622
        %1651 = vmatprep.subr.mxu0 0.0
        %1652 = vmatpush1.msra.mxu0 %v1623
        %1653 = vmatprep.subr.mxu0 0.0
        %1654 = vmatpush1.msra.mxu0 %v1624
        %1655 = vmatprep.subr.mxu0 0.0
        %1656 = vmatpush1.msra.mxu0 %v1625
        %1657 = vmatprep.subr.mxu0 0.0
        %1658 = vmatpush1.msra.mxu0 %v1626
        %1659 = vmatprep.subr.mxu0 0.0
        %1660 = vmatpush1.msra.mxu0 0.0
        %1661 = vmatprep.subr.mxu0 0.0
        %1662 = vmatpush1.msra.mxu0 0.0
        %1663 = vmatprep.subr.mxu0 0.0
        %1664 = vmatpush1.msra.mxu0 0.0
        %1665 = vmatprep.subr.mxu0 0.0
        %1666 = vmatpush1.msra.mxu0 0.0
        %1667 = vmatprep.subr.mxu0 0.0
        %1668 = vmatpush1.msra.mxu0 0.0
        %1669 = vmatprep.subr.mxu0 0.0
        %1670 = vmatpush1.msra.mxu0 0.0
        %1671 = vmatprep.subr.mxu0 0.0
        %1672 = vmatpush1.msra.mxu0 0.0
        %1673 = vmatprep.subr.mxu0 0.0
        %1674 = vmatpush1.msra.mxu0 0.0
        %1675 = vmatprep.subr.mxu0 0.0
        %1676 = vmatpush1.msra.mxu0 0.0
        %1677 = vmatprep.subr.mxu0 0.0
        %1678 = vmatpush1.msra.mxu0 0.0
        %1679 = vmatprep.subr.mxu0 0.0
        %1680 = vmatpush1.msra.mxu0 0.0
        %1681 = vmatprep.subr.mxu0 0.0
        %1682 = vmatpush1.msra.mxu0 0.0
        %1683 = vmatprep.subr.mxu0 0.0
        %1684 = vmatpush1.msra.mxu0 0.0
        %1685 = vmatprep.subr.mxu0 0.0
        %1686 = vmatpush1.msra.mxu0 0.0
        %1687 = vmatprep.subr.mxu0 0.0
        %1688 = vmatpush1.msra.mxu0 0.0
        %1689 = vmatprep.subr.mxu0 0.0
        %1690 = vmatpush1.msra.mxu0 0.0
        %1691 = vmatprep.mubr.f32.mxu0 0.0
        %1692 = vmatmul.mubr.f32.gmra.mrb[0].mxu0 %v507
        %v1693 = vpop.f32.mrb[0].mxu0
        %v1694 = vadd.f32 0.0, %v1693
        %v1695 = vpop.f32.mrb[0].mxu0
        %1696 = vmatprep.mubr.f32.mxu0 0.0
        %1697 = vmatmul.mubr.f32.gmra.mrb[0].mxu0 %v508
        %v1698 = vpop.f32.mrb[0].mxu0
        %v1699 = vadd.f32 0.0, %v1698
        %v1700 = vpop.f32.mrb[0].mxu0
        %1701 = vdwg.mxu0
        %s1702 = scalar_lea.vmem %s2, 256
        %v1703 = vld [vmem:[%s1702] sm:$0xff]
        %v1704 = vld [vmem:[%s1702 + $0x8] sm:$0xff]
        %v1705 = vld [vmem:[%s1702 + $0x10] sm:$0xff]
        %v1706 = vld [vmem:[%s1702 + $0x18] sm:$0xff]
        %v1707 = vld [vmem:[%s1702 + $0x20] sm:$0xff]
        %v1708 = vld [vmem:[%s1702 + $0x28] sm:$0xff]
        %v1709 = vld [vmem:[%s1702 + $0x30] sm:$0xff]
        %v1710 = vld [vmem:[%s1702 + $0x38] sm:$0xff]
        %v1711 = vld [vmem:[%s1702 + $0x40] sm:$0xff]
        %v1712 = vld [vmem:[%s1702 + $0x48] sm:$0xff]
        %v1713 = vld [vmem:[%s1702 + $0x50] sm:$0xff]
        %v1714 = vld [vmem:[%s1702 + $0x58] sm:$0xff]
        %v1715 = vld [vmem:[%s1702 + $0x60] sm:$0xff]
        %v1716 = vld [vmem:[%s1702 + $0x68] sm:$0xff]
        %v1717 = vld [vmem:[%s1702 + $0x70] sm:$0xff]
        %v1718 = vld [vmem:[%s1702 + $0x78] sm:$0xff]
        %1719 = vmatprep.subr.mxu0 0.0
        %1720 = vmatpush1.msra.mxu0 %v1703
        %1721 = vmatprep.subr.mxu0 0.0
        %1722 = vmatpush1.msra.mxu0 %v1704
        %1723 = vmatprep.subr.mxu0 0.0
        %1724 = vmatpush1.msra.mxu0 %v1705
        %1725 = vmatprep.subr.mxu0 0.0
        %1726 = vmatpush1.msra.mxu0 %v1706
        %1727 = vmatprep.subr.mxu0 0.0
        %1728 = vmatpush1.msra.mxu0 %v1707
        %1729 = vmatprep.subr.mxu0 0.0
        %1730 = vmatpush1.msra.mxu0 %v1708
        %1731 = vmatprep.subr.mxu0 0.0
        %1732 = vmatpush1.msra.mxu0 %v1709
        %1733 = vmatprep.subr.mxu0 0.0
        %1734 = vmatpush1.msra.mxu0 %v1710
        %1735 = vmatprep.subr.mxu0 0.0
        %1736 = vmatpush1.msra.mxu0 %v1711
        %1737 = vmatprep.subr.mxu0 0.0
        %1738 = vmatpush1.msra.mxu0 %v1712
        %1739 = vmatprep.subr.mxu0 0.0
        %1740 = vmatpush1.msra.mxu0 %v1713
        %1741 = vmatprep.subr.mxu0 0.0
        %1742 = vmatpush1.msra.mxu0 %v1714
        %1743 = vmatprep.subr.mxu0 0.0
        %1744 = vmatpush1.msra.mxu0 %v1715
        %1745 = vmatprep.subr.mxu0 0.0
        %1746 = vmatpush1.msra.mxu0 %v1716
        %1747 = vmatprep.subr.mxu0 0.0
        %1748 = vmatpush1.msra.mxu0 %v1717
        %1749 = vmatprep.subr.mxu0 0.0
        %1750 = vmatpush1.msra.mxu0 %v1718
        %1751 = vmatprep.subr.mxu0 0.0
        %1752 = vmatpush1.msra.mxu0 0.0
        %1753 = vmatprep.subr.mxu0 0.0
        %1754 = vmatpush1.msra.mxu0 0.0
        %1755 = vmatprep.subr.mxu0 0.0
        %1756 = vmatpush1.msra.mxu0 0.0
        %1757 = vmatprep.subr.mxu0 0.0
        %1758 = vmatpush1.msra.mxu0 0.0
        %1759 = vmatprep.subr.mxu0 0.0
        %1760 = vmatpush1.msra.mxu0 0.0
        %1761 = vmatprep.subr.mxu0 0.0
        %1762 = vmatpush1.msra.mxu0 0.0
        %1763 = vmatprep.subr.mxu0 0.0
        %1764 = vmatpush1.msra.mxu0 0.0
        %1765 = vmatprep.subr.mxu0 0.0
        %1766 = vmatpush1.msra.mxu0 0.0
        %1767 = vmatprep.subr.mxu0 0.0
        %1768 = vmatpush1.msra.mxu0 0.0
        %1769 = vmatprep.subr.mxu0 0.0
        %1770 = vmatpush1.msra.mxu0 0.0
        %1771 = vmatprep.subr.mxu0 0.0
        %1772 = vmatpush1.msra.mxu0 0.0
        %1773 = vmatprep.subr.mxu0 0.0
        %1774 = vmatpush1.msra.mxu0 0.0
        %1775 = vmatprep.subr.mxu0 0.0
        %1776 = vmatpush1.msra.mxu0 0.0
        %1777 = vmatprep.subr.mxu0 0.0
        %1778 = vmatpush1.msra.mxu0 0.0
        %1779 = vmatprep.subr.mxu0 0.0
        %1780 = vmatpush1.msra.mxu0 0.0
        %1781 = vmatprep.subr.mxu0 0.0
        %1782 = vmatpush1.msra.mxu0 0.0
        %1783 = vmatprep.mubr.f32.mxu0 0.0
        %1784 = vmatmul.mubr.f32.gmra.mrb[0].mxu0 %v507
        %v1785 = vpop.f32.mrb[0].mxu0
        %v1786 = vadd.f32 0.0, %v1785
        %v1787 = vpop.f32.mrb[0].mxu0
        %1788 = vmatprep.mubr.f32.mxu0 0.0
        %1789 = vmatmul.mubr.f32.gmra.mrb[0].mxu0 %v508
        %v1790 = vpop.f32.mrb[0].mxu0
        %v1791 = vadd.f32 0.0, %v1790
        %v1792 = vpop.f32.mrb[0].mxu0
        %1793 = vdwg.mxu0
        %s1794 = scalar_lea.vmem %s3, 256
        %v1795 = vld [vmem:[%s1794] sm:$0xff]
        %v1796 = vld [vmem:[%s1794 + $0x8] sm:$0xff]
        %v1797 = vld [vmem:[%s1794 + $0x10] sm:$0xff]
        %v1798 = vld [vmem:[%s1794 + $0x18] sm:$0xff]
        %v1799 = vld [vmem:[%s1794 + $0x20] sm:$0xff]
        %v1800 = vld [vmem:[%s1794 + $0x28] sm:$0xff]
        %v1801 = vld [vmem:[%s1794 + $0x30] sm:$0xff]
        %v1802 = vld [vmem:[%s1794 + $0x38] sm:$0xff]
        %v1803 = vld [vmem:[%s1794 + $0x40] sm:$0xff]
        %v1804 = vld [vmem:[%s1794 + $0x48] sm:$0xff]
        %v1805 = vld [vmem:[%s1794 + $0x50] sm:$0xff]
        %v1806 = vld [vmem:[%s1794 + $0x58] sm:$0xff]
        %v1807 = vld [vmem:[%s1794 + $0x60] sm:$0xff]
        %v1808 = vld [vmem:[%s1794 + $0x68] sm:$0xff]
        %v1809 = vld [vmem:[%s1794 + $0x70] sm:$0xff]
        %v1810 = vld [vmem:[%s1794 + $0x78] sm:$0xff]
        %1811 = vmatprep.subr.mxu0 0.0
        %1812 = vmatpush1.msra.mxu0 %v1795
        %1813 = vmatprep.subr.mxu0 0.0
        %1814 = vmatpush1.msra.mxu0 %v1796
        %1815 = vmatprep.subr.mxu0 0.0
        %1816 = vmatpush1.msra.mxu0 %v1797
        %1817 = vmatprep.subr.mxu0 0.0
        %1818 = vmatpush1.msra.mxu0 %v1798
        %1819 = vmatprep.subr.mxu0 0.0
        %1820 = vmatpush1.msra.mxu0 %v1799
        %1821 = vmatprep.subr.mxu0 0.0
        %1822 = vmatpush1.msra.mxu0 %v1800
        %1823 = vmatprep.subr.mxu0 0.0
        %1824 = vmatpush1.msra.mxu0 %v1801
        %1825 = vmatprep.subr.mxu0 0.0
        %1826 = vmatpush1.msra.mxu0 %v1802
        %1827 = vmatprep.subr.mxu0 0.0
        %1828 = vmatpush1.msra.mxu0 %v1803
        %1829 = vmatprep.subr.mxu0 0.0
        %1830 = vmatpush1.msra.mxu0 %v1804
        %1831 = vmatprep.subr.mxu0 0.0
        %1832 = vmatpush1.msra.mxu0 %v1805
        %1833 = vmatprep.subr.mxu0 0.0
        %1834 = vmatpush1.msra.mxu0 %v1806
        %1835 = vmatprep.subr.mxu0 0.0
        %1836 = vmatpush1.msra.mxu0 %v1807
        %1837 = vmatprep.subr.mxu0 0.0
        %1838 = vmatpush1.msra.mxu0 %v1808
        %1839 = vmatprep.subr.mxu0 0.0
        %1840 = vmatpush1.msra.mxu0 %v1809
        %1841 = vmatprep.subr.mxu0 0.0
        %1842 = vmatpush1.msra.mxu0 %v1810
        %1843 = vmatprep.subr.mxu0 0.0
        %1844 = vmatpush1.msra.mxu0 0.0
        %1845 = vmatprep.subr.mxu0 0.0
        %1846 = vmatpush1.msra.mxu0 0.0
        %1847 = vmatprep.subr.mxu0 0.0
        %1848 = vmatpush1.msra.mxu0 0.0
        %1849 = vmatprep.subr.mxu0 0.0
        %1850 = vmatpush1.msra.mxu0 0.0
        %1851 = vmatprep.subr.mxu0 0.0
        %1852 = vmatpush1.msra.mxu0 0.0
        %1853 = vmatprep.subr.mxu0 0.0
        %1854 = vmatpush1.msra.mxu0 0.0
        %1855 = vmatprep.subr.mxu0 0.0
        %1856 = vmatpush1.msra.mxu0 0.0
        %1857 = vmatprep.subr.mxu0 0.0
        %1858 = vmatpush1.msra.mxu0 0.0
        %1859 = vmatprep.subr.mxu0 0.0
        %1860 = vmatpush1.msra.mxu0 0.0
        %1861 = vmatprep.subr.mxu0 0.0
        %1862 = vmatpush1.msra.mxu0 0.0
        %1863 = vmatprep.subr.mxu0 0.0
        %1864 = vmatpush1.msra.mxu0 0.0
        %1865 = vmatprep.subr.mxu0 0.0
        %1866 = vmatpush1.msra.mxu0 0.0
        %1867 = vmatprep.subr.mxu0 0.0
        %1868 = vmatpush1.msra.mxu0 0.0
        %1869 = vmatprep.subr.mxu0 0.0
        %1870 = vmatpush1.msra.mxu0 0.0
        %1871 = vmatprep.subr.mxu0 0.0
        %1872 = vmatpush1.msra.mxu0 0.0
        %1873 = vmatprep.subr.mxu0 0.0
        %1874 = vmatpush1.msra.mxu0 0.0
        %1875 = vmatprep.mubr.f32.mxu0 0.0
        %1876 = vmatmul.mubr.f32.gmra.mrb[0].mxu0 %v507
        %v1877 = vpop.f32.mrb[0].mxu0
        %v1878 = vadd.f32 0.0, %v1877
        %v1879 = vpop.f32.mrb[0].mxu0
        %1880 = vmatprep.mubr.f32.mxu0 0.0
        %1881 = vmatmul.mubr.f32.gmra.mrb[0].mxu0 %v508
        %v1882 = vpop.f32.mrb[0].mxu0
        %v1883 = vadd.f32 0.0, %v1882
        %v1884 = vpop.f32.mrb[0].mxu0
        %1885 = vdwg.mxu0
        %v1887 = vsel %vm782, %v1694, 0
        %v1890 = vsel %vm782, %v1699, 0
        %v1893 = vsel %vm782, %v1786, 0
        %v1896 = vsel %vm782, %v1791, 0
        %1898 = vmatprep.subr.mxu0 0.0
        %1899 = vmatpush1.xpose.msra.mxu0 %v1893
        %1900 = vmatprep.subr.mxu0 0.0
        %1901 = vmatpush1.xpose.msra.mxu0 %v1896
        %1902 = vmatprep.subr.mxu0 0.0
        %1903 = vmatpush1.xpose.msra.mxu0 0.0
        %1904 = vmatprep.subr.mxu0 0.0
        %1905 = vmatpush1.xpose.msra.mxu0 0.0
        %1906 = vmatprep.subr.mxu0 0.0
        %1907 = vmatpush1.xpose.msra.mxu0 0.0
        %1908 = vmatprep.subr.mxu0 0.0
        %1909 = vmatpush1.xpose.msra.mxu0 0.0
        %1910 = vmatprep.subr.mxu0 0.0
        %1911 = vmatpush1.xpose.msra.mxu0 0.0
        %1912 = vmatprep.subr.mxu0 0.0
        %1913 = vmatpush1.xpose.msra.mxu0 0.0
        %1914 = vmatprep.subr.mxu0 0.0
        %1915 = vmatpush1.xpose.msra.mxu0 0.0
        %1916 = vmatprep.subr.mxu0 0.0
        %1917 = vmatpush1.xpose.msra.mxu0 0.0
        %1918 = vmatprep.subr.mxu0 0.0
        %1919 = vmatpush1.xpose.msra.mxu0 0.0
        %1920 = vmatprep.subr.mxu0 0.0
        %1921 = vmatpush1.xpose.msra.mxu0 0.0
        %1922 = vmatprep.subr.mxu0 0.0
        %1923 = vmatpush1.xpose.msra.mxu0 0.0
        %1924 = vmatprep.subr.mxu0 0.0
        %1925 = vmatpush1.xpose.msra.mxu0 0.0
        %1926 = vmatprep.subr.mxu0 0.0
        %1927 = vmatpush1.xpose.msra.mxu0 0.0
        %1928 = vmatprep.subr.mxu0 0.0
        %1929 = vmatpush1.xpose.msra.mxu0 0.0
        %1930 = vmatprep.subr.mxu0 0.0
        %1931 = vmatpush1.xpose.msra.mxu0 0.0
        %1932 = vmatprep.subr.mxu0 0.0
        %1933 = vmatpush1.xpose.msra.mxu0 0.0
        %1934 = vmatprep.subr.mxu0 0.0
        %1935 = vmatpush1.xpose.msra.mxu0 0.0
        %1936 = vmatprep.subr.mxu0 0.0
        %1937 = vmatpush1.xpose.msra.mxu0 0.0
        %1938 = vmatprep.subr.mxu0 0.0
        %1939 = vmatpush1.xpose.msra.mxu0 0.0
        %1940 = vmatprep.subr.mxu0 0.0
        %1941 = vmatpush1.xpose.msra.mxu0 0.0
        %1942 = vmatprep.subr.mxu0 0.0
        %1943 = vmatpush1.xpose.msra.mxu0 0.0
        %1944 = vmatprep.subr.mxu0 0.0
        %1945 = vmatpush1.xpose.msra.mxu0 0.0
        %1946 = vmatprep.subr.mxu0 0.0
        %1947 = vmatpush1.xpose.msra.mxu0 0.0
        %1948 = vmatprep.subr.mxu0 0.0
        %1949 = vmatpush1.xpose.msra.mxu0 0.0
        %1950 = vmatprep.subr.mxu0 0.0
        %1951 = vmatpush1.xpose.msra.mxu0 0.0
        %1952 = vmatprep.subr.mxu0 0.0
        %1953 = vmatpush1.xpose.msra.mxu0 0.0
        %1954 = vmatprep.subr.mxu0 0.0
        %1955 = vmatpush1.xpose.msra.mxu0 0.0
        %1956 = vmatprep.subr.mxu0 0.0
        %1957 = vmatpush1.xpose.msra.mxu0 0.0
        %1958 = vmatprep.subr.mxu0 0.0
        %1959 = vmatpush1.xpose.msra.mxu0 0.0
        %1960 = vmatprep.subr.mxu0 0.0
        %1961 = vmatpush1.xpose.msra.mxu0 0.0
        %1962 = vmatprep.mubr.f32.mxu0 0.0
        %1963 = vmatmul.mubr.f32.gmra.mrb[0].mxu0 %v1887
        %v1964 = vpop.f32.mrb[0].mxu0
        %v1965 = vadd.f32 0.0, %v1964
        %v1966 = vpop.f32.mrb[0].mxu0
        %1967 = vmatprep.mubr.f32.mxu0 0.0
        %1968 = vmatmul.mubr.f32.gmra.mrb[0].mxu0 %v1890
        %v1969 = vpop.f32.mrb[0].mxu0
        %v1970 = vadd.f32 0.0, %v1969
        %v1971 = vpop.f32.mrb[0].mxu0
        %1972 = vdwg.mxu0
        %v1973 = vmul.f32 %v1965, 0.25
        %v1974 = vmul.f32 %v1970, 0.25
        %v1975 = vsel %vm782, %v1973, -inf
        %1976 = vmax.xlane.f32.xlu0 %v1975
        %v1977 = vpop.xlane.xlu0 %1976
        %v1978 = vsel %vm782, %v1974, -inf
        %1979 = vmax.xlane.f32.xlu0 %v1978
        %v1980 = vpop.xlane.xlu0 %1979
        %v1981 = vsub.f32 %v1973, %v1977
        %v1982 = vsub.f32 %v1974, %v1980
        %v1983 = vmul.f32 %v1981, 1.442695
        %v1984 = vpow.pop %v1983
        %v1985 = vmul.f32 %v1982, 1.442695
        %v1986 = vpow.pop %v1985
        %v1987 = vsel %vm782, %v1984, 0.0
        %1988 = vadd.xlane.f32.xlu0 %v1987
        %v1989 = vpop.xlane.xlu0 %1988
        %v1990 = vsel %vm782, %v1986, 0.0
        %1991 = vadd.xlane.f32.xlu0 %v1990
        %v1992 = vpop.xlane.xlu0 %1991
        %v1993 = vrcp.pop %v1989
        %v1994 = vmul.f32 %v1984, %v1993
        %v1995 = vrcp.pop %v1992
        %v1996 = vmul.f32 %v1986, %v1995
        %v1998 = vsel %vm782, %v1994, 0
        %v2001 = vsel %vm782, %v1996, 0
        %2003 = vmatprep.subr.mxu0 0.0
        %2004 = vmatpush1.msra.mxu0 %v1878
        %2005 = vmatprep.subr.mxu0 0.0
        %2006 = vmatpush1.msra.mxu0 %v1883
        %2007 = vmatprep.subr.mxu0 0.0
        %2008 = vmatpush1.msra.mxu0 0.0
        %2009 = vmatprep.subr.mxu0 0.0
        %2010 = vmatpush1.msra.mxu0 0.0
        %2011 = vmatprep.subr.mxu0 0.0
        %2012 = vmatpush1.msra.mxu0 0.0
        %2013 = vmatprep.subr.mxu0 0.0
        %2014 = vmatpush1.msra.mxu0 0.0
        %2015 = vmatprep.subr.mxu0 0.0
        %2016 = vmatpush1.msra.mxu0 0.0
        %2017 = vmatprep.subr.mxu0 0.0
        %2018 = vmatpush1.msra.mxu0 0.0
        %2019 = vmatprep.subr.mxu0 0.0
        %2020 = vmatpush1.msra.mxu0 0.0
        %2021 = vmatprep.subr.mxu0 0.0
        %2022 = vmatpush1.msra.mxu0 0.0
        %2023 = vmatprep.subr.mxu0 0.0
        %2024 = vmatpush1.msra.mxu0 0.0
        %2025 = vmatprep.subr.mxu0 0.0
        %2026 = vmatpush1.msra.mxu0 0.0
        %2027 = vmatprep.subr.mxu0 0.0
        %2028 = vmatpush1.msra.mxu0 0.0
        %2029 = vmatprep.subr.mxu0 0.0
        %2030 = vmatpush1.msra.mxu0 0.0
        %2031 = vmatprep.subr.mxu0 0.0
        %2032 = vmatpush1.msra.mxu0 0.0
        %2033 = vmatprep.subr.mxu0 0.0
        %2034 = vmatpush1.msra.mxu0 0.0
        %2035 = vmatprep.subr.mxu0 0.0
        %2036 = vmatpush1.msra.mxu0 0.0
        %2037 = vmatprep.subr.mxu0 0.0
        %2038 = vmatpush1.msra.mxu0 0.0
        %2039 = vmatprep.subr.mxu0 0.0
        %2040 = vmatpush1.msra.mxu0 0.0
        %2041 = vmatprep.subr.mxu0 0.0
        %2042 = vmatpush1.msra.mxu0 0.0
        %2043 = vmatprep.subr.mxu0 0.0
        %2044 = vmatpush1.msra.mxu0 0.0
        %2045 = vmatprep.subr.mxu0 0.0
        %2046 = vmatpush1.msra.mxu0 0.0
        %2047 = vmatprep.subr.mxu0 0.0
        %2048 = vmatpush1.msra.mxu0 0.0
        %2049 = vmatprep.subr.mxu0 0.0
        %2050 = vmatpush1.msra.mxu0 0.0
        %2051 = vmatprep.subr.mxu0 0.0
        %2052 = vmatpush1.msra.mxu0 0.0
        %2053 = vmatprep.subr.mxu0 0.0
        %2054 = vmatpush1.msra.mxu0 0.0
        %2055 = vmatprep.subr.mxu0 0.0
        %2056 = vmatpush1.msra.mxu0 0.0
        %2057 = vmatprep.subr.mxu0 0.0
        %2058 = vmatpush1.msra.mxu0 0.0
        %2059 = vmatprep.subr.mxu0 0.0
        %2060 = vmatpush1.msra.mxu0 0.0
        %2061 = vmatprep.subr.mxu0 0.0
        %2062 = vmatpush1.msra.mxu0 0.0
        %2063 = vmatprep.subr.mxu0 0.0
        %2064 = vmatpush1.msra.mxu0 0.0
        %2065 = vmatprep.subr.mxu0 0.0
        %2066 = vmatpush1.msra.mxu0 0.0
        %2067 = vmatprep.mubr.f32.mxu0 0.0
        %2068 = vmatmul.mubr.f32.gmra.mrb[0].mxu0 %v1998
        %v2069 = vpop.f32.mrb[0].mxu0
        %v2070 = vadd.f32 0.0, %v2069
        %v2071 = vpop.f32.mrb[0].mxu0
        %2072 = vmatprep.mubr.f32.mxu0 0.0
        %2073 = vmatmul.mubr.f32.gmra.mrb[0].mxu0 %v2001
        %v2074 = vpop.f32.mrb[0].mxu0
        %v2075 = vadd.f32 0.0, %v2074
        %v2076 = vpop.f32.mrb[0].mxu0
        %2077 = vdwg.mxu0
        %s2078 = scalar_lea.vmem %s4, 32
        %v2079 = vld [vmem:[%s2078] sm:$0xff]
        %v2080 = vld [vmem:[%s2078 + $0x8] sm:$0xff]
        %v2082 = vsel %vm782, %v2070, 0
        %v2085 = vsel %vm782, %v2075, 0
        %2087 = vmatprep.subr.mxu0 0.0
        %2088 = vmatpush1.msra.mxu0 %v2079
        %2089 = vmatprep.subr.mxu0 0.0
        %2090 = vmatpush1.msra.mxu0 %v2080
        %2091 = vmatprep.subr.mxu0 0.0
        %2092 = vmatpush1.msra.mxu0 0.0
        %2093 = vmatprep.subr.mxu0 0.0
        %2094 = vmatpush1.msra.mxu0 0.0
        %2095 = vmatprep.subr.mxu0 0.0
        %2096 = vmatpush1.msra.mxu0 0.0
        %2097 = vmatprep.subr.mxu0 0.0
        %2098 = vmatpush1.msra.mxu0 0.0
        %2099 = vmatprep.subr.mxu0 0.0
        %2100 = vmatpush1.msra.mxu0 0.0
        %2101 = vmatprep.subr.mxu0 0.0
        %2102 = vmatpush1.msra.mxu0 0.0
        %2103 = vmatprep.subr.mxu0 0.0
        %2104 = vmatpush1.msra.mxu0 0.0
        %2105 = vmatprep.subr.mxu0 0.0
        %2106 = vmatpush1.msra.mxu0 0.0
        %2107 = vmatprep.subr.mxu0 0.0
        %2108 = vmatpush1.msra.mxu0 0.0
        %2109 = vmatprep.subr.mxu0 0.0
        %2110 = vmatpush1.msra.mxu0 0.0
        %2111 = vmatprep.subr.mxu0 0.0
        %2112 = vmatpush1.msra.mxu0 0.0
        %2113 = vmatprep.subr.mxu0 0.0
        %2114 = vmatpush1.msra.mxu0 0.0
        %2115 = vmatprep.subr.mxu0 0.0
        %2116 = vmatpush1.msra.mxu0 0.0
        %2117 = vmatprep.subr.mxu0 0.0
        %2118 = vmatpush1.msra.mxu0 0.0
        %2119 = vmatprep.subr.mxu0 0.0
        %2120 = vmatpush1.msra.mxu0 0.0
        %2121 = vmatprep.subr.mxu0 0.0
        %2122 = vmatpush1.msra.mxu0 0.0
        %2123 = vmatprep.subr.mxu0 0.0
        %2124 = vmatpush1.msra.mxu0 0.0
        %2125 = vmatprep.subr.mxu0 0.0
        %2126 = vmatpush1.msra.mxu0 0.0
        %2127 = vmatprep.subr.mxu0 0.0
        %2128 = vmatpush1.msra.mxu0 0.0
        %2129 = vmatprep.subr.mxu0 0.0
        %2130 = vmatpush1.msra.mxu0 0.0
        %2131 = vmatprep.subr.mxu0 0.0
        %2132 = vmatpush1.msra.mxu0 0.0
        %2133 = vmatprep.subr.mxu0 0.0
        %2134 = vmatpush1.msra.mxu0 0.0
        %2135 = vmatprep.subr.mxu0 0.0
        %2136 = vmatpush1.msra.mxu0 0.0
        %2137 = vmatprep.subr.mxu0 0.0
        %2138 = vmatpush1.msra.mxu0 0.0
        %2139 = vmatprep.subr.mxu0 0.0
        %2140 = vmatpush1.msra.mxu0 0.0
        %2141 = vmatprep.subr.mxu0 0.0
        %2142 = vmatpush1.msra.mxu0 0.0
        %2143 = vmatprep.subr.mxu0 0.0
        %2144 = vmatpush1.msra.mxu0 0.0
        %2145 = vmatprep.subr.mxu0 0.0
        %2146 = vmatpush1.msra.mxu0 0.0
        %2147 = vmatprep.subr.mxu0 0.0
        %2148 = vmatpush1.msra.mxu0 0.0
        %2149 = vmatprep.subr.mxu0 0.0
        %2150 = vmatpush1.msra.mxu0 0.0
        %2151 = vmatprep.mubr.f32.mxu0 0.0
        %2152 = vmatmul.mubr.f32.gmra.mrb[0].mxu0 %v2082
        %v2153 = vpop.f32.mrb[0].mxu0
        %v2154 = vadd.f32 0.0, %v2153
        %v2155 = vpop.f32.mrb[0].mxu0
        %2156 = vmatprep.mubr.f32.mxu0 0.0
        %2157 = vmatmul.mubr.f32.gmra.mrb[0].mxu0 %v2085
        %v2158 = vpop.f32.mrb[0].mxu0
        %v2159 = vadd.f32 0.0, %v2158
        %v2160 = vpop.f32.mrb[0].mxu0
        %2161 = vdwg.mxu0
        %v2162 = vadd.f32 %v1602, %v2154
        %v2163 = vadd.f32 %v1607, %v2159
        %s2164 = scalar_lea.vmem %s1, 384
        %v2165 = vld [vmem:[%s2164] sm:$0xff]
        %v2166 = vld [vmem:[%s2164 + $0x8] sm:$0xff]
        %v2167 = vld [vmem:[%s2164 + $0x10] sm:$0xff]
        %v2168 = vld [vmem:[%s2164 + $0x18] sm:$0xff]
        %v2169 = vld [vmem:[%s2164 + $0x20] sm:$0xff]
        %v2170 = vld [vmem:[%s2164 + $0x28] sm:$0xff]
        %v2171 = vld [vmem:[%s2164 + $0x30] sm:$0xff]
        %v2172 = vld [vmem:[%s2164 + $0x38] sm:$0xff]
        %v2173 = vld [vmem:[%s2164 + $0x40] sm:$0xff]
        %v2174 = vld [vmem:[%s2164 + $0x48] sm:$0xff]
        %v2175 = vld [vmem:[%s2164 + $0x50] sm:$0xff]
        %v2176 = vld [vmem:[%s2164 + $0x58] sm:$0xff]
        %v2177 = vld [vmem:[%s2164 + $0x60] sm:$0xff]
        %v2178 = vld [vmem:[%s2164 + $0x68] sm:$0xff]
        %v2179 = vld [vmem:[%s2164 + $0x70] sm:$0xff]
        %v2180 = vld [vmem:[%s2164 + $0x78] sm:$0xff]
        %2181 = vmatprep.subr.mxu0 0.0
        %2182 = vmatpush1.msra.mxu0 %v2165
        %2183 = vmatprep.subr.mxu0 0.0
        %2184 = vmatpush1.msra.mxu0 %v2166
        %2185 = vmatprep.subr.mxu0 0.0
        %2186 = vmatpush1.msra.mxu0 %v2167
        %2187 = vmatprep.subr.mxu0 0.0
        %2188 = vmatpush1.msra.mxu0 %v2168
        %2189 = vmatprep.subr.mxu0 0.0
        %2190 = vmatpush1.msra.mxu0 %v2169
        %2191 = vmatprep.subr.mxu0 0.0
        %2192 = vmatpush1.msra.mxu0 %v2170
        %2193 = vmatprep.subr.mxu0 0.0
        %2194 = vmatpush1.msra.mxu0 %v2171
        %2195 = vmatprep.subr.mxu0 0.0
        %2196 = vmatpush1.msra.mxu0 %v2172
        %2197 = vmatprep.subr.mxu0 0.0
        %2198 = vmatpush1.msra.mxu0 %v2173
        %2199 = vmatprep.subr.mxu0 0.0
        %2200 = vmatpush1.msra.mxu0 %v2174
        %2201 = vmatprep.subr.mxu0 0.0
        %2202 = vmatpush1.msra.mxu0 %v2175
        %2203 = vmatprep.subr.mxu0 0.0
        %2204 = vmatpush1.msra.mxu0 %v2176
        %2205 = vmatprep.subr.mxu0 0.0
        %2206 = vmatpush1.msra.mxu0 %v2177
        %2207 = vmatprep.subr.mxu0 0.0
        %2208 = vmatpush1.msra.mxu0 %v2178
        %2209 = vmatprep.subr.mxu0 0.0
        %2210 = vmatpush1.msra.mxu0 %v2179
        %2211 = vmatprep.subr.mxu0 0.0
        %2212 = vmatpush1.msra.mxu0 %v2180
        %2213 = vmatprep.subr.mxu0 0.0
        %2214 = vmatpush1.msra.mxu0 0.0
        %2215 = vmatprep.subr.mxu0 0.0
        %2216 = vmatpush1.msra.mxu0 0.0
        %2217 = vmatprep.subr.mxu0 0.0
        %2218 = vmatpush1.msra.mxu0 0.0
        %2219 = vmatprep.subr.mxu0 0.0
        %2220 = vmatpush1.msra.mxu0 0.0
        %2221 = vmatprep.subr.mxu0 0.0
        %2222 = vmatpush1.msra.mxu0 0.0
        %2223 = vmatprep.subr.mxu0 0.0
        %2224 = vmatpush1.msra.mxu0 0.0
        %2225 = vmatprep.subr.mxu0 0.0
        %2226 = vmatpush1.msra.mxu0 0.0
        %2227 = vmatprep.subr.mxu0 0.0
        %2228 = vmatpush1.msra.mxu0 0.0
        %2229 = vmatprep.subr.mxu0 0.0
        %2230 = vmatpush1.msra.mxu0 0.0
        %2231 = vmatprep.subr.mxu0 0.0
        %2232 = vmatpush1.msra.mxu0 0.0
        %2233 = vmatprep.subr.mxu0 0.0
        %2234 = vmatpush1.msra.mxu0 0.0
        %2235 = vmatprep.subr.mxu0 0.0
        %2236 = vmatpush1.msra.mxu0 0.0
        %2237 = vmatprep.subr.mxu0 0.0
        %2238 = vmatpush1.msra.mxu0 0.0
        %2239 = vmatprep.subr.mxu0 0.0
        %2240 = vmatpush1.msra.mxu0 0.0
        %2241 = vmatprep.subr.mxu0 0.0
        %2242 = vmatpush1.msra.mxu0 0.0
        %2243 = vmatprep.subr.mxu0 0.0
        %2244 = vmatpush1.msra.mxu0 0.0
        %2245 = vmatprep.mubr.f32.mxu0 0.0
        %2246 = vmatmul.mubr.f32.gmra.mrb[0].mxu0 %v507
        %v2247 = vpop.f32.mrb[0].mxu0
        %v2248 = vadd.f32 0.0, %v2247
        %v2249 = vpop.f32.mrb[0].mxu0
        %2250 = vmatprep.mubr.f32.mxu0 0.0
        %2251 = vmatmul.mubr.f32.gmra.mrb[0].mxu0 %v508
        %v2252 = vpop.f32.mrb[0].mxu0
        %v2253 = vadd.f32 0.0, %v2252
        %v2254 = vpop.f32.mrb[0].mxu0
        %2255 = vdwg.mxu0
        %s2256 = scalar_lea.vmem %s2, 384
        %v2257 = vld [vmem:[%s2256] sm:$0xff]
        %v2258 = vld [vmem:[%s2256 + $0x8] sm:$0xff]
        %v2259 = vld [vmem:[%s2256 + $0x10] sm:$0xff]
        %v2260 = vld [vmem:[%s2256 + $0x18] sm:$0xff]
        %v2261 = vld [vmem:[%s2256 + $0x20] sm:$0xff]
        %v2262 = vld [vmem:[%s2256 + $0x28] sm:$0xff]
        %v2263 = vld [vmem:[%s2256 + $0x30] sm:$0xff]
        %v2264 = vld [vmem:[%s2256 + $0x38] sm:$0xff]
        %v2265 = vld [vmem:[%s2256 + $0x40] sm:$0xff]
        %v2266 = vld [vmem:[%s2256 + $0x48] sm:$0xff]
        %v2267 = vld [vmem:[%s2256 + $0x50] sm:$0xff]
        %v2268 = vld [vmem:[%s2256 + $0x58] sm:$0xff]
        %v2269 = vld [vmem:[%s2256 + $0x60] sm:$0xff]
        %v2270 = vld [vmem:[%s2256 + $0x68] sm:$0xff]
        %v2271 = vld [vmem:[%s2256 + $0x70] sm:$0xff]
        %v2272 = vld [vmem:[%s2256 + $0x78] sm:$0xff]
        %2273 = vmatprep.subr.mxu0 0.0
        %2274 = vmatpush1.msra.mxu0 %v2257
        %2275 = vmatprep.subr.mxu0 0.0
        %2276 = vmatpush1.msra.mxu0 %v2258
        %2277 = vmatprep.subr.mxu0 0.0
        %2278 = vmatpush1.msra.mxu0 %v2259
        %2279 = vmatprep.subr.mxu0 0.0
        %2280 = vmatpush1.msra.mxu0 %v2260
        %2281 = vmatprep.subr.mxu0 0.0
        %2282 = vmatpush1.msra.mxu0 %v2261
        %2283 = vmatprep.subr.mxu0 0.0
        %2284 = vmatpush1.msra.mxu0 %v2262
        %2285 = vmatprep.subr.mxu0 0.0
        %2286 = vmatpush1.msra.mxu0 %v2263
        %2287 = vmatprep.subr.mxu0 0.0
        %2288 = vmatpush1.msra.mxu0 %v2264
        %2289 = vmatprep.subr.mxu0 0.0
        %2290 = vmatpush1.msra.mxu0 %v2265
        %2291 = vmatprep.subr.mxu0 0.0
        %2292 = vmatpush1.msra.mxu0 %v2266
        %2293 = vmatprep.subr.mxu0 0.0
        %2294 = vmatpush1.msra.mxu0 %v2267
        %2295 = vmatprep.subr.mxu0 0.0
        %2296 = vmatpush1.msra.mxu0 %v2268
        %2297 = vmatprep.subr.mxu0 0.0
        %2298 = vmatpush1.msra.mxu0 %v2269
        %2299 = vmatprep.subr.mxu0 0.0
        %2300 = vmatpush1.msra.mxu0 %v2270
        %2301 = vmatprep.subr.mxu0 0.0
        %2302 = vmatpush1.msra.mxu0 %v2271
        %2303 = vmatprep.subr.mxu0 0.0
        %2304 = vmatpush1.msra.mxu0 %v2272
        %2305 = vmatprep.subr.mxu0 0.0
        %2306 = vmatpush1.msra.mxu0 0.0
        %2307 = vmatprep.subr.mxu0 0.0
        %2308 = vmatpush1.msra.mxu0 0.0
        %2309 = vmatprep.subr.mxu0 0.0
        %2310 = vmatpush1.msra.mxu0 0.0
        %2311 = vmatprep.subr.mxu0 0.0
        %2312 = vmatpush1.msra.mxu0 0.0
        %2313 = vmatprep.subr.mxu0 0.0
        %2314 = vmatpush1.msra.mxu0 0.0
        %2315 = vmatprep.subr.mxu0 0.0
        %2316 = vmatpush1.msra.mxu0 0.0
        %2317 = vmatprep.subr.mxu0 0.0
        %2318 = vmatpush1.msra.mxu0 0.0
        %2319 = vmatprep.subr.mxu0 0.0
        %2320 = vmatpush1.msra.mxu0 0.0
        %2321 = vmatprep.subr.mxu0 0.0
        %2322 = vmatpush1.msra.mxu0 0.0
        %2323 = vmatprep.subr.mxu0 0.0
        %2324 = vmatpush1.msra.mxu0 0.0
        %2325 = vmatprep.subr.mxu0 0.0
        %2326 = vmatpush1.msra.mxu0 0.0
        %2327 = vmatprep.subr.mxu0 0.0
        %2328 = vmatpush1.msra.mxu0 0.0
        %2329 = vmatprep.subr.mxu0 0.0
        %2330 = vmatpush1.msra.mxu0 0.0
        %2331 = vmatprep.subr.mxu0 0.0
        %2332 = vmatpush1.msra.mxu0 0.0
        %2333 = vmatprep.subr.mxu0 0.0
        %2334 = vmatpush1.msra.mxu0 0.0
        %2335 = vmatprep.subr.mxu0 0.0
        %2336 = vmatpush1.msra.mxu0 0.0
        %2337 = vmatprep.mubr.f32.mxu0 0.0
        %2338 = vmatmul.mubr.f32.gmra.mrb[0].mxu0 %v507
        %v2339 = vpop.f32.mrb[0].mxu0
        %v2340 = vadd.f32 0.0, %v2339
        %v2341 = vpop.f32.mrb[0].mxu0
        %2342 = vmatprep.mubr.f32.mxu0 0.0
        %2343 = vmatmul.mubr.f32.gmra.mrb[0].mxu0 %v508
        %v2344 = vpop.f32.mrb[0].mxu0
        %v2345 = vadd.f32 0.0, %v2344
        %v2346 = vpop.f32.mrb[0].mxu0
        %2347 = vdwg.mxu0
        %s2348 = scalar_lea.vmem %s3, 384
        %v2349 = vld [vmem:[%s2348] sm:$0xff]
        %v2350 = vld [vmem:[%s2348 + $0x8] sm:$0xff]
        %v2351 = vld [vmem:[%s2348 + $0x10] sm:$0xff]
        %v2352 = vld [vmem:[%s2348 + $0x18] sm:$0xff]
        %v2353 = vld [vmem:[%s2348 + $0x20] sm:$0xff]
        %v2354 = vld [vmem:[%s2348 + $0x28] sm:$0xff]
        %v2355 = vld [vmem:[%s2348 + $0x30] sm:$0xff]
        %v2356 = vld [vmem:[%s2348 + $0x38] sm:$0xff]
        %v2357 = vld [vmem:[%s2348 + $0x40] sm:$0xff]
        %v2358 = vld [vmem:[%s2348 + $0x48] sm:$0xff]
        %v2359 = vld [vmem:[%s2348 + $0x50] sm:$0xff]
        %v2360 = vld [vmem:[%s2348 + $0x58] sm:$0xff]
        %v2361 = vld [vmem:[%s2348 + $0x60] sm:$0xff]
        %v2362 = vld [vmem:[%s2348 + $0x68] sm:$0xff]
        %v2363 = vld [vmem:[%s2348 + $0x70] sm:$0xff]
        %v2364 = vld [vmem:[%s2348 + $0x78] sm:$0xff]
        %2365 = vmatprep.subr.mxu0 0.0
        %2366 = vmatpush1.msra.mxu0 %v2349
        %2367 = vmatprep.subr.mxu0 0.0
        %2368 = vmatpush1.msra.mxu0 %v2350
        %2369 = vmatprep.subr.mxu0 0.0
        %2370 = vmatpush1.msra.mxu0 %v2351
        %2371 = vmatprep.subr.mxu0 0.0
        %2372 = vmatpush1.msra.mxu0 %v2352
        %2373 = vmatprep.subr.mxu0 0.0
        %2374 = vmatpush1.msra.mxu0 %v2353
        %2375 = vmatprep.subr.mxu0 0.0
        %2376 = vmatpush1.msra.mxu0 %v2354
        %2377 = vmatprep.subr.mxu0 0.0
        %2378 = vmatpush1.msra.mxu0 %v2355
        %2379 = vmatprep.subr.mxu0 0.0
        %2380 = vmatpush1.msra.mxu0 %v2356
        %2381 = vmatprep.subr.mxu0 0.0
        %2382 = vmatpush1.msra.mxu0 %v2357
        %2383 = vmatprep.subr.mxu0 0.0
        %2384 = vmatpush1.msra.mxu0 %v2358
        %2385 = vmatprep.subr.mxu0 0.0
        %2386 = vmatpush1.msra.mxu0 %v2359
        %2387 = vmatprep.subr.mxu0 0.0
        %2388 = vmatpush1.msra.mxu0 %v2360
        %2389 = vmatprep.subr.mxu0 0.0
        %2390 = vmatpush1.msra.mxu0 %v2361
        %2391 = vmatprep.subr.mxu0 0.0
        %2392 = vmatpush1.msra.mxu0 %v2362
        %2393 = vmatprep.subr.mxu0 0.0
        %2394 = vmatpush1.msra.mxu0 %v2363
        %2395 = vmatprep.subr.mxu0 0.0
        %2396 = vmatpush1.msra.mxu0 %v2364
        %2397 = vmatprep.subr.mxu0 0.0
        %2398 = vmatpush1.msra.mxu0 0.0
        %2399 = vmatprep.subr.mxu0 0.0
        %2400 = vmatpush1.msra.mxu0 0.0
        %2401 = vmatprep.subr.mxu0 0.0
        %2402 = vmatpush1.msra.mxu0 0.0
        %2403 = vmatprep.subr.mxu0 0.0
        %2404 = vmatpush1.msra.mxu0 0.0
        %2405 = vmatprep.subr.mxu0 0.0
        %2406 = vmatpush1.msra.mxu0 0.0
        %2407 = vmatprep.subr.mxu0 0.0
        %2408 = vmatpush1.msra.mxu0 0.0
        %2409 = vmatprep.subr.mxu0 0.0
        %2410 = vmatpush1.msra.mxu0 0.0
        %2411 = vmatprep.subr.mxu0 0.0
        %2412 = vmatpush1.msra.mxu0 0.0
        %2413 = vmatprep.subr.mxu0 0.0
        %2414 = vmatpush1.msra.mxu0 0.0
        %2415 = vmatprep.subr.mxu0 0.0
        %2416 = vmatpush1.msra.mxu0 0.0
        %2417 = vmatprep.subr.mxu0 0.0
        %2418 = vmatpush1.msra.mxu0 0.0
        %2419 = vmatprep.subr.mxu0 0.0
        %2420 = vmatpush1.msra.mxu0 0.0
        %2421 = vmatprep.subr.mxu0 0.0
        %2422 = vmatpush1.msra.mxu0 0.0
        %2423 = vmatprep.subr.mxu0 0.0
        %2424 = vmatpush1.msra.mxu0 0.0
        %2425 = vmatprep.subr.mxu0 0.0
        %2426 = vmatpush1.msra.mxu0 0.0
        %2427 = vmatprep.subr.mxu0 0.0
        %2428 = vmatpush1.msra.mxu0 0.0
        %2429 = vmatprep.mubr.f32.mxu0 0.0
        %2430 = vmatmul.mubr.f32.gmra.mrb[0].mxu0 %v507
        %v2431 = vpop.f32.mrb[0].mxu0
        %v2432 = vadd.f32 0.0, %v2431
        %v2433 = vpop.f32.mrb[0].mxu0
        %2434 = vmatprep.mubr.f32.mxu0 0.0
        %2435 = vmatmul.mubr.f32.gmra.mrb[0].mxu0 %v508
        %v2436 = vpop.f32.mrb[0].mxu0
        %v2437 = vadd.f32 0.0, %v2436
        %v2438 = vpop.f32.mrb[0].mxu0
        %2439 = vdwg.mxu0
        %v2441 = vsel %vm782, %v2248, 0
        %v2444 = vsel %vm782, %v2253, 0
        %v2447 = vsel %vm782, %v2340, 0
        %v2450 = vsel %vm782, %v2345, 0
        %2452 = vmatprep.subr.mxu0 0.0
        %2453 = vmatpush1.xpose.msra.mxu0 %v2447
        %2454 = vmatprep.subr.mxu0 0.0
        %2455 = vmatpush1.xpose.msra.mxu0 %v2450
        %2456 = vmatprep.subr.mxu0 0.0
        %2457 = vmatpush1.xpose.msra.mxu0 0.0
        %2458 = vmatprep.subr.mxu0 0.0
        %2459 = vmatpush1.xpose.msra.mxu0 0.0
        %2460 = vmatprep.subr.mxu0 0.0
        %2461 = vmatpush1.xpose.msra.mxu0 0.0
        %2462 = vmatprep.subr.mxu0 0.0
        %2463 = vmatpush1.xpose.msra.mxu0 0.0
        %2464 = vmatprep.subr.mxu0 0.0
        %2465 = vmatpush1.xpose.msra.mxu0 0.0
        %2466 = vmatprep.subr.mxu0 0.0
        %2467 = vmatpush1.xpose.msra.mxu0 0.0
        %2468 = vmatprep.subr.mxu0 0.0
        %2469 = vmatpush1.xpose.msra.mxu0 0.0
        %2470 = vmatprep.subr.mxu0 0.0
        %2471 = vmatpush1.xpose.msra.mxu0 0.0
        %2472 = vmatprep.subr.mxu0 0.0
        %2473 = vmatpush1.xpose.msra.mxu0 0.0
        %2474 = vmatprep.subr.mxu0 0.0
        %2475 = vmatpush1.xpose.msra.mxu0 0.0
        %2476 = vmatprep.subr.mxu0 0.0
        %2477 = vmatpush1.xpose.msra.mxu0 0.0
        %2478 = vmatprep.subr.mxu0 0.0
        %2479 = vmatpush1.xpose.msra.mxu0 0.0
        %2480 = vmatprep.subr.mxu0 0.0
        %2481 = vmatpush1.xpose.msra.mxu0 0.0
        %2482 = vmatprep.subr.mxu0 0.0
        %2483 = vmatpush1.xpose.msra.mxu0 0.0
        %2484 = vmatprep.subr.mxu0 0.0
        %2485 = vmatpush1.xpose.msra.mxu0 0.0
        %2486 = vmatprep.subr.mxu0 0.0
        %2487 = vmatpush1.xpose.msra.mxu0 0.0
        %2488 = vmatprep.subr.mxu0 0.0
        %2489 = vmatpush1.xpose.msra.mxu0 0.0
        %2490 = vmatprep.subr.mxu0 0.0
        %2491 = vmatpush1.xpose.msra.mxu0 0.0
        %2492 = vmatprep.subr.mxu0 0.0
        %2493 = vmatpush1.xpose.msra.mxu0 0.0
        %2494 = vmatprep.subr.mxu0 0.0
        %2495 = vmatpush1.xpose.msra.mxu0 0.0
        %2496 = vmatprep.subr.mxu0 0.0
        %2497 = vmatpush1.xpose.msra.mxu0 0.0
        %2498 = vmatprep.subr.mxu0 0.0
        %2499 = vmatpush1.xpose.msra.mxu0 0.0
        %2500 = vmatprep.subr.mxu0 0.0
        %2501 = vmatpush1.xpose.msra.mxu0 0.0
        %2502 = vmatprep.subr.mxu0 0.0
        %2503 = vmatpush1.xpose.msra.mxu0 0.0
        %2504 = vmatprep.subr.mxu0 0.0
        %2505 = vmatpush1.xpose.msra.mxu0 0.0
        %2506 = vmatprep.subr.mxu0 0.0
        %2507 = vmatpush1.xpose.msra.mxu0 0.0
        %2508 = vmatprep.subr.mxu0 0.0
        %2509 = vmatpush1.xpose.msra.mxu0 0.0
        %2510 = vmatprep.subr.mxu0 0.0
        %2511 = vmatpush1.xpose.msra.mxu0 0.0
        %2512 = vmatprep.subr.mxu0 0.0
        %2513 = vmatpush1.xpose.msra.mxu0 0.0
        %2514 = vmatprep.subr.mxu0 0.0
        %2515 = vmatpush1.xpose.msra.mxu0 0.0
        %2516 = vmatprep.mubr.f32.mxu0 0.0
        %2517 = vmatmul.mubr.f32.gmra.mrb[0].mxu0 %v2441
        %v2518 = vpop.f32.mrb[0].mxu0
        %v2519 = vadd.f32 0.0, %v2518
        %v2520 = vpop.f32.mrb[0].mxu0
        %2521 = vmatprep.mubr.f32.mxu0 0.0
        %2522 = vmatmul.mubr.f32.gmra.mrb[0].mxu0 %v2444
        %v2523 = vpop.f32.mrb[0].mxu0
        %v2524 = vadd.f32 0.0, %v2523
        %v2525 = vpop.f32.mrb[0].mxu0
        %2526 = vdwg.mxu0
        %v2527 = vmul.f32 %v2519, 0.25
        %v2528 = vmul.f32 %v2524, 0.25
        %v2529 = vsel %vm782, %v2527, -inf
        %2530 = vmax.xlane.f32.xlu0 %v2529
        %v2531 = vpop.xlane.xlu0 %2530
        %v2532 = vsel %vm782, %v2528, -inf
        %2533 = vmax.xlane.f32.xlu0 %v2532
        %v2534 = vpop.xlane.xlu0 %2533
        %v2535 = vsub.f32 %v2527, %v2531
        %v2536 = vsub.f32 %v2528, %v2534
        %v2537 = vmul.f32 %v2535, 1.442695
        %v2538 = vpow.pop %v2537
        %v2539 = vmul.f32 %v2536, 1.442695
        %v2540 = vpow.pop %v2539
        %v2541 = vsel %vm782, %v2538, 0.0
        %2542 = vadd.xlane.f32.xlu0 %v2541
        %v2543 = vpop.xlane.xlu0 %2542
        %v2544 = vsel %vm782, %v2540, 0.0
        %2545 = vadd.xlane.f32.xlu0 %v2544
        %v2546 = vpop.xlane.xlu0 %2545
        %v2547 = vrcp.pop %v2543
        %v2548 = vmul.f32 %v2538, %v2547
        %v2549 = vrcp.pop %v2546
        %v2550 = vmul.f32 %v2540, %v2549
        %v2552 = vsel %vm782, %v2548, 0
        %v2555 = vsel %vm782, %v2550, 0
        %2557 = vmatprep.subr.mxu0 0.0
        %2558 = vmatpush1.msra.mxu0 %v2432
        %2559 = vmatprep.subr.mxu0 0.0
        %2560 = vmatpush1.msra.mxu0 %v2437
        %2561 = vmatprep.subr.mxu0 0.0
        %2562 = vmatpush1.msra.mxu0 0.0
        %2563 = vmatprep.subr.mxu0 0.0
        %2564 = vmatpush1.msra.mxu0 0.0
        %2565 = vmatprep.subr.mxu0 0.0
        %2566 = vmatpush1.msra.mxu0 0.0
        %2567 = vmatprep.subr.mxu0 0.0
        %2568 = vmatpush1.msra.mxu0 0.0
        %2569 = vmatprep.subr.mxu0 0.0
        %2570 = vmatpush1.msra.mxu0 0.0
        %2571 = vmatprep.subr.mxu0 0.0
        %2572 = vmatpush1.msra.mxu0 0.0
        %2573 = vmatprep.subr.mxu0 0.0
        %2574 = vmatpush1.msra.mxu0 0.0
        %2575 = vmatprep.subr.mxu0 0.0
        %2576 = vmatpush1.msra.mxu0 0.0
        %2577 = vmatprep.subr.mxu0 0.0
        %2578 = vmatpush1.msra.mxu0 0.0
        %2579 = vmatprep.subr.mxu0 0.0
        %2580 = vmatpush1.msra.mxu0 0.0
        %2581 = vmatprep.subr.mxu0 0.0
        %2582 = vmatpush1.msra.mxu0 0.0
        %2583 = vmatprep.subr.mxu0 0.0
        %2584 = vmatpush1.msra.mxu0 0.0
        %2585 = vmatprep.subr.mxu0 0.0
        %2586 = vmatpush1.msra.mxu0 0.0
        %2587 = vmatprep.subr.mxu0 0.0
        %2588 = vmatpush1.msra.mxu0 0.0
        %2589 = vmatprep.subr.mxu0 0.0
        %2590 = vmatpush1.msra.mxu0 0.0
        %2591 = vmatprep.subr.mxu0 0.0
        %2592 = vmatpush1.msra.mxu0 0.0
        %2593 = vmatprep.subr.mxu0 0.0
        %2594 = vmatpush1.msra.mxu0 0.0
        %2595 = vmatprep.subr.mxu0 0.0
        %2596 = vmatpush1.msra.mxu0 0.0
        %2597 = vmatprep.subr.mxu0 0.0
        %2598 = vmatpush1.msra.mxu0 0.0
        %2599 = vmatprep.subr.mxu0 0.0
        %2600 = vmatpush1.msra.mxu0 0.0
        %2601 = vmatprep.subr.mxu0 0.0
        %2602 = vmatpush1.msra.mxu0 0.0
        %2603 = vmatprep.subr.mxu0 0.0
        %2604 = vmatpush1.msra.mxu0 0.0
        %2605 = vmatprep.subr.mxu0 0.0
        %2606 = vmatpush1.msra.mxu0 0.0
        %2607 = vmatprep.subr.mxu0 0.0
        %2608 = vmatpush1.msra.mxu0 0.0
        %2609 = vmatprep.subr.mxu0 0.0
        %2610 = vmatpush1.msra.mxu0 0.0
        %2611 = vmatprep.subr.mxu0 0.0
        %2612 = vmatpush1.msra.mxu0 0.0
        %2613 = vmatprep.subr.mxu0 0.0
        %2614 = vmatpush1.msra.mxu0 0.0
        %2615 = vmatprep.subr.mxu0 0.0
        %2616 = vmatpush1.msra.mxu0 0.0
        %2617 = vmatprep.subr.mxu0 0.0
        %2618 = vmatpush1.msra.mxu0 0.0
        %2619 = vmatprep.subr.mxu0 0.0
        %2620 = vmatpush1.msra.mxu0 0.0
        %2621 = vmatprep.mubr.f32.mxu0 0.0
        %2622 = vmatmul.mubr.f32.gmra.mrb[0].mxu0 %v2552
        %v2623 = vpop.f32.mrb[0].mxu0
        %v2624 = vadd.f32 0.0, %v2623
        %v2625 = vpop.f32.mrb[0].mxu0
        %2626 = vmatprep.mubr.f32.mxu0 0.0
        %2627 = vmatmul.mubr.f32.gmra.mrb[0].mxu0 %v2555
        %v2628 = vpop.f32.mrb[0].mxu0
        %v2629 = vadd.f32 0.0, %v2628
        %v2630 = vpop.f32.mrb[0].mxu0
        %2631 = vdwg.mxu0
        %s2632 = scalar_lea.vmem %s4, 48
        %v2633 = vld [vmem:[%s2632] sm:$0xff]
        %v2634 = vld [vmem:[%s2632 + $0x8] sm:$0xff]
        %v2636 = vsel %vm782, %v2624, 0
        %v2639 = vsel %vm782, %v2629, 0
        %2641 = vmatprep.subr.mxu0 0.0
        %2642 = vmatpush1.msra.mxu0 %v2633
        %2643 = vmatprep.subr.mxu0 0.0
        %2644 = vmatpush1.msra.mxu0 %v2634
        %2645 = vmatprep.subr.mxu0 0.0
        %2646 = vmatpush1.msra.mxu0 0.0
        %2647 = vmatprep.subr.mxu0 0.0
        %2648 = vmatpush1.msra.mxu0 0.0
        %2649 = vmatprep.subr.mxu0 0.0
        %2650 = vmatpush1.msra.mxu0 0.0
        %2651 = vmatprep.subr.mxu0 0.0
        %2652 = vmatpush1.msra.mxu0 0.0
        %2653 = vmatprep.subr.mxu0 0.0
        %2654 = vmatpush1.msra.mxu0 0.0
        %2655 = vmatprep.subr.mxu0 0.0
        %2656 = vmatpush1.msra.mxu0 0.0
        %2657 = vmatprep.subr.mxu0 0.0
        %2658 = vmatpush1.msra.mxu0 0.0
        %2659 = vmatprep.subr.mxu0 0.0
        %2660 = vmatpush1.msra.mxu0 0.0
        %2661 = vmatprep.subr.mxu0 0.0
        %2662 = vmatpush1.msra.mxu0 0.0
        %2663 = vmatprep.subr.mxu0 0.0
        %2664 = vmatpush1.msra.mxu0 0.0
        %2665 = vmatprep.subr.mxu0 0.0
        %2666 = vmatpush1.msra.mxu0 0.0
        %2667 = vmatprep.subr.mxu0 0.0
        %2668 = vmatpush1.msra.mxu0 0.0
        %2669 = vmatprep.subr.mxu0 0.0
        %2670 = vmatpush1.msra.mxu0 0.0
        %2671 = vmatprep.subr.mxu0 0.0
        %2672 = vmatpush1.msra.mxu0 0.0
        %2673 = vmatprep.subr.mxu0 0.0
        %2674 = vmatpush1.msra.mxu0 0.0
        %2675 = vmatprep.subr.mxu0 0.0
        %2676 = vmatpush1.msra.mxu0 0.0
        %2677 = vmatprep.subr.mxu0 0.0
        %2678 = vmatpush1.msra.mxu0 0.0
        %2679 = vmatprep.subr.mxu0 0.0
        %2680 = vmatpush1.msra.mxu0 0.0
        %2681 = vmatprep.subr.mxu0 0.0
        %2682 = vmatpush1.msra.mxu0 0.0
        %2683 = vmatprep.subr.mxu0 0.0
        %2684 = vmatpush1.msra.mxu0 0.0
        %2685 = vmatprep.subr.mxu0 0.0
        %2686 = vmatpush1.msra.mxu0 0.0
        %2687 = vmatprep.subr.mxu0 0.0
        %2688 = vmatpush1.msra.mxu0 0.0
        %2689 = vmatprep.subr.mxu0 0.0
        %2690 = vmatpush1.msra.mxu0 0.0
        %2691 = vmatprep.subr.mxu0 0.0
        %2692 = vmatpush1.msra.mxu0 0.0
        %2693 = vmatprep.subr.mxu0 0.0
        %2694 = vmatpush1.msra.mxu0 0.0
        %2695 = vmatprep.subr.mxu0 0.0
        %2696 = vmatpush1.msra.mxu0 0.0
        %2697 = vmatprep.subr.mxu0 0.0
        %2698 = vmatpush1.msra.mxu0 0.0
        %2699 = vmatprep.subr.mxu0 0.0
        %2700 = vmatpush1.msra.mxu0 0.0
        %2701 = vmatprep.subr.mxu0 0.0
        %2702 = vmatpush1.msra.mxu0 0.0
        %2703 = vmatprep.subr.mxu0 0.0
        %2704 = vmatpush1.msra.mxu0 0.0
        %2705 = vmatprep.mubr.f32.mxu0 0.0
        %2706 = vmatmul.mubr.f32.gmra.mrb[0].mxu0 %v2636
        %v2707 = vpop.f32.mrb[0].mxu0
        %v2708 = vadd.f32 0.0, %v2707
        %v2709 = vpop.f32.mrb[0].mxu0
        %2710 = vmatprep.mubr.f32.mxu0 0.0
        %2711 = vmatmul.mubr.f32.gmra.mrb[0].mxu0 %v2639
        %v2712 = vpop.f32.mrb[0].mxu0
        %v2713 = vadd.f32 0.0, %v2712
        %v2714 = vpop.f32.mrb[0].mxu0
        %2715 = vdwg.mxu0
        %v2716 = vadd.f32 %v2162, %v2708
        %v2717 = vadd.f32 %v2163, %v2713
        %s2718 = scalar_lea.vmem %s1, 512
        %v2719 = vld [vmem:[%s2718] sm:$0xff]
        %v2720 = vld [vmem:[%s2718 + $0x8] sm:$0xff]
        %v2721 = vld [vmem:[%s2718 + $0x10] sm:$0xff]
        %v2722 = vld [vmem:[%s2718 + $0x18] sm:$0xff]
        %v2723 = vld [vmem:[%s2718 + $0x20] sm:$0xff]
        %v2724 = vld [vmem:[%s2718 + $0x28] sm:$0xff]
        %v2725 = vld [vmem:[%s2718 + $0x30] sm:$0xff]
        %v2726 = vld [vmem:[%s2718 + $0x38] sm:$0xff]
        %v2727 = vld [vmem:[%s2718 + $0x40] sm:$0xff]
        %v2728 = vld [vmem:[%s2718 + $0x48] sm:$0xff]
        %v2729 = vld [vmem:[%s2718 + $0x50] sm:$0xff]
        %v2730 = vld [vmem:[%s2718 + $0x58] sm:$0xff]
        %v2731 = vld [vmem:[%s2718 + $0x60] sm:$0xff]
        %v2732 = vld [vmem:[%s2718 + $0x68] sm:$0xff]
        %v2733 = vld [vmem:[%s2718 + $0x70] sm:$0xff]
        %v2734 = vld [vmem:[%s2718 + $0x78] sm:$0xff]
        %2735 = vmatprep.subr.mxu0 0.0
        %2736 = vmatpush1.msra.mxu0 %v2719
        %2737 = vmatprep.subr.mxu0 0.0
        %2738 = vmatpush1.msra.mxu0 %v2720
        %2739 = vmatprep.subr.mxu0 0.0
        %2740 = vmatpush1.msra.mxu0 %v2721
        %2741 = vmatprep.subr.mxu0 0.0
        %2742 = vmatpush1.msra.mxu0 %v2722
        %2743 = vmatprep.subr.mxu0 0.0
        %2744 = vmatpush1.msra.mxu0 %v2723
        %2745 = vmatprep.subr.mxu0 0.0
        %2746 = vmatpush1.msra.mxu0 %v2724
        %2747 = vmatprep.subr.mxu0 0.0
        %2748 = vmatpush1.msra.mxu0 %v2725
        %2749 = vmatprep.subr.mxu0 0.0
        %2750 = vmatpush1.msra.mxu0 %v2726
        %2751 = vmatprep.subr.mxu0 0.0
        %2752 = vmatpush1.msra.mxu0 %v2727
        %2753 = vmatprep.subr.mxu0 0.0
        %2754 = vmatpush1.msra.mxu0 %v2728
        %2755 = vmatprep.subr.mxu0 0.0
        %2756 = vmatpush1.msra.mxu0 %v2729
        %2757 = vmatprep.subr.mxu0 0.0
        %2758 = vmatpush1.msra.mxu0 %v2730
        %2759 = vmatprep.subr.mxu0 0.0
        %2760 = vmatpush1.msra.mxu0 %v2731
        %2761 = vmatprep.subr.mxu0 0.0
        %2762 = vmatpush1.msra.mxu0 %v2732
        %2763 = vmatprep.subr.mxu0 0.0
        %2764 = vmatpush1.msra.mxu0 %v2733
        %2765 = vmatprep.subr.mxu0 0.0
        %2766 = vmatpush1.msra.mxu0 %v2734
        %2767 = vmatprep.subr.mxu0 0.0
        %2768 = vmatpush1.msra.mxu0 0.0
        %2769 = vmatprep.subr.mxu0 0.0
        %2770 = vmatpush1.msra.mxu0 0.0
        %2771 = vmatprep.subr.mxu0 0.0
        %2772 = vmatpush1.msra.mxu0 0.0
        %2773 = vmatprep.subr.mxu0 0.0
        %2774 = vmatpush1.msra.mxu0 0.0
        %2775 = vmatprep.subr.mxu0 0.0
        %2776 = vmatpush1.msra.mxu0 0.0
        %2777 = vmatprep.subr.mxu0 0.0
        %2778 = vmatpush1.msra.mxu0 0.0
        %2779 = vmatprep.subr.mxu0 0.0
        %2780 = vmatpush1.msra.mxu0 0.0
        %2781 = vmatprep.subr.mxu0 0.0
        %2782 = vmatpush1.msra.mxu0 0.0
        %2783 = vmatprep.subr.mxu0 0.0
        %2784 = vmatpush1.msra.mxu0 0.0
        %2785 = vmatprep.subr.mxu0 0.0
        %2786 = vmatpush1.msra.mxu0 0.0
        %2787 = vmatprep.subr.mxu0 0.0
        %2788 = vmatpush1.msra.mxu0 0.0
        %2789 = vmatprep.subr.mxu0 0.0
        %2790 = vmatpush1.msra.mxu0 0.0
        %2791 = vmatprep.subr.mxu0 0.0
        %2792 = vmatpush1.msra.mxu0 0.0
        %2793 = vmatprep.subr.mxu0 0.0
        %2794 = vmatpush1.msra.mxu0 0.0
        %2795 = vmatprep.subr.mxu0 0.0
        %2796 = vmatpush1.msra.mxu0 0.0
        %2797 = vmatprep.subr.mxu0 0.0
        %2798 = vmatpush1.msra.mxu0 0.0
        %2799 = vmatprep.mubr.f32.mxu0 0.0
        %2800 = vmatmul.mubr.f32.gmra.mrb[0].mxu0 %v507
        %v2801 = vpop.f32.mrb[0].mxu0
        %v2802 = vadd.f32 0.0, %v2801
        %v2803 = vpop.f32.mrb[0].mxu0
        %2804 = vmatprep.mubr.f32.mxu0 0.0
        %2805 = vmatmul.mubr.f32.gmra.mrb[0].mxu0 %v508
        %v2806 = vpop.f32.mrb[0].mxu0
        %v2807 = vadd.f32 0.0, %v2806
        %v2808 = vpop.f32.mrb[0].mxu0
        %2809 = vdwg.mxu0
        %s2810 = scalar_lea.vmem %s2, 512
        %v2811 = vld [vmem:[%s2810] sm:$0xff]
        %v2812 = vld [vmem:[%s2810 + $0x8] sm:$0xff]
        %v2813 = vld [vmem:[%s2810 + $0x10] sm:$0xff]
        %v2814 = vld [vmem:[%s2810 + $0x18] sm:$0xff]
        %v2815 = vld [vmem:[%s2810 + $0x20] sm:$0xff]
        %v2816 = vld [vmem:[%s2810 + $0x28] sm:$0xff]
        %v2817 = vld [vmem:[%s2810 + $0x30] sm:$0xff]
        %v2818 = vld [vmem:[%s2810 + $0x38] sm:$0xff]
        %v2819 = vld [vmem:[%s2810 + $0x40] sm:$0xff]
        %v2820 = vld [vmem:[%s2810 + $0x48] sm:$0xff]
        %v2821 = vld [vmem:[%s2810 + $0x50] sm:$0xff]
        %v2822 = vld [vmem:[%s2810 + $0x58] sm:$0xff]
        %v2823 = vld [vmem:[%s2810 + $0x60] sm:$0xff]
        %v2824 = vld [vmem:[%s2810 + $0x68] sm:$0xff]
        %v2825 = vld [vmem:[%s2810 + $0x70] sm:$0xff]
        %v2826 = vld [vmem:[%s2810 + $0x78] sm:$0xff]
        %2827 = vmatprep.subr.mxu0 0.0
        %2828 = vmatpush1.msra.mxu0 %v2811
        %2829 = vmatprep.subr.mxu0 0.0
        %2830 = vmatpush1.msra.mxu0 %v2812
        %2831 = vmatprep.subr.mxu0 0.0
        %2832 = vmatpush1.msra.mxu0 %v2813
        %2833 = vmatprep.subr.mxu0 0.0
        %2834 = vmatpush1.msra.mxu0 %v2814
        %2835 = vmatprep.subr.mxu0 0.0
        %2836 = vmatpush1.msra.mxu0 %v2815
        %2837 = vmatprep.subr.mxu0 0.0
        %2838 = vmatpush1.msra.mxu0 %v2816
        %2839 = vmatprep.subr.mxu0 0.0
        %2840 = vmatpush1.msra.mxu0 %v2817
        %2841 = vmatprep.subr.mxu0 0.0
        %2842 = vmatpush1.msra.mxu0 %v2818
        %2843 = vmatprep.subr.mxu0 0.0
        %2844 = vmatpush1.msra.mxu0 %v2819
        %2845 = vmatprep.subr.mxu0 0.0
        %2846 = vmatpush1.msra.mxu0 %v2820
        %2847 = vmatprep.subr.mxu0 0.0
        %2848 = vmatpush1.msra.mxu0 %v2821
        %2849 = vmatprep.subr.mxu0 0.0
        %2850 = vmatpush1.msra.mxu0 %v2822
        %2851 = vmatprep.subr.mxu0 0.0
        %2852 = vmatpush1.msra.mxu0 %v2823
        %2853 = vmatprep.subr.mxu0 0.0
        %2854 = vmatpush1.msra.mxu0 %v2824
        %2855 = vmatprep.subr.mxu0 0.0
        %2856 = vmatpush1.msra.mxu0 %v2825
        %2857 = vmatprep.subr.mxu0 0.0
        %2858 = vmatpush1.msra.mxu0 %v2826
        %2859 = vmatprep.subr.mxu0 0.0
        %2860 = vmatpush1.msra.mxu0 0.0
        %2861 = vmatprep.subr.mxu0 0.0
        %2862 = vmatpush1.msra.mxu0 0.0
        %2863 = vmatprep.subr.mxu0 0.0
        %2864 = vmatpush1.msra.mxu0 0.0
        %2865 = vmatprep.subr.mxu0 0.0
        %2866 = vmatpush1.msra.mxu0 0.0
        %2867 = vmatprep.subr.mxu0 0.0
        %2868 = vmatpush1.msra.mxu0 0.0
        %2869 = vmatprep.subr.mxu0 0.0
        %2870 = vmatpush1.msra.mxu0 0.0
        %2871 = vmatprep.subr.mxu0 0.0
        %2872 = vmatpush1.msra.mxu0 0.0
        %2873 = vmatprep.subr.mxu0 0.0
        %2874 = vmatpush1.msra.mxu0 0.0
        %2875 = vmatprep.subr.mxu0 0.0
        %2876 = vmatpush1.msra.mxu0 0.0
        %2877 = vmatprep.subr.mxu0 0.0
        %2878 = vmatpush1.msra.mxu0 0.0
        %2879 = vmatprep.subr.mxu0 0.0
        %2880 = vmatpush1.msra.mxu0 0.0
        %2881 = vmatprep.subr.mxu0 0.0
        %2882 = vmatpush1.msra.mxu0 0.0
        %2883 = vmatprep.subr.mxu0 0.0
        %2884 = vmatpush1.msra.mxu0 0.0
        %2885 = vmatprep.subr.mxu0 0.0
        %2886 = vmatpush1.msra.mxu0 0.0
        %2887 = vmatprep.subr.mxu0 0.0
        %2888 = vmatpush1.msra.mxu0 0.0
        %2889 = vmatprep.subr.mxu0 0.0
        %2890 = vmatpush1.msra.mxu0 0.0
        %2891 = vmatprep.mubr.f32.mxu0 0.0
        %2892 = vmatmul.mubr.f32.gmra.mrb[0].mxu0 %v507
        %v2893 = vpop.f32.mrb[0].mxu0
        %v2894 = vadd.f32 0.0, %v2893
        %v2895 = vpop.f32.mrb[0].mxu0
        %2896 = vmatprep.mubr.f32.mxu0 0.0
        %2897 = vmatmul.mubr.f32.gmra.mrb[0].mxu0 %v508
        %v2898 = vpop.f32.mrb[0].mxu0
        %v2899 = vadd.f32 0.0, %v2898
        %v2900 = vpop.f32.mrb[0].mxu0
        %2901 = vdwg.mxu0
        %s2902 = scalar_lea.vmem %s3, 512
        %v2903 = vld [vmem:[%s2902] sm:$0xff]
        %v2904 = vld [vmem:[%s2902 + $0x8] sm:$0xff]
        %v2905 = vld [vmem:[%s2902 + $0x10] sm:$0xff]
        %v2906 = vld [vmem:[%s2902 + $0x18] sm:$0xff]
        %v2907 = vld [vmem:[%s2902 + $0x20] sm:$0xff]
        %v2908 = vld [vmem:[%s2902 + $0x28] sm:$0xff]
        %v2909 = vld [vmem:[%s2902 + $0x30] sm:$0xff]
        %v2910 = vld [vmem:[%s2902 + $0x38] sm:$0xff]
        %v2911 = vld [vmem:[%s2902 + $0x40] sm:$0xff]
        %v2912 = vld [vmem:[%s2902 + $0x48] sm:$0xff]
        %v2913 = vld [vmem:[%s2902 + $0x50] sm:$0xff]
        %v2914 = vld [vmem:[%s2902 + $0x58] sm:$0xff]
        %v2915 = vld [vmem:[%s2902 + $0x60] sm:$0xff]
        %v2916 = vld [vmem:[%s2902 + $0x68] sm:$0xff]
        %v2917 = vld [vmem:[%s2902 + $0x70] sm:$0xff]
        %v2918 = vld [vmem:[%s2902 + $0x78] sm:$0xff]
        %2919 = vmatprep.subr.mxu0 0.0
        %2920 = vmatpush1.msra.mxu0 %v2903
        %2921 = vmatprep.subr.mxu0 0.0
        %2922 = vmatpush1.msra.mxu0 %v2904
        %2923 = vmatprep.subr.mxu0 0.0
        %2924 = vmatpush1.msra.mxu0 %v2905
        %2925 = vmatprep.subr.mxu0 0.0
        %2926 = vmatpush1.msra.mxu0 %v2906
        %2927 = vmatprep.subr.mxu0 0.0
        %2928 = vmatpush1.msra.mxu0 %v2907
        %2929 = vmatprep.subr.mxu0 0.0
        %2930 = vmatpush1.msra.mxu0 %v2908
        %2931 = vmatprep.subr.mxu0 0.0
        %2932 = vmatpush1.msra.mxu0 %v2909
        %2933 = vmatprep.subr.mxu0 0.0
        %2934 = vmatpush1.msra.mxu0 %v2910
        %2935 = vmatprep.subr.mxu0 0.0
        %2936 = vmatpush1.msra.mxu0 %v2911
        %2937 = vmatprep.subr.mxu0 0.0
        %2938 = vmatpush1.msra.mxu0 %v2912
        %2939 = vmatprep.subr.mxu0 0.0
        %2940 = vmatpush1.msra.mxu0 %v2913
        %2941 = vmatprep.subr.mxu0 0.0
        %2942 = vmatpush1.msra.mxu0 %v2914
        %2943 = vmatprep.subr.mxu0 0.0
        %2944 = vmatpush1.msra.mxu0 %v2915
        %2945 = vmatprep.subr.mxu0 0.0
        %2946 = vmatpush1.msra.mxu0 %v2916
        %2947 = vmatprep.subr.mxu0 0.0
        %2948 = vmatpush1.msra.mxu0 %v2917
        %2949 = vmatprep.subr.mxu0 0.0
        %2950 = vmatpush1.msra.mxu0 %v2918
        %2951 = vmatprep.subr.mxu0 0.0
        %2952 = vmatpush1.msra.mxu0 0.0
        %2953 = vmatprep.subr.mxu0 0.0
        %2954 = vmatpush1.msra.mxu0 0.0
        %2955 = vmatprep.subr.mxu0 0.0
        %2956 = vmatpush1.msra.mxu0 0.0
        %2957 = vmatprep.subr.mxu0 0.0
        %2958 = vmatpush1.msra.mxu0 0.0
        %2959 = vmatprep.subr.mxu0 0.0
        %2960 = vmatpush1.msra.mxu0 0.0
        %2961 = vmatprep.subr.mxu0 0.0
        %2962 = vmatpush1.msra.mxu0 0.0
        %2963 = vmatprep.subr.mxu0 0.0
        %2964 = vmatpush1.msra.mxu0 0.0
        %2965 = vmatprep.subr.mxu0 0.0
        %2966 = vmatpush1.msra.mxu0 0.0
        %2967 = vmatprep.subr.mxu0 0.0
        %2968 = vmatpush1.msra.mxu0 0.0
        %2969 = vmatprep.subr.mxu0 0.0
        %2970 = vmatpush1.msra.mxu0 0.0
        %2971 = vmatprep.subr.mxu0 0.0
        %2972 = vmatpush1.msra.mxu0 0.0
        %2973 = vmatprep.subr.mxu0 0.0
        %2974 = vmatpush1.msra.mxu0 0.0
        %2975 = vmatprep.subr.mxu0 0.0
        %2976 = vmatpush1.msra.mxu0 0.0
        %2977 = vmatprep.subr.mxu0 0.0
        %2978 = vmatpush1.msra.mxu0 0.0
        %2979 = vmatprep.subr.mxu0 0.0
        %2980 = vmatpush1.msra.mxu0 0.0
        %2981 = vmatprep.subr.mxu0 0.0
        %2982 = vmatpush1.msra.mxu0 0.0
        %2983 = vmatprep.mubr.f32.mxu0 0.0
        %2984 = vmatmul.mubr.f32.gmra.mrb[0].mxu0 %v507
        %v2985 = vpop.f32.mrb[0].mxu0
        %v2986 = vadd.f32 0.0, %v2985
        %v2987 = vpop.f32.mrb[0].mxu0
        %2988 = vmatprep.mubr.f32.mxu0 0.0
        %2989 = vmatmul.mubr.f32.gmra.mrb[0].mxu0 %v508
        %v2990 = vpop.f32.mrb[0].mxu0
        %v2991 = vadd.f32 0.0, %v2990
        %v2992 = vpop.f32.mrb[0].mxu0
        %2993 = vdwg.mxu0
        %v2995 = vsel %vm782, %v2802, 0
        %v2998 = vsel %vm782, %v2807, 0
        %v3001 = vsel %vm782, %v2894, 0
        %v3004 = vsel %vm782, %v2899, 0
        %3006 = vmatprep.subr.mxu0 0.0
        %3007 = vmatpush1.xpose.msra.mxu0 %v3001
        %3008 = vmatprep.subr.mxu0 0.0
        %3009 = vmatpush1.xpose.msra.mxu0 %v3004
        %3010 = vmatprep.subr.mxu0 0.0
        %3011 = vmatpush1.xpose.msra.mxu0 0.0
        %3012 = vmatprep.subr.mxu0 0.0
        %3013 = vmatpush1.xpose.msra.mxu0 0.0
        %3014 = vmatprep.subr.mxu0 0.0
        %3015 = vmatpush1.xpose.msra.mxu0 0.0
        %3016 = vmatprep.subr.mxu0 0.0
        %3017 = vmatpush1.xpose.msra.mxu0 0.0
        %3018 = vmatprep.subr.mxu0 0.0
        %3019 = vmatpush1.xpose.msra.mxu0 0.0
        %3020 = vmatprep.subr.mxu0 0.0
        %3021 = vmatpush1.xpose.msra.mxu0 0.0
        %3022 = vmatprep.subr.mxu0 0.0
        %3023 = vmatpush1.xpose.msra.mxu0 0.0
        %3024 = vmatprep.subr.mxu0 0.0
        %3025 = vmatpush1.xpose.msra.mxu0 0.0
        %3026 = vmatprep.subr.mxu0 0.0
        %3027 = vmatpush1.xpose.msra.mxu0 0.0
        %3028 = vmatprep.subr.mxu0 0.0
        %3029 = vmatpush1.xpose.msra.mxu0 0.0
        %3030 = vmatprep.subr.mxu0 0.0
        %3031 = vmatpush1.xpose.msra.mxu0 0.0
        %3032 = vmatprep.subr.mxu0 0.0
        %3033 = vmatpush1.xpose.msra.mxu0 0.0
        %3034 = vmatprep.subr.mxu0 0.0
        %3035 = vmatpush1.xpose.msra.mxu0 0.0
        %3036 = vmatprep.subr.mxu0 0.0
        %3037 = vmatpush1.xpose.msra.mxu0 0.0
        %3038 = vmatprep.subr.mxu0 0.0
        %3039 = vmatpush1.xpose.msra.mxu0 0.0
        %3040 = vmatprep.subr.mxu0 0.0
        %3041 = vmatpush1.xpose.msra.mxu0 0.0
        %3042 = vmatprep.subr.mxu0 0.0
        %3043 = vmatpush1.xpose.msra.mxu0 0.0
        %3044 = vmatprep.subr.mxu0 0.0
        %3045 = vmatpush1.xpose.msra.mxu0 0.0
        %3046 = vmatprep.subr.mxu0 0.0
        %3047 = vmatpush1.xpose.msra.mxu0 0.0
        %3048 = vmatprep.subr.mxu0 0.0
        %3049 = vmatpush1.xpose.msra.mxu0 0.0
        %3050 = vmatprep.subr.mxu0 0.0
        %3051 = vmatpush1.xpose.msra.mxu0 0.0
        %3052 = vmatprep.subr.mxu0 0.0
        %3053 = vmatpush1.xpose.msra.mxu0 0.0
        %3054 = vmatprep.subr.mxu0 0.0
        %3055 = vmatpush1.xpose.msra.mxu0 0.0
        %3056 = vmatprep.subr.mxu0 0.0
        %3057 = vmatpush1.xpose.msra.mxu0 0.0
        %3058 = vmatprep.subr.mxu0 0.0
        %3059 = vmatpush1.xpose.msra.mxu0 0.0
        %3060 = vmatprep.subr.mxu0 0.0
        %3061 = vmatpush1.xpose.msra.mxu0 0.0
        %3062 = vmatprep.subr.mxu0 0.0
        %3063 = vmatpush1.xpose.msra.mxu0 0.0
        %3064 = vmatprep.subr.mxu0 0.0
        %3065 = vmatpush1.xpose.msra.mxu0 0.0
        %3066 = vmatprep.subr.mxu0 0.0
        %3067 = vmatpush1.xpose.msra.mxu0 0.0
        %3068 = vmatprep.subr.mxu0 0.0
        %3069 = vmatpush1.xpose.msra.mxu0 0.0
        %3070 = vmatprep.mubr.f32.mxu0 0.0
        %3071 = vmatmul.mubr.f32.gmra.mrb[0].mxu0 %v2995
        %v3072 = vpop.f32.mrb[0].mxu0
        %v3073 = vadd.f32 0.0, %v3072
        %v3074 = vpop.f32.mrb[0].mxu0
        %3075 = vmatprep.mubr.f32.mxu0 0.0
        %3076 = vmatmul.mubr.f32.gmra.mrb[0].mxu0 %v2998
        %v3077 = vpop.f32.mrb[0].mxu0
        %v3078 = vadd.f32 0.0, %v3077
        %v3079 = vpop.f32.mrb[0].mxu0
        %3080 = vdwg.mxu0
        %v3081 = vmul.f32 %v3073, 0.25
        %v3082 = vmul.f32 %v3078, 0.25
        %v3083 = vsel %vm782, %v3081, -inf
        %3084 = vmax.xlane.f32.xlu0 %v3083
        %v3085 = vpop.xlane.xlu0 %3084
        %v3086 = vsel %vm782, %v3082, -inf
        %3087 = vmax.xlane.f32.xlu0 %v3086
        %v3088 = vpop.xlane.xlu0 %3087
        %v3089 = vsub.f32 %v3081, %v3085
        %v3090 = vsub.f32 %v3082, %v3088
        %v3091 = vmul.f32 %v3089, 1.442695
        %v3092 = vpow.pop %v3091
        %v3093 = vmul.f32 %v3090, 1.442695
        %v3094 = vpow.pop %v3093
        %v3095 = vsel %vm782, %v3092, 0.0
        %3096 = vadd.xlane.f32.xlu0 %v3095
        %v3097 = vpop.xlane.xlu0 %3096
        %v3098 = vsel %vm782, %v3094, 0.0
        %3099 = vadd.xlane.f32.xlu0 %v3098
        %v3100 = vpop.xlane.xlu0 %3099
        %v3101 = vrcp.pop %v3097
        %v3102 = vmul.f32 %v3092, %v3101
        %v3103 = vrcp.pop %v3100
        %v3104 = vmul.f32 %v3094, %v3103
        %v3106 = vsel %vm782, %v3102, 0
        %v3109 = vsel %vm782, %v3104, 0
        %3111 = vmatprep.subr.mxu0 0.0
        %3112 = vmatpush1.msra.mxu0 %v2986
        %3113 = vmatprep.subr.mxu0 0.0
        %3114 = vmatpush1.msra.mxu0 %v2991
        %3115 = vmatprep.subr.mxu0 0.0
        %3116 = vmatpush1.msra.mxu0 0.0
        %3117 = vmatprep.subr.mxu0 0.0
        %3118 = vmatpush1.msra.mxu0 0.0
        %3119 = vmatprep.subr.mxu0 0.0
        %3120 = vmatpush1.msra.mxu0 0.0
        %3121 = vmatprep.subr.mxu0 0.0
        %3122 = vmatpush1.msra.mxu0 0.0
        %3123 = vmatprep.subr.mxu0 0.0
        %3124 = vmatpush1.msra.mxu0 0.0
        %3125 = vmatprep.subr.mxu0 0.0
        %3126 = vmatpush1.msra.mxu0 0.0
        %3127 = vmatprep.subr.mxu0 0.0
        %3128 = vmatpush1.msra.mxu0 0.0
        %3129 = vmatprep.subr.mxu0 0.0
        %3130 = vmatpush1.msra.mxu0 0.0
        %3131 = vmatprep.subr.mxu0 0.0
        %3132 = vmatpush1.msra.mxu0 0.0
        %3133 = vmatprep.subr.mxu0 0.0
        %3134 = vmatpush1.msra.mxu0 0.0
        %3135 = vmatprep.subr.mxu0 0.0
        %3136 = vmatpush1.msra.mxu0 0.0
        %3137 = vmatprep.subr.mxu0 0.0
        %3138 = vmatpush1.msra.mxu0 0.0
        %3139 = vmatprep.subr.mxu0 0.0
        %3140 = vmatpush1.msra.mxu0 0.0
        %3141 = vmatprep.subr.mxu0 0.0
        %3142 = vmatpush1.msra.mxu0 0.0
        %3143 = vmatprep.subr.mxu0 0.0
        %3144 = vmatpush1.msra.mxu0 0.0
        %3145 = vmatprep.subr.mxu0 0.0
        %3146 = vmatpush1.msra.mxu0 0.0
        %3147 = vmatprep.subr.mxu0 0.0
        %3148 = vmatpush1.msra.mxu0 0.0
        %3149 = vmatprep.subr.mxu0 0.0
        %3150 = vmatpush1.msra.mxu0 0.0
        %3151 = vmatprep.subr.mxu0 0.0
        %3152 = vmatpush1.msra.mxu0 0.0
        %3153 = vmatprep.subr.mxu0 0.0
        %3154 = vmatpush1.msra.mxu0 0.0
        %3155 = vmatprep.subr.mxu0 0.0
        %3156 = vmatpush1.msra.mxu0 0.0
        %3157 = vmatprep.subr.mxu0 0.0
        %3158 = vmatpush1.msra.mxu0 0.0
        %3159 = vmatprep.subr.mxu0 0.0
        %3160 = vmatpush1.msra.mxu0 0.0
        %3161 = vmatprep.subr.mxu0 0.0
        %3162 = vmatpush1.msra.mxu0 0.0
        %3163 = vmatprep.subr.mxu0 0.0
        %3164 = vmatpush1.msra.mxu0 0.0
        %3165 = vmatprep.subr.mxu0 0.0
        %3166 = vmatpush1.msra.mxu0 0.0
        %3167 = vmatprep.subr.mxu0 0.0
        %3168 = vmatpush1.msra.mxu0 0.0
        %3169 = vmatprep.subr.mxu0 0.0
        %3170 = vmatpush1.msra.mxu0 0.0
        %3171 = vmatprep.subr.mxu0 0.0
        %3172 = vmatpush1.msra.mxu0 0.0
        %3173 = vmatprep.subr.mxu0 0.0
        %3174 = vmatpush1.msra.mxu0 0.0
        %3175 = vmatprep.mubr.f32.mxu0 0.0
        %3176 = vmatmul.mubr.f32.gmra.mrb[0].mxu0 %v3106
        %v3177 = vpop.f32.mrb[0].mxu0
        %v3178 = vadd.f32 0.0, %v3177
        %v3179 = vpop.f32.mrb[0].mxu0
        %3180 = vmatprep.mubr.f32.mxu0 0.0
        %3181 = vmatmul.mubr.f32.gmra.mrb[0].mxu0 %v3109
        %v3182 = vpop.f32.mrb[0].mxu0
        %v3183 = vadd.f32 0.0, %v3182
        %v3184 = vpop.f32.mrb[0].mxu0
        %3185 = vdwg.mxu0
        %s3186 = scalar_lea.vmem %s4, 64
        %v3187 = vld [vmem:[%s3186] sm:$0xff]
        %v3188 = vld [vmem:[%s3186 + $0x8] sm:$0xff]
        %v3190 = vsel %vm782, %v3178, 0
        %v3193 = vsel %vm782, %v3183, 0
        %3195 = vmatprep.subr.mxu0 0.0
        %3196 = vmatpush1.msra.mxu0 %v3187
        %3197 = vmatprep.subr.mxu0 0.0
        %3198 = vmatpush1.msra.mxu0 %v3188
        %3199 = vmatprep.subr.mxu0 0.0
        %3200 = vmatpush1.msra.mxu0 0.0
        %3201 = vmatprep.subr.mxu0 0.0
        %3202 = vmatpush1.msra.mxu0 0.0
        %3203 = vmatprep.subr.mxu0 0.0
        %3204 = vmatpush1.msra.mxu0 0.0
        %3205 = vmatprep.subr.mxu0 0.0
        %3206 = vmatpush1.msra.mxu0 0.0
        %3207 = vmatprep.subr.mxu0 0.0
        %3208 = vmatpush1.msra.mxu0 0.0
        %3209 = vmatprep.subr.mxu0 0.0
        %3210 = vmatpush1.msra.mxu0 0.0
        %3211 = vmatprep.subr.mxu0 0.0
        %3212 = vmatpush1.msra.mxu0 0.0
        %3213 = vmatprep.subr.mxu0 0.0
        %3214 = vmatpush1.msra.mxu0 0.0
        %3215 = vmatprep.subr.mxu0 0.0
        %3216 = vmatpush1.msra.mxu0 0.0
        %3217 = vmatprep.subr.mxu0 0.0
        %3218 = vmatpush1.msra.mxu0 0.0
        %3219 = vmatprep.subr.mxu0 0.0
        %3220 = vmatpush1.msra.mxu0 0.0
        %3221 = vmatprep.subr.mxu0 0.0
        %3222 = vmatpush1.msra.mxu0 0.0
        %3223 = vmatprep.subr.mxu0 0.0
        %3224 = vmatpush1.msra.mxu0 0.0
        %3225 = vmatprep.subr.mxu0 0.0
        %3226 = vmatpush1.msra.mxu0 0.0
        %3227 = vmatprep.subr.mxu0 0.0
        %3228 = vmatpush1.msra.mxu0 0.0
        %3229 = vmatprep.subr.mxu0 0.0
        %3230 = vmatpush1.msra.mxu0 0.0
        %3231 = vmatprep.subr.mxu0 0.0
        %3232 = vmatpush1.msra.mxu0 0.0
        %3233 = vmatprep.subr.mxu0 0.0
        %3234 = vmatpush1.msra.mxu0 0.0
        %3235 = vmatprep.subr.mxu0 0.0
        %3236 = vmatpush1.msra.mxu0 0.0
        %3237 = vmatprep.subr.mxu0 0.0
        %3238 = vmatpush1.msra.mxu0 0.0
        %3239 = vmatprep.subr.mxu0 0.0
        %3240 = vmatpush1.msra.mxu0 0.0
        %3241 = vmatprep.subr.mxu0 0.0
        %3242 = vmatpush1.msra.mxu0 0.0
        %3243 = vmatprep.subr.mxu0 0.0
        %3244 = vmatpush1.msra.mxu0 0.0
        %3245 = vmatprep.subr.mxu0 0.0
        %3246 = vmatpush1.msra.mxu0 0.0
        %3247 = vmatprep.subr.mxu0 0.0
        %3248 = vmatpush1.msra.mxu0 0.0
        %3249 = vmatprep.subr.mxu0 0.0
        %3250 = vmatpush1.msra.mxu0 0.0
        %3251 = vmatprep.subr.mxu0 0.0
        %3252 = vmatpush1.msra.mxu0 0.0
        %3253 = vmatprep.subr.mxu0 0.0
        %3254 = vmatpush1.msra.mxu0 0.0
        %3255 = vmatprep.subr.mxu0 0.0
        %3256 = vmatpush1.msra.mxu0 0.0
        %3257 = vmatprep.subr.mxu0 0.0
        %3258 = vmatpush1.msra.mxu0 0.0
        %3259 = vmatprep.mubr.f32.mxu0 0.0
        %3260 = vmatmul.mubr.f32.gmra.mrb[0].mxu0 %v3190
        %v3261 = vpop.f32.mrb[0].mxu0
        %v3262 = vadd.f32 0.0, %v3261
        %v3263 = vpop.f32.mrb[0].mxu0
        %3264 = vmatprep.mubr.f32.mxu0 0.0
        %3265 = vmatmul.mubr.f32.gmra.mrb[0].mxu0 %v3193
        %v3266 = vpop.f32.mrb[0].mxu0
        %v3267 = vadd.f32 0.0, %v3266
        %v3268 = vpop.f32.mrb[0].mxu0
        %3269 = vdwg.mxu0
        %v3270 = vadd.f32 %v2716, %v3262
        %v3271 = vadd.f32 %v2717, %v3267
        %s3272 = scalar_lea.vmem %s1, 640
        %v3273 = vld [vmem:[%s3272] sm:$0xff]
        %v3274 = vld [vmem:[%s3272 + $0x8] sm:$0xff]
        %v3275 = vld [vmem:[%s3272 + $0x10] sm:$0xff]
        %v3276 = vld [vmem:[%s3272 + $0x18] sm:$0xff]
        %v3277 = vld [vmem:[%s3272 + $0x20] sm:$0xff]
        %v3278 = vld [vmem:[%s3272 + $0x28] sm:$0xff]
        %v3279 = vld [vmem:[%s3272 + $0x30] sm:$0xff]
        %v3280 = vld [vmem:[%s3272 + $0x38] sm:$0xff]
        %v3281 = vld [vmem:[%s3272 + $0x40] sm:$0xff]
        %v3282 = vld [vmem:[%s3272 + $0x48] sm:$0xff]
        %v3283 = vld [vmem:[%s3272 + $0x50] sm:$0xff]
        %v3284 = vld [vmem:[%s3272 + $0x58] sm:$0xff]
        %v3285 = vld [vmem:[%s3272 + $0x60] sm:$0xff]
        %v3286 = vld [vmem:[%s3272 + $0x68] sm:$0xff]
        %v3287 = vld [vmem:[%s3272 + $0x70] sm:$0xff]
        %v3288 = vld [vmem:[%s3272 + $0x78] sm:$0xff]
        %3289 = vmatprep.subr.mxu0 0.0
        %3290 = vmatpush1.msra.mxu0 %v3273
        %3291 = vmatprep.subr.mxu0 0.0
        %3292 = vmatpush1.msra.mxu0 %v3274
        %3293 = vmatprep.subr.mxu0 0.0
        %3294 = vmatpush1.msra.mxu0 %v3275
        %3295 = vmatprep.subr.mxu0 0.0
        %3296 = vmatpush1.msra.mxu0 %v3276
        %3297 = vmatprep.subr.mxu0 0.0
        %3298 = vmatpush1.msra.mxu0 %v3277
        %3299 = vmatprep.subr.mxu0 0.0
        %3300 = vmatpush1.msra.mxu0 %v3278
        %3301 = vmatprep.subr.mxu0 0.0
        %3302 = vmatpush1.msra.mxu0 %v3279
        %3303 = vmatprep.subr.mxu0 0.0
        %3304 = vmatpush1.msra.mxu0 %v3280
        %3305 = vmatprep.subr.mxu0 0.0
        %3306 = vmatpush1.msra.mxu0 %v3281
        %3307 = vmatprep.subr.mxu0 0.0
        %3308 = vmatpush1.msra.mxu0 %v3282
        %3309 = vmatprep.subr.mxu0 0.0
        %3310 = vmatpush1.msra.mxu0 %v3283
        %3311 = vmatprep.subr.mxu0 0.0
        %3312 = vmatpush1.msra.mxu0 %v3284
        %3313 = vmatprep.subr.mxu0 0.0
        %3314 = vmatpush1.msra.mxu0 %v3285
        %3315 = vmatprep.subr.mxu0 0.0
        %3316 = vmatpush1.msra.mxu0 %v3286
        %3317 = vmatprep.subr.mxu0 0.0
        %3318 = vmatpush1.msra.mxu0 %v3287
        %3319 = vmatprep.subr.mxu0 0.0
        %3320 = vmatpush1.msra.mxu0 %v3288
        %3321 = vmatprep.subr.mxu0 0.0
        %3322 = vmatpush1.msra.mxu0 0.0
        %3323 = vmatprep.subr.mxu0 0.0
        %3324 = vmatpush1.msra.mxu0 0.0
        %3325 = vmatprep.subr.mxu0 0.0
        %3326 = vmatpush1.msra.mxu0 0.0
        %3327 = vmatprep.subr.mxu0 0.0
        %3328 = vmatpush1.msra.mxu0 0.0
        %3329 = vmatprep.subr.mxu0 0.0
        %3330 = vmatpush1.msra.mxu0 0.0
        %3331 = vmatprep.subr.mxu0 0.0
        %3332 = vmatpush1.msra.mxu0 0.0
        %3333 = vmatprep.subr.mxu0 0.0
        %3334 = vmatpush1.msra.mxu0 0.0
        %3335 = vmatprep.subr.mxu0 0.0
        %3336 = vmatpush1.msra.mxu0 0.0
        %3337 = vmatprep.subr.mxu0 0.0
        %3338 = vmatpush1.msra.mxu0 0.0
        %3339 = vmatprep.subr.mxu0 0.0
        %3340 = vmatpush1.msra.mxu0 0.0
        %3341 = vmatprep.subr.mxu0 0.0
        %3342 = vmatpush1.msra.mxu0 0.0
        %3343 = vmatprep.subr.mxu0 0.0
        %3344 = vmatpush1.msra.mxu0 0.0
        %3345 = vmatprep.subr.mxu0 0.0
        %3346 = vmatpush1.msra.mxu0 0.0
        %3347 = vmatprep.subr.mxu0 0.0
        %3348 = vmatpush1.msra.mxu0 0.0
        %3349 = vmatprep.subr.mxu0 0.0
        %3350 = vmatpush1.msra.mxu0 0.0
        %3351 = vmatprep.subr.mxu0 0.0
        %3352 = vmatpush1.msra.mxu0 0.0
        %3353 = vmatprep.mubr.f32.mxu0 0.0
        %3354 = vmatmul.mubr.f32.gmra.mrb[0].mxu0 %v507
        %v3355 = vpop.f32.mrb[0].mxu0
        %v3356 = vadd.f32 0.0, %v3355
        %v3357 = vpop.f32.mrb[0].mxu0
        %3358 = vmatprep.mubr.f32.mxu0 0.0
        %3359 = vmatmul.mubr.f32.gmra.mrb[0].mxu0 %v508
        %v3360 = vpop.f32.mrb[0].mxu0
        %v3361 = vadd.f32 0.0, %v3360
        %v3362 = vpop.f32.mrb[0].mxu0
        %3363 = vdwg.mxu0
        %s3364 = scalar_lea.vmem %s2, 640
        %v3365 = vld [vmem:[%s3364] sm:$0xff]
        %v3366 = vld [vmem:[%s3364 + $0x8] sm:$0xff]
        %v3367 = vld [vmem:[%s3364 + $0x10] sm:$0xff]
        %v3368 = vld [vmem:[%s3364 + $0x18] sm:$0xff]
        %v3369 = vld [vmem:[%s3364 + $0x20] sm:$0xff]
        %v3370 = vld [vmem:[%s3364 + $0x28] sm:$0xff]
        %v3371 = vld [vmem:[%s3364 + $0x30] sm:$0xff]
        %v3372 = vld [vmem:[%s3364 + $0x38] sm:$0xff]
        %v3373 = vld [vmem:[%s3364 + $0x40] sm:$0xff]
        %v3374 = vld [vmem:[%s3364 + $0x48] sm:$0xff]
        %v3375 = vld [vmem:[%s3364 + $0x50] sm:$0xff]
        %v3376 = vld [vmem:[%s3364 + $0x58] sm:$0xff]
        %v3377 = vld [vmem:[%s3364 + $0x60] sm:$0xff]
        %v3378 = vld [vmem:[%s3364 + $0x68] sm:$0xff]
        %v3379 = vld [vmem:[%s3364 + $0x70] sm:$0xff]
        %v3380 = vld [vmem:[%s3364 + $0x78] sm:$0xff]
        %3381 = vmatprep.subr.mxu0 0.0
        %3382 = vmatpush1.msra.mxu0 %v3365
        %3383 = vmatprep.subr.mxu0 0.0
        %3384 = vmatpush1.msra.mxu0 %v3366
        %3385 = vmatprep.subr.mxu0 0.0
        %3386 = vmatpush1.msra.mxu0 %v3367
        %3387 = vmatprep.subr.mxu0 0.0
        %3388 = vmatpush1.msra.mxu0 %v3368
        %3389 = vmatprep.subr.mxu0 0.0
        %3390 = vmatpush1.msra.mxu0 %v3369
        %3391 = vmatprep.subr.mxu0 0.0
        %3392 = vmatpush1.msra.mxu0 %v3370
        %3393 = vmatprep.subr.mxu0 0.0
        %3394 = vmatpush1.msra.mxu0 %v3371
        %3395 = vmatprep.subr.mxu0 0.0
        %3396 = vmatpush1.msra.mxu0 %v3372
        %3397 = vmatprep.subr.mxu0 0.0
        %3398 = vmatpush1.msra.mxu0 %v3373
        %3399 = vmatprep.subr.mxu0 0.0
        %3400 = vmatpush1.msra.mxu0 %v3374
        %3401 = vmatprep.subr.mxu0 0.0
        %3402 = vmatpush1.msra.mxu0 %v3375
        %3403 = vmatprep.subr.mxu0 0.0
        %3404 = vmatpush1.msra.mxu0 %v3376
        %3405 = vmatprep.subr.mxu0 0.0
        %3406 = vmatpush1.msra.mxu0 %v3377
        %3407 = vmatprep.subr.mxu0 0.0
        %3408 = vmatpush1.msra.mxu0 %v3378
        %3409 = vmatprep.subr.mxu0 0.0
        %3410 = vmatpush1.msra.mxu0 %v3379
        %3411 = vmatprep.subr.mxu0 0.0
        %3412 = vmatpush1.msra.mxu0 %v3380
        %3413 = vmatprep.subr.mxu0 0.0
        %3414 = vmatpush1.msra.mxu0 0.0
        %3415 = vmatprep.subr.mxu0 0.0
        %3416 = vmatpush1.msra.mxu0 0.0
        %3417 = vmatprep.subr.mxu0 0.0
        %3418 = vmatpush1.msra.mxu0 0.0
        %3419 = vmatprep.subr.mxu0 0.0
        %3420 = vmatpush1.msra.mxu0 0.0
        %3421 = vmatprep.subr.mxu0 0.0
        %3422 = vmatpush1.msra.mxu0 0.0
        %3423 = vmatprep.subr.mxu0 0.0
        %3424 = vmatpush1.msra.mxu0 0.0
        %3425 = vmatprep.subr.mxu0 0.0
        %3426 = vmatpush1.msra.mxu0 0.0
        %3427 = vmatprep.subr.mxu0 0.0
        %3428 = vmatpush1.msra.mxu0 0.0
        %3429 = vmatprep.subr.mxu0 0.0
        %3430 = vmatpush1.msra.mxu0 0.0
        %3431 = vmatprep.subr.mxu0 0.0
        %3432 = vmatpush1.msra.mxu0 0.0
        %3433 = vmatprep.subr.mxu0 0.0
        %3434 = vmatpush1.msra.mxu0 0.0
        %3435 = vmatprep.subr.mxu0 0.0
        %3436 = vmatpush1.msra.mxu0 0.0
        %3437 = vmatprep.subr.mxu0 0.0
        %3438 = vmatpush1.msra.mxu0 0.0
        %3439 = vmatprep.subr.mxu0 0.0
        %3440 = vmatpush1.msra.mxu0 0.0
        %3441 = vmatprep.subr.mxu0 0.0
        %3442 = vmatpush1.msra.mxu0 0.0
        %3443 = vmatprep.subr.mxu0 0.0
        %3444 = vmatpush1.msra.mxu0 0.0
        %3445 = vmatprep.mubr.f32.mxu0 0.0
        %3446 = vmatmul.mubr.f32.gmra.mrb[0].mxu0 %v507
        %v3447 = vpop.f32.mrb[0].mxu0
        %v3448 = vadd.f32 0.0, %v3447
        %v3449 = vpop.f32.mrb[0].mxu0
        %3450 = vmatprep.mubr.f32.mxu0 0.0
        %3451 = vmatmul.mubr.f32.gmra.mrb[0].mxu0 %v508
        %v3452 = vpop.f32.mrb[0].mxu0
        %v3453 = vadd.f32 0.0, %v3452
        %v3454 = vpop.f32.mrb[0].mxu0
        %3455 = vdwg.mxu0
        %s3456 = scalar_lea.vmem %s3, 640
        %v3457 = vld [vmem:[%s3456] sm:$0xff]
        %v3458 = vld [vmem:[%s3456 + $0x8] sm:$0xff]
        %v3459 = vld [vmem:[%s3456 + $0x10] sm:$0xff]
        %v3460 = vld [vmem:[%s3456 + $0x18] sm:$0xff]
        %v3461 = vld [vmem:[%s3456 + $0x20] sm:$0xff]
        %v3462 = vld [vmem:[%s3456 + $0x28] sm:$0xff]
        %v3463 = vld [vmem:[%s3456 + $0x30] sm:$0xff]
        %v3464 = vld [vmem:[%s3456 + $0x38] sm:$0xff]
        %v3465 = vld [vmem:[%s3456 + $0x40] sm:$0xff]
        %v3466 = vld [vmem:[%s3456 + $0x48] sm:$0xff]
        %v3467 = vld [vmem:[%s3456 + $0x50] sm:$0xff]
        %v3468 = vld [vmem:[%s3456 + $0x58] sm:$0xff]
        %v3469 = vld [vmem:[%s3456 + $0x60] sm:$0xff]
        %v3470 = vld [vmem:[%s3456 + $0x68] sm:$0xff]
        %v3471 = vld [vmem:[%s3456 + $0x70] sm:$0xff]
        %v3472 = vld [vmem:[%s3456 + $0x78] sm:$0xff]
        %3473 = vmatprep.subr.mxu0 0.0
        %3474 = vmatpush1.msra.mxu0 %v3457
        %3475 = vmatprep.subr.mxu0 0.0
        %3476 = vmatpush1.msra.mxu0 %v3458
        %3477 = vmatprep.subr.mxu0 0.0
        %3478 = vmatpush1.msra.mxu0 %v3459
        %3479 = vmatprep.subr.mxu0 0.0
        %3480 = vmatpush1.msra.mxu0 %v3460
        %3481 = vmatprep.subr.mxu0 0.0
        %3482 = vmatpush1.msra.mxu0 %v3461
        %3483 = vmatprep.subr.mxu0 0.0
        %3484 = vmatpush1.msra.mxu0 %v3462
        %3485 = vmatprep.subr.mxu0 0.0
        %3486 = vmatpush1.msra.mxu0 %v3463
        %3487 = vmatprep.subr.mxu0 0.0
        %3488 = vmatpush1.msra.mxu0 %v3464
        %3489 = vmatprep.subr.mxu0 0.0
        %3490 = vmatpush1.msra.mxu0 %v3465
        %3491 = vmatprep.subr.mxu0 0.0
        %3492 = vmatpush1.msra.mxu0 %v3466
        %3493 = vmatprep.subr.mxu0 0.0
        %3494 = vmatpush1.msra.mxu0 %v3467
        %3495 = vmatprep.subr.mxu0 0.0
        %3496 = vmatpush1.msra.mxu0 %v3468
        %3497 = vmatprep.subr.mxu0 0.0
        %3498 = vmatpush1.msra.mxu0 %v3469
        %3499 = vmatprep.subr.mxu0 0.0
        %3500 = vmatpush1.msra.mxu0 %v3470
        %3501 = vmatprep.subr.mxu0 0.0
        %3502 = vmatpush1.msra.mxu0 %v3471
        %3503 = vmatprep.subr.mxu0 0.0
        %3504 = vmatpush1.msra.mxu0 %v3472
        %3505 = vmatprep.subr.mxu0 0.0
        %3506 = vmatpush1.msra.mxu0 0.0
        %3507 = vmatprep.subr.mxu0 0.0
        %3508 = vmatpush1.msra.mxu0 0.0
        %3509 = vmatprep.subr.mxu0 0.0
        %3510 = vmatpush1.msra.mxu0 0.0
        %3511 = vmatprep.subr.mxu0 0.0
        %3512 = vmatpush1.msra.mxu0 0.0
        %3513 = vmatprep.subr.mxu0 0.0
        %3514 = vmatpush1.msra.mxu0 0.0
        %3515 = vmatprep.subr.mxu0 0.0
        %3516 = vmatpush1.msra.mxu0 0.0
        %3517 = vmatprep.subr.mxu0 0.0
        %3518 = vmatpush1.msra.mxu0 0.0
        %3519 = vmatprep.subr.mxu0 0.0
        %3520 = vmatpush1.msra.mxu0 0.0
        %3521 = vmatprep.subr.mxu0 0.0
        %3522 = vmatpush1.msra.mxu0 0.0
        %3523 = vmatprep.subr.mxu0 0.0
        %3524 = vmatpush1.msra.mxu0 0.0
        %3525 = vmatprep.subr.mxu0 0.0
        %3526 = vmatpush1.msra.mxu0 0.0
        %3527 = vmatprep.subr.mxu0 0.0
        %3528 = vmatpush1.msra.mxu0 0.0
        %3529 = vmatprep.subr.mxu0 0.0
        %3530 = vmatpush1.msra.mxu0 0.0
        %3531 = vmatprep.subr.mxu0 0.0
        %3532 = vmatpush1.msra.mxu0 0.0
        %3533 = vmatprep.subr.mxu0 0.0
        %3534 = vmatpush1.msra.mxu0 0.0
        %3535 = vmatprep.subr.mxu0 0.0
        %3536 = vmatpush1.msra.mxu0 0.0
        %3537 = vmatprep.mubr.f32.mxu0 0.0
        %3538 = vmatmul.mubr.f32.gmra.mrb[0].mxu0 %v507
        %v3539 = vpop.f32.mrb[0].mxu0
        %v3540 = vadd.f32 0.0, %v3539
        %v3541 = vpop.f32.mrb[0].mxu0
        %3542 = vmatprep.mubr.f32.mxu0 0.0
        %3543 = vmatmul.mubr.f32.gmra.mrb[0].mxu0 %v508
        %v3544 = vpop.f32.mrb[0].mxu0
        %v3545 = vadd.f32 0.0, %v3544
        %v3546 = vpop.f32.mrb[0].mxu0
        %3547 = vdwg.mxu0
        %v3549 = vsel %vm782, %v3356, 0
        %v3552 = vsel %vm782, %v3361, 0
        %v3555 = vsel %vm782, %v3448, 0
        %v3558 = vsel %vm782, %v3453, 0
        %3560 = vmatprep.subr.mxu0 0.0
        %3561 = vmatpush1.xpose.msra.mxu0 %v3555
        %3562 = vmatprep.subr.mxu0 0.0
        %3563 = vmatpush1.xpose.msra.mxu0 %v3558
        %3564 = vmatprep.subr.mxu0 0.0
        %3565 = vmatpush1.xpose.msra.mxu0 0.0
        %3566 = vmatprep.subr.mxu0 0.0
        %3567 = vmatpush1.xpose.msra.mxu0 0.0
        %3568 = vmatprep.subr.mxu0 0.0
        %3569 = vmatpush1.xpose.msra.mxu0 0.0
        %3570 = vmatprep.subr.mxu0 0.0
        %3571 = vmatpush1.xpose.msra.mxu0 0.0
        %3572 = vmatprep.subr.mxu0 0.0
        %3573 = vmatpush1.xpose.msra.mxu0 0.0
        %3574 = vmatprep.subr.mxu0 0.0
        %3575 = vmatpush1.xpose.msra.mxu0 0.0
        %3576 = vmatprep.subr.mxu0 0.0
        %3577 = vmatpush1.xpose.msra.mxu0 0.0
        %3578 = vmatprep.subr.mxu0 0.0
        %3579 = vmatpush1.xpose.msra.mxu0 0.0
        %3580 = vmatprep.subr.mxu0 0.0
        %3581 = vmatpush1.xpose.msra.mxu0 0.0
        %3582 = vmatprep.subr.mxu0 0.0
        %3583 = vmatpush1.xpose.msra.mxu0 0.0
        %3584 = vmatprep.subr.mxu0 0.0
        %3585 = vmatpush1.xpose.msra.mxu0 0.0
        %3586 = vmatprep.subr.mxu0 0.0
        %3587 = vmatpush1.xpose.msra.mxu0 0.0
        %3588 = vmatprep.subr.mxu0 0.0
        %3589 = vmatpush1.xpose.msra.mxu0 0.0
        %3590 = vmatprep.subr.mxu0 0.0
        %3591 = vmatpush1.xpose.msra.mxu0 0.0
        %3592 = vmatprep.subr.mxu0 0.0
        %3593 = vmatpush1.xpose.msra.mxu0 0.0
        %3594 = vmatprep.subr.mxu0 0.0
        %3595 = vmatpush1.xpose.msra.mxu0 0.0
        %3596 = vmatprep.subr.mxu0 0.0
        %3597 = vmatpush1.xpose.msra.mxu0 0.0
        %3598 = vmatprep.subr.mxu0 0.0
        %3599 = vmatpush1.xpose.msra.mxu0 0.0
        %3600 = vmatprep.subr.mxu0 0.0
        %3601 = vmatpush1.xpose.msra.mxu0 0.0
        %3602 = vmatprep.subr.mxu0 0.0
        %3603 = vmatpush1.xpose.msra.mxu0 0.0
        %3604 = vmatprep.subr.mxu0 0.0
        %3605 = vmatpush1.xpose.msra.mxu0 0.0
        %3606 = vmatprep.subr.mxu0 0.0
        %3607 = vmatpush1.xpose.msra.mxu0 0.0
        %3608 = vmatprep.subr.mxu0 0.0
        %3609 = vmatpush1.xpose.msra.mxu0 0.0
        %3610 = vmatprep.subr.mxu0 0.0
        %3611 = vmatpush1.xpose.msra.mxu0 0.0
        %3612 = vmatprep.subr.mxu0 0.0
        %3613 = vmatpush1.xpose.msra.mxu0 0.0
        %3614 = vmatprep.subr.mxu0 0.0
        %3615 = vmatpush1.xpose.msra.mxu0 0.0
        %3616 = vmatprep.subr.mxu0 0.0
        %3617 = vmatpush1.xpose.msra.mxu0 0.0
        %3618 = vmatprep.subr.mxu0 0.0
        %3619 = vmatpush1.xpose.msra.mxu0 0.0
        %3620 = vmatprep.subr.mxu0 0.0
        %3621 = vmatpush1.xpose.msra.mxu0 0.0
        %3622 = vmatprep.subr.mxu0 0.0
        %3623 = vmatpush1.xpose.msra.mxu0 0.0
        %3624 = vmatprep.mubr.f32.mxu0 0.0
        %3625 = vmatmul.mubr.f32.gmra.mrb[0].mxu0 %v3549
        %v3626 = vpop.f32.mrb[0].mxu0
        %v3627 = vadd.f32 0.0, %v3626
        %v3628 = vpop.f32.mrb[0].mxu0
        %3629 = vmatprep.mubr.f32.mxu0 0.0
        %3630 = vmatmul.mubr.f32.gmra.mrb[0].mxu0 %v3552
        %v3631 = vpop.f32.mrb[0].mxu0
        %v3632 = vadd.f32 0.0, %v3631
        %v3633 = vpop.f32.mrb[0].mxu0
        %3634 = vdwg.mxu0
        %v3635 = vmul.f32 %v3627, 0.25
        %v3636 = vmul.f32 %v3632, 0.25
        %v3637 = vsel %vm782, %v3635, -inf
        %3638 = vmax.xlane.f32.xlu0 %v3637
        %v3639 = vpop.xlane.xlu0 %3638
        %v3640 = vsel %vm782, %v3636, -inf
        %3641 = vmax.xlane.f32.xlu0 %v3640
        %v3642 = vpop.xlane.xlu0 %3641
        %v3643 = vsub.f32 %v3635, %v3639
        %v3644 = vsub.f32 %v3636, %v3642
        %v3645 = vmul.f32 %v3643, 1.442695
        %v3646 = vpow.pop %v3645
        %v3647 = vmul.f32 %v3644, 1.442695
        %v3648 = vpow.pop %v3647
        %v3649 = vsel %vm782, %v3646, 0.0
        %3650 = vadd.xlane.f32.xlu0 %v3649
        %v3651 = vpop.xlane.xlu0 %3650
        %v3652 = vsel %vm782, %v3648, 0.0
        %3653 = vadd.xlane.f32.xlu0 %v3652
        %v3654 = vpop.xlane.xlu0 %3653
        %v3655 = vrcp.pop %v3651
        %v3656 = vmul.f32 %v3646, %v3655
        %v3657 = vrcp.pop %v3654
        %v3658 = vmul.f32 %v3648, %v3657
        %v3660 = vsel %vm782, %v3656, 0
        %v3663 = vsel %vm782, %v3658, 0
        %3665 = vmatprep.subr.mxu0 0.0
        %3666 = vmatpush1.msra.mxu0 %v3540
        %3667 = vmatprep.subr.mxu0 0.0
        %3668 = vmatpush1.msra.mxu0 %v3545
        %3669 = vmatprep.subr.mxu0 0.0
        %3670 = vmatpush1.msra.mxu0 0.0
        %3671 = vmatprep.subr.mxu0 0.0
        %3672 = vmatpush1.msra.mxu0 0.0
        %3673 = vmatprep.subr.mxu0 0.0
        %3674 = vmatpush1.msra.mxu0 0.0
        %3675 = vmatprep.subr.mxu0 0.0
        %3676 = vmatpush1.msra.mxu0 0.0
        %3677 = vmatprep.subr.mxu0 0.0
        %3678 = vmatpush1.msra.mxu0 0.0
        %3679 = vmatprep.subr.mxu0 0.0
        %3680 = vmatpush1.msra.mxu0 0.0
        %3681 = vmatprep.subr.mxu0 0.0
        %3682 = vmatpush1.msra.mxu0 0.0
        %3683 = vmatprep.subr.mxu0 0.0
        %3684 = vmatpush1.msra.mxu0 0.0
        %3685 = vmatprep.subr.mxu0 0.0
        %3686 = vmatpush1.msra.mxu0 0.0
        %3687 = vmatprep.subr.mxu0 0.0
        %3688 = vmatpush1.msra.mxu0 0.0
        %3689 = vmatprep.subr.mxu0 0.0
        %3690 = vmatpush1.msra.mxu0 0.0
        %3691 = vmatprep.subr.mxu0 0.0
        %3692 = vmatpush1.msra.mxu0 0.0
        %3693 = vmatprep.subr.mxu0 0.0
        %3694 = vmatpush1.msra.mxu0 0.0
        %3695 = vmatprep.subr.mxu0 0.0
        %3696 = vmatpush1.msra.mxu0 0.0
        %3697 = vmatprep.subr.mxu0 0.0
        %3698 = vmatpush1.msra.mxu0 0.0
        %3699 = vmatprep.subr.mxu0 0.0
        %3700 = vmatpush1.msra.mxu0 0.0
        %3701 = vmatprep.subr.mxu0 0.0
        %3702 = vmatpush1.msra.mxu0 0.0
        %3703 = vmatprep.subr.mxu0 0.0
        %3704 = vmatpush1.msra.mxu0 0.0
        %3705 = vmatprep.subr.mxu0 0.0
        %3706 = vmatpush1.msra.mxu0 0.0
        %3707 = vmatprep.subr.mxu0 0.0
        %3708 = vmatpush1.msra.mxu0 0.0
        %3709 = vmatprep.subr.mxu0 0.0
        %3710 = vmatpush1.msra.mxu0 0.0
        %3711 = vmatprep.subr.mxu0 0.0
        %3712 = vmatpush1.msra.mxu0 0.0
        %3713 = vmatprep.subr.mxu0 0.0
        %3714 = vmatpush1.msra.mxu0 0.0
        %3715 = vmatprep.subr.mxu0 0.0
        %3716 = vmatpush1.msra.mxu0 0.0
        %3717 = vmatprep.subr.mxu0 0.0
        %3718 = vmatpush1.msra.mxu0 0.0
        %3719 = vmatprep.subr.mxu0 0.0
        %3720 = vmatpush1.msra.mxu0 0.0
        %3721 = vmatprep.subr.mxu0 0.0
        %3722 = vmatpush1.msra.mxu0 0.0
        %3723 = vmatprep.subr.mxu0 0.0
        %3724 = vmatpush1.msra.mxu0 0.0
        %3725 = vmatprep.subr.mxu0 0.0
        %3726 = vmatpush1.msra.mxu0 0.0
        %3727 = vmatprep.subr.mxu0 0.0
        %3728 = vmatpush1.msra.mxu0 0.0
        %3729 = vmatprep.mubr.f32.mxu0 0.0
        %3730 = vmatmul.mubr.f32.gmra.mrb[0].mxu0 %v3660
        %v3731 = vpop.f32.mrb[0].mxu0
        %v3732 = vadd.f32 0.0, %v3731
        %v3733 = vpop.f32.mrb[0].mxu0
        %3734 = vmatprep.mubr.f32.mxu0 0.0
        %3735 = vmatmul.mubr.f32.gmra.mrb[0].mxu0 %v3663
        %v3736 = vpop.f32.mrb[0].mxu0
        %v3737 = vadd.f32 0.0, %v3736
        %v3738 = vpop.f32.mrb[0].mxu0
        %3739 = vdwg.mxu0
        %s3740 = scalar_lea.vmem %s4, 80
        %v3741 = vld [vmem:[%s3740] sm:$0xff]
        %v3742 = vld [vmem:[%s3740 + $0x8] sm:$0xff]
        %v3744 = vsel %vm782, %v3732, 0
        %v3747 = vsel %vm782, %v3737, 0
        %3749 = vmatprep.subr.mxu0 0.0
        %3750 = vmatpush1.msra.mxu0 %v3741
        %3751 = vmatprep.subr.mxu0 0.0
        %3752 = vmatpush1.msra.mxu0 %v3742
        %3753 = vmatprep.subr.mxu0 0.0
        %3754 = vmatpush1.msra.mxu0 0.0
        %3755 = vmatprep.subr.mxu0 0.0
        %3756 = vmatpush1.msra.mxu0 0.0
        %3757 = vmatprep.subr.mxu0 0.0
        %3758 = vmatpush1.msra.mxu0 0.0
        %3759 = vmatprep.subr.mxu0 0.0
        %3760 = vmatpush1.msra.mxu0 0.0
        %3761 = vmatprep.subr.mxu0 0.0
        %3762 = vmatpush1.msra.mxu0 0.0
        %3763 = vmatprep.subr.mxu0 0.0
        %3764 = vmatpush1.msra.mxu0 0.0
        %3765 = vmatprep.subr.mxu0 0.0
        %3766 = vmatpush1.msra.mxu0 0.0
        %3767 = vmatprep.subr.mxu0 0.0
        %3768 = vmatpush1.msra.mxu0 0.0
        %3769 = vmatprep.subr.mxu0 0.0
        %3770 = vmatpush1.msra.mxu0 0.0
        %3771 = vmatprep.subr.mxu0 0.0
        %3772 = vmatpush1.msra.mxu0 0.0
        %3773 = vmatprep.subr.mxu0 0.0
        %3774 = vmatpush1.msra.mxu0 0.0
        %3775 = vmatprep.subr.mxu0 0.0
        %3776 = vmatpush1.msra.mxu0 0.0
        %3777 = vmatprep.subr.mxu0 0.0
        %3778 = vmatpush1.msra.mxu0 0.0
        %3779 = vmatprep.subr.mxu0 0.0
        %3780 = vmatpush1.msra.mxu0 0.0
        %3781 = vmatprep.subr.mxu0 0.0
        %3782 = vmatpush1.msra.mxu0 0.0
        %3783 = vmatprep.subr.mxu0 0.0
        %3784 = vmatpush1.msra.mxu0 0.0
        %3785 = vmatprep.subr.mxu0 0.0
        %3786 = vmatpush1.msra.mxu0 0.0
        %3787 = vmatprep.subr.mxu0 0.0
        %3788 = vmatpush1.msra.mxu0 0.0
        %3789 = vmatprep.subr.mxu0 0.0
        %3790 = vmatpush1.msra.mxu0 0.0
        %3791 = vmatprep.subr.mxu0 0.0
        %3792 = vmatpush1.msra.mxu0 0.0
        %3793 = vmatprep.subr.mxu0 0.0
        %3794 = vmatpush1.msra.mxu0 0.0
        %3795 = vmatprep.subr.mxu0 0.0
        %3796 = vmatpush1.msra.mxu0 0.0
        %3797 = vmatprep.subr.mxu0 0.0
        %3798 = vmatpush1.msra.mxu0 0.0
        %3799 = vmatprep.subr.mxu0 0.0
        %3800 = vmatpush1.msra.mxu0 0.0
        %3801 = vmatprep.subr.mxu0 0.0
        %3802 = vmatpush1.msra.mxu0 0.0
        %3803 = vmatprep.subr.mxu0 0.0
        %3804 = vmatpush1.msra.mxu0 0.0
        %3805 = vmatprep.subr.mxu0 0.0
        %3806 = vmatpush1.msra.mxu0 0.0
        %3807 = vmatprep.subr.mxu0 0.0
        %3808 = vmatpush1.msra.mxu0 0.0
        %3809 = vmatprep.subr.mxu0 0.0
        %3810 = vmatpush1.msra.mxu0 0.0
        %3811 = vmatprep.subr.mxu0 0.0
        %3812 = vmatpush1.msra.mxu0 0.0
        %3813 = vmatprep.mubr.f32.mxu0 0.0
        %3814 = vmatmul.mubr.f32.gmra.mrb[0].mxu0 %v3744
        %v3815 = vpop.f32.mrb[0].mxu0
        %v3816 = vadd.f32 0.0, %v3815
        %v3817 = vpop.f32.mrb[0].mxu0
        %3818 = vmatprep.mubr.f32.mxu0 0.0
        %3819 = vmatmul.mubr.f32.gmra.mrb[0].mxu0 %v3747
        %v3820 = vpop.f32.mrb[0].mxu0
        %v3821 = vadd.f32 0.0, %v3820
        %v3822 = vpop.f32.mrb[0].mxu0
        %3823 = vdwg.mxu0
        %v3824 = vadd.f32 %v3270, %v3816
        %v3825 = vadd.f32 %v3271, %v3821
        %s3826 = scalar_lea.vmem %s1, 768
        %v3827 = vld [vmem:[%s3826] sm:$0xff]
        %v3828 = vld [vmem:[%s3826 + $0x8] sm:$0xff]
        %v3829 = vld [vmem:[%s3826 + $0x10] sm:$0xff]
        %v3830 = vld [vmem:[%s3826 + $0x18] sm:$0xff]
        %v3831 = vld [vmem:[%s3826 + $0x20] sm:$0xff]
        %v3832 = vld [vmem:[%s3826 + $0x28] sm:$0xff]
        %v3833 = vld [vmem:[%s3826 + $0x30] sm:$0xff]
        %v3834 = vld [vmem:[%s3826 + $0x38] sm:$0xff]
        %v3835 = vld [vmem:[%s3826 + $0x40] sm:$0xff]
        %v3836 = vld [vmem:[%s3826 + $0x48] sm:$0xff]
        %v3837 = vld [vmem:[%s3826 + $0x50] sm:$0xff]
        %v3838 = vld [vmem:[%s3826 + $0x58] sm:$0xff]
        %v3839 = vld [vmem:[%s3826 + $0x60] sm:$0xff]
        %v3840 = vld [vmem:[%s3826 + $0x68] sm:$0xff]
        %v3841 = vld [vmem:[%s3826 + $0x70] sm:$0xff]
        %v3842 = vld [vmem:[%s3826 + $0x78] sm:$0xff]
        %3843 = vmatprep.subr.mxu0 0.0
        %3844 = vmatpush1.msra.mxu0 %v3827
        %3845 = vmatprep.subr.mxu0 0.0
        %3846 = vmatpush1.msra.mxu0 %v3828
        %3847 = vmatprep.subr.mxu0 0.0
        %3848 = vmatpush1.msra.mxu0 %v3829
        %3849 = vmatprep.subr.mxu0 0.0
        %3850 = vmatpush1.msra.mxu0 %v3830
        %3851 = vmatprep.subr.mxu0 0.0
        %3852 = vmatpush1.msra.mxu0 %v3831
        %3853 = vmatprep.subr.mxu0 0.0
        %3854 = vmatpush1.msra.mxu0 %v3832
        %3855 = vmatprep.subr.mxu0 0.0
        %3856 = vmatpush1.msra.mxu0 %v3833
        %3857 = vmatprep.subr.mxu0 0.0
        %3858 = vmatpush1.msra.mxu0 %v3834
        %3859 = vmatprep.subr.mxu0 0.0
        %3860 = vmatpush1.msra.mxu0 %v3835
        %3861 = vmatprep.subr.mxu0 0.0
        %3862 = vmatpush1.msra.mxu0 %v3836
        %3863 = vmatprep.subr.mxu0 0.0
        %3864 = vmatpush1.msra.mxu0 %v3837
        %3865 = vmatprep.subr.mxu0 0.0
        %3866 = vmatpush1.msra.mxu0 %v3838
        %3867 = vmatprep.subr.mxu0 0.0
        %3868 = vmatpush1.msra.mxu0 %v3839
        %3869 = vmatprep.subr.mxu0 0.0
        %3870 = vmatpush1.msra.mxu0 %v3840
        %3871 = vmatprep.subr.mxu0 0.0
        %3872 = vmatpush1.msra.mxu0 %v3841
        %3873 = vmatprep.subr.mxu0 0.0
        %3874 = vmatpush1.msra.mxu0 %v3842
        %3875 = vmatprep.subr.mxu0 0.0
        %3876 = vmatpush1.msra.mxu0 0.0
        %3877 = vmatprep.subr.mxu0 0.0
        %3878 = vmatpush1.msra.mxu0 0.0
        %3879 = vmatprep.subr.mxu0 0.0
        %3880 = vmatpush1.msra.mxu0 0.0
        %3881 = vmatprep.subr.mxu0 0.0
        %3882 = vmatpush1.msra.mxu0 0.0
        %3883 = vmatprep.subr.mxu0 0.0
        %3884 = vmatpush1.msra.mxu0 0.0
        %3885 = vmatprep.subr.mxu0 0.0
        %3886 = vmatpush1.msra.mxu0 0.0
        %3887 = vmatprep.subr.mxu0 0.0
        %3888 = vmatpush1.msra.mxu0 0.0
        %3889 = vmatprep.subr.mxu0 0.0
        %3890 = vmatpush1.msra.mxu0 0.0
        %3891 = vmatprep.subr.mxu0 0.0
        %3892 = vmatpush1.msra.mxu0 0.0
        %3893 = vmatprep.subr.mxu0 0.0
        %3894 = vmatpush1.msra.mxu0 0.0
        %3895 = vmatprep.subr.mxu0 0.0
        %3896 = vmatpush1.msra.mxu0 0.0
        %3897 = vmatprep.subr.mxu0 0.0
        %3898 = vmatpush1.msra.mxu0 0.0
        %3899 = vmatprep.subr.mxu0 0.0
        %3900 = vmatpush1.msra.mxu0 0.0
        %3901 = vmatprep.subr.mxu0 0.0
        %3902 = vmatpush1.msra.mxu0 0.0
        %3903 = vmatprep.subr.mxu0 0.0
        %3904 = vmatpush1.msra.mxu0 0.0
        %3905 = vmatprep.subr.mxu0 0.0
        %3906 = vmatpush1.msra.mxu0 0.0
        %3907 = vmatprep.mubr.f32.mxu0 0.0
        %3908 = vmatmul.mubr.f32.gmra.mrb[0].mxu0 %v507
        %v3909 = vpop.f32.mrb[0].mxu0
        %v3910 = vadd.f32 0.0, %v3909
        %v3911 = vpop.f32.mrb[0].mxu0
        %3912 = vmatprep.mubr.f32.mxu0 0.0
        %3913 = vmatmul.mubr.f32.gmra.mrb[0].mxu0 %v508
        %v3914 = vpop.f32.mrb[0].mxu0
        %v3915 = vadd.f32 0.0, %v3914
        %v3916 = vpop.f32.mrb[0].mxu0
        %3917 = vdwg.mxu0
        %s3918 = scalar_lea.vmem %s2, 768
        %v3919 = vld [vmem:[%s3918] sm:$0xff]
        %v3920 = vld [vmem:[%s3918 + $0x8] sm:$0xff]
        %v3921 = vld [vmem:[%s3918 + $0x10] sm:$0xff]
        %v3922 = vld [vmem:[%s3918 + $0x18] sm:$0xff]
        %v3923 = vld [vmem:[%s3918 + $0x20] sm:$0xff]
        %v3924 = vld [vmem:[%s3918 + $0x28] sm:$0xff]
        %v3925 = vld [vmem:[%s3918 + $0x30] sm:$0xff]
        %v3926 = vld [vmem:[%s3918 + $0x38] sm:$0xff]
        %v3927 = vld [vmem:[%s3918 + $0x40] sm:$0xff]
        %v3928 = vld [vmem:[%s3918 + $0x48] sm:$0xff]
        %v3929 = vld [vmem:[%s3918 + $0x50] sm:$0xff]
        %v3930 = vld [vmem:[%s3918 + $0x58] sm:$0xff]
        %v3931 = vld [vmem:[%s3918 + $0x60] sm:$0xff]
        %v3932 = vld [vmem:[%s3918 + $0x68] sm:$0xff]
        %v3933 = vld [vmem:[%s3918 + $0x70] sm:$0xff]
        %v3934 = vld [vmem:[%s3918 + $0x78] sm:$0xff]
        %3935 = vmatprep.subr.mxu0 0.0
        %3936 = vmatpush1.msra.mxu0 %v3919
        %3937 = vmatprep.subr.mxu0 0.0
        %3938 = vmatpush1.msra.mxu0 %v3920
        %3939 = vmatprep.subr.mxu0 0.0
        %3940 = vmatpush1.msra.mxu0 %v3921
        %3941 = vmatprep.subr.mxu0 0.0
        %3942 = vmatpush1.msra.mxu0 %v3922
        %3943 = vmatprep.subr.mxu0 0.0
        %3944 = vmatpush1.msra.mxu0 %v3923
        %3945 = vmatprep.subr.mxu0 0.0
        %3946 = vmatpush1.msra.mxu0 %v3924
        %3947 = vmatprep.subr.mxu0 0.0
        %3948 = vmatpush1.msra.mxu0 %v3925
        %3949 = vmatprep.subr.mxu0 0.0
        %3950 = vmatpush1.msra.mxu0 %v3926
        %3951 = vmatprep.subr.mxu0 0.0
        %3952 = vmatpush1.msra.mxu0 %v3927
        %3953 = vmatprep.subr.mxu0 0.0
        %3954 = vmatpush1.msra.mxu0 %v3928
        %3955 = vmatprep.subr.mxu0 0.0
        %3956 = vmatpush1.msra.mxu0 %v3929
        %3957 = vmatprep.subr.mxu0 0.0
        %3958 = vmatpush1.msra.mxu0 %v3930
        %3959 = vmatprep.subr.mxu0 0.0
        %3960 = vmatpush1.msra.mxu0 %v3931
        %3961 = vmatprep.subr.mxu0 0.0
        %3962 = vmatpush1.msra.mxu0 %v3932
        %3963 = vmatprep.subr.mxu0 0.0
        %3964 = vmatpush1.msra.mxu0 %v3933
        %3965 = vmatprep.subr.mxu0 0.0
        %3966 = vmatpush1.msra.mxu0 %v3934
        %3967 = vmatprep.subr.mxu0 0.0
        %3968 = vmatpush1.msra.mxu0 0.0
        %3969 = vmatprep.subr.mxu0 0.0
        %3970 = vmatpush1.msra.mxu0 0.0
        %3971 = vmatprep.subr.mxu0 0.0
        %3972 = vmatpush1.msra.mxu0 0.0
        %3973 = vmatprep.subr.mxu0 0.0
        %3974 = vmatpush1.msra.mxu0 0.0
        %3975 = vmatprep.subr.mxu0 0.0
        %3976 = vmatpush1.msra.mxu0 0.0
        %3977 = vmatprep.subr.mxu0 0.0
        %3978 = vmatpush1.msra.mxu0 0.0
        %3979 = vmatprep.subr.mxu0 0.0
        %3980 = vmatpush1.msra.mxu0 0.0
        %3981 = vmatprep.subr.mxu0 0.0
        %3982 = vmatpush1.msra.mxu0 0.0
        %3983 = vmatprep.subr.mxu0 0.0
        %3984 = vmatpush1.msra.mxu0 0.0
        %3985 = vmatprep.subr.mxu0 0.0
        %3986 = vmatpush1.msra.mxu0 0.0
        %3987 = vmatprep.subr.mxu0 0.0
        %3988 = vmatpush1.msra.mxu0 0.0
        %3989 = vmatprep.subr.mxu0 0.0
        %3990 = vmatpush1.msra.mxu0 0.0
        %3991 = vmatprep.subr.mxu0 0.0
        %3992 = vmatpush1.msra.mxu0 0.0
        %3993 = vmatprep.subr.mxu0 0.0
        %3994 = vmatpush1.msra.mxu0 0.0
        %3995 = vmatprep.subr.mxu0 0.0
        %3996 = vmatpush1.msra.mxu0 0.0
        %3997 = vmatprep.subr.mxu0 0.0
        %3998 = vmatpush1.msra.mxu0 0.0
        %3999 = vmatprep.mubr.f32.mxu0 0.0
        %4000 = vmatmul.mubr.f32.gmra.mrb[0].mxu0 %v507
        %v4001 = vpop.f32.mrb[0].mxu0
        %v4002 = vadd.f32 0.0, %v4001
        %v4003 = vpop.f32.mrb[0].mxu0
        %4004 = vmatprep.mubr.f32.mxu0 0.0
        %4005 = vmatmul.mubr.f32.gmra.mrb[0].mxu0 %v508
        %v4006 = vpop.f32.mrb[0].mxu0
        %v4007 = vadd.f32 0.0, %v4006
        %v4008 = vpop.f32.mrb[0].mxu0
        %4009 = vdwg.mxu0
        %s4010 = scalar_lea.vmem %s3, 768
        %v4011 = vld [vmem:[%s4010] sm:$0xff]
        %v4012 = vld [vmem:[%s4010 + $0x8] sm:$0xff]
        %v4013 = vld [vmem:[%s4010 + $0x10] sm:$0xff]
        %v4014 = vld [vmem:[%s4010 + $0x18] sm:$0xff]
        %v4015 = vld [vmem:[%s4010 + $0x20] sm:$0xff]
        %v4016 = vld [vmem:[%s4010 + $0x28] sm:$0xff]
        %v4017 = vld [vmem:[%s4010 + $0x30] sm:$0xff]
        %v4018 = vld [vmem:[%s4010 + $0x38] sm:$0xff]
        %v4019 = vld [vmem:[%s4010 + $0x40] sm:$0xff]
        %v4020 = vld [vmem:[%s4010 + $0x48] sm:$0xff]
        %v4021 = vld [vmem:[%s4010 + $0x50] sm:$0xff]
        %v4022 = vld [vmem:[%s4010 + $0x58] sm:$0xff]
        %v4023 = vld [vmem:[%s4010 + $0x60] sm:$0xff]
        %v4024 = vld [vmem:[%s4010 + $0x68] sm:$0xff]
        %v4025 = vld [vmem:[%s4010 + $0x70] sm:$0xff]
        %v4026 = vld [vmem:[%s4010 + $0x78] sm:$0xff]
        %4027 = vmatprep.subr.mxu0 0.0
        %4028 = vmatpush1.msra.mxu0 %v4011
        %4029 = vmatprep.subr.mxu0 0.0
        %4030 = vmatpush1.msra.mxu0 %v4012
        %4031 = vmatprep.subr.mxu0 0.0
        %4032 = vmatpush1.msra.mxu0 %v4013
        %4033 = vmatprep.subr.mxu0 0.0
        %4034 = vmatpush1.msra.mxu0 %v4014
        %4035 = vmatprep.subr.mxu0 0.0
        %4036 = vmatpush1.msra.mxu0 %v4015
        %4037 = vmatprep.subr.mxu0 0.0
        %4038 = vmatpush1.msra.mxu0 %v4016
        %4039 = vmatprep.subr.mxu0 0.0
        %4040 = vmatpush1.msra.mxu0 %v4017
        %4041 = vmatprep.subr.mxu0 0.0
        %4042 = vmatpush1.msra.mxu0 %v4018
        %4043 = vmatprep.subr.mxu0 0.0
        %4044 = vmatpush1.msra.mxu0 %v4019
        %4045 = vmatprep.subr.mxu0 0.0
        %4046 = vmatpush1.msra.mxu0 %v4020
        %4047 = vmatprep.subr.mxu0 0.0
        %4048 = vmatpush1.msra.mxu0 %v4021
        %4049 = vmatprep.subr.mxu0 0.0
        %4050 = vmatpush1.msra.mxu0 %v4022
        %4051 = vmatprep.subr.mxu0 0.0
        %4052 = vmatpush1.msra.mxu0 %v4023
        %4053 = vmatprep.subr.mxu0 0.0
        %4054 = vmatpush1.msra.mxu0 %v4024
        %4055 = vmatprep.subr.mxu0 0.0
        %4056 = vmatpush1.msra.mxu0 %v4025
        %4057 = vmatprep.subr.mxu0 0.0
        %4058 = vmatpush1.msra.mxu0 %v4026
        %4059 = vmatprep.subr.mxu0 0.0
        %4060 = vmatpush1.msra.mxu0 0.0
        %4061 = vmatprep.subr.mxu0 0.0
        %4062 = vmatpush1.msra.mxu0 0.0
        %4063 = vmatprep.subr.mxu0 0.0
        %4064 = vmatpush1.msra.mxu0 0.0
        %4065 = vmatprep.subr.mxu0 0.0
        %4066 = vmatpush1.msra.mxu0 0.0
        %4067 = vmatprep.subr.mxu0 0.0
        %4068 = vmatpush1.msra.mxu0 0.0
        %4069 = vmatprep.subr.mxu0 0.0
        %4070 = vmatpush1.msra.mxu0 0.0
        %4071 = vmatprep.subr.mxu0 0.0
        %4072 = vmatpush1.msra.mxu0 0.0
        %4073 = vmatprep.subr.mxu0 0.0
        %4074 = vmatpush1.msra.mxu0 0.0
        %4075 = vmatprep.subr.mxu0 0.0
        %4076 = vmatpush1.msra.mxu0 0.0
        %4077 = vmatprep.subr.mxu0 0.0
        %4078 = vmatpush1.msra.mxu0 0.0
        %4079 = vmatprep.subr.mxu0 0.0
        %4080 = vmatpush1.msra.mxu0 0.0
        %4081 = vmatprep.subr.mxu0 0.0
        %4082 = vmatpush1.msra.mxu0 0.0
        %4083 = vmatprep.subr.mxu0 0.0
        %4084 = vmatpush1.msra.mxu0 0.0
        %4085 = vmatprep.subr.mxu0 0.0
        %4086 = vmatpush1.msra.mxu0 0.0
        %4087 = vmatprep.subr.mxu0 0.0
        %4088 = vmatpush1.msra.mxu0 0.0
        %4089 = vmatprep.subr.mxu0 0.0
        %4090 = vmatpush1.msra.mxu0 0.0
        %4091 = vmatprep.mubr.f32.mxu0 0.0
        %4092 = vmatmul.mubr.f32.gmra.mrb[0].mxu0 %v507
        %v4093 = vpop.f32.mrb[0].mxu0
        %v4094 = vadd.f32 0.0, %v4093
        %v4095 = vpop.f32.mrb[0].mxu0
        %4096 = vmatprep.mubr.f32.mxu0 0.0
        %4097 = vmatmul.mubr.f32.gmra.mrb[0].mxu0 %v508
        %v4098 = vpop.f32.mrb[0].mxu0
        %v4099 = vadd.f32 0.0, %v4098
        %v4100 = vpop.f32.mrb[0].mxu0
        %4101 = vdwg.mxu0
        %v4103 = vsel %vm782, %v3910, 0
        %v4106 = vsel %vm782, %v3915, 0
        %v4109 = vsel %vm782, %v4002, 0
        %v4112 = vsel %vm782, %v4007, 0
        %4114 = vmatprep.subr.mxu0 0.0
        %4115 = vmatpush1.xpose.msra.mxu0 %v4109
        %4116 = vmatprep.subr.mxu0 0.0
        %4117 = vmatpush1.xpose.msra.mxu0 %v4112
        %4118 = vmatprep.subr.mxu0 0.0
        %4119 = vmatpush1.xpose.msra.mxu0 0.0
        %4120 = vmatprep.subr.mxu0 0.0
        %4121 = vmatpush1.xpose.msra.mxu0 0.0
        %4122 = vmatprep.subr.mxu0 0.0
        %4123 = vmatpush1.xpose.msra.mxu0 0.0
        %4124 = vmatprep.subr.mxu0 0.0
        %4125 = vmatpush1.xpose.msra.mxu0 0.0
        %4126 = vmatprep.subr.mxu0 0.0
        %4127 = vmatpush1.xpose.msra.mxu0 0.0
        %4128 = vmatprep.subr.mxu0 0.0
        %4129 = vmatpush1.xpose.msra.mxu0 0.0
        %4130 = vmatprep.subr.mxu0 0.0
        %4131 = vmatpush1.xpose.msra.mxu0 0.0
        %4132 = vmatprep.subr.mxu0 0.0
        %4133 = vmatpush1.xpose.msra.mxu0 0.0
        %4134 = vmatprep.subr.mxu0 0.0
        %4135 = vmatpush1.xpose.msra.mxu0 0.0
        %4136 = vmatprep.subr.mxu0 0.0
        %4137 = vmatpush1.xpose.msra.mxu0 0.0
        %4138 = vmatprep.subr.mxu0 0.0
        %4139 = vmatpush1.xpose.msra.mxu0 0.0
        %4140 = vmatprep.subr.mxu0 0.0
        %4141 = vmatpush1.xpose.msra.mxu0 0.0
        %4142 = vmatprep.subr.mxu0 0.0
        %4143 = vmatpush1.xpose.msra.mxu0 0.0
        %4144 = vmatprep.subr.mxu0 0.0
        %4145 = vmatpush1.xpose.msra.mxu0 0.0
        %4146 = vmatprep.subr.mxu0 0.0
        %4147 = vmatpush1.xpose.msra.mxu0 0.0
        %4148 = vmatprep.subr.mxu0 0.0
        %4149 = vmatpush1.xpose.msra.mxu0 0.0
        %4150 = vmatprep.subr.mxu0 0.0
        %4151 = vmatpush1.xpose.msra.mxu0 0.0
        %4152 = vmatprep.subr.mxu0 0.0
        %4153 = vmatpush1.xpose.msra.mxu0 0.0
        %4154 = vmatprep.subr.mxu0 0.0
        %4155 = vmatpush1.xpose.msra.mxu0 0.0
        %4156 = vmatprep.subr.mxu0 0.0
        %4157 = vmatpush1.xpose.msra.mxu0 0.0
        %4158 = vmatprep.subr.mxu0 0.0
        %4159 = vmatpush1.xpose.msra.mxu0 0.0
        %4160 = vmatprep.subr.mxu0 0.0
        %4161 = vmatpush1.xpose.msra.mxu0 0.0
        %4162 = vmatprep.subr.mxu0 0.0
        %4163 = vmatpush1.xpose.msra.mxu0 0.0
        %4164 = vmatprep.subr.mxu0 0.0
        %4165 = vmatpush1.xpose.msra.mxu0 0.0
        %4166 = vmatprep.subr.mxu0 0.0
        %4167 = vmatpush1.xpose.msra.mxu0 0.0
        %4168 = vmatprep.subr.mxu0 0.0
        %4169 = vmatpush1.xpose.msra.mxu0 0.0
        %4170 = vmatprep.subr.mxu0 0.0
        %4171 = vmatpush1.xpose.msra.mxu0 0.0
        %4172 = vmatprep.subr.mxu0 0.0
        %4173 = vmatpush1.xpose.msra.mxu0 0.0
        %4174 = vmatprep.subr.mxu0 0.0
        %4175 = vmatpush1.xpose.msra.mxu0 0.0
        %4176 = vmatprep.subr.mxu0 0.0
        %4177 = vmatpush1.xpose.msra.mxu0 0.0
        %4178 = vmatprep.mubr.f32.mxu0 0.0
        %4179 = vmatmul.mubr.f32.gmra.mrb[0].mxu0 %v4103
        %v4180 = vpop.f32.mrb[0].mxu0
        %v4181 = vadd.f32 0.0, %v4180
        %v4182 = vpop.f32.mrb[0].mxu0
        %4183 = vmatprep.mubr.f32.mxu0 0.0
        %4184 = vmatmul.mubr.f32.gmra.mrb[0].mxu0 %v4106
        %v4185 = vpop.f32.mrb[0].mxu0
        %v4186 = vadd.f32 0.0, %v4185
        %v4187 = vpop.f32.mrb[0].mxu0
        %4188 = vdwg.mxu0
        %v4189 = vmul.f32 %v4181, 0.25
        %v4190 = vmul.f32 %v4186, 0.25
        %v4191 = vsel %vm782, %v4189, -inf
        %4192 = vmax.xlane.f32.xlu0 %v4191
        %v4193 = vpop.xlane.xlu0 %4192
        %v4194 = vsel %vm782, %v4190, -inf
        %4195 = vmax.xlane.f32.xlu0 %v4194
        %v4196 = vpop.xlane.xlu0 %4195
        %v4197 = vsub.f32 %v4189, %v4193
        %v4198 = vsub.f32 %v4190, %v4196
        %v4199 = vmul.f32 %v4197, 1.442695
        %v4200 = vpow.pop %v4199
        %v4201 = vmul.f32 %v4198, 1.442695
        %v4202 = vpow.pop %v4201
        %v4203 = vsel %vm782, %v4200, 0.0
        %4204 = vadd.xlane.f32.xlu0 %v4203
        %v4205 = vpop.xlane.xlu0 %4204
        %v4206 = vsel %vm782, %v4202, 0.0
        %4207 = vadd.xlane.f32.xlu0 %v4206
        %v4208 = vpop.xlane.xlu0 %4207
        %v4209 = vrcp.pop %v4205
        %v4210 = vmul.f32 %v4200, %v4209
        %v4211 = vrcp.pop %v4208
        %v4212 = vmul.f32 %v4202, %v4211
        %v4214 = vsel %vm782, %v4210, 0
        %v4217 = vsel %vm782, %v4212, 0
        %4219 = vmatprep.subr.mxu0 0.0
        %4220 = vmatpush1.msra.mxu0 %v4094
        %4221 = vmatprep.subr.mxu0 0.0
        %4222 = vmatpush1.msra.mxu0 %v4099
        %4223 = vmatprep.subr.mxu0 0.0
        %4224 = vmatpush1.msra.mxu0 0.0
        %4225 = vmatprep.subr.mxu0 0.0
        %4226 = vmatpush1.msra.mxu0 0.0
        %4227 = vmatprep.subr.mxu0 0.0
        %4228 = vmatpush1.msra.mxu0 0.0
        %4229 = vmatprep.subr.mxu0 0.0
        %4230 = vmatpush1.msra.mxu0 0.0
        %4231 = vmatprep.subr.mxu0 0.0
        %4232 = vmatpush1.msra.mxu0 0.0
        %4233 = vmatprep.subr.mxu0 0.0
        %4234 = vmatpush1.msra.mxu0 0.0
        %4235 = vmatprep.subr.mxu0 0.0
        %4236 = vmatpush1.msra.mxu0 0.0
        %4237 = vmatprep.subr.mxu0 0.0
        %4238 = vmatpush1.msra.mxu0 0.0
        %4239 = vmatprep.subr.mxu0 0.0
        %4240 = vmatpush1.msra.mxu0 0.0
        %4241 = vmatprep.subr.mxu0 0.0
        %4242 = vmatpush1.msra.mxu0 0.0
        %4243 = vmatprep.subr.mxu0 0.0
        %4244 = vmatpush1.msra.mxu0 0.0
        %4245 = vmatprep.subr.mxu0 0.0
        %4246 = vmatpush1.msra.mxu0 0.0
        %4247 = vmatprep.subr.mxu0 0.0
        %4248 = vmatpush1.msra.mxu0 0.0
        %4249 = vmatprep.subr.mxu0 0.0
        %4250 = vmatpush1.msra.mxu0 0.0
        %4251 = vmatprep.subr.mxu0 0.0
        %4252 = vmatpush1.msra.mxu0 0.0
        %4253 = vmatprep.subr.mxu0 0.0
        %4254 = vmatpush1.msra.mxu0 0.0
        %4255 = vmatprep.subr.mxu0 0.0
        %4256 = vmatpush1.msra.mxu0 0.0
        %4257 = vmatprep.subr.mxu0 0.0
        %4258 = vmatpush1.msra.mxu0 0.0
        %4259 = vmatprep.subr.mxu0 0.0
        %4260 = vmatpush1.msra.mxu0 0.0
        %4261 = vmatprep.subr.mxu0 0.0
        %4262 = vmatpush1.msra.mxu0 0.0
        %4263 = vmatprep.subr.mxu0 0.0
        %4264 = vmatpush1.msra.mxu0 0.0
        %4265 = vmatprep.subr.mxu0 0.0
        %4266 = vmatpush1.msra.mxu0 0.0
        %4267 = vmatprep.subr.mxu0 0.0
        %4268 = vmatpush1.msra.mxu0 0.0
        %4269 = vmatprep.subr.mxu0 0.0
        %4270 = vmatpush1.msra.mxu0 0.0
        %4271 = vmatprep.subr.mxu0 0.0
        %4272 = vmatpush1.msra.mxu0 0.0
        %4273 = vmatprep.subr.mxu0 0.0
        %4274 = vmatpush1.msra.mxu0 0.0
        %4275 = vmatprep.subr.mxu0 0.0
        %4276 = vmatpush1.msra.mxu0 0.0
        %4277 = vmatprep.subr.mxu0 0.0
        %4278 = vmatpush1.msra.mxu0 0.0
        %4279 = vmatprep.subr.mxu0 0.0
        %4280 = vmatpush1.msra.mxu0 0.0
        %4281 = vmatprep.subr.mxu0 0.0
        %4282 = vmatpush1.msra.mxu0 0.0
        %4283 = vmatprep.mubr.f32.mxu0 0.0
        %4284 = vmatmul.mubr.f32.gmra.mrb[0].mxu0 %v4214
        %v4285 = vpop.f32.mrb[0].mxu0
        %v4286 = vadd.f32 0.0, %v4285
        %v4287 = vpop.f32.mrb[0].mxu0
        %4288 = vmatprep.mubr.f32.mxu0 0.0
        %4289 = vmatmul.mubr.f32.gmra.mrb[0].mxu0 %v4217
        %v4290 = vpop.f32.mrb[0].mxu0
        %v4291 = vadd.f32 0.0, %v4290
        %v4292 = vpop.f32.mrb[0].mxu0
        %4293 = vdwg.mxu0
        %s4294 = scalar_lea.vmem %s4, 96
        %v4295 = vld [vmem:[%s4294] sm:$0xff]
        %v4296 = vld [vmem:[%s4294 + $0x8] sm:$0xff]
        %v4298 = vsel %vm782, %v4286, 0
        %v4301 = vsel %vm782, %v4291, 0
        %4303 = vmatprep.subr.mxu0 0.0
        %4304 = vmatpush1.msra.mxu0 %v4295
        %4305 = vmatprep.subr.mxu0 0.0
        %4306 = vmatpush1.msra.mxu0 %v4296
        %4307 = vmatprep.subr.mxu0 0.0
        %4308 = vmatpush1.msra.mxu0 0.0
        %4309 = vmatprep.subr.mxu0 0.0
        %4310 = vmatpush1.msra.mxu0 0.0
        %4311 = vmatprep.subr.mxu0 0.0
        %4312 = vmatpush1.msra.mxu0 0.0
        %4313 = vmatprep.subr.mxu0 0.0
        %4314 = vmatpush1.msra.mxu0 0.0
        %4315 = vmatprep.subr.mxu0 0.0
        %4316 = vmatpush1.msra.mxu0 0.0
        %4317 = vmatprep.subr.mxu0 0.0
        %4318 = vmatpush1.msra.mxu0 0.0
        %4319 = vmatprep.subr.mxu0 0.0
        %4320 = vmatpush1.msra.mxu0 0.0
        %4321 = vmatprep.subr.mxu0 0.0
        %4322 = vmatpush1.msra.mxu0 0.0
        %4323 = vmatprep.subr.mxu0 0.0
        %4324 = vmatpush1.msra.mxu0 0.0
        %4325 = vmatprep.subr.mxu0 0.0
        %4326 = vmatpush1.msra.mxu0 0.0
        %4327 = vmatprep.subr.mxu0 0.0
        %4328 = vmatpush1.msra.mxu0 0.0
        %4329 = vmatprep.subr.mxu0 0.0
        %4330 = vmatpush1.msra.mxu0 0.0
        %4331 = vmatprep.subr.mxu0 0.0
        %4332 = vmatpush1.msra.mxu0 0.0
        %4333 = vmatprep.subr.mxu0 0.0
        %4334 = vmatpush1.msra.mxu0 0.0
        %4335 = vmatprep.subr.mxu0 0.0
        %4336 = vmatpush1.msra.mxu0 0.0
        %4337 = vmatprep.subr.mxu0 0.0
        %4338 = vmatpush1.msra.mxu0 0.0
        %4339 = vmatprep.subr.mxu0 0.0
        %4340 = vmatpush1.msra.mxu0 0.0
        %4341 = vmatprep.subr.mxu0 0.0
        %4342 = vmatpush1.msra.mxu0 0.0
        %4343 = vmatprep.subr.mxu0 0.0
        %4344 = vmatpush1.msra.mxu0 0.0
        %4345 = vmatprep.subr.mxu0 0.0
        %4346 = vmatpush1.msra.mxu0 0.0
        %4347 = vmatprep.subr.mxu0 0.0
        %4348 = vmatpush1.msra.mxu0 0.0
        %4349 = vmatprep.subr.mxu0 0.0
        %4350 = vmatpush1.msra.mxu0 0.0
        %4351 = vmatprep.subr.mxu0 0.0
        %4352 = vmatpush1.msra.mxu0 0.0
        %4353 = vmatprep.subr.mxu0 0.0
        %4354 = vmatpush1.msra.mxu0 0.0
        %4355 = vmatprep.subr.mxu0 0.0
        %4356 = vmatpush1.msra.mxu0 0.0
        %4357 = vmatprep.subr.mxu0 0.0
        %4358 = vmatpush1.msra.mxu0 0.0
        %4359 = vmatprep.subr.mxu0 0.0
        %4360 = vmatpush1.msra.mxu0 0.0
        %4361 = vmatprep.subr.mxu0 0.0
        %4362 = vmatpush1.msra.mxu0 0.0
        %4363 = vmatprep.subr.mxu0 0.0
        %4364 = vmatpush1.msra.mxu0 0.0
        %4365 = vmatprep.subr.mxu0 0.0
        %4366 = vmatpush1.msra.mxu0 0.0
        %4367 = vmatprep.mubr.f32.mxu0 0.0
        %4368 = vmatmul.mubr.f32.gmra.mrb[0].mxu0 %v4298
        %v4369 = vpop.f32.mrb[0].mxu0
        %v4370 = vadd.f32 0.0, %v4369
        %v4371 = vpop.f32.mrb[0].mxu0
        %4372 = vmatprep.mubr.f32.mxu0 0.0
        %4373 = vmatmul.mubr.f32.gmra.mrb[0].mxu0 %v4301
        %v4374 = vpop.f32.mrb[0].mxu0
        %v4375 = vadd.f32 0.0, %v4374
        %v4376 = vpop.f32.mrb[0].mxu0
        %4377 = vdwg.mxu0
        %v4378 = vadd.f32 %v3824, %v4370
        %v4379 = vadd.f32 %v3825, %v4375
        %s4380 = scalar_lea.vmem %s1, 896
        %v4381 = vld [vmem:[%s4380] sm:$0xff]
        %v4382 = vld [vmem:[%s4380 + $0x8] sm:$0xff]
        %v4383 = vld [vmem:[%s4380 + $0x10] sm:$0xff]
        %v4384 = vld [vmem:[%s4380 + $0x18] sm:$0xff]
        %v4385 = vld [vmem:[%s4380 + $0x20] sm:$0xff]
        %v4386 = vld [vmem:[%s4380 + $0x28] sm:$0xff]
        %v4387 = vld [vmem:[%s4380 + $0x30] sm:$0xff]
        %v4388 = vld [vmem:[%s4380 + $0x38] sm:$0xff]
        %v4389 = vld [vmem:[%s4380 + $0x40] sm:$0xff]
        %v4390 = vld [vmem:[%s4380 + $0x48] sm:$0xff]
        %v4391 = vld [vmem:[%s4380 + $0x50] sm:$0xff]
        %v4392 = vld [vmem:[%s4380 + $0x58] sm:$0xff]
        %v4393 = vld [vmem:[%s4380 + $0x60] sm:$0xff]
        %v4394 = vld [vmem:[%s4380 + $0x68] sm:$0xff]
        %v4395 = vld [vmem:[%s4380 + $0x70] sm:$0xff]
        %v4396 = vld [vmem:[%s4380 + $0x78] sm:$0xff]
        %4397 = vmatprep.subr.mxu0 0.0
        %4398 = vmatpush1.msra.mxu0 %v4381
        %4399 = vmatprep.subr.mxu0 0.0
        %4400 = vmatpush1.msra.mxu0 %v4382
        %4401 = vmatprep.subr.mxu0 0.0
        %4402 = vmatpush1.msra.mxu0 %v4383
        %4403 = vmatprep.subr.mxu0 0.0
        %4404 = vmatpush1.msra.mxu0 %v4384
        %4405 = vmatprep.subr.mxu0 0.0
        %4406 = vmatpush1.msra.mxu0 %v4385
        %4407 = vmatprep.subr.mxu0 0.0
        %4408 = vmatpush1.msra.mxu0 %v4386
        %4409 = vmatprep.subr.mxu0 0.0
        %4410 = vmatpush1.msra.mxu0 %v4387
        %4411 = vmatprep.subr.mxu0 0.0
        %4412 = vmatpush1.msra.mxu0 %v4388
        %4413 = vmatprep.subr.mxu0 0.0
        %4414 = vmatpush1.msra.mxu0 %v4389
        %4415 = vmatprep.subr.mxu0 0.0
        %4416 = vmatpush1.msra.mxu0 %v4390
        %4417 = vmatprep.subr.mxu0 0.0
        %4418 = vmatpush1.msra.mxu0 %v4391
        %4419 = vmatprep.subr.mxu0 0.0
        %4420 = vmatpush1.msra.mxu0 %v4392
        %4421 = vmatprep.subr.mxu0 0.0
        %4422 = vmatpush1.msra.mxu0 %v4393
        %4423 = vmatprep.subr.mxu0 0.0
        %4424 = vmatpush1.msra.mxu0 %v4394
        %4425 = vmatprep.subr.mxu0 0.0
        %4426 = vmatpush1.msra.mxu0 %v4395
        %4427 = vmatprep.subr.mxu0 0.0
        %4428 = vmatpush1.msra.mxu0 %v4396
        %4429 = vmatprep.subr.mxu0 0.0
        %4430 = vmatpush1.msra.mxu0 0.0
        %4431 = vmatprep.subr.mxu0 0.0
        %4432 = vmatpush1.msra.mxu0 0.0
        %4433 = vmatprep.subr.mxu0 0.0
        %4434 = vmatpush1.msra.mxu0 0.0
        %4435 = vmatprep.subr.mxu0 0.0
        %4436 = vmatpush1.msra.mxu0 0.0
        %4437 = vmatprep.subr.mxu0 0.0
        %4438 = vmatpush1.msra.mxu0 0.0
        %4439 = vmatprep.subr.mxu0 0.0
        %4440 = vmatpush1.msra.mxu0 0.0
        %4441 = vmatprep.subr.mxu0 0.0
        %4442 = vmatpush1.msra.mxu0 0.0
        %4443 = vmatprep.subr.mxu0 0.0
        %4444 = vmatpush1.msra.mxu0 0.0
        %4445 = vmatprep.subr.mxu0 0.0
        %4446 = vmatpush1.msra.mxu0 0.0
        %4447 = vmatprep.subr.mxu0 0.0
        %4448 = vmatpush1.msra.mxu0 0.0
        %4449 = vmatprep.subr.mxu0 0.0
        %4450 = vmatpush1.msra.mxu0 0.0
        %4451 = vmatprep.subr.mxu0 0.0
        %4452 = vmatpush1.msra.mxu0 0.0
        %4453 = vmatprep.subr.mxu0 0.0
        %4454 = vmatpush1.msra.mxu0 0.0
        %4455 = vmatprep.subr.mxu0 0.0
        %4456 = vmatpush1.msra.mxu0 0.0
        %4457 = vmatprep.subr.mxu0 0.0
        %4458 = vmatpush1.msra.mxu0 0.0
        %4459 = vmatprep.subr.mxu0 0.0
        %4460 = vmatpush1.msra.mxu0 0.0
        %4461 = vmatprep.mubr.f32.mxu0 0.0
        %4462 = vmatmul.mubr.f32.gmra.mrb[0].mxu0 %v507
        %v4463 = vpop.f32.mrb[0].mxu0
        %v4464 = vadd.f32 0.0, %v4463
        %v4465 = vpop.f32.mrb[0].mxu0
        %4466 = vmatprep.mubr.f32.mxu0 0.0
        %4467 = vmatmul.mubr.f32.gmra.mrb[0].mxu0 %v508
        %v4468 = vpop.f32.mrb[0].mxu0
        %v4469 = vadd.f32 0.0, %v4468
        %v4470 = vpop.f32.mrb[0].mxu0
        %4471 = vdwg.mxu0
        %s4472 = scalar_lea.vmem %s2, 896
        %v4473 = vld [vmem:[%s4472] sm:$0xff]
        %v4474 = vld [vmem:[%s4472 + $0x8] sm:$0xff]
        %v4475 = vld [vmem:[%s4472 + $0x10] sm:$0xff]
        %v4476 = vld [vmem:[%s4472 + $0x18] sm:$0xff]
        %v4477 = vld [vmem:[%s4472 + $0x20] sm:$0xff]
        %v4478 = vld [vmem:[%s4472 + $0x28] sm:$0xff]
        %v4479 = vld [vmem:[%s4472 + $0x30] sm:$0xff]
        %v4480 = vld [vmem:[%s4472 + $0x38] sm:$0xff]
        %v4481 = vld [vmem:[%s4472 + $0x40] sm:$0xff]
        %v4482 = vld [vmem:[%s4472 + $0x48] sm:$0xff]
        %v4483 = vld [vmem:[%s4472 + $0x50] sm:$0xff]
        %v4484 = vld [vmem:[%s4472 + $0x58] sm:$0xff]
        %v4485 = vld [vmem:[%s4472 + $0x60] sm:$0xff]
        %v4486 = vld [vmem:[%s4472 + $0x68] sm:$0xff]
        %v4487 = vld [vmem:[%s4472 + $0x70] sm:$0xff]
        %v4488 = vld [vmem:[%s4472 + $0x78] sm:$0xff]
        %4489 = vmatprep.subr.mxu0 0.0
        %4490 = vmatpush1.msra.mxu0 %v4473
        %4491 = vmatprep.subr.mxu0 0.0
        %4492 = vmatpush1.msra.mxu0 %v4474
        %4493 = vmatprep.subr.mxu0 0.0
        %4494 = vmatpush1.msra.mxu0 %v4475
        %4495 = vmatprep.subr.mxu0 0.0
        %4496 = vmatpush1.msra.mxu0 %v4476
        %4497 = vmatprep.subr.mxu0 0.0
        %4498 = vmatpush1.msra.mxu0 %v4477
        %4499 = vmatprep.subr.mxu0 0.0
        %4500 = vmatpush1.msra.mxu0 %v4478
        %4501 = vmatprep.subr.mxu0 0.0
        %4502 = vmatpush1.msra.mxu0 %v4479
        %4503 = vmatprep.subr.mxu0 0.0
        %4504 = vmatpush1.msra.mxu0 %v4480
        %4505 = vmatprep.subr.mxu0 0.0
        %4506 = vmatpush1.msra.mxu0 %v4481
        %4507 = vmatprep.subr.mxu0 0.0
        %4508 = vmatpush1.msra.mxu0 %v4482
        %4509 = vmatprep.subr.mxu0 0.0
        %4510 = vmatpush1.msra.mxu0 %v4483
        %4511 = vmatprep.subr.mxu0 0.0
        %4512 = vmatpush1.msra.mxu0 %v4484
        %4513 = vmatprep.subr.mxu0 0.0
        %4514 = vmatpush1.msra.mxu0 %v4485
        %4515 = vmatprep.subr.mxu0 0.0
        %4516 = vmatpush1.msra.mxu0 %v4486
        %4517 = vmatprep.subr.mxu0 0.0
        %4518 = vmatpush1.msra.mxu0 %v4487
        %4519 = vmatprep.subr.mxu0 0.0
        %4520 = vmatpush1.msra.mxu0 %v4488
        %4521 = vmatprep.subr.mxu0 0.0
        %4522 = vmatpush1.msra.mxu0 0.0
        %4523 = vmatprep.subr.mxu0 0.0
        %4524 = vmatpush1.msra.mxu0 0.0
        %4525 = vmatprep.subr.mxu0 0.0
        %4526 = vmatpush1.msra.mxu0 0.0
        %4527 = vmatprep.subr.mxu0 0.0
        %4528 = vmatpush1.msra.mxu0 0.0
        %4529 = vmatprep.subr.mxu0 0.0
        %4530 = vmatpush1.msra.mxu0 0.0
        %4531 = vmatprep.subr.mxu0 0.0
        %4532 = vmatpush1.msra.mxu0 0.0
        %4533 = vmatprep.subr.mxu0 0.0
        %4534 = vmatpush1.msra.mxu0 0.0
        %4535 = vmatprep.subr.mxu0 0.0
        %4536 = vmatpush1.msra.mxu0 0.0
        %4537 = vmatprep.subr.mxu0 0.0
        %4538 = vmatpush1.msra.mxu0 0.0
        %4539 = vmatprep.subr.mxu0 0.0
        %4540 = vmatpush1.msra.mxu0 0.0
        %4541 = vmatprep.subr.mxu0 0.0
        %4542 = vmatpush1.msra.mxu0 0.0
        %4543 = vmatprep.subr.mxu0 0.0
        %4544 = vmatpush1.msra.mxu0 0.0
        %4545 = vmatprep.subr.mxu0 0.0
        %4546 = vmatpush1.msra.mxu0 0.0
        %4547 = vmatprep.subr.mxu0 0.0
        %4548 = vmatpush1.msra.mxu0 0.0
        %4549 = vmatprep.subr.mxu0 0.0
        %4550 = vmatpush1.msra.mxu0 0.0
        %4551 = vmatprep.subr.mxu0 0.0
        %4552 = vmatpush1.msra.mxu0 0.0
        %4553 = vmatprep.mubr.f32.mxu0 0.0
        %4554 = vmatmul.mubr.f32.gmra.mrb[0].mxu0 %v507
        %v4555 = vpop.f32.mrb[0].mxu0
        %v4556 = vadd.f32 0.0, %v4555
        %v4557 = vpop.f32.mrb[0].mxu0
        %4558 = vmatprep.mubr.f32.mxu0 0.0
        %4559 = vmatmul.mubr.f32.gmra.mrb[0].mxu0 %v508
        %v4560 = vpop.f32.mrb[0].mxu0
        %v4561 = vadd.f32 0.0, %v4560
        %v4562 = vpop.f32.mrb[0].mxu0
        %4563 = vdwg.mxu0
        %s4564 = scalar_lea.vmem %s3, 896
        %v4565 = vld [vmem:[%s4564] sm:$0xff]
        %v4566 = vld [vmem:[%s4564 + $0x8] sm:$0xff]
        %v4567 = vld [vmem:[%s4564 + $0x10] sm:$0xff]
        %v4568 = vld [vmem:[%s4564 + $0x18] sm:$0xff]
        %v4569 = vld [vmem:[%s4564 + $0x20] sm:$0xff]
        %v4570 = vld [vmem:[%s4564 + $0x28] sm:$0xff]
        %v4571 = vld [vmem:[%s4564 + $0x30] sm:$0xff]
        %v4572 = vld [vmem:[%s4564 + $0x38] sm:$0xff]
        %v4573 = vld [vmem:[%s4564 + $0x40] sm:$0xff]
        %v4574 = vld [vmem:[%s4564 + $0x48] sm:$0xff]
        %v4575 = vld [vmem:[%s4564 + $0x50] sm:$0xff]
        %v4576 = vld [vmem:[%s4564 + $0x58] sm:$0xff]
        %v4577 = vld [vmem:[%s4564 + $0x60] sm:$0xff]
        %v4578 = vld [vmem:[%s4564 + $0x68] sm:$0xff]
        %v4579 = vld [vmem:[%s4564 + $0x70] sm:$0xff]
        %v4580 = vld [vmem:[%s4564 + $0x78] sm:$0xff]
        %4581 = vmatprep.subr.mxu0 0.0
        %4582 = vmatpush1.msra.mxu0 %v4565
        %4583 = vmatprep.subr.mxu0 0.0
        %4584 = vmatpush1.msra.mxu0 %v4566
        %4585 = vmatprep.subr.mxu0 0.0
        %4586 = vmatpush1.msra.mxu0 %v4567
        %4587 = vmatprep.subr.mxu0 0.0
        %4588 = vmatpush1.msra.mxu0 %v4568
        %4589 = vmatprep.subr.mxu0 0.0
        %4590 = vmatpush1.msra.mxu0 %v4569
        %4591 = vmatprep.subr.mxu0 0.0
        %4592 = vmatpush1.msra.mxu0 %v4570
        %4593 = vmatprep.subr.mxu0 0.0
        %4594 = vmatpush1.msra.mxu0 %v4571
        %4595 = vmatprep.subr.mxu0 0.0
        %4596 = vmatpush1.msra.mxu0 %v4572
        %4597 = vmatprep.subr.mxu0 0.0
        %4598 = vmatpush1.msra.mxu0 %v4573
        %4599 = vmatprep.subr.mxu0 0.0
        %4600 = vmatpush1.msra.mxu0 %v4574
        %4601 = vmatprep.subr.mxu0 0.0
        %4602 = vmatpush1.msra.mxu0 %v4575
        %4603 = vmatprep.subr.mxu0 0.0
        %4604 = vmatpush1.msra.mxu0 %v4576
        %4605 = vmatprep.subr.mxu0 0.0
        %4606 = vmatpush1.msra.mxu0 %v4577
        %4607 = vmatprep.subr.mxu0 0.0
        %4608 = vmatpush1.msra.mxu0 %v4578
        %4609 = vmatprep.subr.mxu0 0.0
        %4610 = vmatpush1.msra.mxu0 %v4579
        %4611 = vmatprep.subr.mxu0 0.0
        %4612 = vmatpush1.msra.mxu0 %v4580
        %4613 = vmatprep.subr.mxu0 0.0
        %4614 = vmatpush1.msra.mxu0 0.0
        %4615 = vmatprep.subr.mxu0 0.0
        %4616 = vmatpush1.msra.mxu0 0.0
        %4617 = vmatprep.subr.mxu0 0.0
        %4618 = vmatpush1.msra.mxu0 0.0
        %4619 = vmatprep.subr.mxu0 0.0
        %4620 = vmatpush1.msra.mxu0 0.0
        %4621 = vmatprep.subr.mxu0 0.0
        %4622 = vmatpush1.msra.mxu0 0.0
        %4623 = vmatprep.subr.mxu0 0.0
        %4624 = vmatpush1.msra.mxu0 0.0
        %4625 = vmatprep.subr.mxu0 0.0
        %4626 = vmatpush1.msra.mxu0 0.0
        %4627 = vmatprep.subr.mxu0 0.0
        %4628 = vmatpush1.msra.mxu0 0.0
        %4629 = vmatprep.subr.mxu0 0.0
        %4630 = vmatpush1.msra.mxu0 0.0
        %4631 = vmatprep.subr.mxu0 0.0
        %4632 = vmatpush1.msra.mxu0 0.0
        %4633 = vmatprep.subr.mxu0 0.0
        %4634 = vmatpush1.msra.mxu0 0.0
        %4635 = vmatprep.subr.mxu0 0.0
        %4636 = vmatpush1.msra.mxu0 0.0
        %4637 = vmatprep.subr.mxu0 0.0
        %4638 = vmatpush1.msra.mxu0 0.0
        %4639 = vmatprep.subr.mxu0 0.0
        %4640 = vmatpush1.msra.mxu0 0.0
        %4641 = vmatprep.subr.mxu0 0.0
        %4642 = vmatpush1.msra.mxu0 0.0
        %4643 = vmatprep.subr.mxu0 0.0
        %4644 = vmatpush1.msra.mxu0 0.0
        %4645 = vmatprep.mubr.f32.mxu0 0.0
        %4646 = vmatmul.mubr.f32.gmra.mrb[0].mxu0 %v507
        %v4647 = vpop.f32.mrb[0].mxu0
        %v4648 = vadd.f32 0.0, %v4647
        %v4649 = vpop.f32.mrb[0].mxu0
        %4650 = vmatprep.mubr.f32.mxu0 0.0
        %4651 = vmatmul.mubr.f32.gmra.mrb[0].mxu0 %v508
        %v4652 = vpop.f32.mrb[0].mxu0
        %v4653 = vadd.f32 0.0, %v4652
        %v4654 = vpop.f32.mrb[0].mxu0
        %4655 = vdwg.mxu0
        %v4657 = vsel %vm782, %v4464, 0
        %v4660 = vsel %vm782, %v4469, 0
        %v4663 = vsel %vm782, %v4556, 0
        %v4666 = vsel %vm782, %v4561, 0
        %4668 = vmatprep.subr.mxu0 0.0
        %4669 = vmatpush1.xpose.msra.mxu0 %v4663
        %4670 = vmatprep.subr.mxu0 0.0
        %4671 = vmatpush1.xpose.msra.mxu0 %v4666
        %4672 = vmatprep.subr.mxu0 0.0
        %4673 = vmatpush1.xpose.msra.mxu0 0.0
        %4674 = vmatprep.subr.mxu0 0.0
        %4675 = vmatpush1.xpose.msra.mxu0 0.0
        %4676 = vmatprep.subr.mxu0 0.0
        %4677 = vmatpush1.xpose.msra.mxu0 0.0
        %4678 = vmatprep.subr.mxu0 0.0
        %4679 = vmatpush1.xpose.msra.mxu0 0.0
        %4680 = vmatprep.subr.mxu0 0.0
        %4681 = vmatpush1.xpose.msra.mxu0 0.0
        %4682 = vmatprep.subr.mxu0 0.0
        %4683 = vmatpush1.xpose.msra.mxu0 0.0
        %4684 = vmatprep.subr.mxu0 0.0
        %4685 = vmatpush1.xpose.msra.mxu0 0.0
        %4686 = vmatprep.subr.mxu0 0.0
        %4687 = vmatpush1.xpose.msra.mxu0 0.0
        %4688 = vmatprep.subr.mxu0 0.0
        %4689 = vmatpush1.xpose.msra.mxu0 0.0
        %4690 = vmatprep.subr.mxu0 0.0
        %4691 = vmatpush1.xpose.msra.mxu0 0.0
        %4692 = vmatprep.subr.mxu0 0.0
        %4693 = vmatpush1.xpose.msra.mxu0 0.0
        %4694 = vmatprep.subr.mxu0 0.0
        %4695 = vmatpush1.xpose.msra.mxu0 0.0
        %4696 = vmatprep.subr.mxu0 0.0
        %4697 = vmatpush1.xpose.msra.mxu0 0.0
        %4698 = vmatprep.subr.mxu0 0.0
        %4699 = vmatpush1.xpose.msra.mxu0 0.0
        %4700 = vmatprep.subr.mxu0 0.0
        %4701 = vmatpush1.xpose.msra.mxu0 0.0
        %4702 = vmatprep.subr.mxu0 0.0
        %4703 = vmatpush1.xpose.msra.mxu0 0.0
        %4704 = vmatprep.subr.mxu0 0.0
        %4705 = vmatpush1.xpose.msra.mxu0 0.0
        %4706 = vmatprep.subr.mxu0 0.0
        %4707 = vmatpush1.xpose.msra.mxu0 0.0
        %4708 = vmatprep.subr.mxu0 0.0
        %4709 = vmatpush1.xpose.msra.mxu0 0.0
        %4710 = vmatprep.subr.mxu0 0.0
        %4711 = vmatpush1.xpose.msra.mxu0 0.0
        %4712 = vmatprep.subr.mxu0 0.0
        %4713 = vmatpush1.xpose.msra.mxu0 0.0
        %4714 = vmatprep.subr.mxu0 0.0
        %4715 = vmatpush1.xpose.msra.mxu0 0.0
        %4716 = vmatprep.subr.mxu0 0.0
        %4717 = vmatpush1.xpose.msra.mxu0 0.0
        %4718 = vmatprep.subr.mxu0 0.0
        %4719 = vmatpush1.xpose.msra.mxu0 0.0
        %4720 = vmatprep.subr.mxu0 0.0
        %4721 = vmatpush1.xpose.msra.mxu0 0.0
        %4722 = vmatprep.subr.mxu0 0.0
        %4723 = vmatpush1.xpose.msra.mxu0 0.0
        %4724 = vmatprep.subr.mxu0 0.0
        %4725 = vmatpush1.xpose.msra.mxu0 0.0
        %4726 = vmatprep.subr.mxu0 0.0
        %4727 = vmatpush1.xpose.msra.mxu0 0.0
        %4728 = vmatprep.subr.mxu0 0.0
        %4729 = vmatpush1.xpose.msra.mxu0 0.0
        %4730 = vmatprep.subr.mxu0 0.0
        %4731 = vmatpush1.xpose.msra.mxu0 0.0
        %4732 = vmatprep.mubr.f32.mxu0 0.0
        %4733 = vmatmul.mubr.f32.gmra.mrb[0].mxu0 %v4657
        %v4734 = vpop.f32.mrb[0].mxu0
        %v4735 = vadd.f32 0.0, %v4734
        %v4736 = vpop.f32.mrb[0].mxu0
        %4737 = vmatprep.mubr.f32.mxu0 0.0
        %4738 = vmatmul.mubr.f32.gmra.mrb[0].mxu0 %v4660
        %v4739 = vpop.f32.mrb[0].mxu0
        %v4740 = vadd.f32 0.0, %v4739
        %v4741 = vpop.f32.mrb[0].mxu0
        %4742 = vdwg.mxu0
        %v4743 = vmul.f32 %v4735, 0.25
        %v4744 = vmul.f32 %v4740, 0.25
        %v4745 = vsel %vm782, %v4743, -inf
        %4746 = vmax.xlane.f32.xlu0 %v4745
        %v4747 = vpop.xlane.xlu0 %4746
        %v4748 = vsel %vm782, %v4744, -inf
        %4749 = vmax.xlane.f32.xlu0 %v4748
        %v4750 = vpop.xlane.xlu0 %4749
        %v4751 = vsub.f32 %v4743, %v4747
        %v4752 = vsub.f32 %v4744, %v4750
        %v4753 = vmul.f32 %v4751, 1.442695
        %v4754 = vpow.pop %v4753
        %v4755 = vmul.f32 %v4752, 1.442695
        %v4756 = vpow.pop %v4755
        %v4757 = vsel %vm782, %v4754, 0.0
        %4758 = vadd.xlane.f32.xlu0 %v4757
        %v4759 = vpop.xlane.xlu0 %4758
        %v4760 = vsel %vm782, %v4756, 0.0
        %4761 = vadd.xlane.f32.xlu0 %v4760
        %v4762 = vpop.xlane.xlu0 %4761
        %v4763 = vrcp.pop %v4759
        %v4764 = vmul.f32 %v4754, %v4763
        %v4765 = vrcp.pop %v4762
        %v4766 = vmul.f32 %v4756, %v4765
        %v4768 = vsel %vm782, %v4764, 0
        %v4771 = vsel %vm782, %v4766, 0
        %4773 = vmatprep.subr.mxu0 0.0
        %4774 = vmatpush1.msra.mxu0 %v4648
        %4775 = vmatprep.subr.mxu0 0.0
        %4776 = vmatpush1.msra.mxu0 %v4653
        %4777 = vmatprep.subr.mxu0 0.0
        %4778 = vmatpush1.msra.mxu0 0.0
        %4779 = vmatprep.subr.mxu0 0.0
        %4780 = vmatpush1.msra.mxu0 0.0
        %4781 = vmatprep.subr.mxu0 0.0
        %4782 = vmatpush1.msra.mxu0 0.0
        %4783 = vmatprep.subr.mxu0 0.0
        %4784 = vmatpush1.msra.mxu0 0.0
        %4785 = vmatprep.subr.mxu0 0.0
        %4786 = vmatpush1.msra.mxu0 0.0
        %4787 = vmatprep.subr.mxu0 0.0
        %4788 = vmatpush1.msra.mxu0 0.0
        %4789 = vmatprep.subr.mxu0 0.0
        %4790 = vmatpush1.msra.mxu0 0.0
        %4791 = vmatprep.subr.mxu0 0.0
        %4792 = vmatpush1.msra.mxu0 0.0
        %4793 = vmatprep.subr.mxu0 0.0
        %4794 = vmatpush1.msra.mxu0 0.0
        %4795 = vmatprep.subr.mxu0 0.0
        %4796 = vmatpush1.msra.mxu0 0.0
        %4797 = vmatprep.subr.mxu0 0.0
        %4798 = vmatpush1.msra.mxu0 0.0
        %4799 = vmatprep.subr.mxu0 0.0
        %4800 = vmatpush1.msra.mxu0 0.0
        %4801 = vmatprep.subr.mxu0 0.0
        %4802 = vmatpush1.msra.mxu0 0.0
        %4803 = vmatprep.subr.mxu0 0.0
        %4804 = vmatpush1.msra.mxu0 0.0
        %4805 = vmatprep.subr.mxu0 0.0
        %4806 = vmatpush1.msra.mxu0 0.0
        %4807 = vmatprep.subr.mxu0 0.0
        %4808 = vmatpush1.msra.mxu0 0.0
        %4809 = vmatprep.subr.mxu0 0.0
        %4810 = vmatpush1.msra.mxu0 0.0
        %4811 = vmatprep.subr.mxu0 0.0
        %4812 = vmatpush1.msra.mxu0 0.0
        %4813 = vmatprep.subr.mxu0 0.0
        %4814 = vmatpush1.msra.mxu0 0.0
        %4815 = vmatprep.subr.mxu0 0.0
        %4816 = vmatpush1.msra.mxu0 0.0
        %4817 = vmatprep.subr.mxu0 0.0
        %4818 = vmatpush1.msra.mxu0 0.0
        %4819 = vmatprep.subr.mxu0 0.0
        %4820 = vmatpush1.msra.mxu0 0.0
        %4821 = vmatprep.subr.mxu0 0.0
        %4822 = vmatpush1.msra.mxu0 0.0
        %4823 = vmatprep.subr.mxu0 0.0
        %4824 = vmatpush1.msra.mxu0 0.0
        %4825 = vmatprep.subr.mxu0 0.0
        %4826 = vmatpush1.msra.mxu0 0.0
        %4827 = vmatprep.subr.mxu0 0.0
        %4828 = vmatpush1.msra.mxu0 0.0
        %4829 = vmatprep.subr.mxu0 0.0
        %4830 = vmatpush1.msra.mxu0 0.0
        %4831 = vmatprep.subr.mxu0 0.0
        %4832 = vmatpush1.msra.mxu0 0.0
        %4833 = vmatprep.subr.mxu0 0.0
        %4834 = vmatpush1.msra.mxu0 0.0
        %4835 = vmatprep.subr.mxu0 0.0
        %4836 = vmatpush1.msra.mxu0 0.0
        %4837 = vmatprep.mubr.f32.mxu0 0.0
        %4838 = vmatmul.mubr.f32.gmra.mrb[0].mxu0 %v4768
        %v4839 = vpop.f32.mrb[0].mxu0
        %v4840 = vadd.f32 0.0, %v4839
        %v4841 = vpop.f32.mrb[0].mxu0
        %4842 = vmatprep.mubr.f32.mxu0 0.0
        %4843 = vmatmul.mubr.f32.gmra.mrb[0].mxu0 %v4771
        %v4844 = vpop.f32.mrb[0].mxu0
        %v4845 = vadd.f32 0.0, %v4844
        %v4846 = vpop.f32.mrb[0].mxu0
        %4847 = vdwg.mxu0
        %s4848 = scalar_lea.vmem %s4, 112
        %v4849 = vld [vmem:[%s4848] sm:$0xff]
        %v4850 = vld [vmem:[%s4848 + $0x8] sm:$0xff]
        %v4852 = vsel %vm782, %v4840, 0
        %v4855 = vsel %vm782, %v4845, 0
        %4857 = vmatprep.subr.mxu0 0.0
        %4858 = vmatpush1.msra.mxu0 %v4849
        %4859 = vmatprep.subr.mxu0 0.0
        %4860 = vmatpush1.msra.mxu0 %v4850
        %4861 = vmatprep.subr.mxu0 0.0
        %4862 = vmatpush1.msra.mxu0 0.0
        %4863 = vmatprep.subr.mxu0 0.0
        %4864 = vmatpush1.msra.mxu0 0.0
        %4865 = vmatprep.subr.mxu0 0.0
        %4866 = vmatpush1.msra.mxu0 0.0
        %4867 = vmatprep.subr.mxu0 0.0
        %4868 = vmatpush1.msra.mxu0 0.0
        %4869 = vmatprep.subr.mxu0 0.0
        %4870 = vmatpush1.msra.mxu0 0.0
        %4871 = vmatprep.subr.mxu0 0.0
        %4872 = vmatpush1.msra.mxu0 0.0
        %4873 = vmatprep.subr.mxu0 0.0
        %4874 = vmatpush1.msra.mxu0 0.0
        %4875 = vmatprep.subr.mxu0 0.0
        %4876 = vmatpush1.msra.mxu0 0.0
        %4877 = vmatprep.subr.mxu0 0.0
        %4878 = vmatpush1.msra.mxu0 0.0
        %4879 = vmatprep.subr.mxu0 0.0
        %4880 = vmatpush1.msra.mxu0 0.0
        %4881 = vmatprep.subr.mxu0 0.0
        %4882 = vmatpush1.msra.mxu0 0.0
        %4883 = vmatprep.subr.mxu0 0.0
        %4884 = vmatpush1.msra.mxu0 0.0
        %4885 = vmatprep.subr.mxu0 0.0
        %4886 = vmatpush1.msra.mxu0 0.0
        %4887 = vmatprep.subr.mxu0 0.0
        %4888 = vmatpush1.msra.mxu0 0.0
        %4889 = vmatprep.subr.mxu0 0.0
        %4890 = vmatpush1.msra.mxu0 0.0
        %4891 = vmatprep.subr.mxu0 0.0
        %4892 = vmatpush1.msra.mxu0 0.0
        %4893 = vmatprep.subr.mxu0 0.0
        %4894 = vmatpush1.msra.mxu0 0.0
        %4895 = vmatprep.subr.mxu0 0.0
        %4896 = vmatpush1.msra.mxu0 0.0
        %4897 = vmatprep.subr.mxu0 0.0
        %4898 = vmatpush1.msra.mxu0 0.0
        %4899 = vmatprep.subr.mxu0 0.0
        %4900 = vmatpush1.msra.mxu0 0.0
        %4901 = vmatprep.subr.mxu0 0.0
        %4902 = vmatpush1.msra.mxu0 0.0
        %4903 = vmatprep.subr.mxu0 0.0
        %4904 = vmatpush1.msra.mxu0 0.0
        %4905 = vmatprep.subr.mxu0 0.0
        %4906 = vmatpush1.msra.mxu0 0.0
        %4907 = vmatprep.subr.mxu0 0.0
        %4908 = vmatpush1.msra.mxu0 0.0
        %4909 = vmatprep.subr.mxu0 0.0
        %4910 = vmatpush1.msra.mxu0 0.0
        %4911 = vmatprep.subr.mxu0 0.0
        %4912 = vmatpush1.msra.mxu0 0.0
        %4913 = vmatprep.subr.mxu0 0.0
        %4914 = vmatpush1.msra.mxu0 0.0
        %4915 = vmatprep.subr.mxu0 0.0
        %4916 = vmatpush1.msra.mxu0 0.0
        %4917 = vmatprep.subr.mxu0 0.0
        %4918 = vmatpush1.msra.mxu0 0.0
        %4919 = vmatprep.subr.mxu0 0.0
        %4920 = vmatpush1.msra.mxu0 0.0
        %4921 = vmatprep.mubr.f32.mxu0 0.0
        %4922 = vmatmul.mubr.f32.gmra.mrb[0].mxu0 %v4852
        %v4923 = vpop.f32.mrb[0].mxu0
        %v4924 = vadd.f32 0.0, %v4923
        %v4925 = vpop.f32.mrb[0].mxu0
        %4926 = vmatprep.mubr.f32.mxu0 0.0
        %4927 = vmatmul.mubr.f32.gmra.mrb[0].mxu0 %v4855
        %v4928 = vpop.f32.mrb[0].mxu0
        %v4929 = vadd.f32 0.0, %v4928
        %v4930 = vpop.f32.mrb[0].mxu0
        %4931 = vdwg.mxu0
        %v4932 = vadd.f32 %v4378, %v4924
        %v4933 = vadd.f32 %v4379, %v4929
        %v4934 = vadd.f32 %v466, %v4932
        %v4935 = vadd.f32 %v467, %v4933
        %v4936 = vld [vmem:[%s5] sm:$0x1]
        %v4938 = vlaneseq
        %v4939 = vshrl.u32 %v4938, 7
        %v4940 = vsub.s32 0, %v4939
        %v4941 = vrot.slane %v4936, %v4940
        %v4943 = vadd.f32 %v4934, %v4941
        %v4944 = vadd.f32 %v4935, %v4941
        %v4945 = vld [vmem:[%s12] sm:$0x1]
        %v4946 = vld [vmem:[%s13] sm:$0x1]
        %4947 = vadd.xlane.f32.xlu0 %v4943
        %v4948 = vpop.xlane.xlu0 %4947
        %4949 = vadd.xlane.f32.xlu0 %v4944
        %v4950 = vpop.xlane.xlu0 %4949
        %v4951 = vmul.f32 %v4948, %v474
        %v4952 = vmul.f32 %v4950, %v474
        %v4953 = vsub.f32 %v4943, %v4951
        %v4954 = vsub.f32 %v4944, %v4952
        %v4955 = vmul.f32 %v4953, %v4953
        %v4956 = vmul.f32 %v4954, %v4954
        %4957 = vadd.xlane.f32.xlu0 %v4955
        %v4958 = vpop.xlane.xlu0 %4957
        %4959 = vadd.xlane.f32.xlu0 %v4956
        %v4960 = vpop.xlane.xlu0 %4959
        %v4961 = vmul.f32 %v4958, %v474
        %v4962 = vmul.f32 %v4960, %v474
        %v4963 = vadd.f32 %v4961, 1e-05
        %v4964 = vadd.f32 %v4962, 1e-05
        %v4965 = vrsqrt.pop %v4963
        %v4966 = vrsqrt.pop %v4964
        %v4967 = vmul.f32 %v4953, %v4965
        %v4968 = vmul.f32 %v4954, %v4966
        %v4970 = vlaneseq
        %v4971 = vshrl.u32 %v4970, 7
        %v4972 = vsub.s32 0, %v4971
        %v4973 = vrot.slane %v4945, %v4972
        %v4975 = vmul.f32 %v4967, %v4973
        %v4976 = vmul.f32 %v4968, %v4973
        %v4978 = vlaneseq
        %v4979 = vshrl.u32 %v4978, 7
        %v4980 = vsub.s32 0, %v4979
        %v4981 = vrot.slane %v4946, %v4980
        %v4983 = vadd.f32 %v4975, %v4981
        %v4984 = vadd.f32 %v4976, %v4981
        %v4985 = vld [vmem:[%s6] sm:$0xff]
        %v4986 = vld [vmem:[%s6 + $0x8] sm:$0xff]
        %v4987 = vld [vmem:[%s6 + $0x10] sm:$0xff]
        %v4988 = vld [vmem:[%s6 + $0x18] sm:$0xff]
        %v4989 = vld [vmem:[%s6 + $0x20] sm:$0xff]
        %v4990 = vld [vmem:[%s6 + $0x28] sm:$0xff]
        %v4991 = vld [vmem:[%s6 + $0x30] sm:$0xff]
        %v4992 = vld [vmem:[%s6 + $0x38] sm:$0xff]
        %v4993 = vld [vmem:[%s6 + $0x40] sm:$0xff]
        %v4994 = vld [vmem:[%s6 + $0x48] sm:$0xff]
        %v4995 = vld [vmem:[%s6 + $0x50] sm:$0xff]
        %v4996 = vld [vmem:[%s6 + $0x58] sm:$0xff]
        %v4997 = vld [vmem:[%s6 + $0x60] sm:$0xff]
        %v4998 = vld [vmem:[%s6 + $0x68] sm:$0xff]
        %v4999 = vld [vmem:[%s6 + $0x70] sm:$0xff]
        %v5000 = vld [vmem:[%s6 + $0x78] sm:$0xff]
        %v5001 = vld [vmem:[%s6 + $0x80] sm:$0xff]
        %v5002 = vld [vmem:[%s6 + $0x88] sm:$0xff]
        %v5003 = vld [vmem:[%s6 + $0x90] sm:$0xff]
        %v5004 = vld [vmem:[%s6 + $0x98] sm:$0xff]
        %v5005 = vld [vmem:[%s6 + $0xa0] sm:$0xff]
        %v5006 = vld [vmem:[%s6 + $0xa8] sm:$0xff]
        %v5007 = vld [vmem:[%s6 + $0xb0] sm:$0xff]
        %v5008 = vld [vmem:[%s6 + $0xb8] sm:$0xff]
        %v5009 = vld [vmem:[%s6 + $0xc0] sm:$0xff]
        %v5010 = vld [vmem:[%s6 + $0xc8] sm:$0xff]
        %v5011 = vld [vmem:[%s6 + $0xd0] sm:$0xff]
        %v5012 = vld [vmem:[%s6 + $0xd8] sm:$0xff]
        %v5013 = vld [vmem:[%s6 + $0xe0] sm:$0xff]
        %v5014 = vld [vmem:[%s6 + $0xe8] sm:$0xff]
        %v5015 = vld [vmem:[%s6 + $0xf0] sm:$0xff]
        %v5016 = vld [vmem:[%s6 + $0xf8] sm:$0xff]
        %v5017 = vld [vmem:[%s6 + $0x100] sm:$0xff]
        %v5018 = vld [vmem:[%s6 + $0x108] sm:$0xff]
        %v5019 = vld [vmem:[%s6 + $0x110] sm:$0xff]
        %v5020 = vld [vmem:[%s6 + $0x118] sm:$0xff]
        %v5021 = vld [vmem:[%s6 + $0x120] sm:$0xff]
        %v5022 = vld [vmem:[%s6 + $0x128] sm:$0xff]
        %v5023 = vld [vmem:[%s6 + $0x130] sm:$0xff]
        %v5024 = vld [vmem:[%s6 + $0x138] sm:$0xff]
        %v5025 = vld [vmem:[%s6 + $0x140] sm:$0xff]
        %v5026 = vld [vmem:[%s6 + $0x148] sm:$0xff]
        %v5027 = vld [vmem:[%s6 + $0x150] sm:$0xff]
        %v5028 = vld [vmem:[%s6 + $0x158] sm:$0xff]
        %v5029 = vld [vmem:[%s6 + $0x160] sm:$0xff]
        %v5030 = vld [vmem:[%s6 + $0x168] sm:$0xff]
        %v5031 = vld [vmem:[%s6 + $0x170] sm:$0xff]
        %v5032 = vld [vmem:[%s6 + $0x178] sm:$0xff]
        %v5033 = vld [vmem:[%s6 + $0x180] sm:$0xff]
        %v5034 = vld [vmem:[%s6 + $0x188] sm:$0xff]
        %v5035 = vld [vmem:[%s6 + $0x190] sm:$0xff]
        %v5036 = vld [vmem:[%s6 + $0x198] sm:$0xff]
        %v5037 = vld [vmem:[%s6 + $0x1a0] sm:$0xff]
        %v5038 = vld [vmem:[%s6 + $0x1a8] sm:$0xff]
        %v5039 = vld [vmem:[%s6 + $0x1b0] sm:$0xff]
        %v5040 = vld [vmem:[%s6 + $0x1b8] sm:$0xff]
        %v5041 = vld [vmem:[%s6 + $0x1c0] sm:$0xff]
        %v5042 = vld [vmem:[%s6 + $0x1c8] sm:$0xff]
        %v5043 = vld [vmem:[%s6 + $0x1d0] sm:$0xff]
        %v5044 = vld [vmem:[%s6 + $0x1d8] sm:$0xff]
        %v5045 = vld [vmem:[%s6 + $0x1e0] sm:$0xff]
        %v5046 = vld [vmem:[%s6 + $0x1e8] sm:$0xff]
        %v5047 = vld [vmem:[%s6 + $0x1f0] sm:$0xff]
        %v5048 = vld [vmem:[%s6 + $0x1f8] sm:$0xff]
        %v5049 = vld [vmem:[%s7] sm:$0xf]
        %v5051 = vlaneseq
        %v5052 = vshrl.u32 %v5051, 7
        %v5053 = vsub.s32 0, %v5052
        %v5054 = vrot.slane %v5049, %v5053
        %v5055 = vlaneseq
        %v5056 = vshrl.u32 %v5055, 7
        %v5057 = vsub.s32 1, %v5056
        %v5058 = vrot.slane %v5049, %v5057
        %v5059 = vlaneseq
        %v5060 = vshrl.u32 %v5059, 7
        %v5061 = vsub.s32 2, %v5060
        %v5062 = vrot.slane %v5049, %v5061
        %v5063 = vlaneseq
        %v5064 = vshrl.u32 %v5063, 7
        %v5065 = vsub.s32 3, %v5064
        %v5066 = vrot.slane %v5049, %v5065
        %5071 = vmatprep.subr.mxu0 %v4986
        %5072 = vmatpush1.msra.mxu0 %v4985
        %5073 = vmatprep.subr.mxu0 %v4990
        %5074 = vmatpush1.msra.mxu0 %v4989
        %5075 = vmatprep.subr.mxu0 %v4994
        %5076 = vmatpush1.msra.mxu0 %v4993
        %5077 = vmatprep.subr.mxu0 %v4998
        %5078 = vmatpush1.msra.mxu0 %v4997
        %5079 = vmatprep.subr.mxu0 %v5002
        %5080 = vmatpush1.msra.mxu0 %v5001
        %5081 = vmatprep.subr.mxu0 %v5006
        %5082 = vmatpush1.msra.mxu0 %v5005
        %5083 = vmatprep.subr.mxu0 %v5010
        %5084 = vmatpush1.msra.mxu0 %v5009
        %5085 = vmatprep.subr.mxu0 %v5014
        %5086 = vmatpush1.msra.mxu0 %v5013
        %5087 = vmatprep.subr.mxu0 %v5018
        %5088 = vmatpush1.msra.mxu0 %v5017
        %5089 = vmatprep.subr.mxu0 %v5022
        %5090 = vmatpush1.msra.mxu0 %v5021
        %5091 = vmatprep.subr.mxu0 %v5026
        %5092 = vmatpush1.msra.mxu0 %v5025
        %5093 = vmatprep.subr.mxu0 %v5030
        %5094 = vmatpush1.msra.mxu0 %v5029
        %5095 = vmatprep.subr.mxu0 %v5034
        %5096 = vmatpush1.msra.mxu0 %v5033
        %5097 = vmatprep.subr.mxu0 %v5038
        %5098 = vmatpush1.msra.mxu0 %v5037
        %5099 = vmatprep.subr.mxu0 %v5042
        %5100 = vmatpush1.msra.mxu0 %v5041
        %5101 = vmatprep.subr.mxu0 %v5046
        %5102 = vmatpush1.msra.mxu0 %v5045
        %5103 = vmatprep.subr.mxu0 0.0
        %5104 = vmatpush1.msra.mxu0 0.0
        %5105 = vmatprep.subr.mxu0 0.0
        %5106 = vmatpush1.msra.mxu0 0.0
        %5107 = vmatprep.subr.mxu0 0.0
        %5108 = vmatpush1.msra.mxu0 0.0
        %5109 = vmatprep.subr.mxu0 0.0
        %5110 = vmatpush1.msra.mxu0 0.0
        %5111 = vmatprep.subr.mxu0 0.0
        %5112 = vmatpush1.msra.mxu0 0.0
        %5113 = vmatprep.subr.mxu0 0.0
        %5114 = vmatpush1.msra.mxu0 0.0
        %5115 = vmatprep.subr.mxu0 0.0
        %5116 = vmatpush1.msra.mxu0 0.0
        %5117 = vmatprep.subr.mxu0 0.0
        %5118 = vmatpush1.msra.mxu0 0.0
        %5119 = vmatprep.subr.mxu0 0.0
        %5120 = vmatpush1.msra.mxu0 0.0
        %5121 = vmatprep.subr.mxu0 0.0
        %5122 = vmatpush1.msra.mxu0 0.0
        %5123 = vmatprep.subr.mxu0 0.0
        %5124 = vmatpush1.msra.mxu0 0.0
        %5125 = vmatprep.subr.mxu0 0.0
        %5126 = vmatpush1.msra.mxu0 0.0
        %5127 = vmatprep.subr.mxu0 0.0
        %5128 = vmatpush1.msra.mxu0 0.0
        %5129 = vmatprep.subr.mxu0 0.0
        %5130 = vmatpush1.msra.mxu0 0.0
        %5131 = vmatprep.subr.mxu0 0.0
        %5132 = vmatpush1.msra.mxu0 0.0
        %5133 = vmatprep.subr.mxu0 0.0
        %5134 = vmatpush1.msra.mxu0 0.0
        %5135 = vmatprep.mubr.f32.mxu0 0.0
        %5136 = vmatmul.mubr.f32.gmra.mrb[0].mxu0 %v4983
        %v5137 = vpop.f32.mrb[0].mxu0
        %v5138 = vadd.f32 %v5054, %v5137
        %v5139 = vpop.f32.mrb[0].mxu0
        %v5140 = vadd.f32 %v5058, %v5139
        %5141 = vmatprep.mubr.f32.mxu0 0.0
        %5142 = vmatmul.mubr.f32.gmra.mrb[0].mxu0 %v4984
        %v5143 = vpop.f32.mrb[0].mxu0
        %v5144 = vadd.f32 %v5054, %v5143
        %v5145 = vpop.f32.mrb[0].mxu0
        %v5146 = vadd.f32 %v5058, %v5145
        %5147 = vdwg.mxu0
        %5148 = vmatprep.subr.mxu0 %v4988
        %5149 = vmatpush1.msra.mxu0 %v4987
        %5150 = vmatprep.subr.mxu0 %v4992
        %5151 = vmatpush1.msra.mxu0 %v4991
        %5152 = vmatprep.subr.mxu0 %v4996
        %5153 = vmatpush1.msra.mxu0 %v4995
        %5154 = vmatprep.subr.mxu0 %v5000
        %5155 = vmatpush1.msra.mxu0 %v4999
        %5156 = vmatprep.subr.mxu0 %v5004
        %5157 = vmatpush1.msra.mxu0 %v5003
        %5158 = vmatprep.subr.mxu0 %v5008
        %5159 = vmatpush1.msra.mxu0 %v5007
        %5160 = vmatprep.subr.mxu0 %v5012
        %5161 = vmatpush1.msra.mxu0 %v5011
        %5162 = vmatprep.subr.mxu0 %v5016
        %5163 = vmatpush1.msra.mxu0 %v5015
        %5164 = vmatprep.subr.mxu0 %v5020
        %5165 = vmatpush1.msra.mxu0 %v5019
        %5166 = vmatprep.subr.mxu0 %v5024
        %5167 = vmatpush1.msra.mxu0 %v5023
        %5168 = vmatprep.subr.mxu0 %v5028
        %5169 = vmatpush1.msra.mxu0 %v5027
        %5170 = vmatprep.subr.mxu0 %v5032
        %5171 = vmatpush1.msra.mxu0 %v5031
        %5172 = vmatprep.subr.mxu0 %v5036
        %5173 = vmatpush1.msra.mxu0 %v5035
        %5174 = vmatprep.subr.mxu0 %v5040
        %5175 = vmatpush1.msra.mxu0 %v5039
        %5176 = vmatprep.subr.mxu0 %v5044
        %5177 = vmatpush1.msra.mxu0 %v5043
        %5178 = vmatprep.subr.mxu0 %v5048
        %5179 = vmatpush1.msra.mxu0 %v5047
        %5180 = vmatprep.subr.mxu0 0.0
        %5181 = vmatpush1.msra.mxu0 0.0
        %5182 = vmatprep.subr.mxu0 0.0
        %5183 = vmatpush1.msra.mxu0 0.0
        %5184 = vmatprep.subr.mxu0 0.0
        %5185 = vmatpush1.msra.mxu0 0.0
        %5186 = vmatprep.subr.mxu0 0.0
        %5187 = vmatpush1.msra.mxu0 0.0
        %5188 = vmatprep.subr.mxu0 0.0
        %5189 = vmatpush1.msra.mxu0 0.0
        %5190 = vmatprep.subr.mxu0 0.0
        %5191 = vmatpush1.msra.mxu0 0.0
        %5192 = vmatprep.subr.mxu0 0.0
        %5193 = vmatpush1.msra.mxu0 0.0
        %5194 = vmatprep.subr.mxu0 0.0
        %5195 = vmatpush1.msra.mxu0 0.0
        %5196 = vmatprep.subr.mxu0 0.0
        %5197 = vmatpush1.msra.mxu0 0.0
        %5198 = vmatprep.subr.mxu0 0.0
        %5199 = vmatpush1.msra.mxu0 0.0
        %5200 = vmatprep.subr.mxu0 0.0
        %5201 = vmatpush1.msra.mxu0 0.0
        %5202 = vmatprep.subr.mxu0 0.0
        %5203 = vmatpush1.msra.mxu0 0.0
        %5204 = vmatprep.subr.mxu0 0.0
        %5205 = vmatpush1.msra.mxu0 0.0
        %5206 = vmatprep.subr.mxu0 0.0
        %5207 = vmatpush1.msra.mxu0 0.0
        %5208 = vmatprep.subr.mxu0 0.0
        %5209 = vmatpush1.msra.mxu0 0.0
        %5210 = vmatprep.subr.mxu0 0.0
        %5211 = vmatpush1.msra.mxu0 0.0
        %5212 = vmatprep.mubr.f32.mxu0 0.0
        %5213 = vmatmul.mubr.f32.gmra.mrb[0].mxu0 %v4983
        %v5214 = vpop.f32.mrb[0].mxu0
        %v5215 = vadd.f32 %v5062, %v5214
        %v5216 = vpop.f32.mrb[0].mxu0
        %v5217 = vadd.f32 %v5066, %v5216
        %5218 = vmatprep.mubr.f32.mxu0 0.0
        %5219 = vmatmul.mubr.f32.gmra.mrb[0].mxu0 %v4984
        %v5220 = vpop.f32.mrb[0].mxu0
        %v5221 = vadd.f32 %v5062, %v5220
        %v5222 = vpop.f32.mrb[0].mxu0
        %v5223 = vadd.f32 %v5066, %v5222
        %5224 = vdwg.mxu0
        %v5225 = vmul.f32 %v5138, 0.5
        %v5226 = vmul.f32 %v5140, 0.5
        %v5227 = vmul.f32 %v5215, 0.5
        %v5228 = vmul.f32 %v5217, 0.5
        %v5229 = vmul.f32 %v5144, 0.5
        %v5230 = vmul.f32 %v5146, 0.5
        %v5231 = vmul.f32 %v5221, 0.5
        %v5232 = vmul.f32 %v5223, 0.5
        %v5233 = vmul.f32 %v5138, 0.70710677
        %v5234 = vmul.f32 %v5140, 0.70710677
        %v5235 = vmul.f32 %v5215, 0.70710677
        %v5236 = vmul.f32 %v5217, 0.70710677
        %v5237 = vmul.f32 %v5144, 0.70710677
        %v5238 = vmul.f32 %v5146, 0.70710677
        %v5239 = vmul.f32 %v5221, 0.70710677
        %v5240 = vmul.f32 %v5223, 0.70710677
        %v5241 = verf.f32.pop %v5233
        %v5242 = verf.f32.pop %v5234
        %v5243 = verf.f32.pop %v5235
        %v5244 = verf.f32.pop %v5236
        %v5245 = verf.f32.pop %v5237
        %v5246 = verf.f32.pop %v5238
        %v5247 = verf.f32.pop %v5239
        %v5248 = verf.f32.pop %v5240
        %v5249 = vadd.f32 %v5241, 1.0
        %v5250 = vadd.f32 %v5242, 1.0
        %v5251 = vadd.f32 %v5243, 1.0
        %v5252 = vadd.f32 %v5244, 1.0
        %v5253 = vadd.f32 %v5245, 1.0
        %v5254 = vadd.f32 %v5246, 1.0
        %v5255 = vadd.f32 %v5247, 1.0
        %v5256 = vadd.f32 %v5248, 1.0
        %v5257 = vmul.f32 %v5225, %v5249
        %v5258 = vmul.f32 %v5226, %v5250
        %v5259 = vmul.f32 %v5227, %v5251
        %v5260 = vmul.f32 %v5228, %v5252
        %v5261 = vmul.f32 %v5229, %v5253
        %v5262 = vmul.f32 %v5230, %v5254
        %v5263 = vmul.f32 %v5231, %v5255
        %v5264 = vmul.f32 %v5232, %v5256
        %v5265 = vld [vmem:[%s8] sm:$0xff]
        %v5266 = vld [vmem:[%s8 + $0x8] sm:$0xff]
        %v5267 = vld [vmem:[%s8 + $0x10] sm:$0xff]
        %v5268 = vld [vmem:[%s8 + $0x18] sm:$0xff]
        %v5269 = vld [vmem:[%s8 + $0x20] sm:$0xff]
        %v5270 = vld [vmem:[%s8 + $0x28] sm:$0xff]
        %v5271 = vld [vmem:[%s8 + $0x30] sm:$0xff]
        %v5272 = vld [vmem:[%s8 + $0x38] sm:$0xff]
        %v5273 = vld [vmem:[%s8 + $0x40] sm:$0xff]
        %v5274 = vld [vmem:[%s8 + $0x48] sm:$0xff]
        %v5275 = vld [vmem:[%s8 + $0x50] sm:$0xff]
        %v5276 = vld [vmem:[%s8 + $0x58] sm:$0xff]
        %v5277 = vld [vmem:[%s8 + $0x60] sm:$0xff]
        %v5278 = vld [vmem:[%s8 + $0x68] sm:$0xff]
        %v5279 = vld [vmem:[%s8 + $0x70] sm:$0xff]
        %v5280 = vld [vmem:[%s8 + $0x78] sm:$0xff]
        %v5281 = vld [vmem:[%s8 + $0x80] sm:$0xff]
        %v5282 = vld [vmem:[%s8 + $0x88] sm:$0xff]
        %v5283 = vld [vmem:[%s8 + $0x90] sm:$0xff]
        %v5284 = vld [vmem:[%s8 + $0x98] sm:$0xff]
        %v5285 = vld [vmem:[%s8 + $0xa0] sm:$0xff]
        %v5286 = vld [vmem:[%s8 + $0xa8] sm:$0xff]
        %v5287 = vld [vmem:[%s8 + $0xb0] sm:$0xff]
        %v5288 = vld [vmem:[%s8 + $0xb8] sm:$0xff]
        %v5289 = vld [vmem:[%s8 + $0xc0] sm:$0xff]
        %v5290 = vld [vmem:[%s8 + $0xc8] sm:$0xff]
        %v5291 = vld [vmem:[%s8 + $0xd0] sm:$0xff]
        %v5292 = vld [vmem:[%s8 + $0xd8] sm:$0xff]
        %v5293 = vld [vmem:[%s8 + $0xe0] sm:$0xff]
        %v5294 = vld [vmem:[%s8 + $0xe8] sm:$0xff]
        %v5295 = vld [vmem:[%s8 + $0xf0] sm:$0xff]
        %v5296 = vld [vmem:[%s8 + $0xf8] sm:$0xff]
        %v5297 = vld [vmem:[%s8 + $0x100] sm:$0xff]
        %v5298 = vld [vmem:[%s8 + $0x108] sm:$0xff]
        %v5299 = vld [vmem:[%s8 + $0x110] sm:$0xff]
        %v5300 = vld [vmem:[%s8 + $0x118] sm:$0xff]
        %v5301 = vld [vmem:[%s8 + $0x120] sm:$0xff]
        %v5302 = vld [vmem:[%s8 + $0x128] sm:$0xff]
        %v5303 = vld [vmem:[%s8 + $0x130] sm:$0xff]
        %v5304 = vld [vmem:[%s8 + $0x138] sm:$0xff]
        %v5305 = vld [vmem:[%s8 + $0x140] sm:$0xff]
        %v5306 = vld [vmem:[%s8 + $0x148] sm:$0xff]
        %v5307 = vld [vmem:[%s8 + $0x150] sm:$0xff]
        %v5308 = vld [vmem:[%s8 + $0x158] sm:$0xff]
        %v5309 = vld [vmem:[%s8 + $0x160] sm:$0xff]
        %v5310 = vld [vmem:[%s8 + $0x168] sm:$0xff]
        %v5311 = vld [vmem:[%s8 + $0x170] sm:$0xff]
        %v5312 = vld [vmem:[%s8 + $0x178] sm:$0xff]
        %v5313 = vld [vmem:[%s8 + $0x180] sm:$0xff]
        %v5314 = vld [vmem:[%s8 + $0x188] sm:$0xff]
        %v5315 = vld [vmem:[%s8 + $0x190] sm:$0xff]
        %v5316 = vld [vmem:[%s8 + $0x198] sm:$0xff]
        %v5317 = vld [vmem:[%s8 + $0x1a0] sm:$0xff]
        %v5318 = vld [vmem:[%s8 + $0x1a8] sm:$0xff]
        %v5319 = vld [vmem:[%s8 + $0x1b0] sm:$0xff]
        %v5320 = vld [vmem:[%s8 + $0x1b8] sm:$0xff]
        %v5321 = vld [vmem:[%s8 + $0x1c0] sm:$0xff]
        %v5322 = vld [vmem:[%s8 + $0x1c8] sm:$0xff]
        %v5323 = vld [vmem:[%s8 + $0x1d0] sm:$0xff]
        %v5324 = vld [vmem:[%s8 + $0x1d8] sm:$0xff]
        %v5325 = vld [vmem:[%s8 + $0x1e0] sm:$0xff]
        %v5326 = vld [vmem:[%s8 + $0x1e8] sm:$0xff]
        %v5327 = vld [vmem:[%s8 + $0x1f0] sm:$0xff]
        %v5328 = vld [vmem:[%s8 + $0x1f8] sm:$0xff]
        %v5329 = vld [vmem:[%s9] sm:$0x1]
        %v5331 = vlaneseq
        %v5332 = vshrl.u32 %v5331, 7
        %v5333 = vsub.s32 0, %v5332
        %v5334 = vrot.slane %v5329, %v5333
        %5336 = vmatprep.subr.mxu0 0.0
        %5337 = vmatpush1.msra.mxu0 %v5265
        %5338 = vmatprep.subr.mxu0 0.0
        %5339 = vmatpush1.msra.mxu0 %v5266
        %5340 = vmatprep.subr.mxu0 0.0
        %5341 = vmatpush1.msra.mxu0 %v5267
        %5342 = vmatprep.subr.mxu0 0.0
        %5343 = vmatpush1.msra.mxu0 %v5268
        %5344 = vmatprep.subr.mxu0 0.0
        %5345 = vmatpush1.msra.mxu0 %v5269
        %5346 = vmatprep.subr.mxu0 0.0
        %5347 = vmatpush1.msra.mxu0 %v5270
        %5348 = vmatprep.subr.mxu0 0.0
        %5349 = vmatpush1.msra.mxu0 %v5271
        %5350 = vmatprep.subr.mxu0 0.0
        %5351 = vmatpush1.msra.mxu0 %v5272
        %5352 = vmatprep.subr.mxu0 0.0
        %5353 = vmatpush1.msra.mxu0 %v5273
        %5354 = vmatprep.subr.mxu0 0.0
        %5355 = vmatpush1.msra.mxu0 %v5274
        %5356 = vmatprep.subr.mxu0 0.0
        %5357 = vmatpush1.msra.mxu0 %v5275
        %5358 = vmatprep.subr.mxu0 0.0
        %5359 = vmatpush1.msra.mxu0 %v5276
        %5360 = vmatprep.subr.mxu0 0.0
        %5361 = vmatpush1.msra.mxu0 %v5277
        %5362 = vmatprep.subr.mxu0 0.0
        %5363 = vmatpush1.msra.mxu0 %v5278
        %5364 = vmatprep.subr.mxu0 0.0
        %5365 = vmatpush1.msra.mxu0 %v5279
        %5366 = vmatprep.subr.mxu0 0.0
        %5367 = vmatpush1.msra.mxu0 %v5280
        %5368 = vmatprep.subr.mxu0 0.0
        %5369 = vmatpush1.msra.mxu0 %v5281
        %5370 = vmatprep.subr.mxu0 0.0
        %5371 = vmatpush1.msra.mxu0 %v5282
        %5372 = vmatprep.subr.mxu0 0.0
        %5373 = vmatpush1.msra.mxu0 %v5283
        %5374 = vmatprep.subr.mxu0 0.0
        %5375 = vmatpush1.msra.mxu0 %v5284
        %5376 = vmatprep.subr.mxu0 0.0
        %5377 = vmatpush1.msra.mxu0 %v5285
        %5378 = vmatprep.subr.mxu0 0.0
        %5379 = vmatpush1.msra.mxu0 %v5286
        %5380 = vmatprep.subr.mxu0 0.0
        %5381 = vmatpush1.msra.mxu0 %v5287
        %5382 = vmatprep.subr.mxu0 0.0
        %5383 = vmatpush1.msra.mxu0 %v5288
        %5384 = vmatprep.subr.mxu0 0.0
        %5385 = vmatpush1.msra.mxu0 %v5289
        %5386 = vmatprep.subr.mxu0 0.0
        %5387 = vmatpush1.msra.mxu0 %v5290
        %5388 = vmatprep.subr.mxu0 0.0
        %5389 = vmatpush1.msra.mxu0 %v5291
        %5390 = vmatprep.subr.mxu0 0.0
        %5391 = vmatpush1.msra.mxu0 %v5292
        %5392 = vmatprep.subr.mxu0 0.0
        %5393 = vmatpush1.msra.mxu0 %v5293
        %5394 = vmatprep.subr.mxu0 0.0
        %5395 = vmatpush1.msra.mxu0 %v5294
        %5396 = vmatprep.subr.mxu0 0.0
        %5397 = vmatpush1.msra.mxu0 %v5295
        %5398 = vmatprep.subr.mxu0 0.0
        %5399 = vmatpush1.msra.mxu0 %v5296
        %5400 = vmatprep.mubr.f32.mxu0 %v5258
        %5401 = vmatmul.mubr.f32.gmra.mrb[0].mxu0 %v5257
        %v5402 = vpop.f32.mrb[0].mxu0
        %v5403 = vadd.f32 %v5334, %v5402
        %v5404 = vpop.f32.mrb[0].mxu0
        %5405 = vmatprep.mubr.f32.mxu0 %v5262
        %5406 = vmatmul.mubr.f32.gmra.mrb[0].mxu0 %v5261
        %v5407 = vpop.f32.mrb[0].mxu0
        %v5408 = vadd.f32 %v5334, %v5407
        %v5409 = vpop.f32.mrb[0].mxu0
        %5410 = vdwg.mxu0
        %5411 = vmatprep.subr.mxu0 0.0
        %5412 = vmatpush1.msra.mxu0 %v5297
        %5413 = vmatprep.subr.mxu0 0.0
        %5414 = vmatpush1.msra.mxu0 %v5298
        %5415 = vmatprep.subr.mxu0 0.0
        %5416 = vmatpush1.msra.mxu0 %v5299
        %5417 = vmatprep.subr.mxu0 0.0
        %5418 = vmatpush1.msra.mxu0 %v5300
        %5419 = vmatprep.subr.mxu0 0.0
        %5420 = vmatpush1.msra.mxu0 %v5301
        %5421 = vmatprep.subr.mxu0 0.0
        %5422 = vmatpush1.msra.mxu0 %v5302
        %5423 = vmatprep.subr.mxu0 0.0
        %5424 = vmatpush1.msra.mxu0 %v5303
        %5425 = vmatprep.subr.mxu0 0.0
        %5426 = vmatpush1.msra.mxu0 %v5304
        %5427 = vmatprep.subr.mxu0 0.0
        %5428 = vmatpush1.msra.mxu0 %v5305
        %5429 = vmatprep.subr.mxu0 0.0
        %5430 = vmatpush1.msra.mxu0 %v5306
        %5431 = vmatprep.subr.mxu0 0.0
        %5432 = vmatpush1.msra.mxu0 %v5307
        %5433 = vmatprep.subr.mxu0 0.0
        %5434 = vmatpush1.msra.mxu0 %v5308
        %5435 = vmatprep.subr.mxu0 0.0
        %5436 = vmatpush1.msra.mxu0 %v5309
        %5437 = vmatprep.subr.mxu0 0.0
        %5438 = vmatpush1.msra.mxu0 %v5310
        %5439 = vmatprep.subr.mxu0 0.0
        %5440 = vmatpush1.msra.mxu0 %v5311
        %5441 = vmatprep.subr.mxu0 0.0
        %5442 = vmatpush1.msra.mxu0 %v5312
        %5443 = vmatprep.subr.mxu0 0.0
        %5444 = vmatpush1.msra.mxu0 %v5313
        %5445 = vmatprep.subr.mxu0 0.0
        %5446 = vmatpush1.msra.mxu0 %v5314
        %5447 = vmatprep.subr.mxu0 0.0
        %5448 = vmatpush1.msra.mxu0 %v5315
        %5449 = vmatprep.subr.mxu0 0.0
        %5450 = vmatpush1.msra.mxu0 %v5316
        %5451 = vmatprep.subr.mxu0 0.0
        %5452 = vmatpush1.msra.mxu0 %v5317
        %5453 = vmatprep.subr.mxu0 0.0
        %5454 = vmatpush1.msra.mxu0 %v5318
        %5455 = vmatprep.subr.mxu0 0.0
        %5456 = vmatpush1.msra.mxu0 %v5319
        %5457 = vmatprep.subr.mxu0 0.0
        %5458 = vmatpush1.msra.mxu0 %v5320
        %5459 = vmatprep.subr.mxu0 0.0
        %5460 = vmatpush1.msra.mxu0 %v5321
        %5461 = vmatprep.subr.mxu0 0.0
        %5462 = vmatpush1.msra.mxu0 %v5322
        %5463 = vmatprep.subr.mxu0 0.0
        %5464 = vmatpush1.msra.mxu0 %v5323
        %5465 = vmatprep.subr.mxu0 0.0
        %5466 = vmatpush1.msra.mxu0 %v5324
        %5467 = vmatprep.subr.mxu0 0.0
        %5468 = vmatpush1.msra.mxu0 %v5325
        %5469 = vmatprep.subr.mxu0 0.0
        %5470 = vmatpush1.msra.mxu0 %v5326
        %5471 = vmatprep.subr.mxu0 0.0
        %5472 = vmatpush1.msra.mxu0 %v5327
        %5473 = vmatprep.subr.mxu0 0.0
        %5474 = vmatpush1.msra.mxu0 %v5328
        %5475 = vmatprep.mubr.f32.mxu0 %v5260
        %5476 = vmatmul.mubr.f32.gmra.mrb[0].mxu0 %v5259
        %v5477 = vpop.f32.mrb[0].mxu0
        %v5478 = vadd.f32 %v5403, %v5477
        %v5479 = vpop.f32.mrb[0].mxu0
        %5480 = vmatprep.mubr.f32.mxu0 %v5264
        %5481 = vmatmul.mubr.f32.gmra.mrb[0].mxu0 %v5263
        %v5482 = vpop.f32.mrb[0].mxu0
        %v5483 = vadd.f32 %v5408, %v5482
        %v5484 = vpop.f32.mrb[0].mxu0
        %5485 = vdwg.mxu0
        %v5486 = vadd.f32 %v4943, %v5478
        %v5487 = vadd.f32 %v4944, %v5483
        %5488 = vst [vmem:[%s460] sm:$0xff] %v5486
        %5489 = vst [vmem:[%s460 + $0x8] sm:$0xff] %v5487
        %s5490 = sand.u32 %s335, 1
        %s5491 = scalar_lea.sflag [#allocation3], %s5490
        %s5492 = sand.u32 %s335, 1
        %s5493 = smul.addr %s5492, 16
        %s5494 = scalar_lea.vmem [#allocation2], %s5493
        // Predicated region
        $region77: #{tpu_custom_call.1} parent=75 // pred_check
          %p5495 = pneg %p345
        $region78: #{tpu_custom_call.1} parent=75 // pred_check_branch
          %5497 = sbr.rel (%p5495) target = $region80
        $region79: #{tpu_custom_call.1} parent=75 // pred_region
          %s5499 = ssub.s32 256, 256
          %5500 = vsyncadd %s5491, %s5499
          %s5501 = smul.addr %s28, 2
          %s5502 = smul.addr %s5501, 128
          %s5503 = scalar_lea.hbm %s14, %s5502
          %s5504 = sshll.u32 %s5494, 4
          %s5505 = int_to_ptr.vmem [resolvable:$true] %s5504
          %5510 = dma.vmem_to_hbm [thread:$0]  %s5505, 256, %s5503, %s5491, 128, 128, 8
        $region80: #{tpu_custom_call.1} parent=75 // pred_fallthru
          _
      $region76: #{tpu_custom_call.1} parent=5 // pred_fallthru
        _
      %p5511 = scmp.le.s32.totalorder 2, %s23
      // Predicated region
      $region81: #{tpu_custom_call.1} parent=5 // pred_check
        %p5512 = pneg %p5511
      $region82: #{tpu_custom_call.1} parent=5 // pred_check_branch
        %5514 = sbr.rel (%p5512) target = $region84
      $region83: #{tpu_custom_call.1} parent=5 // pred_region
        %s5515 = ssub.s32 %s23, 2
        // Predicated region
        $region85: #{tpu_custom_call.1} parent=83 // pred_check
          %p5516 = pneg %p351
        $region86: #{tpu_custom_call.1} parent=83 // pred_check_branch
          %5518 = sbr.rel (%p5516) target = $region88
        $region87: #{tpu_custom_call.1} parent=83 // pred_region
          %s5519 = sand.u32 %s336, 1
          %s5520 = scalar_lea.sflag [#allocation3], %s5519
          %s5521 = sand.u32 %s336, 1
          %s5522 = smul.addr %s5521, 16
          %s5523 = scalar_lea.vmem [#allocation2], %s5522
          %5524 = dma.done %s5520, 256
        $region88: #{tpu_custom_call.1} parent=83 // pred_fallthru
          _
      $region84: #{tpu_custom_call.1} parent=5 // pred_fallthru
        _
    $region6: #{tpu_custom_call.1} parent=1 // loop_footer
      %s27 = sadd.s32 1, %s23
    $region7: #{tpu_custom_call.1} parent=1 // loop_footer_branch
      %22 = sbr.rel target = $region3
    $region8: #{tpu_custom_call.1} parent=1 // loop_exit
      _
    %5525 = vsyncpa [#allocation3], 1
    %s5526 = scalar_lea.sflag [#allocation3], 1
    %5527 = vsyncpa %s5526, 1

</llo_original>
